<compile_context>
chip_gen: v5e
topology: v5e:2x2
jax: 0.10.0
libtpu: 0.0.40
codegen_flags: <defaults>
</compile_context>

<pallas_src>
import functools
import numpy as np
import jax
import jax.numpy as jnp
from jax import lax
from jax.experimental import pallas as pl
from jax.experimental.pallas import tpu as pltpu


def _pick_block(n, target):
    """Largest node tile <= target that divides n and is a multiple of 8."""
    target = max(8, min(target, n))
    for b in range(target, 7, -1):
        if n % b == 0 and b % 8 == 0:
            return b
    return n


# ----------------------------------------------------------------------------
# Kernel 1 (fused front end): pca linear+bias -> per-capsule LayerNorm (q path)
# -> block-diagonal q/k projections -> scaled-dot softmax -> off-diagonal
# attention row sums, plus relu(residual).  All math is full-width (bn, d) slab
# math; per-capsule reductions use the segment matrix S on the MXU.
# ----------------------------------------------------------------------------
def _frontend_kernel(x_ref, w_ref, b_ref, g_ref, bt_ref, wq_ref, wk_ref,
                     s_ref, e_ref, xr_ref, sum_ref, *, k, h, inv_t):
    S = s_ref[...]                                              # (d, k) 0/1 segments
    E = e_ref[...]                                              # (k, d) = S.T
    rep = (jnp.dot(x_ref[...], w_ref[...], preferred_element_type=jnp.float32)
           + b_ref[...])                                        # (bn, d)
    inv_h = 1.0 / h

    # per-capsule LayerNorm of the q path (slab form).
    mu = jnp.dot(rep, S, preferred_element_type=jnp.float32) * inv_h        # (bn, k)
    cen = rep - jnp.dot(mu, E, preferred_element_type=jnp.float32)          # (bn, d)
    var = jnp.dot(cen * cen, S, preferred_element_type=jnp.float32) * inv_h # (bn, k)
    istd = lax.rsqrt(var + 1e-6)
    ln = (cen * jnp.dot(istd, E, preferred_element_type=jnp.float32)
          * g_ref[...] + bt_ref[...])                                       # (bn, d)

    # fused block-diagonal projections (one matmul per path).
    q = jnp.dot(ln, wq_ref[...], preferred_element_type=jnp.float32)        # (bn, d)
    kk = jnp.dot(rep, wk_ref[...], preferred_element_type=jnp.float32)      # (bn, d)

    bn = rep.shape[0]
    ssum = jnp.zeros((bn, 1), jnp.float32)
    for a in range(k):                                          # k = #query capsules (small)
        qa = q[:, a * h:(a + 1) * h]                            # (bn, h)
        qa_t = jnp.concatenate([qa] * k, axis=1)                # (bn, d), capsule-a tiled
        sc = jnp.dot(qa_t * kk, S, preferred_element_type=jnp.float32) * inv_t  # (bn, k)
        sc = sc - jnp.max(sc, axis=1, keepdims=True)
        e = jnp.exp(sc)
        denom = jnp.sum(e, axis=1, keepdims=True)
        # off-diagonal softmax mass for query capsule a = (rowsum - diag) / rowsum
        ssum = ssum + (denom - e[:, a:a + 1]) / denom

    xr_ref[...] = jnp.maximum(rep, 0.0)                         # relu(residual)
    sum_ref[...] = ssum                                         # (bn, 1)


def frontend(x, pca_w, pca_b, gamma, beta, wq_blk, wk_blk, S, E,
             ncaps, nhid, block_target=1024):
    n, nfeat = x.shape
    d = ncaps * nhid
    bn = _pick_block(n, min(block_target, max(8, n // 2)))      # >=2 grid steps (v7x)
    kern = functools.partial(_frontend_kernel, k=ncaps, h=nhid,
                             inv_t=float(1.0 / np.sqrt(nhid)))
    # TODO(synk): for very wide nfeat, tile the reduction axis of the pca matmul
    # (extra "arbitrary" grid axis + f32 VMEM accumulator).
    return pl.pallas_call(
        kern,
        out_shape=(jax.ShapeDtypeStruct((n, d), jnp.float32),
                   jax.ShapeDtypeStruct((n, 1), jnp.float32)),
        grid=(n // bn,),
        in_specs=[pl.BlockSpec((bn, nfeat), lambda i: (i, 0)),
                  pl.BlockSpec((nfeat, d), lambda i: (0, 0)),
                  pl.BlockSpec((1, d), lambda i: (0, 0)),
                  pl.BlockSpec((1, d), lambda i: (0, 0)),
                  pl.BlockSpec((1, d), lambda i: (0, 0)),
                  pl.BlockSpec((d, d), lambda i: (0, 0)),
                  pl.BlockSpec((d, d), lambda i: (0, 0)),
                  pl.BlockSpec((d, ncaps), lambda i: (0, 0)),
                  pl.BlockSpec((ncaps, d), lambda i: (0, 0))],
        out_specs=(pl.BlockSpec((bn, d), lambda i: (i, 0)),
                   pl.BlockSpec((bn, 1), lambda i: (i, 0))),
        compiler_params=pltpu.CompilerParams(dimension_semantics=("parallel",)),
    )(x, pca_w, pca_b, gamma, beta, wq_blk, wk_blk, S, E)


# ----------------------------------------------------------------------------
# Kernel 2 (fused routing layer).
#   - x (layer input) is VMEM-resident (constant index_map); the node tile is a
#     dynamic slice of it, and neighbor rows are gathered with dynamic VMEM row
#     loads using scalar-prefetched (SMEM) neighbor ids.  No HBM row DMAs.
#   - invalid neighbors (-1) are handled by multiplying the gathered slab with a
#     per-neighbor validity mask (no per-layer zero-row concatenation).
#   - capsule L2 norms / routing logits / p-expansion are all (bn, d) slab ops
#     with segment-sum matmuls (S, E).
# ----------------------------------------------------------------------------
def _routing_kernel(nb_ref, x_ref, mask_ref, s_ref, e_ref, *refs,
                    n, bn, m, k, h, max_iter, last):
    if last:
        u_ref, xn_ref, p_ref, zbuf = refs
    else:
        y_ref, zbuf = refs
    S = s_ref[...]                                              # (d, k)
    E = e_ref[...]                                              # (k, d)

    def caps_norm(v):                                           # per-capsule L2 normalize
        ss = jnp.dot(v * v, S, preferred_element_type=jnp.float32)      # (bn, k)
        inv = 1.0 / jnp.maximum(jnp.sqrt(ss), 1e-12)
        return v * jnp.dot(inv, E, preferred_element_type=jnp.float32)

    base = pl.multiple_of(pl.program_id(0) * bn, bn)

    # 1) gather neighbor rows from the VMEM-resident activation (neighbor-major ids).
    for j in range(m):
        off = j * n
        @pl.loop(0, bn)
        def _gather(r):
            idx = nb_ref[off + base + r]                        # already clamped >= 0
            zbuf[j, pl.ds(r, 1), :] = x_ref[pl.ds(idx, 1), :]

    # 2) normalize own capsules + masked/normalized neighbor slabs (written back).
    xt = x_ref[pl.ds(base, bn), :]                              # (bn, d)
    xn = caps_norm(xt)
    mask = mask_ref[...]                                        # (bn, m), 1 = valid
    for j in range(m):
        zbuf[j, :, :] = caps_norm(zbuf[j, :, :] * mask[:, j:j + 1])

    # 3) routing iterations in (bn, d) slab form.
    inv_k = 1.0 / k
    ps = [jnp.full((bn, k), inv_k, jnp.float32)] * m            # softmax(0) = uniform
    zsum = zbuf[0, :, :]
    for j in range(1, m):
        zsum = zsum + zbuf[j, :, :]
    u = xn + zsum * inv_k                                       # iteration 0
    if max_iter > 1:
        u = caps_norm(u)
    for it in range(1, max_iter):
        unew = xn
        ps = []
        for j in range(m):
            zj = zbuf[j, :, :]
            logits = jnp.dot(zj * u, S, preferred_element_type=jnp.float32)  # (bn, k)
            # |logits| <= 1 (dot of per-capsule unit vectors) -> exp is stable.
            e = jnp.exp(logits)
            p = e / jnp.sum(e, axis=1, keepdims=True)
            ps.append(p)
            unew = unew + zj * jnp.dot(p, E, preferred_element_type=jnp.float32)
        u = unew
        if it < max_iter - 1:
            u = caps_norm(u)

    if last:
        u_ref[...] = u                                          # (bn, d)
        xn_ref[...] = xn                                        # (bn, d)
        p_ref[...] = jnp.concatenate(ps, axis=1)                # (bn, m*k), j-major
    else:
        y_ref[...] = jnp.maximum(u, 0.0)                        # relu; dropout = id


def routing_layer(x_flat, nb_t_safe, mask, S, E, ncaps, m, routit, last,
                  block_target=256):
    n, d = x_flat.shape
    k = ncaps
    h = d // k
    bn = _pick_block(n, min(block_target, max(8, n // 2)))      # >=2 grid steps (v7x)
    # TODO(synk): nb ids are scalar-prefetched into SMEM; for very large graphs
    # (n*m beyond SMEM capacity) switch to per-tile SMEM BlockSpec chunks.
    kern = functools.partial(_routing_kernel, n=n, bn=bn, m=m, k=k, h=h,
                             max_iter=routit, last=last)
    if last:
        out_shape = (jax.ShapeDtypeStruct((n, d), jnp.float32),
                     jax.ShapeDtypeStruct((n, d), jnp.float32),
                     jax.ShapeDtypeStruct((n, m * k), jnp.float32))
        out_specs = (pl.BlockSpec((bn, d), lambda i, nb: (i, 0)),
                     pl.BlockSpec((bn, d), lambda i, nb: (i, 0)),
                     pl.BlockSpec((bn, m * k), lambda i, nb: (i, 0)))
    else:
        out_shape = jax.ShapeDtypeStruct((n, d), jnp.float32)
        out_specs = pl.BlockSpec((bn, d), lambda i, nb: (i, 0))

    grid_spec = pltpu.PrefetchScalarGridSpec(
        num_scalar_prefetch=1,
        grid=(n // bn,),
        in_specs=[pl.BlockSpec((n, d), lambda i, nb: (0, 0)),   # x resident in VMEM
                  pl.BlockSpec((bn, m), lambda i, nb: (i, 0)),  # validity mask tile
                  pl.BlockSpec((d, k), lambda i, nb: (0, 0)),   # S
                  pl.BlockSpec((k, d), lambda i, nb: (0, 0))],  # E
        out_specs=out_specs,
        scratch_shapes=[pltpu.VMEM((m, bn, d), jnp.float32)])

    # explicit VMEM budget (kept well under v7x's 64 MiB physical VMEM).
    est = 4 * (n * d + m * bn * d + 2 * bn * (m + 2 * d + m * k) + 4 * d * k)
    vmem_limit = int(min(48 * 2 ** 20, max(32 * 2 ** 20, 4 * est)))

    return pl.pallas_call(
        kern, out_shape=out_shape, grid_spec=grid_spec,
        compiler_params=pltpu.CompilerParams(dimension_semantics=("parallel",),
                                             vmem_limit_bytes=vmem_limit),
    )(nb_t_safe, x_flat, mask, S, E)


# ----------------------------------------------------------------------------
# Last-layer meta-path aggregation (2-hop neighbor-of-neighbor gather), kept in
# XLA but restructured as a numerically-identical two-stage mean:
#   stage 1: M1[j, f] = mean over cut second-hop neighbors of x capsule j
#   stage 2: agg[v, i] = mean over cut first-hop neighbors of sum_j M1[j, .]
# TODO(synk): an in-kernel scalar-prefetched DMA gather would be the next step.
# ----------------------------------------------------------------------------
def meta_aggregate(x_norm, p, nb, ncaps, cut=5):
    n, d = x_norm.shape
    k = ncaps
    dd = d // k
    m = nb.shape[1]
    assert m >= cut

    nei_mask = (nb >= 0).astype(jnp.int32)
    p1 = jnp.argmax(p, axis=2)                                   # (n, m)
    A = jax.nn.one_hot(p1, k, dtype=jnp.int32) * nei_mask[:, :, None]      # (n, m, k)
    At = jnp.transpose(A, (2, 0, 1))                             # (k, n, m)
    B = At * nb[None, :, :] + (At - 1)                           # (k, n, m); -1 = invalid
    B = jnp.concatenate([B, jnp.full((k, 1, m), -1, B.dtype)], axis=1)     # (k, n+1, m)
    Bc = B[:, :, :cut]                                           # (k, n+1, cut)
    Bc = jnp.where(Bc < 0, n, Bc)                                # -1 -> zero row index

    x_c = jnp.concatenate([x_norm, jnp.zeros((1, d), x_norm.dtype)], axis=0)
    x_cj = jnp.transpose(x_c.reshape(n + 1, k, dd), (1, 0, 2))   # (k, n+1, dd)

    M1 = jax.vmap(lambda xc, idx: xc[idx])(x_cj, Bc)             # (k, n+1, cut, dd)
    M1 = jnp.mean(M1, axis=2)                                    # (k, n+1, dd)
    Msum = jnp.sum(M1, axis=0)                                   # (n+1, dd)

    F = Bc[:, :n, :]                                             # (k, n, cut)
    agg = jnp.mean(Msum[F], axis=2)                              # (k, n, dd)
    return jnp.transpose(agg, (1, 0, 2)).reshape(n, d)           # (n, d)


# ----------------------------------------------------------------------------
# Kernel 3 (fused head): meta = u + agg -> relu -> linear+bias -> log_softmax.
# ----------------------------------------------------------------------------
def _head_kernel(u_ref, a_ref, w_ref, b_ref, logp_ref, logit_ref):
    meta = jnp.maximum(u_ref[...] + a_ref[...], 0.0)             # relu; dropout = id
    logits = (jnp.dot(meta, w_ref[...], preferred_element_type=jnp.float32)
              + b_ref[...])
    mx = jnp.max(logits, axis=1, keepdims=True)
    lse = jnp.log(jnp.sum(jnp.exp(logits - mx), axis=1, keepdims=True)) + mx
    logp_ref[...] = logits - lse
    logit_ref[...] = logits


def head(u, agg, mlp_w, mlp_b, block_target=1024):
    n, d = u.shape
    nclass = mlp_w.shape[1]
    bn = _pick_block(n, min(block_target, max(8, n // 2)))
    return pl.pallas_call(
        _head_kernel,
        out_shape=(jax.ShapeDtypeStruct((n, nclass), jnp.float32),
                   jax.ShapeDtypeStruct((n, nclass), jnp.float32)),
        grid=(n // bn,),
        in_specs=[pl.BlockSpec((bn, d), lambda i: (i, 0)),
                  pl.BlockSpec((bn, d), lambda i: (i, 0)),
                  pl.BlockSpec((d, nclass), lambda i: (0, 0)),
                  pl.BlockSpec((1, nclass), lambda i: (0, 0))],
        out_specs=(pl.BlockSpec((bn, nclass), lambda i: (i, 0)),
                   pl.BlockSpec((bn, nclass), lambda i: (i, 0))),
        compiler_params=pltpu.CompilerParams(dimension_semantics=("parallel",)),
    )(u, agg, mlp_w, mlp_b)


# ----------------------------------------------------------------------------
# CapsuleNet forward
# ----------------------------------------------------------------------------
def capsule_net_forward(x, nb, params, hp):
    n = x.shape[0]
    k, h = hp["ncaps"], hp["nhidden"]
    d = k * h
    m = nb.shape[1]

    # segment-sum (d, k) / expand (k, d) constants and block-diagonal q/k weights.
    S = jnp.asarray(np.kron(np.eye(k, dtype=np.float32),
                            np.ones((h, 1), np.float32)))       # (d, k)
    E = S.T                                                     # (k, d)
    eye_k = jnp.eye(k, dtype=jnp.float32)
    wq_blk = jnp.kron(eye_k, params["wq"])                      # (d, d)
    wk_blk = jnp.kron(eye_k, params["wk"])                      # (d, d)
    gamma_full = jnp.tile(params["ln_g"], (1, k))               # (1, d)
    beta_full = jnp.tile(params["ln_b"], (1, k))                # (1, d)

    x_relu, attn_rowsum = frontend(x, params["pca_w"], params["pca_b"],
                                   gamma_full, beta_full, wq_blk, wk_blk,
                                   S, E, k, h)
    attn_loss = jnp.sum(attn_rowsum) / ((k * k - k) * n)

    nb_i = nb.astype(jnp.int32)
    nb_t_safe = jnp.where(nb_i < 0, 0, nb_i).T.reshape(-1)      # neighbor-major (m*n,)
    mask = (nb_i >= 0).astype(jnp.float32)                      # (n, m)

    xcur = x_relu
    u = xn = p_flat = None
    for li in range(hp["nlayer"]):
        last = li == hp["nlayer"] - 1
        if last:
            u, xn, p_flat = routing_layer(xcur, nb_t_safe, mask, S, E,
                                          k, m, hp["routit"], True)
        else:
            xcur = routing_layer(xcur, nb_t_safe, mask, S, E,
                                 k, m, hp["routit"], False)     # relu in-kernel

    p = p_flat.reshape(n, m, k)
    agg = meta_aggregate(xn, p, nb_i, k)
    logp, logits = head(u, agg, params["mlp_w"], params["mlp_b"])
    return logp, attn_loss, logits


if __name__ == "__main__":
    n, nfeat, nclass = 16, 16, 3
    hp = dict(ncaps=4, nhidden=8, nlayer=2, routit=3, dropout=0.1)
    rep_dim = hp["ncaps"] * hp["nhidden"]
    m = 6  # neighbors per node (must be >= 5 for the meta-path "cut")

    key = jax.random.PRNGKey(0)
    kx, knb, k0, k1, k2, k3, k4, k5 = jax.random.split(key, 8)

    stdv = 1.0 / np.sqrt(rep_dim)
    bnd_h = 1.0 / np.sqrt(hp["nhidden"])
    params = dict(
        pca_w=jax.random.uniform(k0, (nfeat, rep_dim), jnp.float32, -stdv, stdv),
        pca_b=jax.random.uniform(k1, (1, rep_dim), jnp.float32, -stdv, stdv),
        wq=jax.random.uniform(k2, (hp["nhidden"], hp["nhidden"]), jnp.float32, -bnd_h, bnd_h),
        wk=jax.random.uniform(k3, (hp["nhidden"], hp["nhidden"]), jnp.float32, -bnd_h, bnd_h),
        ln_g=jnp.ones((1, hp["nhidden"]), jnp.float32),
        ln_b=jnp.zeros((1, hp["nhidden"]), jnp.float32),
        mlp_w=jax.random.uniform(k4, (rep_dim, nclass), jnp.float32, -stdv, stdv),
        mlp_b=jax.random.uniform(k5, (1, nclass), jnp.float32, -stdv, stdv),
    )

    x = jax.random.normal(kx, (n, nfeat), jnp.float32)
    nb = jax.random.randint(knb, (n, m), -1, n, dtype=jnp.int32)  # -1 == no neighbor

    fwd = jax.jit(lambda x_, nb_, ps_: capsule_net_forward(x_, nb_, ps_, hp))
    logp, attn_loss, logits = fwd(x, nb, params)
    jax.block_until_ready((logp, attn_loss, logits))
    assert logp.shape == (n, nclass) and logits.shape == (n, nclass)
    assert bool(jnp.isfinite(logp).all()) and bool(jnp.isfinite(attn_loss))
    assert bool(jnp.isfinite(logits).all())
    print("KERNEL_OK")
</pallas_src>

<mosaic_0001>
module attributes {stable_mosaic.version = 11 : i64} {
  func.func @_frontend_kernel(%arg0: i32, %arg1: memref<8x16xf32, #tpu.memory_space<vmem>>, %arg2: memref<16x32xf32, #tpu.memory_space<vmem>>, %arg3: memref<1x32xf32, #tpu.memory_space<vmem>>, %arg4: memref<1x32xf32, #tpu.memory_space<vmem>>, %arg5: memref<1x32xf32, #tpu.memory_space<vmem>>, %arg6: memref<32x32xf32, #tpu.memory_space<vmem>>, %arg7: memref<32x32xf32, #tpu.memory_space<vmem>>, %arg8: memref<32x4xf32, #tpu.memory_space<vmem>>, %arg9: memref<4x32xf32, #tpu.memory_space<vmem>>, %arg10: memref<8x32xf32, #tpu.memory_space<vmem>>, %arg11: memref<8x1xf32, #tpu.memory_space<vmem>>) attributes {dimension_semantics = [#tpu.dimension_semantics<parallel>], iteration_bounds = array<i64: 2>, scalar_prefetch = 0 : i64, scratch_operands = 0 : i64, tpu.core_type = #tpu.core_type<tc>, window_params = [{transform_indices = @transform_0, window_bounds = array<i64: 8, 16>}, {pipeline_mode = #tpu.pipeline_mode<synchronous>, transform_indices = @transform_1, window_bounds = array<i64: 16, 32>}, {pipeline_mode = #tpu.pipeline_mode<synchronous>, transform_indices = @transform_2, window_bounds = array<i64: 1, 32>}, {pipeline_mode = #tpu.pipeline_mode<synchronous>, transform_indices = @transform_3, window_bounds = array<i64: 1, 32>}, {pipeline_mode = #tpu.pipeline_mode<synchronous>, transform_indices = @transform_4, window_bounds = array<i64: 1, 32>}, {pipeline_mode = #tpu.pipeline_mode<synchronous>, transform_indices = @transform_5, window_bounds = array<i64: 32, 32>}, {pipeline_mode = #tpu.pipeline_mode<synchronous>, transform_indices = @transform_6, window_bounds = array<i64: 32, 32>}, {pipeline_mode = #tpu.pipeline_mode<synchronous>, transform_indices = @transform_7, window_bounds = array<i64: 32, 4>}, {pipeline_mode = #tpu.pipeline_mode<synchronous>, transform_indices = @transform_8, window_bounds = array<i64: 4, 32>}, {transform_indices = @transform_9, window_bounds = array<i64: 8, 32>}, {transform_indices = @transform_10, window_bounds = array<i64: 8, 1>}]} {
    %c0 = arith.constant 0 : index
    %c0_0 = arith.constant 0 : index
    %0 = vector.load %arg8[%c0, %c0_0] : memref<32x4xf32, #tpu.memory_space<vmem>>, vector<32x4xf32>
    %c0_1 = arith.constant 0 : index
    %c0_2 = arith.constant 0 : index
    %1 = vector.load %arg9[%c0_1, %c0_2] : memref<4x32xf32, #tpu.memory_space<vmem>>, vector<4x32xf32>
    %c0_3 = arith.constant 0 : index
    %c0_4 = arith.constant 0 : index
    %2 = vector.load %arg1[%c0_3, %c0_4] : memref<8x16xf32, #tpu.memory_space<vmem>>, vector<8x16xf32>
    %c0_5 = arith.constant 0 : index
    %c0_6 = arith.constant 0 : index
    %3 = vector.load %arg2[%c0_5, %c0_6] : memref<16x32xf32, #tpu.memory_space<vmem>>, vector<16x32xf32>
    %cst = arith.constant dense<0.000000e+00> : vector<8x32xf32>
    %4 = tpu.matmul %2, %3, %cst {dimension_numbers = #tpu.dot_dimension_numbers<[1], [0], [0], [1], [0, 0, 1, 1], [], []>} : vector<8x16xf32>, vector<16x32xf32>, vector<8x32xf32> -> vector<8x32xf32>
    %c0_7 = arith.constant 0 : index
    %c0_8 = arith.constant 0 : index
    %5 = vector.load %arg3[%c0_7, %c0_8] : memref<1x32xf32, #tpu.memory_space<vmem>>, vector<1x32xf32>
    %6 = vector.broadcast %5 : vector<1x32xf32> to vector<8x32xf32>
    %7 = arith.addf %4, %6 : vector<8x32xf32>
    %cst_9 = arith.constant dense<0.000000e+00> : vector<8x4xf32>
    %8 = tpu.matmul %7, %0, %cst_9 {dimension_numbers = #tpu.dot_dimension_numbers<[1], [0], [0], [1], [0, 0, 1, 1], [], []>} : vector<8x32xf32>, vector<32x4xf32>, vector<8x4xf32> -> vector<8x4xf32>
    %cst_10 = arith.constant 1.250000e-01 : f32
    %9 = vector.broadcast %cst_10 : f32 to vector<8x4xf32>
    %10 = arith.mulf %8, %9 : vector<8x4xf32>
    %cst_11 = arith.constant dense<0.000000e+00> : vector<8x32xf32>
    %11 = tpu.matmul %10, %1, %cst_11 {dimension_numbers = #tpu.dot_dimension_numbers<[1], [0], [0], [1], [0, 0, 1, 1], [], []>} : vector<8x4xf32>, vector<4x32xf32>, vector<8x32xf32> -> vector<8x32xf32>
    %12 = arith.subf %7, %11 : vector<8x32xf32>
    %13 = arith.mulf %12, %12 : vector<8x32xf32>
    %cst_12 = arith.constant dense<0.000000e+00> : vector<8x4xf32>
    %14 = tpu.matmul %13, %0, %cst_12 {dimension_numbers = #tpu.dot_dimension_numbers<[1], [0], [0], [1], [0, 0, 1, 1], [], []>} : vector<8x32xf32>, vector<32x4xf32>, vector<8x4xf32> -> vector<8x4xf32>
    %cst_13 = arith.constant 1.250000e-01 : f32
    %15 = vector.broadcast %cst_13 : f32 to vector<8x4xf32>
    %16 = arith.mulf %14, %15 : vector<8x4xf32>
    %cst_14 = arith.constant 9.99999997E-7 : f32
    %17 = vector.broadcast %cst_14 : f32 to vector<8x4xf32>
    %18 = arith.addf %16, %17 : vector<8x4xf32>
    %19 = math.rsqrt %18 : vector<8x4xf32>
    %cst_15 = arith.constant dense<0.000000e+00> : vector<8x32xf32>
    %20 = tpu.matmul %19, %1, %cst_15 {dimension_numbers = #tpu.dot_dimension_numbers<[1], [0], [0], [1], [0, 0, 1, 1], [], []>} : vector<8x4xf32>, vector<4x32xf32>, vector<8x32xf32> -> vector<8x32xf32>
    %21 = arith.mulf %12, %20 : vector<8x32xf32>
    %c0_16 = arith.constant 0 : index
    %c0_17 = arith.constant 0 : index
    %22 = vector.load %arg4[%c0_16, %c0_17] : memref<1x32xf32, #tpu.memory_space<vmem>>, vector<1x32xf32>
    %23 = vector.broadcast %22 : vector<1x32xf32> to vector<8x32xf32>
    %24 = arith.mulf %21, %23 : vector<8x32xf32>
    %c0_18 = arith.constant 0 : index
    %c0_19 = arith.constant 0 : index
    %25 = vector.load %arg5[%c0_18, %c0_19] : memref<1x32xf32, #tpu.memory_space<vmem>>, vector<1x32xf32>
    %26 = vector.broadcast %25 : vector<1x32xf32> to vector<8x32xf32>
    %27 = arith.addf %24, %26 : vector<8x32xf32>
    %c0_20 = arith.constant 0 : index
    %c0_21 = arith.constant 0 : index
    %28 = vector.load %arg6[%c0_20, %c0_21] : memref<32x32xf32, #tpu.memory_space<vmem>>, vector<32x32xf32>
    %cst_22 = arith.constant dense<0.000000e+00> : vector<8x32xf32>
    %29 = tpu.matmul %27, %28, %cst_22 {dimension_numbers = #tpu.dot_dimension_numbers<[1], [0], [0], [1], [0, 0, 1, 1], [], []>} : vector<8x32xf32>, vector<32x32xf32>, vector<8x32xf32> -> vector<8x32xf32>
    %c0_23 = arith.constant 0 : index
    %c0_24 = arith.constant 0 : index
    %30 = vector.load %arg7[%c0_23, %c0_24] : memref<32x32xf32, #tpu.memory_space<vmem>>, vector<32x32xf32>
    %cst_25 = arith.constant dense<0.000000e+00> : vector<8x32xf32>
    %31 = tpu.matmul %7, %30, %cst_25 {dimension_numbers = #tpu.dot_dimension_numbers<[1], [0], [0], [1], [0, 0, 1, 1], [], []>} : vector<8x32xf32>, vector<32x32xf32>, vector<8x32xf32> -> vector<8x32xf32>
    %cst_26 = arith.constant 0.000000e+00 : f32
    %32 = vector.broadcast %cst_26 : f32 to vector<8x1xf32>
    %33 = vector.extract_strided_slice %29 {offsets = [0, 0], sizes = [8, 8], strides = [1, 1]} : vector<8x32xf32> to vector<8x8xf32>
    %34 = tpu.concatenate %33, %33, %33, %33 in 1 : vector<8x8xf32>, vector<8x8xf32>, vector<8x8xf32>, vector<8x8xf32> -> vector<8x32xf32>
    %35 = arith.mulf %34, %31 : vector<8x32xf32>
    %cst_27 = arith.constant dense<0.000000e+00> : vector<8x4xf32>
    %36 = tpu.matmul %35, %0, %cst_27 {dimension_numbers = #tpu.dot_dimension_numbers<[1], [0], [0], [1], [0, 0, 1, 1], [], []>} : vector<8x32xf32>, vector<32x4xf32>, vector<8x4xf32> -> vector<8x4xf32>
    %cst_28 = arith.constant 0.353553385 : f32
    %37 = vector.broadcast %cst_28 : f32 to vector<8x4xf32>
    %38 = arith.mulf %36, %37 : vector<8x4xf32>
    %cst_29 = arith.constant dense<0xFF800000> : vector<8xf32>
    %39 = vector.multi_reduction <maximumf>, %38, %cst_29 [1] : vector<8x4xf32> to vector<8xf32>
    %40 = vector.shape_cast %39 : vector<8xf32> to vector<8x1xf32>
    %41 = vector.broadcast %40 : vector<8x1xf32> to vector<8x4xf32>
    %42 = arith.subf %38, %41 : vector<8x4xf32>
    %43 = math.exp %42 : vector<8x4xf32>
    %cst_30 = arith.constant dense<0.000000e+00> : vector<8xf32>
    %44 = vector.multi_reduction <add>, %43, %cst_30 [1] : vector<8x4xf32> to vector<8xf32>
    %45 = vector.shape_cast %44 : vector<8xf32> to vector<8x1xf32>
    %46 = vector.extract_strided_slice %43 {offsets = [0, 0], sizes = [8, 1], strides = [1, 1]} : vector<8x4xf32> to vector<8x1xf32>
    %47 = arith.subf %45, %46 : vector<8x1xf32>
    %48 = arith.divf %47, %45 : vector<8x1xf32>
    %49 = arith.addf %32, %48 : vector<8x1xf32>
    %50 = vector.extract_strided_slice %29 {offsets = [0, 8], sizes = [8, 8], strides = [1, 1]} : vector<8x32xf32> to vector<8x8xf32>
    %51 = tpu.concatenate %50, %50, %50, %50 in 1 : vector<8x8xf32>, vector<8x8xf32>, vector<8x8xf32>, vector<8x8xf32> -> vector<8x32xf32>
    %52 = arith.mulf %51, %31 : vector<8x32xf32>
    %cst_31 = arith.constant dense<0.000000e+00> : vector<8x4xf32>
    %53 = tpu.matmul %52, %0, %cst_31 {dimension_numbers = #tpu.dot_dimension_numbers<[1], [0], [0], [1], [0, 0, 1, 1], [], []>} : vector<8x32xf32>, vector<32x4xf32>, vector<8x4xf32> -> vector<8x4xf32>
    %cst_32 = arith.constant 0.353553385 : f32
    %54 = vector.broadcast %cst_32 : f32 to vector<8x4xf32>
    %55 = arith.mulf %53, %54 : vector<8x4xf32>
    %cst_33 = arith.constant dense<0xFF800000> : vector<8xf32>
    %56 = vector.multi_reduction <maximumf>, %55, %cst_33 [1] : vector<8x4xf32> to vector<8xf32>
    %57 = vector.shape_cast %56 : vector<8xf32> to vector<8x1xf32>
    %58 = vector.broadcast %57 : vector<8x1xf32> to vector<8x4xf32>
    %59 = arith.subf %55, %58 : vector<8x4xf32>
    %60 = math.exp %59 : vector<8x4xf32>
    %cst_34 = arith.constant dense<0.000000e+00> : vector<8xf32>
    %61 = vector.multi_reduction <add>, %60, %cst_34 [1] : vector<8x4xf32> to vector<8xf32>
    %62 = vector.shape_cast %61 : vector<8xf32> to vector<8x1xf32>
    %63 = vector.extract_strided_slice %60 {offsets = [0, 1], sizes = [8, 1], strides = [1, 1]} : vector<8x4xf32> to vector<8x1xf32>
    %64 = arith.subf %62, %63 : vector<8x1xf32>
    %65 = arith.divf %64, %62 : vector<8x1xf32>
    %66 = arith.addf %49, %65 : vector<8x1xf32>
    %67 = vector.extract_strided_slice %29 {offsets = [0, 16], sizes = [8, 8], strides = [1, 1]} : vector<8x32xf32> to vector<8x8xf32>
    %68 = tpu.concatenate %67, %67, %67, %67 in 1 : vector<8x8xf32>, vector<8x8xf32>, vector<8x8xf32>, vector<8x8xf32> -> vector<8x32xf32>
    %69 = arith.mulf %68, %31 : vector<8x32xf32>
    %cst_35 = arith.constant dense<0.000000e+00> : vector<8x4xf32>
    %70 = tpu.matmul %69, %0, %cst_35 {dimension_numbers = #tpu.dot_dimension_numbers<[1], [0], [0], [1], [0, 0, 1, 1], [], []>} : vector<8x32xf32>, vector<32x4xf32>, vector<8x4xf32> -> vector<8x4xf32>
    %cst_36 = arith.constant 0.353553385 : f32
    %71 = vector.broadcast %cst_36 : f32 to vector<8x4xf32>
    %72 = arith.mulf %70, %71 : vector<8x4xf32>
    %cst_37 = arith.constant dense<0xFF800000> : vector<8xf32>
    %73 = vector.multi_reduction <maximumf>, %72, %cst_37 [1] : vector<8x4xf32> to vector<8xf32>
    %74 = vector.shape_cast %73 : vector<8xf32> to vector<8x1xf32>
    %75 = vector.broadcast %74 : vector<8x1xf32> to vector<8x4xf32>
    %76 = arith.subf %72, %75 : vector<8x4xf32>
    %77 = math.exp %76 : vector<8x4xf32>
    %cst_38 = arith.constant dense<0.000000e+00> : vector<8xf32>
    %78 = vector.multi_reduction <add>, %77, %cst_38 [1] : vector<8x4xf32> to vector<8xf32>
    %79 = vector.shape_cast %78 : vector<8xf32> to vector<8x1xf32>
    %80 = vector.extract_strided_slice %77 {offsets = [0, 2], sizes = [8, 1], strides = [1, 1]} : vector<8x4xf32> to vector<8x1xf32>
    %81 = arith.subf %79, %80 : vector<8x1xf32>
    %82 = arith.divf %81, %79 : vector<8x1xf32>
    %83 = arith.addf %66, %82 : vector<8x1xf32>
    %84 = vector.extract_strided_slice %29 {offsets = [0, 24], sizes = [8, 8], strides = [1, 1]} : vector<8x32xf32> to vector<8x8xf32>
    %85 = tpu.concatenate %84, %84, %84, %84 in 1 : vector<8x8xf32>, vector<8x8xf32>, vector<8x8xf32>, vector<8x8xf32> -> vector<8x32xf32>
    %86 = arith.mulf %85, %31 : vector<8x32xf32>
    %cst_39 = arith.constant dense<0.000000e+00> : vector<8x4xf32>
    %87 = tpu.matmul %86, %0, %cst_39 {dimension_numbers = #tpu.dot_dimension_numbers<[1], [0], [0], [1], [0, 0, 1, 1], [], []>} : vector<8x32xf32>, vector<32x4xf32>, vector<8x4xf32> -> vector<8x4xf32>
    %cst_40 = arith.constant 0.353553385 : f32
    %88 = vector.broadcast %cst_40 : f32 to vector<8x4xf32>
    %89 = arith.mulf %87, %88 : vector<8x4xf32>
    %cst_41 = arith.constant dense<0xFF800000> : vector<8xf32>
    %90 = vector.multi_reduction <maximumf>, %89, %cst_41 [1] : vector<8x4xf32> to vector<8xf32>
    %91 = vector.shape_cast %90 : vector<8xf32> to vector<8x1xf32>
    %92 = vector.broadcast %91 : vector<8x1xf32> to vector<8x4xf32>
    %93 = arith.subf %89, %92 : vector<8x4xf32>
    %94 = math.exp %93 : vector<8x4xf32>
    %cst_42 = arith.constant dense<0.000000e+00> : vector<8xf32>
    %95 = vector.multi_reduction <add>, %94, %cst_42 [1] : vector<8x4xf32> to vector<8xf32>
    %96 = vector.shape_cast %95 : vector<8xf32> to vector<8x1xf32>
    %97 = vector.extract_strided_slice %94 {offsets = [0, 3], sizes = [8, 1], strides = [1, 1]} : vector<8x4xf32> to vector<8x1xf32>
    %98 = arith.subf %96, %97 : vector<8x1xf32>
    %99 = arith.divf %98, %96 : vector<8x1xf32>
    %100 = arith.addf %83, %99 : vector<8x1xf32>
    %cst_43 = arith.constant 0.000000e+00 : f32
    %101 = vector.broadcast %cst_43 : f32 to vector<8x32xf32>
    %102 = arith.maximumf %7, %101 : vector<8x32xf32>
    %c0_44 = arith.constant 0 : index
    %c0_45 = arith.constant 0 : index
    %103 = vector.load %arg10[%c0_44, %c0_45] : memref<8x32xf32, #tpu.memory_space<vmem>>, vector<8x32xf32>
    tpu.vector_store %arg10[%c0_44, %c0_45], %102 {strides = array<i32>} : memref<8x32xf32, #tpu.memory_space<vmem>>, vector<8x32xf32>,
    %c0_46 = arith.constant 0 : index
    %c0_47 = arith.constant 0 : index
    %104 = vector.load %arg11[%c0_46, %c0_47] : memref<8x1xf32, #tpu.memory_space<vmem>>, vector<8x1xf32>
    tpu.vector_store %arg11[%c0_46, %c0_47], %100 {strides = array<i32>} : memref<8x1xf32, #tpu.memory_space<vmem>>, vector<8x1xf32>,
    return
  }
  func.func @transform_0(%arg0: i32) -> (i32, i32) {
    %c0_i32 = arith.constant 0 : i32
    %c0_i32_0 = arith.constant 0 : i32
    return %arg0, %c0_i32 : i32, i32
  }
  func.func @transform_1(%arg0: i32) -> (i32, i32) {
    %c0_i32 = arith.constant 0 : i32
    %c0_i32_0 = arith.constant 0 : i32
    %c0_i32_1 = arith.constant 0 : i32
    return %c0_i32, %c0_i32_0 : i32, i32
  }
  func.func @transform_2(%arg0: i32) -> (i32, i32) {
    %c0_i32 = arith.constant 0 : i32
    %c0_i32_0 = arith.constant 0 : i32
    %c0_i32_1 = arith.constant 0 : i32
    return %c0_i32, %c0_i32_0 : i32, i32
  }
  func.func @transform_3(%arg0: i32) -> (i32, i32) {
    %c0_i32 = arith.constant 0 : i32
    %c0_i32_0 = arith.constant 0 : i32
    %c0_i32_1 = arith.constant 0 : i32
    return %c0_i32, %c0_i32_0 : i32, i32
  }
  func.func @transform_4(%arg0: i32) -> (i32, i32) {
    %c0_i32 = arith.constant 0 : i32
    %c0_i32_0 = arith.constant 0 : i32
    %c0_i32_1 = arith.constant 0 : i32
    return %c0_i32, %c0_i32_0 : i32, i32
  }
  func.func @transform_5(%arg0: i32) -> (i32, i32) {
    %c0_i32 = arith.constant 0 : i32
    %c0_i32_0 = arith.constant 0 : i32
    %c0_i32_1 = arith.constant 0 : i32
    return %c0_i32, %c0_i32_0 : i32, i32
  }
  func.func @transform_6(%arg0: i32) -> (i32, i32) {
    %c0_i32 = arith.constant 0 : i32
    %c0_i32_0 = arith.constant 0 : i32
    %c0_i32_1 = arith.constant 0 : i32
    return %c0_i32, %c0_i32_0 : i32, i32
  }
  func.func @transform_7(%arg0: i32) -> (i32, i32) {
    %c0_i32 = arith.constant 0 : i32
    %c0_i32_0 = arith.constant 0 : i32
    %c0_i32_1 = arith.constant 0 : i32
    return %c0_i32, %c0_i32_0 : i32, i32
  }
  func.func @transform_8(%arg0: i32) -> (i32, i32) {
    %c0_i32 = arith.constant 0 : i32
    %c0_i32_0 = arith.constant 0 : i32
    %c0_i32_1 = arith.constant 0 : i32
    return %c0_i32, %c0_i32_0 : i32, i32
  }
  func.func @transform_9(%arg0: i32) -> (i32, i32) {
    %c0_i32 = arith.constant 0 : i32
    %c0_i32_0 = arith.constant 0 : i32
    return %arg0, %c0_i32 : i32, i32
  }
  func.func @transform_10(%arg0: i32) -> (i32, i32) {
    %c0_i32 = arith.constant 0 : i32
    %c0_i32_0 = arith.constant 0 : i32
    return %arg0, %c0_i32 : i32, i32
  }
}

module attributes {stable_mosaic.version = 11 : i64} {
  func.func @_routing_kernel(%arg0: i32, %arg1: memref<96xi32, #tpu.memory_space<smem>>, %arg2: memref<16x32xf32, #tpu.memory_space<vmem>>, %arg3: memref<8x6xf32, #tpu.memory_space<vmem>>, %arg4: memref<32x4xf32, #tpu.memory_space<vmem>>, %arg5: memref<4x32xf32, #tpu.memory_space<vmem>>, %arg6: memref<8x32xf32, #tpu.memory_space<vmem>>, %arg7: memref<8x32xf32, #tpu.memory_space<vmem>>, %arg8: memref<8x24xf32, #tpu.memory_space<vmem>>, %arg9: memref<6x8x32xf32, #tpu.memory_space<vmem>>) attributes {dimension_semantics = [#tpu.dimension_semantics<parallel>], iteration_bounds = array<i64: 2>, scalar_prefetch = 1 : i64, scratch_operands = 1 : i64, tpu.core_type = #tpu.core_type<tc>, window_params = [{pipeline_mode = #tpu.pipeline_mode<synchronous>, transform_indices = @transform_0, window_bounds = array<i64: 16, 32>}, {transform_indices = @transform_1, window_bounds = array<i64: 8, 6>}, {pipeline_mode = #tpu.pipeline_mode<synchronous>, transform_indices = @transform_2, window_bounds = array<i64: 32, 4>}, {pipeline_mode = #tpu.pipeline_mode<synchronous>, transform_indices = @transform_3, window_bounds = array<i64: 4, 32>}, {transform_indices = @transform_4, window_bounds = array<i64: 8, 32>}, {transform_indices = @transform_5, window_bounds = array<i64: 8, 32>}, {transform_indices = @transform_6, window_bounds = array<i64: 8, 24>}]} {
    %c0 = arith.constant 0 : index
    %c0_0 = arith.constant 0 : index
    %0 = vector.load %arg4[%c0, %c0_0] : memref<32x4xf32, #tpu.memory_space<vmem>>, vector<32x4xf32>
    %c0_1 = arith.constant 0 : index
    %c0_2 = arith.constant 0 : index
    %1 = vector.load %arg5[%c0_1, %c0_2] : memref<4x32xf32, #tpu.memory_space<vmem>>, vector<4x32xf32>
    %c8_i32 = arith.constant 8 : i32
    %2 = arith.muli %arg0, %c8_i32 : i32
    %3 = tpu.assume_multiple %2, 8 : i32
    %c0_i32 = arith.constant 0 : i32
    %c8_i32_3 = arith.constant 8 : i32
    %4 = arith.addi %c0_i32, %c8_i32_3 : i32
    %c1_i32 = arith.constant 1 : i32
    scf.for %arg10 = %c0_i32 to %4 step %c1_i32  : i32 {
      %c1_i32_191 = arith.constant 1 : i32
      %310 = arith.muli %arg10, %c1_i32_191 : i32
      %c0_i32_192 = arith.constant 0 : i32
      %311 = arith.addi %c0_i32_192, %310 : i32
      %c0_i32_193 = arith.constant 0 : i32
      %312 = arith.addi %c0_i32_193, %3 : i32
      %313 = arith.addi %312, %311 : i32
      %314 = arith.index_cast %313 : i32 to index
      %315 = memref.load %arg1[%314] : memref<96xi32, #tpu.memory_space<smem>>
      %316 = arith.index_cast %315 : i32 to index
      %c0_194 = arith.constant 0 : index
      %317 = vector.load %arg2[%316, %c0_194] : memref<16x32xf32, #tpu.memory_space<vmem>>, vector<1x32xf32>
      %c0_195 = arith.constant 0 : index
      %318 = arith.index_cast %311 : i32 to index
      %c0_196 = arith.constant 0 : index
      %319 = vector.load %arg9[%c0_195, %318, %c0_196] : memref<6x8x32xf32, #tpu.memory_space<vmem>>, vector<1x1x32xf32>
      %320 = vector.shape_cast %319 : vector<1x1x32xf32> to vector<1x32xf32>
      %321 = vector.shape_cast %317 : vector<1x32xf32> to vector<1x1x32xf32>
      tpu.vector_store %arg9[%c0_195, %318, %c0_196], %321 {strides = array<i32>} : memref<6x8x32xf32, #tpu.memory_space<vmem>>, vector<1x1x32xf32>,
    }
    %c8_i32_4 = arith.constant 8 : i32
    %c0_i32_5 = arith.constant 0 : i32
    %c8_i32_6 = arith.constant 8 : i32
    %5 = arith.addi %c0_i32_5, %c8_i32_6 : i32
    %c1_i32_7 = arith.constant 1 : i32
    scf.for %arg10 = %c0_i32_5 to %5 step %c1_i32_7  : i32 {
      %c1_i32_191 = arith.constant 1 : i32
      %310 = arith.muli %arg10, %c1_i32_191 : i32
      %c0_i32_192 = arith.constant 0 : i32
      %311 = arith.addi %c0_i32_192, %310 : i32
      %c16_i32 = arith.constant 16 : i32
      %312 = arith.addi %c16_i32, %3 : i32
      %313 = arith.addi %312, %311 : i32
      %314 = arith.index_cast %313 : i32 to index
      %315 = memref.load %arg1[%314] : memref<96xi32, #tpu.memory_space<smem>>
      %316 = arith.index_cast %315 : i32 to index
      %c0_193 = arith.constant 0 : index
      %317 = vector.load %arg2[%316, %c0_193] : memref<16x32xf32, #tpu.memory_space<vmem>>, vector<1x32xf32>
      %c1_194 = arith.constant 1 : index
      %318 = arith.index_cast %311 : i32 to index
      %c0_195 = arith.constant 0 : index
      %319 = vector.load %arg9[%c1_194, %318, %c0_195] : memref<6x8x32xf32, #tpu.memory_space<vmem>>, vector<1x1x32xf32>
      %320 = vector.shape_cast %319 : vector<1x1x32xf32> to vector<1x32xf32>
      %321 = vector.shape_cast %317 : vector<1x32xf32> to vector<1x1x32xf32>
      tpu.vector_store %arg9[%c1_194, %318, %c0_195], %321 {strides = array<i32>} : memref<6x8x32xf32, #tpu.memory_space<vmem>>, vector<1x1x32xf32>,
    }
    %c8_i32_8 = arith.constant 8 : i32
    %c0_i32_9 = arith.constant 0 : i32
    %c8_i32_10 = arith.constant 8 : i32
    %6 = arith.addi %c0_i32_9, %c8_i32_10 : i32
    %c1_i32_11 = arith.constant 1 : i32
    scf.for %arg10 = %c0_i32_9 to %6 step %c1_i32_11  : i32 {
      %c1_i32_191 = arith.constant 1 : i32
      %310 = arith.muli %arg10, %c1_i32_191 : i32
      %c0_i32_192 = arith.constant 0 : i32
      %311 = arith.addi %c0_i32_192, %310 : i32
      %c32_i32 = arith.constant 32 : i32
      %312 = arith.addi %c32_i32, %3 : i32
      %313 = arith.addi %312, %311 : i32
      %314 = arith.index_cast %313 : i32 to index
      %315 = memref.load %arg1[%314] : memref<96xi32, #tpu.memory_space<smem>>
      %316 = arith.index_cast %315 : i32 to index
      %c0_193 = arith.constant 0 : index
      %317 = vector.load %arg2[%316, %c0_193] : memref<16x32xf32, #tpu.memory_space<vmem>>, vector<1x32xf32>
      %c2_194 = arith.constant 2 : index
      %318 = arith.index_cast %311 : i32 to index
      %c0_195 = arith.constant 0 : index
      %319 = vector.load %arg9[%c2_194, %318, %c0_195] : memref<6x8x32xf32, #tpu.memory_space<vmem>>, vector<1x1x32xf32>
      %320 = vector.shape_cast %319 : vector<1x1x32xf32> to vector<1x32xf32>
      %321 = vector.shape_cast %317 : vector<1x32xf32> to vector<1x1x32xf32>
      tpu.vector_store %arg9[%c2_194, %318, %c0_195], %321 {strides = array<i32>} : memref<6x8x32xf32, #tpu.memory_space<vmem>>, vector<1x1x32xf32>,
    }
    %c8_i32_12 = arith.constant 8 : i32
    %c0_i32_13 = arith.constant 0 : i32
    %c8_i32_14 = arith.constant 8 : i32
    %7 = arith.addi %c0_i32_13, %c8_i32_14 : i32
    %c1_i32_15 = arith.constant 1 : i32
    scf.for %arg10 = %c0_i32_13 to %7 step %c1_i32_15  : i32 {
      %c1_i32_191 = arith.constant 1 : i32
      %310 = arith.muli %arg10, %c1_i32_191 : i32
      %c0_i32_192 = arith.constant 0 : i32
      %311 = arith.addi %c0_i32_192, %310 : i32
      %c48_i32 = arith.constant 48 : i32
      %312 = arith.addi %c48_i32, %3 : i32
      %313 = arith.addi %312, %311 : i32
      %314 = arith.index_cast %313 : i32 to index
      %315 = memref.load %arg1[%314] : memref<96xi32, #tpu.memory_space<smem>>
      %316 = arith.index_cast %315 : i32 to index
      %c0_193 = arith.constant 0 : index
      %317 = vector.load %arg2[%316, %c0_193] : memref<16x32xf32, #tpu.memory_space<vmem>>, vector<1x32xf32>
      %c3_194 = arith.constant 3 : index
      %318 = arith.index_cast %311 : i32 to index
      %c0_195 = arith.constant 0 : index
      %319 = vector.load %arg9[%c3_194, %318, %c0_195] : memref<6x8x32xf32, #tpu.memory_space<vmem>>, vector<1x1x32xf32>
      %320 = vector.shape_cast %319 : vector<1x1x32xf32> to vector<1x32xf32>
      %321 = vector.shape_cast %317 : vector<1x32xf32> to vector<1x1x32xf32>
      tpu.vector_store %arg9[%c3_194, %318, %c0_195], %321 {strides = array<i32>} : memref<6x8x32xf32, #tpu.memory_space<vmem>>, vector<1x1x32xf32>,
    }
    %c8_i32_16 = arith.constant 8 : i32
    %c0_i32_17 = arith.constant 0 : i32
    %c8_i32_18 = arith.constant 8 : i32
    %8 = arith.addi %c0_i32_17, %c8_i32_18 : i32
    %c1_i32_19 = arith.constant 1 : i32
    scf.for %arg10 = %c0_i32_17 to %8 step %c1_i32_19  : i32 {
      %c1_i32_191 = arith.constant 1 : i32
      %310 = arith.muli %arg10, %c1_i32_191 : i32
      %c0_i32_192 = arith.constant 0 : i32
      %311 = arith.addi %c0_i32_192, %310 : i32
      %c64_i32 = arith.constant 64 : i32
      %312 = arith.addi %c64_i32, %3 : i32
      %313 = arith.addi %312, %311 : i32
      %314 = arith.index_cast %313 : i32 to index
      %315 = memref.load %arg1[%314] : memref<96xi32, #tpu.memory_space<smem>>
      %316 = arith.index_cast %315 : i32 to index
      %c0_193 = arith.constant 0 : index
      %317 = vector.load %arg2[%316, %c0_193] : memref<16x32xf32, #tpu.memory_space<vmem>>, vector<1x32xf32>
      %c4_194 = arith.constant 4 : index
      %318 = arith.index_cast %311 : i32 to index
      %c0_195 = arith.constant 0 : index
      %319 = vector.load %arg9[%c4_194, %318, %c0_195] : memref<6x8x32xf32, #tpu.memory_space<vmem>>, vector<1x1x32xf32>
      %320 = vector.shape_cast %319 : vector<1x1x32xf32> to vector<1x32xf32>
      %321 = vector.shape_cast %317 : vector<1x32xf32> to vector<1x1x32xf32>
      tpu.vector_store %arg9[%c4_194, %318, %c0_195], %321 {strides = array<i32>} : memref<6x8x32xf32, #tpu.memory_space<vmem>>, vector<1x1x32xf32>,
    }
    %c8_i32_20 = arith.constant 8 : i32
    %c0_i32_21 = arith.constant 0 : i32
    %c8_i32_22 = arith.constant 8 : i32
    %9 = arith.addi %c0_i32_21, %c8_i32_22 : i32
    %c1_i32_23 = arith.constant 1 : i32
    scf.for %arg10 = %c0_i32_21 to %9 step %c1_i32_23  : i32 {
      %c1_i32_191 = arith.constant 1 : i32
      %310 = arith.muli %arg10, %c1_i32_191 : i32
      %c0_i32_192 = arith.constant 0 : i32
      %311 = arith.addi %c0_i32_192, %310 : i32
      %c80_i32 = arith.constant 80 : i32
      %312 = arith.addi %c80_i32, %3 : i32
      %313 = arith.addi %312, %311 : i32
      %314 = arith.index_cast %313 : i32 to index
      %315 = memref.load %arg1[%314] : memref<96xi32, #tpu.memory_space<smem>>
      %316 = arith.index_cast %315 : i32 to index
      %c0_193 = arith.constant 0 : index
      %317 = vector.load %arg2[%316, %c0_193] : memref<16x32xf32, #tpu.memory_space<vmem>>, vector<1x32xf32>
      %c5_194 = arith.constant 5 : index
      %318 = arith.index_cast %311 : i32 to index
      %c0_195 = arith.constant 0 : index
      %319 = vector.load %arg9[%c5_194, %318, %c0_195] : memref<6x8x32xf32, #tpu.memory_space<vmem>>, vector<1x1x32xf32>
      %320 = vector.shape_cast %319 : vector<1x1x32xf32> to vector<1x32xf32>
      %321 = vector.shape_cast %317 : vector<1x32xf32> to vector<1x1x32xf32>
      tpu.vector_store %arg9[%c5_194, %318, %c0_195], %321 {strides = array<i32>} : memref<6x8x32xf32, #tpu.memory_space<vmem>>, vector<1x1x32xf32>,
    }
    %c8_i32_24 = arith.constant 8 : i32
    %10 = arith.index_cast %3 : i32 to index
    %c0_25 = arith.constant 0 : index
    %11 = vector.load %arg2[%10, %c0_25] : memref<16x32xf32, #tpu.memory_space<vmem>>, vector<8x32xf32>
    %12 = arith.mulf %11, %11 : vector<8x32xf32>
    %cst = arith.constant dense<0.000000e+00> : vector<8x4xf32>
    %13 = tpu.matmul %12, %0, %cst {dimension_numbers = #tpu.dot_dimension_numbers<[1], [0], [0], [1], [0, 0, 1, 1], [], []>} : vector<8x32xf32>, vector<32x4xf32>, vector<8x4xf32> -> vector<8x4xf32>
    %14 = math.sqrt %13 : vector<8x4xf32>
    %cst_26 = arith.constant 9.99999996E-13 : f32
    %15 = vector.broadcast %cst_26 : f32 to vector<8x4xf32>
    %16 = arith.maximumf %14, %15 : vector<8x4xf32>
    %cst_27 = arith.constant 1.000000e+00 : f32
    %17 = vector.broadcast %cst_27 : f32 to vector<8x4xf32>
    %18 = arith.divf %17, %16 : vector<8x4xf32>
    %cst_28 = arith.constant dense<0.000000e+00> : vector<8x32xf32>
    %19 = tpu.matmul %18, %1, %cst_28 {dimension_numbers = #tpu.dot_dimension_numbers<[1], [0], [0], [1], [0, 0, 1, 1], [], []>} : vector<8x4xf32>, vector<4x32xf32>, vector<8x32xf32> -> vector<8x32xf32>
    %20 = arith.mulf %11, %19 : vector<8x32xf32>
    %c0_29 = arith.constant 0 : index
    %c0_30 = arith.constant 0 : index
    %21 = vector.load %arg3[%c0_29, %c0_30] : memref<8x6xf32, #tpu.memory_space<vmem>>, vector<8x6xf32>
    %c0_31 = arith.constant 0 : index
    %c0_32 = arith.constant 0 : index
    %c0_33 = arith.constant 0 : index
    %22 = vector.load %arg9[%c0_31, %c0_32, %c0_33] : memref<6x8x32xf32, #tpu.memory_space<vmem>>, vector<1x8x32xf32>
    %23 = vector.shape_cast %22 : vector<1x8x32xf32> to vector<8x32xf32>
    %24 = vector.extract_strided_slice %21 {offsets = [0, 0], sizes = [8, 1], strides = [1, 1]} : vector<8x6xf32> to vector<8x1xf32>
    %25 = vector.broadcast %24 : vector<8x1xf32> to vector<8x32xf32>
    %26 = arith.mulf %23, %25 : vector<8x32xf32>
    %27 = arith.mulf %26, %26 : vector<8x32xf32>
    %cst_34 = arith.constant dense<0.000000e+00> : vector<8x4xf32>
    %28 = tpu.matmul %27, %0, %cst_34 {dimension_numbers = #tpu.dot_dimension_numbers<[1], [0], [0], [1], [0, 0, 1, 1], [], []>} : vector<8x32xf32>, vector<32x4xf32>, vector<8x4xf32> -> vector<8x4xf32>
    %29 = math.sqrt %28 : vector<8x4xf32>
    %cst_35 = arith.constant 9.99999996E-13 : f32
    %30 = vector.broadcast %cst_35 : f32 to vector<8x4xf32>
    %31 = arith.maximumf %29, %30 : vector<8x4xf32>
    %cst_36 = arith.constant 1.000000e+00 : f32
    %32 = vector.broadcast %cst_36 : f32 to vector<8x4xf32>
    %33 = arith.divf %32, %31 : vector<8x4xf32>
    %cst_37 = arith.constant dense<0.000000e+00> : vector<8x32xf32>
    %34 = tpu.matmul %33, %1, %cst_37 {dimension_numbers = #tpu.dot_dimension_numbers<[1], [0], [0], [1], [0, 0, 1, 1], [], []>} : vector<8x4xf32>, vector<4x32xf32>, vector<8x32xf32> -> vector<8x32xf32>
    %35 = arith.mulf %26, %34 : vector<8x32xf32>
    %c0_38 = arith.constant 0 : index
    %c0_39 = arith.constant 0 : index
    %c0_40 = arith.constant 0 : index
    %36 = vector.load %arg9[%c0_38, %c0_39, %c0_40] : memref<6x8x32xf32, #tpu.memory_space<vmem>>, vector<1x8x32xf32>
    %37 = vector.shape_cast %36 : vector<1x8x32xf32> to vector<8x32xf32>
    %38 = vector.shape_cast %35 : vector<8x32xf32> to vector<1x8x32xf32>
    tpu.vector_store %arg9[%c0_38, %c0_39, %c0_40], %38 {strides = array<i32>} : memref<6x8x32xf32, #tpu.memory_space<vmem>>, vector<1x8x32xf32>,
    %c1 = arith.constant 1 : index
    %c0_41 = arith.constant 0 : index
    %c0_42 = arith.constant 0 : index
    %39 = vector.load %arg9[%c1, %c0_41, %c0_42] : memref<6x8x32xf32, #tpu.memory_space<vmem>>, vector<1x8x32xf32>
    %40 = vector.shape_cast %39 : vector<1x8x32xf32> to vector<8x32xf32>
    %41 = vector.extract_strided_slice %21 {offsets = [0, 1], sizes = [8, 1], strides = [1, 1]} : vector<8x6xf32> to vector<8x1xf32>
    %42 = vector.broadcast %41 : vector<8x1xf32> to vector<8x32xf32>
    %43 = arith.mulf %40, %42 : vector<8x32xf32>
    %44 = arith.mulf %43, %43 : vector<8x32xf32>
    %cst_43 = arith.constant dense<0.000000e+00> : vector<8x4xf32>
    %45 = tpu.matmul %44, %0, %cst_43 {dimension_numbers = #tpu.dot_dimension_numbers<[1], [0], [0], [1], [0, 0, 1, 1], [], []>} : vector<8x32xf32>, vector<32x4xf32>, vector<8x4xf32> -> vector<8x4xf32>
    %46 = math.sqrt %45 : vector<8x4xf32>
    %cst_44 = arith.constant 9.99999996E-13 : f32
    %47 = vector.broadcast %cst_44 : f32 to vector<8x4xf32>
    %48 = arith.maximumf %46, %47 : vector<8x4xf32>
    %cst_45 = arith.constant 1.000000e+00 : f32
    %49 = vector.broadcast %cst_45 : f32 to vector<8x4xf32>
    %50 = arith.divf %49, %48 : vector<8x4xf32>
    %cst_46 = arith.constant dense<0.000000e+00> : vector<8x32xf32>
    %51 = tpu.matmul %50, %1, %cst_46 {dimension_numbers = #tpu.dot_dimension_numbers<[1], [0], [0], [1], [0, 0, 1, 1], [], []>} : vector<8x4xf32>, vector<4x32xf32>, vector<8x32xf32> -> vector<8x32xf32>
    %52 = arith.mulf %43, %51 : vector<8x32xf32>
    %c1_47 = arith.constant 1 : index
    %c0_48 = arith.constant 0 : index
    %c0_49 = arith.constant 0 : index
    %53 = vector.load %arg9[%c1_47, %c0_48, %c0_49] : memref<6x8x32xf32, #tpu.memory_space<vmem>>, vector<1x8x32xf32>
    %54 = vector.shape_cast %53 : vector<1x8x32xf32> to vector<8x32xf32>
    %55 = vector.shape_cast %52 : vector<8x32xf32> to vector<1x8x32xf32>
    tpu.vector_store %arg9[%c1_47, %c0_48, %c0_49], %55 {strides = array<i32>} : memref<6x8x32xf32, #tpu.memory_space<vmem>>, vector<1x8x32xf32>,
    %c2 = arith.constant 2 : index
    %c0_50 = arith.constant 0 : index
    %c0_51 = arith.constant 0 : index
    %56 = vector.load %arg9[%c2, %c0_50, %c0_51] : memref<6x8x32xf32, #tpu.memory_space<vmem>>, vector<1x8x32xf32>
    %57 = vector.shape_cast %56 : vector<1x8x32xf32> to vector<8x32xf32>
    %58 = vector.extract_strided_slice %21 {offsets = [0, 2], sizes = [8, 1], strides = [1, 1]} : vector<8x6xf32> to vector<8x1xf32>
    %59 = vector.broadcast %58 : vector<8x1xf32> to vector<8x32xf32>
    %60 = arith.mulf %57, %59 : vector<8x32xf32>
    %61 = arith.mulf %60, %60 : vector<8x32xf32>
    %cst_52 = arith.constant dense<0.000000e+00> : vector<8x4xf32>
    %62 = tpu.matmul %61, %0, %cst_52 {dimension_numbers = #tpu.dot_dimension_numbers<[1], [0], [0], [1], [0, 0, 1, 1], [], []>} : vector<8x32xf32>, vector<32x4xf32>, vector<8x4xf32> -> vector<8x4xf32>
    %63 = math.sqrt %62 : vector<8x4xf32>
    %cst_53 = arith.constant 9.99999996E-13 : f32
    %64 = vector.broadcast %cst_53 : f32 to vector<8x4xf32>
    %65 = arith.maximumf %63, %64 : vector<8x4xf32>
    %cst_54 = arith.constant 1.000000e+00 : f32
    %66 = vector.broadcast %cst_54 : f32 to vector<8x4xf32>
    %67 = arith.divf %66, %65 : vector<8x4xf32>
    %cst_55 = arith.constant dense<0.000000e+00> : vector<8x32xf32>
    %68 = tpu.matmul %67, %1, %cst_55 {dimension_numbers = #tpu.dot_dimension_numbers<[1], [0], [0], [1], [0, 0, 1, 1], [], []>} : vector<8x4xf32>, vector<4x32xf32>, vector<8x32xf32> -> vector<8x32xf32>
    %69 = arith.mulf %60, %68 : vector<8x32xf32>
    %c2_56 = arith.constant 2 : index
    %c0_57 = arith.constant 0 : index
    %c0_58 = arith.constant 0 : index
    %70 = vector.load %arg9[%c2_56, %c0_57, %c0_58] : memref<6x8x32xf32, #tpu.memory_space<vmem>>, vector<1x8x32xf32>
    %71 = vector.shape_cast %70 : vector<1x8x32xf32> to vector<8x32xf32>
    %72 = vector.shape_cast %69 : vector<8x32xf32> to vector<1x8x32xf32>
    tpu.vector_store %arg9[%c2_56, %c0_57, %c0_58], %72 {strides = array<i32>} : memref<6x8x32xf32, #tpu.memory_space<vmem>>, vector<1x8x32xf32>,
    %c3 = arith.constant 3 : index
    %c0_59 = arith.constant 0 : index
    %c0_60 = arith.constant 0 : index
    %73 = vector.load %arg9[%c3, %c0_59, %c0_60] : memref<6x8x32xf32, #tpu.memory_space<vmem>>, vector<1x8x32xf32>
    %74 = vector.shape_cast %73 : vector<1x8x32xf32> to vector<8x32xf32>
    %75 = vector.extract_strided_slice %21 {offsets = [0, 3], sizes = [8, 1], strides = [1, 1]} : vector<8x6xf32> to vector<8x1xf32>
    %76 = vector.broadcast %75 : vector<8x1xf32> to vector<8x32xf32>
    %77 = arith.mulf %74, %76 : vector<8x32xf32>
    %78 = arith.mulf %77, %77 : vector<8x32xf32>
    %cst_61 = arith.constant dense<0.000000e+00> : vector<8x4xf32>
    %79 = tpu.matmul %78, %0, %cst_61 {dimension_numbers = #tpu.dot_dimension_numbers<[1], [0], [0], [1], [0, 0, 1, 1], [], []>} : vector<8x32xf32>, vector<32x4xf32>, vector<8x4xf32> -> vector<8x4xf32>
    %80 = math.sqrt %79 : vector<8x4xf32>
    %cst_62 = arith.constant 9.99999996E-13 : f32
    %81 = vector.broadcast %cst_62 : f32 to vector<8x4xf32>
    %82 = arith.maximumf %80, %81 : vector<8x4xf32>
    %cst_63 = arith.constant 1.000000e+00 : f32
    %83 = vector.broadcast %cst_63 : f32 to vector<8x4xf32>
    %84 = arith.divf %83, %82 : vector<8x4xf32>
    %cst_64 = arith.constant dense<0.000000e+00> : vector<8x32xf32>
    %85 = tpu.matmul %84, %1, %cst_64 {dimension_numbers = #tpu.dot_dimension_numbers<[1], [0], [0], [1], [0, 0, 1, 1], [], []>} : vector<8x4xf32>, vector<4x32xf32>, vector<8x32xf32> -> vector<8x32xf32>
    %86 = arith.mulf %77, %85 : vector<8x32xf32>
    %c3_65 = arith.constant 3 : index
    %c0_66 = arith.constant 0 : index
    %c0_67 = arith.constant 0 : index
    %87 = vector.load %arg9[%c3_65, %c0_66, %c0_67] : memref<6x8x32xf32, #tpu.memory_space<vmem>>, vector<1x8x32xf32>
    %88 = vector.shape_cast %87 : vector<1x8x32xf32> to vector<8x32xf32>
    %89 = vector.shape_cast %86 : vector<8x32xf32> to vector<1x8x32xf32>
    tpu.vector_store %arg9[%c3_65, %c0_66, %c0_67], %89 {strides = array<i32>} : memref<6x8x32xf32, #tpu.memory_space<vmem>>, vector<1x8x32xf32>,
    %c4 = arith.constant 4 : index
    %c0_68 = arith.constant 0 : index
    %c0_69 = arith.constant 0 : index
    %90 = vector.load %arg9[%c4, %c0_68, %c0_69] : memref<6x8x32xf32, #tpu.memory_space<vmem>>, vector<1x8x32xf32>
    %91 = vector.shape_cast %90 : vector<1x8x32xf32> to vector<8x32xf32>
    %92 = vector.extract_strided_slice %21 {offsets = [0, 4], sizes = [8, 1], strides = [1, 1]} : vector<8x6xf32> to vector<8x1xf32>
    %93 = vector.broadcast %92 : vector<8x1xf32> to vector<8x32xf32>
    %94 = arith.mulf %91, %93 : vector<8x32xf32>
    %95 = arith.mulf %94, %94 : vector<8x32xf32>
    %cst_70 = arith.constant dense<0.000000e+00> : vector<8x4xf32>
    %96 = tpu.matmul %95, %0, %cst_70 {dimension_numbers = #tpu.dot_dimension_numbers<[1], [0], [0], [1], [0, 0, 1, 1], [], []>} : vector<8x32xf32>, vector<32x4xf32>, vector<8x4xf32> -> vector<8x4xf32>
    %97 = math.sqrt %96 : vector<8x4xf32>
    %cst_71 = arith.constant 9.99999996E-13 : f32
    %98 = vector.broadcast %cst_71 : f32 to vector<8x4xf32>
    %99 = arith.maximumf %97, %98 : vector<8x4xf32>
    %cst_72 = arith.constant 1.000000e+00 : f32
    %100 = vector.broadcast %cst_72 : f32 to vector<8x4xf32>
    %101 = arith.divf %100, %99 : vector<8x4xf32>
    %cst_73 = arith.constant dense<0.000000e+00> : vector<8x32xf32>
    %102 = tpu.matmul %101, %1, %cst_73 {dimension_numbers = #tpu.dot_dimension_numbers<[1], [0], [0], [1], [0, 0, 1, 1], [], []>} : vector<8x4xf32>, vector<4x32xf32>, vector<8x32xf32> -> vector<8x32xf32>
    %103 = arith.mulf %94, %102 : vector<8x32xf32>
    %c4_74 = arith.constant 4 : index
    %c0_75 = arith.constant 0 : index
    %c0_76 = arith.constant 0 : index
    %104 = vector.load %arg9[%c4_74, %c0_75, %c0_76] : memref<6x8x32xf32, #tpu.memory_space<vmem>>, vector<1x8x32xf32>
    %105 = vector.shape_cast %104 : vector<1x8x32xf32> to vector<8x32xf32>
    %106 = vector.shape_cast %103 : vector<8x32xf32> to vector<1x8x32xf32>
    tpu.vector_store %arg9[%c4_74, %c0_75, %c0_76], %106 {strides = array<i32>} : memref<6x8x32xf32, #tpu.memory_space<vmem>>, vector<1x8x32xf32>,
    %c5 = arith.constant 5 : index
    %c0_77 = arith.constant 0 : index
    %c0_78 = arith.constant 0 : index
    %107 = vector.load %arg9[%c5, %c0_77, %c0_78] : memref<6x8x32xf32, #tpu.memory_space<vmem>>, vector<1x8x32xf32>
    %108 = vector.shape_cast %107 : vector<1x8x32xf32> to vector<8x32xf32>
    %109 = vector.extract_strided_slice %21 {offsets = [0, 5], sizes = [8, 1], strides = [1, 1]} : vector<8x6xf32> to vector<8x1xf32>
    %110 = vector.broadcast %109 : vector<8x1xf32> to vector<8x32xf32>
    %111 = arith.mulf %108, %110 : vector<8x32xf32>
    %112 = arith.mulf %111, %111 : vector<8x32xf32>
    %cst_79 = arith.constant dense<0.000000e+00> : vector<8x4xf32>
    %113 = tpu.matmul %112, %0, %cst_79 {dimension_numbers = #tpu.dot_dimension_numbers<[1], [0], [0], [1], [0, 0, 1, 1], [], []>} : vector<8x32xf32>, vector<32x4xf32>, vector<8x4xf32> -> vector<8x4xf32>
    %114 = math.sqrt %113 : vector<8x4xf32>
    %cst_80 = arith.constant 9.99999996E-13 : f32
    %115 = vector.broadcast %cst_80 : f32 to vector<8x4xf32>
    %116 = arith.maximumf %114, %115 : vector<8x4xf32>
    %cst_81 = arith.constant 1.000000e+00 : f32
    %117 = vector.broadcast %cst_81 : f32 to vector<8x4xf32>
    %118 = arith.divf %117, %116 : vector<8x4xf32>
    %cst_82 = arith.constant dense<0.000000e+00> : vector<8x32xf32>
    %119 = tpu.matmul %118, %1, %cst_82 {dimension_numbers = #tpu.dot_dimension_numbers<[1], [0], [0], [1], [0, 0, 1, 1], [], []>} : vector<8x4xf32>, vector<4x32xf32>, vector<8x32xf32> -> vector<8x32xf32>
    %120 = arith.mulf %111, %119 : vector<8x32xf32>
    %c5_83 = arith.constant 5 : index
    %c0_84 = arith.constant 0 : index
    %c0_85 = arith.constant 0 : index
    %121 = vector.load %arg9[%c5_83, %c0_84, %c0_85] : memref<6x8x32xf32, #tpu.memory_space<vmem>>, vector<1x8x32xf32>
    %122 = vector.shape_cast %121 : vector<1x8x32xf32> to vector<8x32xf32>
    %123 = vector.shape_cast %120 : vector<8x32xf32> to vector<1x8x32xf32>
    tpu.vector_store %arg9[%c5_83, %c0_84, %c0_85], %123 {strides = array<i32>} : memref<6x8x32xf32, #tpu.memory_space<vmem>>, vector<1x8x32xf32>,
    %c0_86 = arith.constant 0 : index
    %c0_87 = arith.constant 0 : index
    %c0_88 = arith.constant 0 : index
    %124 = vector.load %arg9[%c0_86, %c0_87, %c0_88] : memref<6x8x32xf32, #tpu.memory_space<vmem>>, vector<1x8x32xf32>
    %125 = vector.shape_cast %124 : vector<1x8x32xf32> to vector<8x32xf32>
    %c1_89 = arith.constant 1 : index
    %c0_90 = arith.constant 0 : index
    %c0_91 = arith.constant 0 : index
    %126 = vector.load %arg9[%c1_89, %c0_90, %c0_91] : memref<6x8x32xf32, #tpu.memory_space<vmem>>, vector<1x8x32xf32>
    %127 = vector.shape_cast %126 : vector<1x8x32xf32> to vector<8x32xf32>
    %128 = arith.addf %125, %127 : vector<8x32xf32>
    %c2_92 = arith.constant 2 : index
    %c0_93 = arith.constant 0 : index
    %c0_94 = arith.constant 0 : index
    %129 = vector.load %arg9[%c2_92, %c0_93, %c0_94] : memref<6x8x32xf32, #tpu.memory_space<vmem>>, vector<1x8x32xf32>
    %130 = vector.shape_cast %129 : vector<1x8x32xf32> to vector<8x32xf32>
    %131 = arith.addf %128, %130 : vector<8x32xf32>
    %c3_95 = arith.constant 3 : index
    %c0_96 = arith.constant 0 : index
    %c0_97 = arith.constant 0 : index
    %132 = vector.load %arg9[%c3_95, %c0_96, %c0_97] : memref<6x8x32xf32, #tpu.memory_space<vmem>>, vector<1x8x32xf32>
    %133 = vector.shape_cast %132 : vector<1x8x32xf32> to vector<8x32xf32>
    %134 = arith.addf %131, %133 : vector<8x32xf32>
    %c4_98 = arith.constant 4 : index
    %c0_99 = arith.constant 0 : index
    %c0_100 = arith.constant 0 : index
    %135 = vector.load %arg9[%c4_98, %c0_99, %c0_100] : memref<6x8x32xf32, #tpu.memory_space<vmem>>, vector<1x8x32xf32>
    %136 = vector.shape_cast %135 : vector<1x8x32xf32> to vector<8x32xf32>
    %137 = arith.addf %134, %136 : vector<8x32xf32>
    %c5_101 = arith.constant 5 : index
    %c0_102 = arith.constant 0 : index
    %c0_103 = arith.constant 0 : index
    %138 = vector.load %arg9[%c5_101, %c0_102, %c0_103] : memref<6x8x32xf32, #tpu.memory_space<vmem>>, vector<1x8x32xf32>
    %139 = vector.shape_cast %138 : vector<1x8x32xf32> to vector<8x32xf32>
    %140 = arith.addf %137, %139 : vector<8x32xf32>
    %cst_104 = arith.constant 2.500000e-01 : f32
    %141 = vector.broadcast %cst_104 : f32 to vector<8x32xf32>
    %142 = arith.mulf %140, %141 : vector<8x32xf32>
    %143 = arith.addf %20, %142 : vector<8x32xf32>
    %144 = arith.mulf %143, %143 : vector<8x32xf32>
    %cst_105 = arith.constant dense<0.000000e+00> : vector<8x4xf32>
    %145 = tpu.matmul %144, %0, %cst_105 {dimension_numbers = #tpu.dot_dimension_numbers<[1], [0], [0], [1], [0, 0, 1, 1], [], []>} : vector<8x32xf32>, vector<32x4xf32>, vector<8x4xf32> -> vector<8x4xf32>
    %146 = math.sqrt %145 : vector<8x4xf32>
    %cst_106 = arith.constant 9.99999996E-13 : f32
    %147 = vector.broadcast %cst_106 : f32 to vector<8x4xf32>
    %148 = arith.maximumf %146, %147 : vector<8x4xf32>
    %cst_107 = arith.constant 1.000000e+00 : f32
    %149 = vector.broadcast %cst_107 : f32 to vector<8x4xf32>
    %150 = arith.divf %149, %148 : vector<8x4xf32>
    %cst_108 = arith.constant dense<0.000000e+00> : vector<8x32xf32>
    %151 = tpu.matmul %150, %1, %cst_108 {dimension_numbers = #tpu.dot_dimension_numbers<[1], [0], [0], [1], [0, 0, 1, 1], [], []>} : vector<8x4xf32>, vector<4x32xf32>, vector<8x32xf32> -> vector<8x32xf32>
    %152 = arith.mulf %143, %151 : vector<8x32xf32>
    %c0_109 = arith.constant 0 : index
    %c0_110 = arith.constant 0 : index
    %c0_111 = arith.constant 0 : index
    %153 = vector.load %arg9[%c0_109, %c0_110, %c0_111] : memref<6x8x32xf32, #tpu.memory_space<vmem>>, vector<1x8x32xf32>
    %154 = vector.shape_cast %153 : vector<1x8x32xf32> to vector<8x32xf32>
    %155 = arith.mulf %154, %152 : vector<8x32xf32>
    %cst_112 = arith.constant dense<0.000000e+00> : vector<8x4xf32>
    %156 = tpu.matmul %155, %0, %cst_112 {dimension_numbers = #tpu.dot_dimension_numbers<[1], [0], [0], [1], [0, 0, 1, 1], [], []>} : vector<8x32xf32>, vector<32x4xf32>, vector<8x4xf32> -> vector<8x4xf32>
    %157 = math.exp %156 : vector<8x4xf32>
    %cst_113 = arith.constant dense<0.000000e+00> : vector<8xf32>
    %158 = vector.multi_reduction <add>, %157, %cst_113 [1] : vector<8x4xf32> to vector<8xf32>
    %159 = vector.shape_cast %158 : vector<8xf32> to vector<8x1xf32>
    %160 = vector.broadcast %159 : vector<8x1xf32> to vector<8x4xf32>
    %161 = arith.divf %157, %160 : vector<8x4xf32>
    %cst_114 = arith.constant dense<0.000000e+00> : vector<8x32xf32>
    %162 = tpu.matmul %161, %1, %cst_114 {dimension_numbers = #tpu.dot_dimension_numbers<[1], [0], [0], [1], [0, 0, 1, 1], [], []>} : vector<8x4xf32>, vector<4x32xf32>, vector<8x32xf32> -> vector<8x32xf32>
    %163 = arith.mulf %154, %162 : vector<8x32xf32>
    %164 = arith.addf %20, %163 : vector<8x32xf32>
    %c1_115 = arith.constant 1 : index
    %c0_116 = arith.constant 0 : index
    %c0_117 = arith.constant 0 : index
    %165 = vector.load %arg9[%c1_115, %c0_116, %c0_117] : memref<6x8x32xf32, #tpu.memory_space<vmem>>, vector<1x8x32xf32>
    %166 = vector.shape_cast %165 : vector<1x8x32xf32> to vector<8x32xf32>
    %167 = arith.mulf %166, %152 : vector<8x32xf32>
    %cst_118 = arith.constant dense<0.000000e+00> : vector<8x4xf32>
    %168 = tpu.matmul %167, %0, %cst_118 {dimension_numbers = #tpu.dot_dimension_numbers<[1], [0], [0], [1], [0, 0, 1, 1], [], []>} : vector<8x32xf32>, vector<32x4xf32>, vector<8x4xf32> -> vector<8x4xf32>
    %169 = math.exp %168 : vector<8x4xf32>
    %cst_119 = arith.constant dense<0.000000e+00> : vector<8xf32>
    %170 = vector.multi_reduction <add>, %169, %cst_119 [1] : vector<8x4xf32> to vector<8xf32>
    %171 = vector.shape_cast %170 : vector<8xf32> to vector<8x1xf32>
    %172 = vector.broadcast %171 : vector<8x1xf32> to vector<8x4xf32>
    %173 = arith.divf %169, %172 : vector<8x4xf32>
    %cst_120 = arith.constant dense<0.000000e+00> : vector<8x32xf32>
    %174 = tpu.matmul %173, %1, %cst_120 {dimension_numbers = #tpu.dot_dimension_numbers<[1], [0], [0], [1], [0, 0, 1, 1], [], []>} : vector<8x4xf32>, vector<4x32xf32>, vector<8x32xf32> -> vector<8x32xf32>
    %175 = arith.mulf %166, %174 : vector<8x32xf32>
    %176 = arith.addf %164, %175 : vector<8x32xf32>
    %c2_121 = arith.constant 2 : index
    %c0_122 = arith.constant 0 : index
    %c0_123 = arith.constant 0 : index
    %177 = vector.load %arg9[%c2_121, %c0_122, %c0_123] : memref<6x8x32xf32, #tpu.memory_space<vmem>>, vector<1x8x32xf32>
    %178 = vector.shape_cast %177 : vector<1x8x32xf32> to vector<8x32xf32>
    %179 = arith.mulf %178, %152 : vector<8x32xf32>
    %cst_124 = arith.constant dense<0.000000e+00> : vector<8x4xf32>
    %180 = tpu.matmul %179, %0, %cst_124 {dimension_numbers = #tpu.dot_dimension_numbers<[1], [0], [0], [1], [0, 0, 1, 1], [], []>} : vector<8x32xf32>, vector<32x4xf32>, vector<8x4xf32> -> vector<8x4xf32>
    %181 = math.exp %180 : vector<8x4xf32>
    %cst_125 = arith.constant dense<0.000000e+00> : vector<8xf32>
    %182 = vector.multi_reduction <add>, %181, %cst_125 [1] : vector<8x4xf32> to vector<8xf32>
    %183 = vector.shape_cast %182 : vector<8xf32> to vector<8x1xf32>
    %184 = vector.broadcast %183 : vector<8x1xf32> to vector<8x4xf32>
    %185 = arith.divf %181, %184 : vector<8x4xf32>
    %cst_126 = arith.constant dense<0.000000e+00> : vector<8x32xf32>
    %186 = tpu.matmul %185, %1, %cst_126 {dimension_numbers = #tpu.dot_dimension_numbers<[1], [0], [0], [1], [0, 0, 1, 1], [], []>} : vector<8x4xf32>, vector<4x32xf32>, vector<8x32xf32> -> vector<8x32xf32>
    %187 = arith.mulf %178, %186 : vector<8x32xf32>
    %188 = arith.addf %176, %187 : vector<8x32xf32>
    %c3_127 = arith.constant 3 : index
    %c0_128 = arith.constant 0 : index
    %c0_129 = arith.constant 0 : index
    %189 = vector.load %arg9[%c3_127, %c0_128, %c0_129] : memref<6x8x32xf32, #tpu.memory_space<vmem>>, vector<1x8x32xf32>
    %190 = vector.shape_cast %189 : vector<1x8x32xf32> to vector<8x32xf32>
    %191 = arith.mulf %190, %152 : vector<8x32xf32>
    %cst_130 = arith.constant dense<0.000000e+00> : vector<8x4xf32>
    %192 = tpu.matmul %191, %0, %cst_130 {dimension_numbers = #tpu.dot_dimension_numbers<[1], [0], [0], [1], [0, 0, 1, 1], [], []>} : vector<8x32xf32>, vector<32x4xf32>, vector<8x4xf32> -> vector<8x4xf32>
    %193 = math.exp %192 : vector<8x4xf32>
    %cst_131 = arith.constant dense<0.000000e+00> : vector<8xf32>
    %194 = vector.multi_reduction <add>, %193, %cst_131 [1] : vector<8x4xf32> to vector<8xf32>
    %195 = vector.shape_cast %194 : vector<8xf32> to vector<8x1xf32>
    %196 = vector.broadcast %195 : vector<8x1xf32> to vector<8x4xf32>
    %197 = arith.divf %193, %196 : vector<8x4xf32>
    %cst_132 = arith.constant dense<0.000000e+00> : vector<8x32xf32>
    %198 = tpu.matmul %197, %1, %cst_132 {dimension_numbers = #tpu.dot_dimension_numbers<[1], [0], [0], [1], [0, 0, 1, 1], [], []>} : vector<8x4xf32>, vector<4x32xf32>, vector<8x32xf32> -> vector<8x32xf32>
    %199 = arith.mulf %190, %198 : vector<8x32xf32>
    %200 = arith.addf %188, %199 : vector<8x32xf32>
    %c4_133 = arith.constant 4 : index
    %c0_134 = arith.constant 0 : index
    %c0_135 = arith.constant 0 : index
    %201 = vector.load %arg9[%c4_133, %c0_134, %c0_135] : memref<6x8x32xf32, #tpu.memory_space<vmem>>, vector<1x8x32xf32>
    %202 = vector.shape_cast %201 : vector<1x8x32xf32> to vector<8x32xf32>
    %203 = arith.mulf %202, %152 : vector<8x32xf32>
    %cst_136 = arith.constant dense<0.000000e+00> : vector<8x4xf32>
    %204 = tpu.matmul %203, %0, %cst_136 {dimension_numbers = #tpu.dot_dimension_numbers<[1], [0], [0], [1], [0, 0, 1, 1], [], []>} : vector<8x32xf32>, vector<32x4xf32>, vector<8x4xf32> -> vector<8x4xf32>
    %205 = math.exp %204 : vector<8x4xf32>
    %cst_137 = arith.constant dense<0.000000e+00> : vector<8xf32>
    %206 = vector.multi_reduction <add>, %205, %cst_137 [1] : vector<8x4xf32> to vector<8xf32>
    %207 = vector.shape_cast %206 : vector<8xf32> to vector<8x1xf32>
    %208 = vector.broadcast %207 : vector<8x1xf32> to vector<8x4xf32>
    %209 = arith.divf %205, %208 : vector<8x4xf32>
    %cst_138 = arith.constant dense<0.000000e+00> : vector<8x32xf32>
    %210 = tpu.matmul %209, %1, %cst_138 {dimension_numbers = #tpu.dot_dimension_numbers<[1], [0], [0], [1], [0, 0, 1, 1], [], []>} : vector<8x4xf32>, vector<4x32xf32>, vector<8x32xf32> -> vector<8x32xf32>
    %211 = arith.mulf %202, %210 : vector<8x32xf32>
    %212 = arith.addf %200, %211 : vector<8x32xf32>
    %c5_139 = arith.constant 5 : index
    %c0_140 = arith.constant 0 : index
    %c0_141 = arith.constant 0 : index
    %213 = vector.load %arg9[%c5_139, %c0_140, %c0_141] : memref<6x8x32xf32, #tpu.memory_space<vmem>>, vector<1x8x32xf32>
    %214 = vector.shape_cast %213 : vector<1x8x32xf32> to vector<8x32xf32>
    %215 = arith.mulf %214, %152 : vector<8x32xf32>
    %cst_142 = arith.constant dense<0.000000e+00> : vector<8x4xf32>
    %216 = tpu.matmul %215, %0, %cst_142 {dimension_numbers = #tpu.dot_dimension_numbers<[1], [0], [0], [1], [0, 0, 1, 1], [], []>} : vector<8x32xf32>, vector<32x4xf32>, vector<8x4xf32> -> vector<8x4xf32>
    %217 = math.exp %216 : vector<8x4xf32>
    %cst_143 = arith.constant dense<0.000000e+00> : vector<8xf32>
    %218 = vector.multi_reduction <add>, %217, %cst_143 [1] : vector<8x4xf32> to vector<8xf32>
    %219 = vector.shape_cast %218 : vector<8xf32> to vector<8x1xf32>
    %220 = vector.broadcast %219 : vector<8x1xf32> to vector<8x4xf32>
    %221 = arith.divf %217, %220 : vector<8x4xf32>
    %cst_144 = arith.constant dense<0.000000e+00> : vector<8x32xf32>
    %222 = tpu.matmul %221, %1, %cst_144 {dimension_numbers = #tpu.dot_dimension_numbers<[1], [0], [0], [1], [0, 0, 1, 1], [], []>} : vector<8x4xf32>, vector<4x32xf32>, vector<8x32xf32> -> vector<8x32xf32>
    %223 = arith.mulf %214, %222 : vector<8x32xf32>
    %224 = arith.addf %212, %223 : vector<8x32xf32>
    %225 = arith.mulf %224, %224 : vector<8x32xf32>
    %cst_145 = arith.constant dense<0.000000e+00> : vector<8x4xf32>
    %226 = tpu.matmul %225, %0, %cst_145 {dimension_numbers = #tpu.dot_dimension_numbers<[1], [0], [0], [1], [0, 0, 1, 1], [], []>} : vector<8x32xf32>, vector<32x4xf32>, vector<8x4xf32> -> vector<8x4xf32>
    %227 = math.sqrt %226 : vector<8x4xf32>
    %cst_146 = arith.constant 9.99999996E-13 : f32
    %228 = vector.broadcast %cst_146 : f32 to vector<8x4xf32>
    %229 = arith.maximumf %227, %228 : vector<8x4xf32>
    %cst_147 = arith.constant 1.000000e+00 : f32
    %230 = vector.broadcast %cst_147 : f32 to vector<8x4xf32>
    %231 = arith.divf %230, %229 : vector<8x4xf32>
    %cst_148 = arith.constant dense<0.000000e+00> : vector<8x32xf32>
    %232 = tpu.matmul %231, %1, %cst_148 {dimension_numbers = #tpu.dot_dimension_numbers<[1], [0], [0], [1], [0, 0, 1, 1], [], []>} : vector<8x4xf32>, vector<4x32xf32>, vector<8x32xf32> -> vector<8x32xf32>
    %233 = arith.mulf %224, %232 : vector<8x32xf32>
    %c0_149 = arith.constant 0 : index
    %c0_150 = arith.constant 0 : index
    %c0_151 = arith.constant 0 : index
    %234 = vector.load %arg9[%c0_149, %c0_150, %c0_151] : memref<6x8x32xf32, #tpu.memory_space<vmem>>, vector<1x8x32xf32>
    %235 = vector.shape_cast %234 : vector<1x8x32xf32> to vector<8x32xf32>
    %236 = arith.mulf %235, %233 : vector<8x32xf32>
    %cst_152 = arith.constant dense<0.000000e+00> : vector<8x4xf32>
    %237 = tpu.matmul %236, %0, %cst_152 {dimension_numbers = #tpu.dot_dimension_numbers<[1], [0], [0], [1], [0, 0, 1, 1], [], []>} : vector<8x32xf32>, vector<32x4xf32>, vector<8x4xf32> -> vector<8x4xf32>
    %238 = math.exp %237 : vector<8x4xf32>
    %cst_153 = arith.constant dense<0.000000e+00> : vector<8xf32>
    %239 = vector.multi_reduction <add>, %238, %cst_153 [1] : vector<8x4xf32> to vector<8xf32>
    %240 = vector.shape_cast %239 : vector<8xf32> to vector<8x1xf32>
    %241 = vector.broadcast %240 : vector<8x1xf32> to vector<8x4xf32>
    %242 = arith.divf %238, %241 : vector<8x4xf32>
    %cst_154 = arith.constant dense<0.000000e+00> : vector<8x32xf32>
    %243 = tpu.matmul %242, %1, %cst_154 {dimension_numbers = #tpu.dot_dimension_numbers<[1], [0], [0], [1], [0, 0, 1, 1], [], []>} : vector<8x4xf32>, vector<4x32xf32>, vector<8x32xf32> -> vector<8x32xf32>
    %244 = arith.mulf %235, %243 : vector<8x32xf32>
    %245 = arith.addf %20, %244 : vector<8x32xf32>
    %c1_155 = arith.constant 1 : index
    %c0_156 = arith.constant 0 : index
    %c0_157 = arith.constant 0 : index
    %246 = vector.load %arg9[%c1_155, %c0_156, %c0_157] : memref<6x8x32xf32, #tpu.memory_space<vmem>>, vector<1x8x32xf32>
    %247 = vector.shape_cast %246 : vector<1x8x32xf32> to vector<8x32xf32>
    %248 = arith.mulf %247, %233 : vector<8x32xf32>
    %cst_158 = arith.constant dense<0.000000e+00> : vector<8x4xf32>
    %249 = tpu.matmul %248, %0, %cst_158 {dimension_numbers = #tpu.dot_dimension_numbers<[1], [0], [0], [1], [0, 0, 1, 1], [], []>} : vector<8x32xf32>, vector<32x4xf32>, vector<8x4xf32> -> vector<8x4xf32>
    %250 = math.exp %249 : vector<8x4xf32>
    %cst_159 = arith.constant dense<0.000000e+00> : vector<8xf32>
    %251 = vector.multi_reduction <add>, %250, %cst_159 [1] : vector<8x4xf32> to vector<8xf32>
    %252 = vector.shape_cast %251 : vector<8xf32> to vector<8x1xf32>
    %253 = vector.broadcast %252 : vector<8x1xf32> to vector<8x4xf32>
    %254 = arith.divf %250, %253 : vector<8x4xf32>
    %cst_160 = arith.constant dense<0.000000e+00> : vector<8x32xf32>
    %255 = tpu.matmul %254, %1, %cst_160 {dimension_numbers = #tpu.dot_dimension_numbers<[1], [0], [0], [1], [0, 0, 1, 1], [], []>} : vector<8x4xf32>, vector<4x32xf32>, vector<8x32xf32> -> vector<8x32xf32>
    %256 = arith.mulf %247, %255 : vector<8x32xf32>
    %257 = arith.addf %245, %256 : vector<8x32xf32>
    %c2_161 = arith.constant 2 : index
    %c0_162 = arith.constant 0 : index
    %c0_163 = arith.constant 0 : index
    %258 = vector.load %arg9[%c2_161, %c0_162, %c0_163] : memref<6x8x32xf32, #tpu.memory_space<vmem>>, vector<1x8x32xf32>
    %259 = vector.shape_cast %258 : vector<1x8x32xf32> to vector<8x32xf32>
    %260 = arith.mulf %259, %233 : vector<8x32xf32>
    %cst_164 = arith.constant dense<0.000000e+00> : vector<8x4xf32>
    %261 = tpu.matmul %260, %0, %cst_164 {dimension_numbers = #tpu.dot_dimension_numbers<[1], [0], [0], [1], [0, 0, 1, 1], [], []>} : vector<8x32xf32>, vector<32x4xf32>, vector<8x4xf32> -> vector<8x4xf32>
    %262 = math.exp %261 : vector<8x4xf32>
    %cst_165 = arith.constant dense<0.000000e+00> : vector<8xf32>
    %263 = vector.multi_reduction <add>, %262, %cst_165 [1] : vector<8x4xf32> to vector<8xf32>
    %264 = vector.shape_cast %263 : vector<8xf32> to vector<8x1xf32>
    %265 = vector.broadcast %264 : vector<8x1xf32> to vector<8x4xf32>
    %266 = arith.divf %262, %265 : vector<8x4xf32>
    %cst_166 = arith.constant dense<0.000000e+00> : vector<8x32xf32>
    %267 = tpu.matmul %266, %1, %cst_166 {dimension_numbers = #tpu.dot_dimension_numbers<[1], [0], [0], [1], [0, 0, 1, 1], [], []>} : vector<8x4xf32>, vector<4x32xf32>, vector<8x32xf32> -> vector<8x32xf32>
    %268 = arith.mulf %259, %267 : vector<8x32xf32>
    %269 = arith.addf %257, %268 : vector<8x32xf32>
    %c3_167 = arith.constant 3 : index
    %c0_168 = arith.constant 0 : index
    %c0_169 = arith.constant 0 : index
    %270 = vector.load %arg9[%c3_167, %c0_168, %c0_169] : memref<6x8x32xf32, #tpu.memory_space<vmem>>, vector<1x8x32xf32>
    %271 = vector.shape_cast %270 : vector<1x8x32xf32> to vector<8x32xf32>
    %272 = arith.mulf %271, %233 : vector<8x32xf32>
    %cst_170 = arith.constant dense<0.000000e+00> : vector<8x4xf32>
    %273 = tpu.matmul %272, %0, %cst_170 {dimension_numbers = #tpu.dot_dimension_numbers<[1], [0], [0], [1], [0, 0, 1, 1], [], []>} : vector<8x32xf32>, vector<32x4xf32>, vector<8x4xf32> -> vector<8x4xf32>
    %274 = math.exp %273 : vector<8x4xf32>
    %cst_171 = arith.constant dense<0.000000e+00> : vector<8xf32>
    %275 = vector.multi_reduction <add>, %274, %cst_171 [1] : vector<8x4xf32> to vector<8xf32>
    %276 = vector.shape_cast %275 : vector<8xf32> to vector<8x1xf32>
    %277 = vector.broadcast %276 : vector<8x1xf32> to vector<8x4xf32>
    %278 = arith.divf %274, %277 : vector<8x4xf32>
    %cst_172 = arith.constant dense<0.000000e+00> : vector<8x32xf32>
    %279 = tpu.matmul %278, %1, %cst_172 {dimension_numbers = #tpu.dot_dimension_numbers<[1], [0], [0], [1], [0, 0, 1, 1], [], []>} : vector<8x4xf32>, vector<4x32xf32>, vector<8x32xf32> -> vector<8x32xf32>
    %280 = arith.mulf %271, %279 : vector<8x32xf32>
    %281 = arith.addf %269, %280 : vector<8x32xf32>
    %c4_173 = arith.constant 4 : index
    %c0_174 = arith.constant 0 : index
    %c0_175 = arith.constant 0 : index
    %282 = vector.load %arg9[%c4_173, %c0_174, %c0_175] : memref<6x8x32xf32, #tpu.memory_space<vmem>>, vector<1x8x32xf32>
    %283 = vector.shape_cast %282 : vector<1x8x32xf32> to vector<8x32xf32>
    %284 = arith.mulf %283, %233 : vector<8x32xf32>
    %cst_176 = arith.constant dense<0.000000e+00> : vector<8x4xf32>
    %285 = tpu.matmul %284, %0, %cst_176 {dimension_numbers = #tpu.dot_dimension_numbers<[1], [0], [0], [1], [0, 0, 1, 1], [], []>} : vector<8x32xf32>, vector<32x4xf32>, vector<8x4xf32> -> vector<8x4xf32>
    %286 = math.exp %285 : vector<8x4xf32>
    %cst_177 = arith.constant dense<0.000000e+00> : vector<8xf32>
    %287 = vector.multi_reduction <add>, %286, %cst_177 [1] : vector<8x4xf32> to vector<8xf32>
    %288 = vector.shape_cast %287 : vector<8xf32> to vector<8x1xf32>
    %289 = vector.broadcast %288 : vector<8x1xf32> to vector<8x4xf32>
    %290 = arith.divf %286, %289 : vector<8x4xf32>
    %cst_178 = arith.constant dense<0.000000e+00> : vector<8x32xf32>
    %291 = tpu.matmul %290, %1, %cst_178 {dimension_numbers = #tpu.dot_dimension_numbers<[1], [0], [0], [1], [0, 0, 1, 1], [], []>} : vector<8x4xf32>, vector<4x32xf32>, vector<8x32xf32> -> vector<8x32xf32>
    %292 = arith.mulf %283, %291 : vector<8x32xf32>
    %293 = arith.addf %281, %292 : vector<8x32xf32>
    %c5_179 = arith.constant 5 : index
    %c0_180 = arith.constant 0 : index
    %c0_181 = arith.constant 0 : index
    %294 = vector.load %arg9[%c5_179, %c0_180, %c0_181] : memref<6x8x32xf32, #tpu.memory_space<vmem>>, vector<1x8x32xf32>
    %295 = vector.shape_cast %294 : vector<1x8x32xf32> to vector<8x32xf32>
    %296 = arith.mulf %295, %233 : vector<8x32xf32>
    %cst_182 = arith.constant dense<0.000000e+00> : vector<8x4xf32>
    %297 = tpu.matmul %296, %0, %cst_182 {dimension_numbers = #tpu.dot_dimension_numbers<[1], [0], [0], [1], [0, 0, 1, 1], [], []>} : vector<8x32xf32>, vector<32x4xf32>, vector<8x4xf32> -> vector<8x4xf32>
    %298 = math.exp %297 : vector<8x4xf32>
    %cst_183 = arith.constant dense<0.000000e+00> : vector<8xf32>
    %299 = vector.multi_reduction <add>, %298, %cst_183 [1] : vector<8x4xf32> to vector<8xf32>
    %300 = vector.shape_cast %299 : vector<8xf32> to vector<8x1xf32>
    %301 = vector.broadcast %300 : vector<8x1xf32> to vector<8x4xf32>
    %302 = arith.divf %298, %301 : vector<8x4xf32>
    %cst_184 = arith.constant dense<0.000000e+00> : vector<8x32xf32>
    %303 = tpu.matmul %302, %1, %cst_184 {dimension_numbers = #tpu.dot_dimension_numbers<[1], [0], [0], [1], [0, 0, 1, 1], [], []>} : vector<8x4xf32>, vector<4x32xf32>, vector<8x32xf32> -> vector<8x32xf32>
    %304 = arith.mulf %295, %303 : vector<8x32xf32>
    %305 = arith.addf %293, %304 : vector<8x32xf32>
    %c0_185 = arith.constant 0 : index
    %c0_186 = arith.constant 0 : index
    %306 = vector.load %arg6[%c0_185, %c0_186] : memref<8x32xf32, #tpu.memory_space<vmem>>, vector<8x32xf32>
    tpu.vector_store %arg6[%c0_185, %c0_186], %305 {strides = array<i32>} : memref<8x32xf32, #tpu.memory_space<vmem>>, vector<8x32xf32>,
    %c0_187 = arith.constant 0 : index
    %c0_188 = arith.constant 0 : index
    %307 = vector.load %arg7[%c0_187, %c0_188] : memref<8x32xf32, #tpu.memory_space<vmem>>, vector<8x32xf32>
    tpu.vector_store %arg7[%c0_187, %c0_188], %20 {strides = array<i32>} : memref<8x32xf32, #tpu.memory_space<vmem>>, vector<8x32xf32>,
    %308 = tpu.concatenate %242, %254, %266, %278, %290, %302 in 1 : vector<8x4xf32>, vector<8x4xf32>, vector<8x4xf32>, vector<8x4xf32>, vector<8x4xf32>, vector<8x4xf32> -> vector<8x24xf32>
    %c0_189 = arith.constant 0 : index
    %c0_190 = arith.constant 0 : index
    %309 = vector.load %arg8[%c0_189, %c0_190] : memref<8x24xf32, #tpu.memory_space<vmem>>, vector<8x24xf32>
    tpu.vector_store %arg8[%c0_189, %c0_190], %308 {strides = array<i32>} : memref<8x24xf32, #tpu.memory_space<vmem>>, vector<8x24xf32>,
    return
  }
  func.func @transform_0(%arg0: i32, %arg1: memref<96xi32, #tpu.memory_space<smem>>) -> (i32, i32) {
    %c0_i32 = arith.constant 0 : i32
    %c0_i32_0 = arith.constant 0 : i32
    %c0_i32_1 = arith.constant 0 : i32
    return %c0_i32, %c0_i32_0 : i32, i32
  }
  func.func @transform_1(%arg0: i32, %arg1: memref<96xi32, #tpu.memory_space<smem>>) -> (i32, i32) {
    %c0_i32 = arith.constant 0 : i32
    %c0_i32_0 = arith.constant 0 : i32
    return %arg0, %c0_i32 : i32, i32
  }
  func.func @transform_2(%arg0: i32, %arg1: memref<96xi32, #tpu.memory_space<smem>>) -> (i32, i32) {
    %c0_i32 = arith.constant 0 : i32
    %c0_i32_0 = arith.constant 0 : i32
    %c0_i32_1 = arith.constant 0 : i32
    return %c0_i32, %c0_i32_0 : i32, i32
  }
  func.func @transform_3(%arg0: i32, %arg1: memref<96xi32, #tpu.memory_space<smem>>) -> (i32, i32) {
    %c0_i32 = arith.constant 0 : i32
    %c0_i32_0 = arith.constant 0 : i32
    %c0_i32_1 = arith.constant 0 : i32
    return %c0_i32, %c0_i32_0 : i32, i32
  }
  func.func @transform_4(%arg0: i32, %arg1: memref<96xi32, #tpu.memory_space<smem>>) -> (i32, i32) {
    %c0_i32 = arith.constant 0 : i32
    %c0_i32_0 = arith.constant 0 : i32
    return %arg0, %c0_i32 : i32, i32
  }
  func.func @transform_5(%arg0: i32, %arg1: memref<96xi32, #tpu.memory_space<smem>>) -> (i32, i32) {
    %c0_i32 = arith.constant 0 : i32
    %c0_i32_0 = arith.constant 0 : i32
    return %arg0, %c0_i32 : i32, i32
  }
  func.func @transform_6(%arg0: i32, %arg1: memref<96xi32, #tpu.memory_space<smem>>) -> (i32, i32) {
    %c0_i32 = arith.constant 0 : i32
    %c0_i32_0 = arith.constant 0 : i32
    return %arg0, %c0_i32 : i32, i32
  }
}

module attributes {stable_mosaic.version = 11 : i64} {
  func.func @_routing_kernel(%arg0: i32, %arg1: memref<96xi32, #tpu.memory_space<smem>>, %arg2: memref<16x32xf32, #tpu.memory_space<vmem>>, %arg3: memref<8x6xf32, #tpu.memory_space<vmem>>, %arg4: memref<32x4xf32, #tpu.memory_space<vmem>>, %arg5: memref<4x32xf32, #tpu.memory_space<vmem>>, %arg6: memref<8x32xf32, #tpu.memory_space<vmem>>, %arg7: memref<6x8x32xf32, #tpu.memory_space<vmem>>) attributes {dimension_semantics = [#tpu.dimension_semantics<parallel>], iteration_bounds = array<i64: 2>, scalar_prefetch = 1 : i64, scratch_operands = 1 : i64, tpu.core_type = #tpu.core_type<tc>, window_params = [{pipeline_mode = #tpu.pipeline_mode<synchronous>, transform_indices = @transform_0, window_bounds = array<i64: 16, 32>}, {transform_indices = @transform_1, window_bounds = array<i64: 8, 6>}, {pipeline_mode = #tpu.pipeline_mode<synchronous>, transform_indices = @transform_2, window_bounds = array<i64: 32, 4>}, {pipeline_mode = #tpu.pipeline_mode<synchronous>, transform_indices = @transform_3, window_bounds = array<i64: 4, 32>}, {transform_indices = @transform_4, window_bounds = array<i64: 8, 32>}]} {
    %c0 = arith.constant 0 : index
    %c0_0 = arith.constant 0 : index
    %0 = vector.load %arg4[%c0, %c0_0] : memref<32x4xf32, #tpu.memory_space<vmem>>, vector<32x4xf32>
    %c0_1 = arith.constant 0 : index
    %c0_2 = arith.constant 0 : index
    %1 = vector.load %arg5[%c0_1, %c0_2] : memref<4x32xf32, #tpu.memory_space<vmem>>, vector<4x32xf32>
    %c8_i32 = arith.constant 8 : i32
    %2 = arith.muli %arg0, %c8_i32 : i32
    %3 = tpu.assume_multiple %2, 8 : i32
    %c0_i32 = arith.constant 0 : i32
    %c8_i32_3 = arith.constant 8 : i32
    %4 = arith.addi %c0_i32, %c8_i32_3 : i32
    %c1_i32 = arith.constant 1 : i32
    scf.for %arg8 = %c0_i32 to %4 step %c1_i32  : i32 {
      %c1_i32_188 = arith.constant 1 : i32
      %309 = arith.muli %arg8, %c1_i32_188 : i32
      %c0_i32_189 = arith.constant 0 : i32
      %310 = arith.addi %c0_i32_189, %309 : i32
      %c0_i32_190 = arith.constant 0 : i32
      %311 = arith.addi %c0_i32_190, %3 : i32
      %312 = arith.addi %311, %310 : i32
      %313 = arith.index_cast %312 : i32 to index
      %314 = memref.load %arg1[%313] : memref<96xi32, #tpu.memory_space<smem>>
      %315 = arith.index_cast %314 : i32 to index
      %c0_191 = arith.constant 0 : index
      %316 = vector.load %arg2[%315, %c0_191] : memref<16x32xf32, #tpu.memory_space<vmem>>, vector<1x32xf32>
      %c0_192 = arith.constant 0 : index
      %317 = arith.index_cast %310 : i32 to index
      %c0_193 = arith.constant 0 : index
      %318 = vector.load %arg7[%c0_192, %317, %c0_193] : memref<6x8x32xf32, #tpu.memory_space<vmem>>, vector<1x1x32xf32>
      %319 = vector.shape_cast %318 : vector<1x1x32xf32> to vector<1x32xf32>
      %320 = vector.shape_cast %316 : vector<1x32xf32> to vector<1x1x32xf32>
      tpu.vector_store %arg7[%c0_192, %317, %c0_193], %320 {strides = array<i32>} : memref<6x8x32xf32, #tpu.memory_space<vmem>>, vector<1x1x32xf32>,
    }
    %c8_i32_4 = arith.constant 8 : i32
    %c0_i32_5 = arith.constant 0 : i32
    %c8_i32_6 = arith.constant 8 : i32
    %5 = arith.addi %c0_i32_5, %c8_i32_6 : i32
    %c1_i32_7 = arith.constant 1 : i32
    scf.for %arg8 = %c0_i32_5 to %5 step %c1_i32_7  : i32 {
      %c1_i32_188 = arith.constant 1 : i32
      %309 = arith.muli %arg8, %c1_i32_188 : i32
      %c0_i32_189 = arith.constant 0 : i32
      %310 = arith.addi %c0_i32_189, %309 : i32
      %c16_i32 = arith.constant 16 : i32
      %311 = arith.addi %c16_i32, %3 : i32
      %312 = arith.addi %311, %310 : i32
      %313 = arith.index_cast %312 : i32 to index
      %314 = memref.load %arg1[%313] : memref<96xi32, #tpu.memory_space<smem>>
      %315 = arith.index_cast %314 : i32 to index
      %c0_190 = arith.constant 0 : index
      %316 = vector.load %arg2[%315, %c0_190] : memref<16x32xf32, #tpu.memory_space<vmem>>, vector<1x32xf32>
      %c1_191 = arith.constant 1 : index
      %317 = arith.index_cast %310 : i32 to index
      %c0_192 = arith.constant 0 : index
      %318 = vector.load %arg7[%c1_191, %317, %c0_192] : memref<6x8x32xf32, #tpu.memory_space<vmem>>, vector<1x1x32xf32>
      %319 = vector.shape_cast %318 : vector<1x1x32xf32> to vector<1x32xf32>
      %320 = vector.shape_cast %316 : vector<1x32xf32> to vector<1x1x32xf32>
      tpu.vector_store %arg7[%c1_191, %317, %c0_192], %320 {strides = array<i32>} : memref<6x8x32xf32, #tpu.memory_space<vmem>>, vector<1x1x32xf32>,
    }
    %c8_i32_8 = arith.constant 8 : i32
    %c0_i32_9 = arith.constant 0 : i32
    %c8_i32_10 = arith.constant 8 : i32
    %6 = arith.addi %c0_i32_9, %c8_i32_10 : i32
    %c1_i32_11 = arith.constant 1 : i32
    scf.for %arg8 = %c0_i32_9 to %6 step %c1_i32_11  : i32 {
      %c1_i32_188 = arith.constant 1 : i32
      %309 = arith.muli %arg8, %c1_i32_188 : i32
      %c0_i32_189 = arith.constant 0 : i32
      %310 = arith.addi %c0_i32_189, %309 : i32
      %c32_i32 = arith.constant 32 : i32
      %311 = arith.addi %c32_i32, %3 : i32
      %312 = arith.addi %311, %310 : i32
      %313 = arith.index_cast %312 : i32 to index
      %314 = memref.load %arg1[%313] : memref<96xi32, #tpu.memory_space<smem>>
      %315 = arith.index_cast %314 : i32 to index
      %c0_190 = arith.constant 0 : index
      %316 = vector.load %arg2[%315, %c0_190] : memref<16x32xf32, #tpu.memory_space<vmem>>, vector<1x32xf32>
      %c2_191 = arith.constant 2 : index
      %317 = arith.index_cast %310 : i32 to index
      %c0_192 = arith.constant 0 : index
      %318 = vector.load %arg7[%c2_191, %317, %c0_192] : memref<6x8x32xf32, #tpu.memory_space<vmem>>, vector<1x1x32xf32>
      %319 = vector.shape_cast %318 : vector<1x1x32xf32> to vector<1x32xf32>
      %320 = vector.shape_cast %316 : vector<1x32xf32> to vector<1x1x32xf32>
      tpu.vector_store %arg7[%c2_191, %317, %c0_192], %320 {strides = array<i32>} : memref<6x8x32xf32, #tpu.memory_space<vmem>>, vector<1x1x32xf32>,
    }
    %c8_i32_12 = arith.constant 8 : i32
    %c0_i32_13 = arith.constant 0 : i32
    %c8_i32_14 = arith.constant 8 : i32
    %7 = arith.addi %c0_i32_13, %c8_i32_14 : i32
    %c1_i32_15 = arith.constant 1 : i32
    scf.for %arg8 = %c0_i32_13 to %7 step %c1_i32_15  : i32 {
      %c1_i32_188 = arith.constant 1 : i32
      %309 = arith.muli %arg8, %c1_i32_188 : i32
      %c0_i32_189 = arith.constant 0 : i32
      %310 = arith.addi %c0_i32_189, %309 : i32
      %c48_i32 = arith.constant 48 : i32
      %311 = arith.addi %c48_i32, %3 : i32
      %312 = arith.addi %311, %310 : i32
      %313 = arith.index_cast %312 : i32 to index
      %314 = memref.load %arg1[%313] : memref<96xi32, #tpu.memory_space<smem>>
      %315 = arith.index_cast %314 : i32 to index
      %c0_190 = arith.constant 0 : index
      %316 = vector.load %arg2[%315, %c0_190] : memref<16x32xf32, #tpu.memory_space<vmem>>, vector<1x32xf32>
      %c3_191 = arith.constant 3 : index
      %317 = arith.index_cast %310 : i32 to index
      %c0_192 = arith.constant 0 : index
      %318 = vector.load %arg7[%c3_191, %317, %c0_192] : memref<6x8x32xf32, #tpu.memory_space<vmem>>, vector<1x1x32xf32>
      %319 = vector.shape_cast %318 : vector<1x1x32xf32> to vector<1x32xf32>
      %320 = vector.shape_cast %316 : vector<1x32xf32> to vector<1x1x32xf32>
      tpu.vector_store %arg7[%c3_191, %317, %c0_192], %320 {strides = array<i32>} : memref<6x8x32xf32, #tpu.memory_space<vmem>>, vector<1x1x32xf32>,
    }
    %c8_i32_16 = arith.constant 8 : i32
    %c0_i32_17 = arith.constant 0 : i32
    %c8_i32_18 = arith.constant 8 : i32
    %8 = arith.addi %c0_i32_17, %c8_i32_18 : i32
    %c1_i32_19 = arith.constant 1 : i32
    scf.for %arg8 = %c0_i32_17 to %8 step %c1_i32_19  : i32 {
      %c1_i32_188 = arith.constant 1 : i32
      %309 = arith.muli %arg8, %c1_i32_188 : i32
      %c0_i32_189 = arith.constant 0 : i32
      %310 = arith.addi %c0_i32_189, %309 : i32
      %c64_i32 = arith.constant 64 : i32
      %311 = arith.addi %c64_i32, %3 : i32
      %312 = arith.addi %311, %310 : i32
      %313 = arith.index_cast %312 : i32 to index
      %314 = memref.load %arg1[%313] : memref<96xi32, #tpu.memory_space<smem>>
      %315 = arith.index_cast %314 : i32 to index
      %c0_190 = arith.constant 0 : index
      %316 = vector.load %arg2[%315, %c0_190] : memref<16x32xf32, #tpu.memory_space<vmem>>, vector<1x32xf32>
      %c4_191 = arith.constant 4 : index
      %317 = arith.index_cast %310 : i32 to index
      %c0_192 = arith.constant 0 : index
      %318 = vector.load %arg7[%c4_191, %317, %c0_192] : memref<6x8x32xf32, #tpu.memory_space<vmem>>, vector<1x1x32xf32>
      %319 = vector.shape_cast %318 : vector<1x1x32xf32> to vector<1x32xf32>
      %320 = vector.shape_cast %316 : vector<1x32xf32> to vector<1x1x32xf32>
      tpu.vector_store %arg7[%c4_191, %317, %c0_192], %320 {strides = array<i32>} : memref<6x8x32xf32, #tpu.memory_space<vmem>>, vector<1x1x32xf32>,
    }
    %c8_i32_20 = arith.constant 8 : i32
    %c0_i32_21 = arith.constant 0 : i32
    %c8_i32_22 = arith.constant 8 : i32
    %9 = arith.addi %c0_i32_21, %c8_i32_22 : i32
    %c1_i32_23 = arith.constant 1 : i32
    scf.for %arg8 = %c0_i32_21 to %9 step %c1_i32_23  : i32 {
      %c1_i32_188 = arith.constant 1 : i32
      %309 = arith.muli %arg8, %c1_i32_188 : i32
      %c0_i32_189 = arith.constant 0 : i32
      %310 = arith.addi %c0_i32_189, %309 : i32
      %c80_i32 = arith.constant 80 : i32
      %311 = arith.addi %c80_i32, %3 : i32
      %312 = arith.addi %311, %310 : i32
      %313 = arith.index_cast %312 : i32 to index
      %314 = memref.load %arg1[%313] : memref<96xi32, #tpu.memory_space<smem>>
      %315 = arith.index_cast %314 : i32 to index
      %c0_190 = arith.constant 0 : index
      %316 = vector.load %arg2[%315, %c0_190] : memref<16x32xf32, #tpu.memory_space<vmem>>, vector<1x32xf32>
      %c5_191 = arith.constant 5 : index
      %317 = arith.index_cast %310 : i32 to index
      %c0_192 = arith.constant 0 : index
      %318 = vector.load %arg7[%c5_191, %317, %c0_192] : memref<6x8x32xf32, #tpu.memory_space<vmem>>, vector<1x1x32xf32>
      %319 = vector.shape_cast %318 : vector<1x1x32xf32> to vector<1x32xf32>
      %320 = vector.shape_cast %316 : vector<1x32xf32> to vector<1x1x32xf32>
      tpu.vector_store %arg7[%c5_191, %317, %c0_192], %320 {strides = array<i32>} : memref<6x8x32xf32, #tpu.memory_space<vmem>>, vector<1x1x32xf32>,
    }
    %c8_i32_24 = arith.constant 8 : i32
    %10 = arith.index_cast %3 : i32 to index
    %c0_25 = arith.constant 0 : index
    %11 = vector.load %arg2[%10, %c0_25] : memref<16x32xf32, #tpu.memory_space<vmem>>, vector<8x32xf32>
    %12 = arith.mulf %11, %11 : vector<8x32xf32>
    %cst = arith.constant dense<0.000000e+00> : vector<8x4xf32>
    %13 = tpu.matmul %12, %0, %cst {dimension_numbers = #tpu.dot_dimension_numbers<[1], [0], [0], [1], [0, 0, 1, 1], [], []>} : vector<8x32xf32>, vector<32x4xf32>, vector<8x4xf32> -> vector<8x4xf32>
    %14 = math.sqrt %13 : vector<8x4xf32>
    %cst_26 = arith.constant 9.99999996E-13 : f32
    %15 = vector.broadcast %cst_26 : f32 to vector<8x4xf32>
    %16 = arith.maximumf %14, %15 : vector<8x4xf32>
    %cst_27 = arith.constant 1.000000e+00 : f32
    %17 = vector.broadcast %cst_27 : f32 to vector<8x4xf32>
    %18 = arith.divf %17, %16 : vector<8x4xf32>
    %cst_28 = arith.constant dense<0.000000e+00> : vector<8x32xf32>
    %19 = tpu.matmul %18, %1, %cst_28 {dimension_numbers = #tpu.dot_dimension_numbers<[1], [0], [0], [1], [0, 0, 1, 1], [], []>} : vector<8x4xf32>, vector<4x32xf32>, vector<8x32xf32> -> vector<8x32xf32>
    %20 = arith.mulf %11, %19 : vector<8x32xf32>
    %c0_29 = arith.constant 0 : index
    %c0_30 = arith.constant 0 : index
    %21 = vector.load %arg3[%c0_29, %c0_30] : memref<8x6xf32, #tpu.memory_space<vmem>>, vector<8x6xf32>
    %c0_31 = arith.constant 0 : index
    %c0_32 = arith.constant 0 : index
    %c0_33 = arith.constant 0 : index
    %22 = vector.load %arg7[%c0_31, %c0_32, %c0_33] : memref<6x8x32xf32, #tpu.memory_space<vmem>>, vector<1x8x32xf32>
    %23 = vector.shape_cast %22 : vector<1x8x32xf32> to vector<8x32xf32>
    %24 = vector.extract_strided_slice %21 {offsets = [0, 0], sizes = [8, 1], strides = [1, 1]} : vector<8x6xf32> to vector<8x1xf32>
    %25 = vector.broadcast %24 : vector<8x1xf32> to vector<8x32xf32>
    %26 = arith.mulf %23, %25 : vector<8x32xf32>
    %27 = arith.mulf %26, %26 : vector<8x32xf32>
    %cst_34 = arith.constant dense<0.000000e+00> : vector<8x4xf32>
    %28 = tpu.matmul %27, %0, %cst_34 {dimension_numbers = #tpu.dot_dimension_numbers<[1], [0], [0], [1], [0, 0, 1, 1], [], []>} : vector<8x32xf32>, vector<32x4xf32>, vector<8x4xf32> -> vector<8x4xf32>
    %29 = math.sqrt %28 : vector<8x4xf32>
    %cst_35 = arith.constant 9.99999996E-13 : f32
    %30 = vector.broadcast %cst_35 : f32 to vector<8x4xf32>
    %31 = arith.maximumf %29, %30 : vector<8x4xf32>
    %cst_36 = arith.constant 1.000000e+00 : f32
    %32 = vector.broadcast %cst_36 : f32 to vector<8x4xf32>
    %33 = arith.divf %32, %31 : vector<8x4xf32>
    %cst_37 = arith.constant dense<0.000000e+00> : vector<8x32xf32>
    %34 = tpu.matmul %33, %1, %cst_37 {dimension_numbers = #tpu.dot_dimension_numbers<[1], [0], [0], [1], [0, 0, 1, 1], [], []>} : vector<8x4xf32>, vector<4x32xf32>, vector<8x32xf32> -> vector<8x32xf32>
    %35 = arith.mulf %26, %34 : vector<8x32xf32>
    %c0_38 = arith.constant 0 : index
    %c0_39 = arith.constant 0 : index
    %c0_40 = arith.constant 0 : index
    %36 = vector.load %arg7[%c0_38, %c0_39, %c0_40] : memref<6x8x32xf32, #tpu.memory_space<vmem>>, vector<1x8x32xf32>
    %37 = vector.shape_cast %36 : vector<1x8x32xf32> to vector<8x32xf32>
    %38 = vector.shape_cast %35 : vector<8x32xf32> to vector<1x8x32xf32>
    tpu.vector_store %arg7[%c0_38, %c0_39, %c0_40], %38 {strides = array<i32>} : memref<6x8x32xf32, #tpu.memory_space<vmem>>, vector<1x8x32xf32>,
    %c1 = arith.constant 1 : index
    %c0_41 = arith.constant 0 : index
    %c0_42 = arith.constant 0 : index
    %39 = vector.load %arg7[%c1, %c0_41, %c0_42] : memref<6x8x32xf32, #tpu.memory_space<vmem>>, vector<1x8x32xf32>
    %40 = vector.shape_cast %39 : vector<1x8x32xf32> to vector<8x32xf32>
    %41 = vector.extract_strided_slice %21 {offsets = [0, 1], sizes = [8, 1], strides = [1, 1]} : vector<8x6xf32> to vector<8x1xf32>
    %42 = vector.broadcast %41 : vector<8x1xf32> to vector<8x32xf32>
    %43 = arith.mulf %40, %42 : vector<8x32xf32>
    %44 = arith.mulf %43, %43 : vector<8x32xf32>
    %cst_43 = arith.constant dense<0.000000e+00> : vector<8x4xf32>
    %45 = tpu.matmul %44, %0, %cst_43 {dimension_numbers = #tpu.dot_dimension_numbers<[1], [0], [0], [1], [0, 0, 1, 1], [], []>} : vector<8x32xf32>, vector<32x4xf32>, vector<8x4xf32> -> vector<8x4xf32>
    %46 = math.sqrt %45 : vector<8x4xf32>
    %cst_44 = arith.constant 9.99999996E-13 : f32
    %47 = vector.broadcast %cst_44 : f32 to vector<8x4xf32>
    %48 = arith.maximumf %46, %47 : vector<8x4xf32>
    %cst_45 = arith.constant 1.000000e+00 : f32
    %49 = vector.broadcast %cst_45 : f32 to vector<8x4xf32>
    %50 = arith.divf %49, %48 : vector<8x4xf32>
    %cst_46 = arith.constant dense<0.000000e+00> : vector<8x32xf32>
    %51 = tpu.matmul %50, %1, %cst_46 {dimension_numbers = #tpu.dot_dimension_numbers<[1], [0], [0], [1], [0, 0, 1, 1], [], []>} : vector<8x4xf32>, vector<4x32xf32>, vector<8x32xf32> -> vector<8x32xf32>
    %52 = arith.mulf %43, %51 : vector<8x32xf32>
    %c1_47 = arith.constant 1 : index
    %c0_48 = arith.constant 0 : index
    %c0_49 = arith.constant 0 : index
    %53 = vector.load %arg7[%c1_47, %c0_48, %c0_49] : memref<6x8x32xf32, #tpu.memory_space<vmem>>, vector<1x8x32xf32>
    %54 = vector.shape_cast %53 : vector<1x8x32xf32> to vector<8x32xf32>
    %55 = vector.shape_cast %52 : vector<8x32xf32> to vector<1x8x32xf32>
    tpu.vector_store %arg7[%c1_47, %c0_48, %c0_49], %55 {strides = array<i32>} : memref<6x8x32xf32, #tpu.memory_space<vmem>>, vector<1x8x32xf32>,
    %c2 = arith.constant 2 : index
    %c0_50 = arith.constant 0 : index
    %c0_51 = arith.constant 0 : index
    %56 = vector.load %arg7[%c2, %c0_50, %c0_51] : memref<6x8x32xf32, #tpu.memory_space<vmem>>, vector<1x8x32xf32>
    %57 = vector.shape_cast %56 : vector<1x8x32xf32> to vector<8x32xf32>
    %58 = vector.extract_strided_slice %21 {offsets = [0, 2], sizes = [8, 1], strides = [1, 1]} : vector<8x6xf32> to vector<8x1xf32>
    %59 = vector.broadcast %58 : vector<8x1xf32> to vector<8x32xf32>
    %60 = arith.mulf %57, %59 : vector<8x32xf32>
    %61 = arith.mulf %60, %60 : vector<8x32xf32>
    %cst_52 = arith.constant dense<0.000000e+00> : vector<8x4xf32>
    %62 = tpu.matmul %61, %0, %cst_52 {dimension_numbers = #tpu.dot_dimension_numbers<[1], [0], [0], [1], [0, 0, 1, 1], [], []>} : vector<8x32xf32>, vector<32x4xf32>, vector<8x4xf32> -> vector<8x4xf32>
    %63 = math.sqrt %62 : vector<8x4xf32>
    %cst_53 = arith.constant 9.99999996E-13 : f32
    %64 = vector.broadcast %cst_53 : f32 to vector<8x4xf32>
    %65 = arith.maximumf %63, %64 : vector<8x4xf32>
    %cst_54 = arith.constant 1.000000e+00 : f32
    %66 = vector.broadcast %cst_54 : f32 to vector<8x4xf32>
    %67 = arith.divf %66, %65 : vector<8x4xf32>
    %cst_55 = arith.constant dense<0.000000e+00> : vector<8x32xf32>
    %68 = tpu.matmul %67, %1, %cst_55 {dimension_numbers = #tpu.dot_dimension_numbers<[1], [0], [0], [1], [0, 0, 1, 1], [], []>} : vector<8x4xf32>, vector<4x32xf32>, vector<8x32xf32> -> vector<8x32xf32>
    %69 = arith.mulf %60, %68 : vector<8x32xf32>
    %c2_56 = arith.constant 2 : index
    %c0_57 = arith.constant 0 : index
    %c0_58 = arith.constant 0 : index
    %70 = vector.load %arg7[%c2_56, %c0_57, %c0_58] : memref<6x8x32xf32, #tpu.memory_space<vmem>>, vector<1x8x32xf32>
    %71 = vector.shape_cast %70 : vector<1x8x32xf32> to vector<8x32xf32>
    %72 = vector.shape_cast %69 : vector<8x32xf32> to vector<1x8x32xf32>
    tpu.vector_store %arg7[%c2_56, %c0_57, %c0_58], %72 {strides = array<i32>} : memref<6x8x32xf32, #tpu.memory_space<vmem>>, vector<1x8x32xf32>,
    %c3 = arith.constant 3 : index
    %c0_59 = arith.constant 0 : index
    %c0_60 = arith.constant 0 : index
    %73 = vector.load %arg7[%c3, %c0_59, %c0_60] : memref<6x8x32xf32, #tpu.memory_space<vmem>>, vector<1x8x32xf32>
    %74 = vector.shape_cast %73 : vector<1x8x32xf32> to vector<8x32xf32>
    %75 = vector.extract_strided_slice %21 {offsets = [0, 3], sizes = [8, 1], strides = [1, 1]} : vector<8x6xf32> to vector<8x1xf32>
    %76 = vector.broadcast %75 : vector<8x1xf32> to vector<8x32xf32>
    %77 = arith.mulf %74, %76 : vector<8x32xf32>
    %78 = arith.mulf %77, %77 : vector<8x32xf32>
    %cst_61 = arith.constant dense<0.000000e+00> : vector<8x4xf32>
    %79 = tpu.matmul %78, %0, %cst_61 {dimension_numbers = #tpu.dot_dimension_numbers<[1], [0], [0], [1], [0, 0, 1, 1], [], []>} : vector<8x32xf32>, vector<32x4xf32>, vector<8x4xf32> -> vector<8x4xf32>
    %80 = math.sqrt %79 : vector<8x4xf32>
    %cst_62 = arith.constant 9.99999996E-13 : f32
    %81 = vector.broadcast %cst_62 : f32 to vector<8x4xf32>
    %82 = arith.maximumf %80, %81 : vector<8x4xf32>
    %cst_63 = arith.constant 1.000000e+00 : f32
    %83 = vector.broadcast %cst_63 : f32 to vector<8x4xf32>
    %84 = arith.divf %83, %82 : vector<8x4xf32>
    %cst_64 = arith.constant dense<0.000000e+00> : vector<8x32xf32>
    %85 = tpu.matmul %84, %1, %cst_64 {dimension_numbers = #tpu.dot_dimension_numbers<[1], [0], [0], [1], [0, 0, 1, 1], [], []>} : vector<8x4xf32>, vector<4x32xf32>, vector<8x32xf32> -> vector<8x32xf32>
    %86 = arith.mulf %77, %85 : vector<8x32xf32>
    %c3_65 = arith.constant 3 : index
    %c0_66 = arith.constant 0 : index
    %c0_67 = arith.constant 0 : index
    %87 = vector.load %arg7[%c3_65, %c0_66, %c0_67] : memref<6x8x32xf32, #tpu.memory_space<vmem>>, vector<1x8x32xf32>
    %88 = vector.shape_cast %87 : vector<1x8x32xf32> to vector<8x32xf32>
    %89 = vector.shape_cast %86 : vector<8x32xf32> to vector<1x8x32xf32>
    tpu.vector_store %arg7[%c3_65, %c0_66, %c0_67], %89 {strides = array<i32>} : memref<6x8x32xf32, #tpu.memory_space<vmem>>, vector<1x8x32xf32>,
    %c4 = arith.constant 4 : index
    %c0_68 = arith.constant 0 : index
    %c0_69 = arith.constant 0 : index
    %90 = vector.load %arg7[%c4, %c0_68, %c0_69] : memref<6x8x32xf32, #tpu.memory_space<vmem>>, vector<1x8x32xf32>
    %91 = vector.shape_cast %90 : vector<1x8x32xf32> to vector<8x32xf32>
    %92 = vector.extract_strided_slice %21 {offsets = [0, 4], sizes = [8, 1], strides = [1, 1]} : vector<8x6xf32> to vector<8x1xf32>
    %93 = vector.broadcast %92 : vector<8x1xf32> to vector<8x32xf32>
    %94 = arith.mulf %91, %93 : vector<8x32xf32>
    %95 = arith.mulf %94, %94 : vector<8x32xf32>
    %cst_70 = arith.constant dense<0.000000e+00> : vector<8x4xf32>
    %96 = tpu.matmul %95, %0, %cst_70 {dimension_numbers = #tpu.dot_dimension_numbers<[1], [0], [0], [1], [0, 0, 1, 1], [], []>} : vector<8x32xf32>, vector<32x4xf32>, vector<8x4xf32> -> vector<8x4xf32>
    %97 = math.sqrt %96 : vector<8x4xf32>
    %cst_71 = arith.constant 9.99999996E-13 : f32
    %98 = vector.broadcast %cst_71 : f32 to vector<8x4xf32>
    %99 = arith.maximumf %97, %98 : vector<8x4xf32>
    %cst_72 = arith.constant 1.000000e+00 : f32
    %100 = vector.broadcast %cst_72 : f32 to vector<8x4xf32>
    %101 = arith.divf %100, %99 : vector<8x4xf32>
    %cst_73 = arith.constant dense<0.000000e+00> : vector<8x32xf32>
    %102 = tpu.matmul %101, %1, %cst_73 {dimension_numbers = #tpu.dot_dimension_numbers<[1], [0], [0], [1], [0, 0, 1, 1], [], []>} : vector<8x4xf32>, vector<4x32xf32>, vector<8x32xf32> -> vector<8x32xf32>
    %103 = arith.mulf %94, %102 : vector<8x32xf32>
    %c4_74 = arith.constant 4 : index
    %c0_75 = arith.constant 0 : index
    %c0_76 = arith.constant 0 : index
    %104 = vector.load %arg7[%c4_74, %c0_75, %c0_76] : memref<6x8x32xf32, #tpu.memory_space<vmem>>, vector<1x8x32xf32>
    %105 = vector.shape_cast %104 : vector<1x8x32xf32> to vector<8x32xf32>
    %106 = vector.shape_cast %103 : vector<8x32xf32> to vector<1x8x32xf32>
    tpu.vector_store %arg7[%c4_74, %c0_75, %c0_76], %106 {strides = array<i32>} : memref<6x8x32xf32, #tpu.memory_space<vmem>>, vector<1x8x32xf32>,
    %c5 = arith.constant 5 : index
    %c0_77 = arith.constant 0 : index
    %c0_78 = arith.constant 0 : index
    %107 = vector.load %arg7[%c5, %c0_77, %c0_78] : memref<6x8x32xf32, #tpu.memory_space<vmem>>, vector<1x8x32xf32>
    %108 = vector.shape_cast %107 : vector<1x8x32xf32> to vector<8x32xf32>
    %109 = vector.extract_strided_slice %21 {offsets = [0, 5], sizes = [8, 1], strides = [1, 1]} : vector<8x6xf32> to vector<8x1xf32>
    %110 = vector.broadcast %109 : vector<8x1xf32> to vector<8x32xf32>
    %111 = arith.mulf %108, %110 : vector<8x32xf32>
    %112 = arith.mulf %111, %111 : vector<8x32xf32>
    %cst_79 = arith.constant dense<0.000000e+00> : vector<8x4xf32>
    %113 = tpu.matmul %112, %0, %cst_79 {dimension_numbers = #tpu.dot_dimension_numbers<[1], [0], [0], [1], [0, 0, 1, 1], [], []>} : vector<8x32xf32>, vector<32x4xf32>, vector<8x4xf32> -> vector<8x4xf32>
    %114 = math.sqrt %113 : vector<8x4xf32>
    %cst_80 = arith.constant 9.99999996E-13 : f32
    %115 = vector.broadcast %cst_80 : f32 to vector<8x4xf32>
    %116 = arith.maximumf %114, %115 : vector<8x4xf32>
    %cst_81 = arith.constant 1.000000e+00 : f32
    %117 = vector.broadcast %cst_81 : f32 to vector<8x4xf32>
    %118 = arith.divf %117, %116 : vector<8x4xf32>
    %cst_82 = arith.constant dense<0.000000e+00> : vector<8x32xf32>
    %119 = tpu.matmul %118, %1, %cst_82 {dimension_numbers = #tpu.dot_dimension_numbers<[1], [0], [0], [1], [0, 0, 1, 1], [], []>} : vector<8x4xf32>, vector<4x32xf32>, vector<8x32xf32> -> vector<8x32xf32>
    %120 = arith.mulf %111, %119 : vector<8x32xf32>
    %c5_83 = arith.constant 5 : index
    %c0_84 = arith.constant 0 : index
    %c0_85 = arith.constant 0 : index
    %121 = vector.load %arg7[%c5_83, %c0_84, %c0_85] : memref<6x8x32xf32, #tpu.memory_space<vmem>>, vector<1x8x32xf32>
    %122 = vector.shape_cast %121 : vector<1x8x32xf32> to vector<8x32xf32>
    %123 = vector.shape_cast %120 : vector<8x32xf32> to vector<1x8x32xf32>
    tpu.vector_store %arg7[%c5_83, %c0_84, %c0_85], %123 {strides = array<i32>} : memref<6x8x32xf32, #tpu.memory_space<vmem>>, vector<1x8x32xf32>,
    %c0_86 = arith.constant 0 : index
    %c0_87 = arith.constant 0 : index
    %c0_88 = arith.constant 0 : index
    %124 = vector.load %arg7[%c0_86, %c0_87, %c0_88] : memref<6x8x32xf32, #tpu.memory_space<vmem>>, vector<1x8x32xf32>
    %125 = vector.shape_cast %124 : vector<1x8x32xf32> to vector<8x32xf32>
    %c1_89 = arith.constant 1 : index
    %c0_90 = arith.constant 0 : index
    %c0_91 = arith.constant 0 : index
    %126 = vector.load %arg7[%c1_89, %c0_90, %c0_91] : memref<6x8x32xf32, #tpu.memory_space<vmem>>, vector<1x8x32xf32>
    %127 = vector.shape_cast %126 : vector<1x8x32xf32> to vector<8x32xf32>
    %128 = arith.addf %125, %127 : vector<8x32xf32>
    %c2_92 = arith.constant 2 : index
    %c0_93 = arith.constant 0 : index
    %c0_94 = arith.constant 0 : index
    %129 = vector.load %arg7[%c2_92, %c0_93, %c0_94] : memref<6x8x32xf32, #tpu.memory_space<vmem>>, vector<1x8x32xf32>
    %130 = vector.shape_cast %129 : vector<1x8x32xf32> to vector<8x32xf32>
    %131 = arith.addf %128, %130 : vector<8x32xf32>
    %c3_95 = arith.constant 3 : index
    %c0_96 = arith.constant 0 : index
    %c0_97 = arith.constant 0 : index
    %132 = vector.load %arg7[%c3_95, %c0_96, %c0_97] : memref<6x8x32xf32, #tpu.memory_space<vmem>>, vector<1x8x32xf32>
    %133 = vector.shape_cast %132 : vector<1x8x32xf32> to vector<8x32xf32>
    %134 = arith.addf %131, %133 : vector<8x32xf32>
    %c4_98 = arith.constant 4 : index
    %c0_99 = arith.constant 0 : index
    %c0_100 = arith.constant 0 : index
    %135 = vector.load %arg7[%c4_98, %c0_99, %c0_100] : memref<6x8x32xf32, #tpu.memory_space<vmem>>, vector<1x8x32xf32>
    %136 = vector.shape_cast %135 : vector<1x8x32xf32> to vector<8x32xf32>
    %137 = arith.addf %134, %136 : vector<8x32xf32>
    %c5_101 = arith.constant 5 : index
    %c0_102 = arith.constant 0 : index
    %c0_103 = arith.constant 0 : index
    %138 = vector.load %arg7[%c5_101, %c0_102, %c0_103] : memref<6x8x32xf32, #tpu.memory_space<vmem>>, vector<1x8x32xf32>
    %139 = vector.shape_cast %138 : vector<1x8x32xf32> to vector<8x32xf32>
    %140 = arith.addf %137, %139 : vector<8x32xf32>
    %cst_104 = arith.constant 2.500000e-01 : f32
    %141 = vector.broadcast %cst_104 : f32 to vector<8x32xf32>
    %142 = arith.mulf %140, %141 : vector<8x32xf32>
    %143 = arith.addf %20, %142 : vector<8x32xf32>
    %144 = arith.mulf %143, %143 : vector<8x32xf32>
    %cst_105 = arith.constant dense<0.000000e+00> : vector<8x4xf32>
    %145 = tpu.matmul %144, %0, %cst_105 {dimension_numbers = #tpu.dot_dimension_numbers<[1], [0], [0], [1], [0, 0, 1, 1], [], []>} : vector<8x32xf32>, vector<32x4xf32>, vector<8x4xf32> -> vector<8x4xf32>
    %146 = math.sqrt %145 : vector<8x4xf32>
    %cst_106 = arith.constant 9.99999996E-13 : f32
    %147 = vector.broadcast %cst_106 : f32 to vector<8x4xf32>
    %148 = arith.maximumf %146, %147 : vector<8x4xf32>
    %cst_107 = arith.constant 1.000000e+00 : f32
    %149 = vector.broadcast %cst_107 : f32 to vector<8x4xf32>
    %150 = arith.divf %149, %148 : vector<8x4xf32>
    %cst_108 = arith.constant dense<0.000000e+00> : vector<8x32xf32>
    %151 = tpu.matmul %150, %1, %cst_108 {dimension_numbers = #tpu.dot_dimension_numbers<[1], [0], [0], [1], [0, 0, 1, 1], [], []>} : vector<8x4xf32>, vector<4x32xf32>, vector<8x32xf32> -> vector<8x32xf32>
    %152 = arith.mulf %143, %151 : vector<8x32xf32>
    %c0_109 = arith.constant 0 : index
    %c0_110 = arith.constant 0 : index
    %c0_111 = arith.constant 0 : index
    %153 = vector.load %arg7[%c0_109, %c0_110, %c0_111] : memref<6x8x32xf32, #tpu.memory_space<vmem>>, vector<1x8x32xf32>
    %154 = vector.shape_cast %153 : vector<1x8x32xf32> to vector<8x32xf32>
    %155 = arith.mulf %154, %152 : vector<8x32xf32>
    %cst_112 = arith.constant dense<0.000000e+00> : vector<8x4xf32>
    %156 = tpu.matmul %155, %0, %cst_112 {dimension_numbers = #tpu.dot_dimension_numbers<[1], [0], [0], [1], [0, 0, 1, 1], [], []>} : vector<8x32xf32>, vector<32x4xf32>, vector<8x4xf32> -> vector<8x4xf32>
    %157 = math.exp %156 : vector<8x4xf32>
    %cst_113 = arith.constant dense<0.000000e+00> : vector<8xf32>
    %158 = vector.multi_reduction <add>, %157, %cst_113 [1] : vector<8x4xf32> to vector<8xf32>
    %159 = vector.shape_cast %158 : vector<8xf32> to vector<8x1xf32>
    %160 = vector.broadcast %159 : vector<8x1xf32> to vector<8x4xf32>
    %161 = arith.divf %157, %160 : vector<8x4xf32>
    %cst_114 = arith.constant dense<0.000000e+00> : vector<8x32xf32>
    %162 = tpu.matmul %161, %1, %cst_114 {dimension_numbers = #tpu.dot_dimension_numbers<[1], [0], [0], [1], [0, 0, 1, 1], [], []>} : vector<8x4xf32>, vector<4x32xf32>, vector<8x32xf32> -> vector<8x32xf32>
    %163 = arith.mulf %154, %162 : vector<8x32xf32>
    %164 = arith.addf %20, %163 : vector<8x32xf32>
    %c1_115 = arith.constant 1 : index
    %c0_116 = arith.constant 0 : index
    %c0_117 = arith.constant 0 : index
    %165 = vector.load %arg7[%c1_115, %c0_116, %c0_117] : memref<6x8x32xf32, #tpu.memory_space<vmem>>, vector<1x8x32xf32>
    %166 = vector.shape_cast %165 : vector<1x8x32xf32> to vector<8x32xf32>
    %167 = arith.mulf %166, %152 : vector<8x32xf32>
    %cst_118 = arith.constant dense<0.000000e+00> : vector<8x4xf32>
    %168 = tpu.matmul %167, %0, %cst_118 {dimension_numbers = #tpu.dot_dimension_numbers<[1], [0], [0], [1], [0, 0, 1, 1], [], []>} : vector<8x32xf32>, vector<32x4xf32>, vector<8x4xf32> -> vector<8x4xf32>
    %169 = math.exp %168 : vector<8x4xf32>
    %cst_119 = arith.constant dense<0.000000e+00> : vector<8xf32>
    %170 = vector.multi_reduction <add>, %169, %cst_119 [1] : vector<8x4xf32> to vector<8xf32>
    %171 = vector.shape_cast %170 : vector<8xf32> to vector<8x1xf32>
    %172 = vector.broadcast %171 : vector<8x1xf32> to vector<8x4xf32>
    %173 = arith.divf %169, %172 : vector<8x4xf32>
    %cst_120 = arith.constant dense<0.000000e+00> : vector<8x32xf32>
    %174 = tpu.matmul %173, %1, %cst_120 {dimension_numbers = #tpu.dot_dimension_numbers<[1], [0], [0], [1], [0, 0, 1, 1], [], []>} : vector<8x4xf32>, vector<4x32xf32>, vector<8x32xf32> -> vector<8x32xf32>
    %175 = arith.mulf %166, %174 : vector<8x32xf32>
    %176 = arith.addf %164, %175 : vector<8x32xf32>
    %c2_121 = arith.constant 2 : index
    %c0_122 = arith.constant 0 : index
    %c0_123 = arith.constant 0 : index
    %177 = vector.load %arg7[%c2_121, %c0_122, %c0_123] : memref<6x8x32xf32, #tpu.memory_space<vmem>>, vector<1x8x32xf32>
    %178 = vector.shape_cast %177 : vector<1x8x32xf32> to vector<8x32xf32>
    %179 = arith.mulf %178, %152 : vector<8x32xf32>
    %cst_124 = arith.constant dense<0.000000e+00> : vector<8x4xf32>
    %180 = tpu.matmul %179, %0, %cst_124 {dimension_numbers = #tpu.dot_dimension_numbers<[1], [0], [0], [1], [0, 0, 1, 1], [], []>} : vector<8x32xf32>, vector<32x4xf32>, vector<8x4xf32> -> vector<8x4xf32>
    %181 = math.exp %180 : vector<8x4xf32>
    %cst_125 = arith.constant dense<0.000000e+00> : vector<8xf32>
    %182 = vector.multi_reduction <add>, %181, %cst_125 [1] : vector<8x4xf32> to vector<8xf32>
    %183 = vector.shape_cast %182 : vector<8xf32> to vector<8x1xf32>
    %184 = vector.broadcast %183 : vector<8x1xf32> to vector<8x4xf32>
    %185 = arith.divf %181, %184 : vector<8x4xf32>
    %cst_126 = arith.constant dense<0.000000e+00> : vector<8x32xf32>
    %186 = tpu.matmul %185, %1, %cst_126 {dimension_numbers = #tpu.dot_dimension_numbers<[1], [0], [0], [1], [0, 0, 1, 1], [], []>} : vector<8x4xf32>, vector<4x32xf32>, vector<8x32xf32> -> vector<8x32xf32>
    %187 = arith.mulf %178, %186 : vector<8x32xf32>
    %188 = arith.addf %176, %187 : vector<8x32xf32>
    %c3_127 = arith.constant 3 : index
    %c0_128 = arith.constant 0 : index
    %c0_129 = arith.constant 0 : index
    %189 = vector.load %arg7[%c3_127, %c0_128, %c0_129] : memref<6x8x32xf32, #tpu.memory_space<vmem>>, vector<1x8x32xf32>
    %190 = vector.shape_cast %189 : vector<1x8x32xf32> to vector<8x32xf32>
    %191 = arith.mulf %190, %152 : vector<8x32xf32>
    %cst_130 = arith.constant dense<0.000000e+00> : vector<8x4xf32>
    %192 = tpu.matmul %191, %0, %cst_130 {dimension_numbers = #tpu.dot_dimension_numbers<[1], [0], [0], [1], [0, 0, 1, 1], [], []>} : vector<8x32xf32>, vector<32x4xf32>, vector<8x4xf32> -> vector<8x4xf32>
    %193 = math.exp %192 : vector<8x4xf32>
    %cst_131 = arith.constant dense<0.000000e+00> : vector<8xf32>
    %194 = vector.multi_reduction <add>, %193, %cst_131 [1] : vector<8x4xf32> to vector<8xf32>
    %195 = vector.shape_cast %194 : vector<8xf32> to vector<8x1xf32>
    %196 = vector.broadcast %195 : vector<8x1xf32> to vector<8x4xf32>
    %197 = arith.divf %193, %196 : vector<8x4xf32>
    %cst_132 = arith.constant dense<0.000000e+00> : vector<8x32xf32>
    %198 = tpu.matmul %197, %1, %cst_132 {dimension_numbers = #tpu.dot_dimension_numbers<[1], [0], [0], [1], [0, 0, 1, 1], [], []>} : vector<8x4xf32>, vector<4x32xf32>, vector<8x32xf32> -> vector<8x32xf32>
    %199 = arith.mulf %190, %198 : vector<8x32xf32>
    %200 = arith.addf %188, %199 : vector<8x32xf32>
    %c4_133 = arith.constant 4 : index
    %c0_134 = arith.constant 0 : index
    %c0_135 = arith.constant 0 : index
    %201 = vector.load %arg7[%c4_133, %c0_134, %c0_135] : memref<6x8x32xf32, #tpu.memory_space<vmem>>, vector<1x8x32xf32>
    %202 = vector.shape_cast %201 : vector<1x8x32xf32> to vector<8x32xf32>
    %203 = arith.mulf %202, %152 : vector<8x32xf32>
    %cst_136 = arith.constant dense<0.000000e+00> : vector<8x4xf32>
    %204 = tpu.matmul %203, %0, %cst_136 {dimension_numbers = #tpu.dot_dimension_numbers<[1], [0], [0], [1], [0, 0, 1, 1], [], []>} : vector<8x32xf32>, vector<32x4xf32>, vector<8x4xf32> -> vector<8x4xf32>
    %205 = math.exp %204 : vector<8x4xf32>
    %cst_137 = arith.constant dense<0.000000e+00> : vector<8xf32>
    %206 = vector.multi_reduction <add>, %205, %cst_137 [1] : vector<8x4xf32> to vector<8xf32>
    %207 = vector.shape_cast %206 : vector<8xf32> to vector<8x1xf32>
    %208 = vector.broadcast %207 : vector<8x1xf32> to vector<8x4xf32>
    %209 = arith.divf %205, %208 : vector<8x4xf32>
    %cst_138 = arith.constant dense<0.000000e+00> : vector<8x32xf32>
    %210 = tpu.matmul %209, %1, %cst_138 {dimension_numbers = #tpu.dot_dimension_numbers<[1], [0], [0], [1], [0, 0, 1, 1], [], []>} : vector<8x4xf32>, vector<4x32xf32>, vector<8x32xf32> -> vector<8x32xf32>
    %211 = arith.mulf %202, %210 : vector<8x32xf32>
    %212 = arith.addf %200, %211 : vector<8x32xf32>
    %c5_139 = arith.constant 5 : index
    %c0_140 = arith.constant 0 : index
    %c0_141 = arith.constant 0 : index
    %213 = vector.load %arg7[%c5_139, %c0_140, %c0_141] : memref<6x8x32xf32, #tpu.memory_space<vmem>>, vector<1x8x32xf32>
    %214 = vector.shape_cast %213 : vector<1x8x32xf32> to vector<8x32xf32>
    %215 = arith.mulf %214, %152 : vector<8x32xf32>
    %cst_142 = arith.constant dense<0.000000e+00> : vector<8x4xf32>
    %216 = tpu.matmul %215, %0, %cst_142 {dimension_numbers = #tpu.dot_dimension_numbers<[1], [0], [0], [1], [0, 0, 1, 1], [], []>} : vector<8x32xf32>, vector<32x4xf32>, vector<8x4xf32> -> vector<8x4xf32>
    %217 = math.exp %216 : vector<8x4xf32>
    %cst_143 = arith.constant dense<0.000000e+00> : vector<8xf32>
    %218 = vector.multi_reduction <add>, %217, %cst_143 [1] : vector<8x4xf32> to vector<8xf32>
    %219 = vector.shape_cast %218 : vector<8xf32> to vector<8x1xf32>
    %220 = vector.broadcast %219 : vector<8x1xf32> to vector<8x4xf32>
    %221 = arith.divf %217, %220 : vector<8x4xf32>
    %cst_144 = arith.constant dense<0.000000e+00> : vector<8x32xf32>
    %222 = tpu.matmul %221, %1, %cst_144 {dimension_numbers = #tpu.dot_dimension_numbers<[1], [0], [0], [1], [0, 0, 1, 1], [], []>} : vector<8x4xf32>, vector<4x32xf32>, vector<8x32xf32> -> vector<8x32xf32>
    %223 = arith.mulf %214, %222 : vector<8x32xf32>
    %224 = arith.addf %212, %223 : vector<8x32xf32>
    %225 = arith.mulf %224, %224 : vector<8x32xf32>
    %cst_145 = arith.constant dense<0.000000e+00> : vector<8x4xf32>
    %226 = tpu.matmul %225, %0, %cst_145 {dimension_numbers = #tpu.dot_dimension_numbers<[1], [0], [0], [1], [0, 0, 1, 1], [], []>} : vector<8x32xf32>, vector<32x4xf32>, vector<8x4xf32> -> vector<8x4xf32>
    %227 = math.sqrt %226 : vector<8x4xf32>
    %cst_146 = arith.constant 9.99999996E-13 : f32
    %228 = vector.broadcast %cst_146 : f32 to vector<8x4xf32>
    %229 = arith.maximumf %227, %228 : vector<8x4xf32>
    %cst_147 = arith.constant 1.000000e+00 : f32
    %230 = vector.broadcast %cst_147 : f32 to vector<8x4xf32>
    %231 = arith.divf %230, %229 : vector<8x4xf32>
    %cst_148 = arith.constant dense<0.000000e+00> : vector<8x32xf32>
    %232 = tpu.matmul %231, %1, %cst_148 {dimension_numbers = #tpu.dot_dimension_numbers<[1], [0], [0], [1], [0, 0, 1, 1], [], []>} : vector<8x4xf32>, vector<4x32xf32>, vector<8x32xf32> -> vector<8x32xf32>
    %233 = arith.mulf %224, %232 : vector<8x32xf32>
    %c0_149 = arith.constant 0 : index
    %c0_150 = arith.constant 0 : index
    %c0_151 = arith.constant 0 : index
    %234 = vector.load %arg7[%c0_149, %c0_150, %c0_151] : memref<6x8x32xf32, #tpu.memory_space<vmem>>, vector<1x8x32xf32>
    %235 = vector.shape_cast %234 : vector<1x8x32xf32> to vector<8x32xf32>
    %236 = arith.mulf %235, %233 : vector<8x32xf32>
    %cst_152 = arith.constant dense<0.000000e+00> : vector<8x4xf32>
    %237 = tpu.matmul %236, %0, %cst_152 {dimension_numbers = #tpu.dot_dimension_numbers<[1], [0], [0], [1], [0, 0, 1, 1], [], []>} : vector<8x32xf32>, vector<32x4xf32>, vector<8x4xf32> -> vector<8x4xf32>
    %238 = math.exp %237 : vector<8x4xf32>
    %cst_153 = arith.constant dense<0.000000e+00> : vector<8xf32>
    %239 = vector.multi_reduction <add>, %238, %cst_153 [1] : vector<8x4xf32> to vector<8xf32>
    %240 = vector.shape_cast %239 : vector<8xf32> to vector<8x1xf32>
    %241 = vector.broadcast %240 : vector<8x1xf32> to vector<8x4xf32>
    %242 = arith.divf %238, %241 : vector<8x4xf32>
    %cst_154 = arith.constant dense<0.000000e+00> : vector<8x32xf32>
    %243 = tpu.matmul %242, %1, %cst_154 {dimension_numbers = #tpu.dot_dimension_numbers<[1], [0], [0], [1], [0, 0, 1, 1], [], []>} : vector<8x4xf32>, vector<4x32xf32>, vector<8x32xf32> -> vector<8x32xf32>
    %244 = arith.mulf %235, %243 : vector<8x32xf32>
    %245 = arith.addf %20, %244 : vector<8x32xf32>
    %c1_155 = arith.constant 1 : index
    %c0_156 = arith.constant 0 : index
    %c0_157 = arith.constant 0 : index
    %246 = vector.load %arg7[%c1_155, %c0_156, %c0_157] : memref<6x8x32xf32, #tpu.memory_space<vmem>>, vector<1x8x32xf32>
    %247 = vector.shape_cast %246 : vector<1x8x32xf32> to vector<8x32xf32>
    %248 = arith.mulf %247, %233 : vector<8x32xf32>
    %cst_158 = arith.constant dense<0.000000e+00> : vector<8x4xf32>
    %249 = tpu.matmul %248, %0, %cst_158 {dimension_numbers = #tpu.dot_dimension_numbers<[1], [0], [0], [1], [0, 0, 1, 1], [], []>} : vector<8x32xf32>, vector<32x4xf32>, vector<8x4xf32> -> vector<8x4xf32>
    %250 = math.exp %249 : vector<8x4xf32>
    %cst_159 = arith.constant dense<0.000000e+00> : vector<8xf32>
    %251 = vector.multi_reduction <add>, %250, %cst_159 [1] : vector<8x4xf32> to vector<8xf32>
    %252 = vector.shape_cast %251 : vector<8xf32> to vector<8x1xf32>
    %253 = vector.broadcast %252 : vector<8x1xf32> to vector<8x4xf32>
    %254 = arith.divf %250, %253 : vector<8x4xf32>
    %cst_160 = arith.constant dense<0.000000e+00> : vector<8x32xf32>
    %255 = tpu.matmul %254, %1, %cst_160 {dimension_numbers = #tpu.dot_dimension_numbers<[1], [0], [0], [1], [0, 0, 1, 1], [], []>} : vector<8x4xf32>, vector<4x32xf32>, vector<8x32xf32> -> vector<8x32xf32>
    %256 = arith.mulf %247, %255 : vector<8x32xf32>
    %257 = arith.addf %245, %256 : vector<8x32xf32>
    %c2_161 = arith.constant 2 : index
    %c0_162 = arith.constant 0 : index
    %c0_163 = arith.constant 0 : index
    %258 = vector.load %arg7[%c2_161, %c0_162, %c0_163] : memref<6x8x32xf32, #tpu.memory_space<vmem>>, vector<1x8x32xf32>
    %259 = vector.shape_cast %258 : vector<1x8x32xf32> to vector<8x32xf32>
    %260 = arith.mulf %259, %233 : vector<8x32xf32>
    %cst_164 = arith.constant dense<0.000000e+00> : vector<8x4xf32>
    %261 = tpu.matmul %260, %0, %cst_164 {dimension_numbers = #tpu.dot_dimension_numbers<[1], [0], [0], [1], [0, 0, 1, 1], [], []>} : vector<8x32xf32>, vector<32x4xf32>, vector<8x4xf32> -> vector<8x4xf32>
    %262 = math.exp %261 : vector<8x4xf32>
    %cst_165 = arith.constant dense<0.000000e+00> : vector<8xf32>
    %263 = vector.multi_reduction <add>, %262, %cst_165 [1] : vector<8x4xf32> to vector<8xf32>
    %264 = vector.shape_cast %263 : vector<8xf32> to vector<8x1xf32>
    %265 = vector.broadcast %264 : vector<8x1xf32> to vector<8x4xf32>
    %266 = arith.divf %262, %265 : vector<8x4xf32>
    %cst_166 = arith.constant dense<0.000000e+00> : vector<8x32xf32>
    %267 = tpu.matmul %266, %1, %cst_166 {dimension_numbers = #tpu.dot_dimension_numbers<[1], [0], [0], [1], [0, 0, 1, 1], [], []>} : vector<8x4xf32>, vector<4x32xf32>, vector<8x32xf32> -> vector<8x32xf32>
    %268 = arith.mulf %259, %267 : vector<8x32xf32>
    %269 = arith.addf %257, %268 : vector<8x32xf32>
    %c3_167 = arith.constant 3 : index
    %c0_168 = arith.constant 0 : index
    %c0_169 = arith.constant 0 : index
    %270 = vector.load %arg7[%c3_167, %c0_168, %c0_169] : memref<6x8x32xf32, #tpu.memory_space<vmem>>, vector<1x8x32xf32>
    %271 = vector.shape_cast %270 : vector<1x8x32xf32> to vector<8x32xf32>
    %272 = arith.mulf %271, %233 : vector<8x32xf32>
    %cst_170 = arith.constant dense<0.000000e+00> : vector<8x4xf32>
    %273 = tpu.matmul %272, %0, %cst_170 {dimension_numbers = #tpu.dot_dimension_numbers<[1], [0], [0], [1], [0, 0, 1, 1], [], []>} : vector<8x32xf32>, vector<32x4xf32>, vector<8x4xf32> -> vector<8x4xf32>
    %274 = math.exp %273 : vector<8x4xf32>
    %cst_171 = arith.constant dense<0.000000e+00> : vector<8xf32>
    %275 = vector.multi_reduction <add>, %274, %cst_171 [1] : vector<8x4xf32> to vector<8xf32>
    %276 = vector.shape_cast %275 : vector<8xf32> to vector<8x1xf32>
    %277 = vector.broadcast %276 : vector<8x1xf32> to vector<8x4xf32>
    %278 = arith.divf %274, %277 : vector<8x4xf32>
    %cst_172 = arith.constant dense<0.000000e+00> : vector<8x32xf32>
    %279 = tpu.matmul %278, %1, %cst_172 {dimension_numbers = #tpu.dot_dimension_numbers<[1], [0], [0], [1], [0, 0, 1, 1], [], []>} : vector<8x4xf32>, vector<4x32xf32>, vector<8x32xf32> -> vector<8x32xf32>
    %280 = arith.mulf %271, %279 : vector<8x32xf32>
    %281 = arith.addf %269, %280 : vector<8x32xf32>
    %c4_173 = arith.constant 4 : index
    %c0_174 = arith.constant 0 : index
    %c0_175 = arith.constant 0 : index
    %282 = vector.load %arg7[%c4_173, %c0_174, %c0_175] : memref<6x8x32xf32, #tpu.memory_space<vmem>>, vector<1x8x32xf32>
    %283 = vector.shape_cast %282 : vector<1x8x32xf32> to vector<8x32xf32>
    %284 = arith.mulf %283, %233 : vector<8x32xf32>
    %cst_176 = arith.constant dense<0.000000e+00> : vector<8x4xf32>
    %285 = tpu.matmul %284, %0, %cst_176 {dimension_numbers = #tpu.dot_dimension_numbers<[1], [0], [0], [1], [0, 0, 1, 1], [], []>} : vector<8x32xf32>, vector<32x4xf32>, vector<8x4xf32> -> vector<8x4xf32>
    %286 = math.exp %285 : vector<8x4xf32>
    %cst_177 = arith.constant dense<0.000000e+00> : vector<8xf32>
    %287 = vector.multi_reduction <add>, %286, %cst_177 [1] : vector<8x4xf32> to vector<8xf32>
    %288 = vector.shape_cast %287 : vector<8xf32> to vector<8x1xf32>
    %289 = vector.broadcast %288 : vector<8x1xf32> to vector<8x4xf32>
    %290 = arith.divf %286, %289 : vector<8x4xf32>
    %cst_178 = arith.constant dense<0.000000e+00> : vector<8x32xf32>
    %291 = tpu.matmul %290, %1, %cst_178 {dimension_numbers = #tpu.dot_dimension_numbers<[1], [0], [0], [1], [0, 0, 1, 1], [], []>} : vector<8x4xf32>, vector<4x32xf32>, vector<8x32xf32> -> vector<8x32xf32>
    %292 = arith.mulf %283, %291 : vector<8x32xf32>
    %293 = arith.addf %281, %292 : vector<8x32xf32>
    %c5_179 = arith.constant 5 : index
    %c0_180 = arith.constant 0 : index
    %c0_181 = arith.constant 0 : index
    %294 = vector.load %arg7[%c5_179, %c0_180, %c0_181] : memref<6x8x32xf32, #tpu.memory_space<vmem>>, vector<1x8x32xf32>
    %295 = vector.shape_cast %294 : vector<1x8x32xf32> to vector<8x32xf32>
    %296 = arith.mulf %295, %233 : vector<8x32xf32>
    %cst_182 = arith.constant dense<0.000000e+00> : vector<8x4xf32>
    %297 = tpu.matmul %296, %0, %cst_182 {dimension_numbers = #tpu.dot_dimension_numbers<[1], [0], [0], [1], [0, 0, 1, 1], [], []>} : vector<8x32xf32>, vector<32x4xf32>, vector<8x4xf32> -> vector<8x4xf32>
    %298 = math.exp %297 : vector<8x4xf32>
    %cst_183 = arith.constant dense<0.000000e+00> : vector<8xf32>
    %299 = vector.multi_reduction <add>, %298, %cst_183 [1] : vector<8x4xf32> to vector<8xf32>
    %300 = vector.shape_cast %299 : vector<8xf32> to vector<8x1xf32>
    %301 = vector.broadcast %300 : vector<8x1xf32> to vector<8x4xf32>
    %302 = arith.divf %298, %301 : vector<8x4xf32>
    %cst_184 = arith.constant dense<0.000000e+00> : vector<8x32xf32>
    %303 = tpu.matmul %302, %1, %cst_184 {dimension_numbers = #tpu.dot_dimension_numbers<[1], [0], [0], [1], [0, 0, 1, 1], [], []>} : vector<8x4xf32>, vector<4x32xf32>, vector<8x32xf32> -> vector<8x32xf32>
    %304 = arith.mulf %295, %303 : vector<8x32xf32>
    %305 = arith.addf %293, %304 : vector<8x32xf32>
    %cst_185 = arith.constant 0.000000e+00 : f32
    %306 = vector.broadcast %cst_185 : f32 to vector<8x32xf32>
    %307 = arith.maximumf %305, %306 : vector<8x32xf32>
    %c0_186 = arith.constant 0 : index
    %c0_187 = arith.constant 0 : index
    %308 = vector.load %arg6[%c0_186, %c0_187] : memref<8x32xf32, #tpu.memory_space<vmem>>, vector<8x32xf32>
    tpu.vector_store %arg6[%c0_186, %c0_187], %307 {strides = array<i32>} : memref<8x32xf32, #tpu.memory_space<vmem>>, vector<8x32xf32>,
    return
  }
  func.func @transform_0(%arg0: i32, %arg1: memref<96xi32, #tpu.memory_space<smem>>) -> (i32, i32) {
    %c0_i32 = arith.constant 0 : i32
    %c0_i32_0 = arith.constant 0 : i32
    %c0_i32_1 = arith.constant 0 : i32
    return %c0_i32, %c0_i32_0 : i32, i32
  }
  func.func @transform_1(%arg0: i32, %arg1: memref<96xi32, #tpu.memory_space<smem>>) -> (i32, i32) {
    %c0_i32 = arith.constant 0 : i32
    %c0_i32_0 = arith.constant 0 : i32
    return %arg0, %c0_i32 : i32, i32
  }
  func.func @transform_2(%arg0: i32, %arg1: memref<96xi32, #tpu.memory_space<smem>>) -> (i32, i32) {
    %c0_i32 = arith.constant 0 : i32
    %c0_i32_0 = arith.constant 0 : i32
    %c0_i32_1 = arith.constant 0 : i32
    return %c0_i32, %c0_i32_0 : i32, i32
  }
  func.func @transform_3(%arg0: i32, %arg1: memref<96xi32, #tpu.memory_space<smem>>) -> (i32, i32) {
    %c0_i32 = arith.constant 0 : i32
    %c0_i32_0 = arith.constant 0 : i32
    %c0_i32_1 = arith.constant 0 : i32
    return %c0_i32, %c0_i32_0 : i32, i32
  }
  func.func @transform_4(%arg0: i32, %arg1: memref<96xi32, #tpu.memory_space<smem>>) -> (i32, i32) {
    %c0_i32 = arith.constant 0 : i32
    %c0_i32_0 = arith.constant 0 : i32
    return %arg0, %c0_i32 : i32, i32
  }
}

module attributes {stable_mosaic.version = 11 : i64} {
  func.func @_head_kernel(%arg0: i32, %arg1: memref<8x32xf32, #tpu.memory_space<vmem>>, %arg2: memref<8x32xf32, #tpu.memory_space<vmem>>, %arg3: memref<32x3xf32, #tpu.memory_space<vmem>>, %arg4: memref<1x3xf32, #tpu.memory_space<vmem>>, %arg5: memref<8x3xf32, #tpu.memory_space<vmem>>, %arg6: memref<8x3xf32, #tpu.memory_space<vmem>>) attributes {dimension_semantics = [#tpu.dimension_semantics<parallel>], iteration_bounds = array<i64: 2>, scalar_prefetch = 0 : i64, scratch_operands = 0 : i64, tpu.core_type = #tpu.core_type<tc>, window_params = [{transform_indices = @transform_0, window_bounds = array<i64: 8, 32>}, {transform_indices = @transform_1, window_bounds = array<i64: 8, 32>}, {pipeline_mode = #tpu.pipeline_mode<synchronous>, transform_indices = @transform_2, window_bounds = array<i64: 32, 3>}, {pipeline_mode = #tpu.pipeline_mode<synchronous>, transform_indices = @transform_3, window_bounds = array<i64: 1, 3>}, {transform_indices = @transform_4, window_bounds = array<i64: 8, 3>}, {transform_indices = @transform_5, window_bounds = array<i64: 8, 3>}]} {
    %c0 = arith.constant 0 : index
    %c0_0 = arith.constant 0 : index
    %0 = vector.load %arg1[%c0, %c0_0] : memref<8x32xf32, #tpu.memory_space<vmem>>, vector<8x32xf32>
    %c0_1 = arith.constant 0 : index
    %c0_2 = arith.constant 0 : index
    %1 = vector.load %arg2[%c0_1, %c0_2] : memref<8x32xf32, #tpu.memory_space<vmem>>, vector<8x32xf32>
    %2 = arith.addf %0, %1 : vector<8x32xf32>
    %cst = arith.constant 0.000000e+00 : f32
    %3 = vector.broadcast %cst : f32 to vector<8x32xf32>
    %4 = arith.maximumf %2, %3 : vector<8x32xf32>
    %c0_3 = arith.constant 0 : index
    %c0_4 = arith.constant 0 : index
    %5 = vector.load %arg3[%c0_3, %c0_4] : memref<32x3xf32, #tpu.memory_space<vmem>>, vector<32x3xf32>
    %cst_5 = arith.constant dense<0.000000e+00> : vector<8x3xf32>
    %6 = tpu.matmul %4, %5, %cst_5 {dimension_numbers = #tpu.dot_dimension_numbers<[1], [0], [0], [1], [0, 0, 1, 1], [], []>} : vector<8x32xf32>, vector<32x3xf32>, vector<8x3xf32> -> vector<8x3xf32>
    %c0_6 = arith.constant 0 : index
    %c0_7 = arith.constant 0 : index
    %7 = vector.load %arg4[%c0_6, %c0_7] : memref<1x3xf32, #tpu.memory_space<vmem>>, vector<1x3xf32>
    %8 = vector.broadcast %7 : vector<1x3xf32> to vector<8x3xf32>
    %9 = arith.addf %6, %8 : vector<8x3xf32>
    %cst_8 = arith.constant dense<0xFF800000> : vector<8xf32>
    %10 = vector.multi_reduction <maximumf>, %9, %cst_8 [1] : vector<8x3xf32> to vector<8xf32>
    %11 = vector.shape_cast %10 : vector<8xf32> to vector<8x1xf32>
    %12 = vector.broadcast %11 : vector<8x1xf32> to vector<8x3xf32>
    %13 = arith.subf %9, %12 : vector<8x3xf32>
    %14 = math.exp %13 : vector<8x3xf32>
    %cst_9 = arith.constant dense<0.000000e+00> : vector<8xf32>
    %15 = vector.multi_reduction <add>, %14, %cst_9 [1] : vector<8x3xf32> to vector<8xf32>
    %16 = vector.shape_cast %15 : vector<8xf32> to vector<8x1xf32>
    %17 = math.log %16 : vector<8x1xf32>
    %18 = arith.addf %17, %11 : vector<8x1xf32>
    %19 = vector.broadcast %18 : vector<8x1xf32> to vector<8x3xf32>
    %20 = arith.subf %9, %19 : vector<8x3xf32>
    %c0_10 = arith.constant 0 : index
    %c0_11 = arith.constant 0 : index
    %21 = vector.load %arg5[%c0_10, %c0_11] : memref<8x3xf32, #tpu.memory_space<vmem>>, vector<8x3xf32>
    tpu.vector_store %arg5[%c0_10, %c0_11], %20 {strides = array<i32>} : memref<8x3xf32, #tpu.memory_space<vmem>>, vector<8x3xf32>,
    %c0_12 = arith.constant 0 : index
    %c0_13 = arith.constant 0 : index
    %22 = vector.load %arg6[%c0_12, %c0_13] : memref<8x3xf32, #tpu.memory_space<vmem>>, vector<8x3xf32>
    tpu.vector_store %arg6[%c0_12, %c0_13], %9 {strides = array<i32>} : memref<8x3xf32, #tpu.memory_space<vmem>>, vector<8x3xf32>,
    return
  }
  func.func @transform_0(%arg0: i32) -> (i32, i32) {
    %c0_i32 = arith.constant 0 : i32
    %c0_i32_0 = arith.constant 0 : i32
    return %arg0, %c0_i32 : i32, i32
  }
  func.func @transform_1(%arg0: i32) -> (i32, i32) {
    %c0_i32 = arith.constant 0 : i32
    %c0_i32_0 = arith.constant 0 : i32
    return %arg0, %c0_i32 : i32, i32
  }
  func.func @transform_2(%arg0: i32) -> (i32, i32) {
    %c0_i32 = arith.constant 0 : i32
    %c0_i32_0 = arith.constant 0 : i32
    %c0_i32_1 = arith.constant 0 : i32
    return %c0_i32, %c0_i32_0 : i32, i32
  }
  func.func @transform_3(%arg0: i32) -> (i32, i32) {
    %c0_i32 = arith.constant 0 : i32
    %c0_i32_0 = arith.constant 0 : i32
    %c0_i32_1 = arith.constant 0 : i32
    return %c0_i32, %c0_i32_0 : i32, i32
  }
  func.func @transform_4(%arg0: i32) -> (i32, i32) {
    %c0_i32 = arith.constant 0 : i32
    %c0_i32_0 = arith.constant 0 : i32
    return %arg0, %c0_i32 : i32, i32
  }
  func.func @transform_5(%arg0: i32) -> (i32, i32) {
    %c0_i32 = arith.constant 0 : i32
    %c0_i32_0 = arith.constant 0 : i32
    return %arg0, %c0_i32 : i32, i32
  }
}

</mosaic_0001>

<llo_original>
// kernel: _lambda_.4
$region0: #{_lambda_.4}
  #allocation0 [shape = 'u32[]', space=smem, size = 0x4, offset = 0x4, fixed_abs, tag = 'smem constant byte address 0x4 - core index']
  #allocation1 [shape = 'u32[72,128]{1,0:T(1,128)}', space=vmem, size = 0x9000, scoped, tag = 'internal scratch']
  %s0 = inlined_call_operand.vmem [shape: f32[16,16], index: 0, kind: input, shape index: {}]
  %s1 = inlined_call_operand.vmem [shape: f32[16,32], index: 1, kind: input, shape index: {}]
  %s2 = inlined_call_operand.vmem [shape: f32[1,32], index: 2, kind: input, shape index: {}]
  %s3 = inlined_call_operand.vmem [shape: f32[1,32], index: 3, kind: input, shape index: {}]
  %s4 = inlined_call_operand.vmem [shape: f32[1,32], index: 4, kind: input, shape index: {}]
  %s5 = inlined_call_operand.vmem [shape: f32[32,32], index: 5, kind: input, shape index: {}]
  %s6 = inlined_call_operand.vmem [shape: f32[32,32], index: 6, kind: input, shape index: {}]
  %s7 = inlined_call_operand.vmem [shape: f32[32,4], index: 7, kind: input, shape index: {}]
  %s8 = inlined_call_operand.vmem [shape: f32[4,32], index: 8, kind: input, shape index: {}]
  %s9 = inlined_call_operand.vmem [shape: f32[16,32], index: 9, kind: output, shape index: {0}]
  %s10 = inlined_call_operand.vmem [shape: f32[16,1], index: 10, kind: output, shape index: {1}]
  %11 = xla_tuple %s9, %s10
  %s12 = sld [smem:[#allocation0]]
  $region77: #{_lambda_.4} parent=0
    _
  %s14 = ssub.s32 1, %s12
  %s15 = scalar_select 0, %s14, %s12
  loop: start=0, step=1, limit=4
  $region2: #{_lambda_.4} parent=0 // loop_pre_header
    _
  $region3: #{_lambda_.4} parent=0 // loop_header
    %s17 = sphi 0, %s21
    %p18 = scmp.ge.s32.totalorder %s17, 4
    %s27 = sphi 0, %s29
    %s30 = sphi 0, %s27
    %s31 = sphi 0, %s30
    %s47 = sphi 0, %s31
    %s51 = sphi 0, %s51
    %s53 = sphi 0, %s51
    %s54 = sphi 0, %s53
    %s68 = sphi 0, %s54
    %s72 = sphi 0, %s72
    %s74 = sphi 0, %s72
    %s75 = sphi 0, %s74
    %s89 = sphi 0, %s75
    %s93 = sphi 0, %s93
    %s95 = sphi 0, %s93
    %s96 = sphi 0, %s95
    %s110 = sphi 0, %s96
    %s114 = sphi 0, %s114
    %s116 = sphi 0, %s114
    %s117 = sphi 0, %s116
    %s131 = sphi 0, %s117
    %s135 = sphi 0, %s135
    %s137 = sphi 0, %s135
    %s138 = sphi 0, %s137
    %s152 = sphi 0, %s138
    %s156 = sphi 0, %s156
    %s158 = sphi 0, %s156
    %s159 = sphi 0, %s158
    %s173 = sphi 0, %s159
    %s177 = sphi 0, %s177
    %s179 = sphi 0, %s177
    %s180 = sphi 0, %s179
    %s194 = sphi 0, %s180
    %s198 = sphi 0, %s198
    %s200 = sphi 0, %s198
    %s201 = sphi 0, %s200
    %s215 = sphi 0, %s201
    %s221 = sphi 0, %s223
    %s224 = sphi 0, %s221
    %s225 = sphi 0, %s224
    %s241 = sphi 0, %s225
    %s247 = sphi 0, %s249
    %s250 = sphi 0, %s247
    %s251 = sphi 0, %s250
    %s267 = sphi 0, %s251
  $region4: #{_lambda_.4} parent=0 // loop_header_branch
    %20 = sbr.rel (%p18) target = $region8
  $region5: #{_lambda_.4} parent=0 // loop_body
    %s22 = ssub.s32 %s17, 1
    %s23 = ssub.s32 %s17, 2
    %s24 = sadd.s32 %s17, 1
    %s25 = ssub.s32 %s17, %s24
    %p26 = scmp.eq.s32.totalorder %s25, 0
    %s28 = sadd.s32 %s27, 1
    %s29 = scalar_select %p26, %s27, %s28
    %p32 = pneg %p26
    %p33 = scmp.eq.s32.totalorder %s17, 1
    %p34 = por %p32, %p33
    %p35 = scmp.ne.s32.totalorder %s27, %s30
    %p36 = scmp.eq.s32.totalorder %s17, 0
    %p37 = por %p35, %p36
    %p38 = scmp.ne.s32.totalorder %s27, %s30
    %p39 = scmp.eq.s32.totalorder %s22, 1
    %p40 = por %p38, %p39
    %p41 = scmp.ne.s32.totalorder %s30, %s31
    %p42 = scmp.eq.s32.totalorder %s22, 0
    %p43 = por %p41, %p42
    %p44 = scmp.ne.s32.totalorder %s30, %s31
    %p45 = scmp.eq.s32.totalorder %s23, 1
    %p46 = por %p44, %p45
    %p48 = scmp.ne.s32.totalorder %s31, %s47
    %p49 = scmp.eq.s32.totalorder %s23, 0
    %p50 = por %p48, %p49
    %s52 = sadd.s32 %s51, 1
    %p55 = scmp.eq.s32.totalorder %s17, 1
    %p56 = scmp.ne.s32.totalorder %s51, %s53
    %p57 = scmp.eq.s32.totalorder %s17, 0
    %p58 = por %p56, %p57
    %p59 = scmp.ne.s32.totalorder %s51, %s53
    %p60 = scmp.eq.s32.totalorder %s22, 1
    %p61 = por %p59, %p60
    %p62 = scmp.ne.s32.totalorder %s53, %s54
    %p63 = scmp.eq.s32.totalorder %s22, 0
    %p64 = por %p62, %p63
    %p65 = scmp.ne.s32.totalorder %s53, %s54
    %p66 = scmp.eq.s32.totalorder %s23, 1
    %p67 = por %p65, %p66
    %p69 = scmp.ne.s32.totalorder %s54, %s68
    %p70 = scmp.eq.s32.totalorder %s23, 0
    %p71 = por %p69, %p70
    %s73 = sadd.s32 %s72, 1
    %p76 = scmp.eq.s32.totalorder %s17, 1
    %p77 = scmp.ne.s32.totalorder %s72, %s74
    %p78 = scmp.eq.s32.totalorder %s17, 0
    %p79 = por %p77, %p78
    %p80 = scmp.ne.s32.totalorder %s72, %s74
    %p81 = scmp.eq.s32.totalorder %s22, 1
    %p82 = por %p80, %p81
    %p83 = scmp.ne.s32.totalorder %s74, %s75
    %p84 = scmp.eq.s32.totalorder %s22, 0
    %p85 = por %p83, %p84
    %p86 = scmp.ne.s32.totalorder %s74, %s75
    %p87 = scmp.eq.s32.totalorder %s23, 1
    %p88 = por %p86, %p87
    %p90 = scmp.ne.s32.totalorder %s75, %s89
    %p91 = scmp.eq.s32.totalorder %s23, 0
    %p92 = por %p90, %p91
    %s94 = sadd.s32 %s93, 1
    %p97 = scmp.eq.s32.totalorder %s17, 1
    %p98 = scmp.ne.s32.totalorder %s93, %s95
    %p99 = scmp.eq.s32.totalorder %s17, 0
    %p100 = por %p98, %p99
    %p101 = scmp.ne.s32.totalorder %s93, %s95
    %p102 = scmp.eq.s32.totalorder %s22, 1
    %p103 = por %p101, %p102
    %p104 = scmp.ne.s32.totalorder %s95, %s96
    %p105 = scmp.eq.s32.totalorder %s22, 0
    %p106 = por %p104, %p105
    %p107 = scmp.ne.s32.totalorder %s95, %s96
    %p108 = scmp.eq.s32.totalorder %s23, 1
    %p109 = por %p107, %p108
    %p111 = scmp.ne.s32.totalorder %s96, %s110
    %p112 = scmp.eq.s32.totalorder %s23, 0
    %p113 = por %p111, %p112
    %s115 = sadd.s32 %s114, 1
    %p118 = scmp.eq.s32.totalorder %s17, 1
    %p119 = scmp.ne.s32.totalorder %s114, %s116
    %p120 = scmp.eq.s32.totalorder %s17, 0
    %p121 = por %p119, %p120
    %p122 = scmp.ne.s32.totalorder %s114, %s116
    %p123 = scmp.eq.s32.totalorder %s22, 1
    %p124 = por %p122, %p123
    %p125 = scmp.ne.s32.totalorder %s116, %s117
    %p126 = scmp.eq.s32.totalorder %s22, 0
    %p127 = por %p125, %p126
    %p128 = scmp.ne.s32.totalorder %s116, %s117
    %p129 = scmp.eq.s32.totalorder %s23, 1
    %p130 = por %p128, %p129
    %p132 = scmp.ne.s32.totalorder %s117, %s131
    %p133 = scmp.eq.s32.totalorder %s23, 0
    %p134 = por %p132, %p133
    %s136 = sadd.s32 %s135, 1
    %p139 = scmp.eq.s32.totalorder %s17, 1
    %p140 = scmp.ne.s32.totalorder %s135, %s137
    %p141 = scmp.eq.s32.totalorder %s17, 0
    %p142 = por %p140, %p141
    %p143 = scmp.ne.s32.totalorder %s135, %s137
    %p144 = scmp.eq.s32.totalorder %s22, 1
    %p145 = por %p143, %p144
    %p146 = scmp.ne.s32.totalorder %s137, %s138
    %p147 = scmp.eq.s32.totalorder %s22, 0
    %p148 = por %p146, %p147
    %p149 = scmp.ne.s32.totalorder %s137, %s138
    %p150 = scmp.eq.s32.totalorder %s23, 1
    %p151 = por %p149, %p150
    %p153 = scmp.ne.s32.totalorder %s138, %s152
    %p154 = scmp.eq.s32.totalorder %s23, 0
    %p155 = por %p153, %p154
    %s157 = sadd.s32 %s156, 1
    %p160 = scmp.eq.s32.totalorder %s17, 1
    %p161 = scmp.ne.s32.totalorder %s156, %s158
    %p162 = scmp.eq.s32.totalorder %s17, 0
    %p163 = por %p161, %p162
    %p164 = scmp.ne.s32.totalorder %s156, %s158
    %p165 = scmp.eq.s32.totalorder %s22, 1
    %p166 = por %p164, %p165
    %p167 = scmp.ne.s32.totalorder %s158, %s159
    %p168 = scmp.eq.s32.totalorder %s22, 0
    %p169 = por %p167, %p168
    %p170 = scmp.ne.s32.totalorder %s158, %s159
    %p171 = scmp.eq.s32.totalorder %s23, 1
    %p172 = por %p170, %p171
    %p174 = scmp.ne.s32.totalorder %s159, %s173
    %p175 = scmp.eq.s32.totalorder %s23, 0
    %p176 = por %p174, %p175
    %s178 = sadd.s32 %s177, 1
    %p181 = scmp.eq.s32.totalorder %s17, 1
    %p182 = scmp.ne.s32.totalorder %s177, %s179
    %p183 = scmp.eq.s32.totalorder %s17, 0
    %p184 = por %p182, %p183
    %p185 = scmp.ne.s32.totalorder %s177, %s179
    %p186 = scmp.eq.s32.totalorder %s22, 1
    %p187 = por %p185, %p186
    %p188 = scmp.ne.s32.totalorder %s179, %s180
    %p189 = scmp.eq.s32.totalorder %s22, 0
    %p190 = por %p188, %p189
    %p191 = scmp.ne.s32.totalorder %s179, %s180
    %p192 = scmp.eq.s32.totalorder %s23, 1
    %p193 = por %p191, %p192
    %p195 = scmp.ne.s32.totalorder %s180, %s194
    %p196 = scmp.eq.s32.totalorder %s23, 0
    %p197 = por %p195, %p196
    %s199 = sadd.s32 %s198, 1
    %p202 = scmp.eq.s32.totalorder %s17, 1
    %p203 = scmp.ne.s32.totalorder %s198, %s200
    %p204 = scmp.eq.s32.totalorder %s17, 0
    %p205 = por %p203, %p204
    %p206 = scmp.ne.s32.totalorder %s198, %s200
    %p207 = scmp.eq.s32.totalorder %s22, 1
    %p208 = por %p206, %p207
    %p209 = scmp.ne.s32.totalorder %s200, %s201
    %p210 = scmp.eq.s32.totalorder %s22, 0
    %p211 = por %p209, %p210
    %p212 = scmp.ne.s32.totalorder %s200, %s201
    %p213 = scmp.eq.s32.totalorder %s23, 1
    %p214 = por %p212, %p213
    %p216 = scmp.ne.s32.totalorder %s201, %s215
    %p217 = scmp.eq.s32.totalorder %s23, 0
    %p218 = por %p216, %p217
    %s219 = ssub.s32 %s17, %s24
    %p220 = scmp.eq.s32.totalorder %s219, 0
    %s222 = sadd.s32 %s221, 1
    %s223 = scalar_select %p220, %s221, %s222
    %p226 = pneg %p220
    %p227 = scmp.eq.s32.totalorder %s17, 1
    %p228 = por %p226, %p227
    %p229 = scmp.ne.s32.totalorder %s221, %s224
    %p230 = scmp.eq.s32.totalorder %s17, 0
    %p231 = por %p229, %p230
    %p232 = scmp.ne.s32.totalorder %s221, %s224
    %p233 = scmp.eq.s32.totalorder %s22, 1
    %p234 = por %p232, %p233
    %p235 = scmp.ne.s32.totalorder %s224, %s225
    %p236 = scmp.eq.s32.totalorder %s22, 0
    %p237 = por %p235, %p236
    %p238 = scmp.ne.s32.totalorder %s224, %s225
    %p239 = scmp.eq.s32.totalorder %s23, 1
    %p240 = por %p238, %p239
    %p242 = scmp.ne.s32.totalorder %s225, %s241
    %p243 = scmp.eq.s32.totalorder %s23, 0
    %p244 = por %p242, %p243
    %s245 = ssub.s32 %s17, %s24
    %p246 = scmp.eq.s32.totalorder %s245, 0
    %s248 = sadd.s32 %s247, 1
    %s249 = scalar_select %p246, %s247, %s248
    %p252 = pneg %p246
    %p253 = scmp.eq.s32.totalorder %s17, 1
    %p254 = por %p252, %p253
    %p255 = scmp.ne.s32.totalorder %s247, %s250
    %p256 = scmp.eq.s32.totalorder %s17, 0
    %p257 = por %p255, %p256
    %p258 = scmp.ne.s32.totalorder %s247, %s250
    %p259 = scmp.eq.s32.totalorder %s22, 1
    %p260 = por %p258, %p259
    %p261 = scmp.ne.s32.totalorder %s250, %s251
    %p262 = scmp.eq.s32.totalorder %s22, 0
    %p263 = por %p261, %p262
    %p264 = scmp.ne.s32.totalorder %s250, %s251
    %p265 = scmp.eq.s32.totalorder %s23, 1
    %p266 = por %p264, %p265
    %p268 = scmp.ne.s32.totalorder %s251, %s267
    %p269 = scmp.eq.s32.totalorder %s23, 0
    %p270 = por %p268, %p269
    %p271 = scmp.le.s32.totalorder 1, %s17
    %p272 = scmp.lt.s32.totalorder %s17, 3
    %p273 = pnand %p271, %p272
    %p274 = pneg %p273
    // Predicated region
    $region9: #{_lambda_.4} parent=5 // pred_check
      _
    $region10: #{_lambda_.4} parent=5 // pred_check_branch
      %276 = sbr.rel (%p273) target = $region12
    $region11: #{_lambda_.4} parent=5 // pred_region
      %s277 = ssub.s32 %s17, 1
      // Predicated region
      $region13: #{_lambda_.4} parent=11 // pred_check
        %p278 = pneg %p64
      $region14: #{_lambda_.4} parent=11 // pred_check_branch
        %280 = sbr.rel (%p278) target = $region16
      $region15: #{_lambda_.4} parent=11 // pred_region
        _
      $region16: #{_lambda_.4} parent=11 // pred_fallthru
        _
      // Predicated region
      $region17: #{_lambda_.4} parent=11 // pred_check
        %p281 = pneg %p85
      $region18: #{_lambda_.4} parent=11 // pred_check_branch
        %283 = sbr.rel (%p281) target = $region20
      $region19: #{_lambda_.4} parent=11 // pred_region
        _
      $region20: #{_lambda_.4} parent=11 // pred_fallthru
        _
      // Predicated region
      $region21: #{_lambda_.4} parent=11 // pred_check
        %p284 = pneg %p106
      $region22: #{_lambda_.4} parent=11 // pred_check_branch
        %286 = sbr.rel (%p284) target = $region24
      $region23: #{_lambda_.4} parent=11 // pred_region
        _
      $region24: #{_lambda_.4} parent=11 // pred_fallthru
        _
      // Predicated region
      $region25: #{_lambda_.4} parent=11 // pred_check
        %p287 = pneg %p127
      $region26: #{_lambda_.4} parent=11 // pred_check_branch
        %289 = sbr.rel (%p287) target = $region28
      $region27: #{_lambda_.4} parent=11 // pred_region
        _
      $region28: #{_lambda_.4} parent=11 // pred_fallthru
        _
      // Predicated region
      $region29: #{_lambda_.4} parent=11 // pred_check
        %p290 = pneg %p148
      $region30: #{_lambda_.4} parent=11 // pred_check_branch
        %292 = sbr.rel (%p290) target = $region32
      $region31: #{_lambda_.4} parent=11 // pred_region
        _
      $region32: #{_lambda_.4} parent=11 // pred_fallthru
        _
      // Predicated region
      $region33: #{_lambda_.4} parent=11 // pred_check
        %p293 = pneg %p169
      $region34: #{_lambda_.4} parent=11 // pred_check_branch
        %295 = sbr.rel (%p293) target = $region36
      $region35: #{_lambda_.4} parent=11 // pred_region
        _
      $region36: #{_lambda_.4} parent=11 // pred_fallthru
        _
      // Predicated region
      $region37: #{_lambda_.4} parent=11 // pred_check
        %p296 = pneg %p190
      $region38: #{_lambda_.4} parent=11 // pred_check_branch
        %298 = sbr.rel (%p296) target = $region40
      $region39: #{_lambda_.4} parent=11 // pred_region
        _
      $region40: #{_lambda_.4} parent=11 // pred_fallthru
        _
      // Predicated region
      $region41: #{_lambda_.4} parent=11 // pred_check
        %p299 = pneg %p211
      $region42: #{_lambda_.4} parent=11 // pred_check_branch
        %301 = sbr.rel (%p299) target = $region44
      $region43: #{_lambda_.4} parent=11 // pred_region
        _
      $region44: #{_lambda_.4} parent=11 // pred_fallthru
        _
    $region12: #{_lambda_.4} parent=5 // pred_fallthru
      _
    %p302 = scmp.lt.s32.totalorder %s17, 2
    // Predicated region
    $region45: #{_lambda_.4} parent=5 // pred_check
      %p303 = pneg %p302
    $region46: #{_lambda_.4} parent=5 // pred_check_branch
      %305 = sbr.rel (%p303) target = $region48
    $region47: #{_lambda_.4} parent=5 // pred_region
      // Predicated region
      $region49: #{_lambda_.4} parent=47 // pred_check
        %p306 = pneg %p37
      $region50: #{_lambda_.4} parent=47 // pred_check_branch
        %308 = sbr.rel (%p306) target = $region52
      $region51: #{_lambda_.4} parent=47 // pred_region
        %p309 = scmp.lt.s32.totalorder %s17, 1
        %s310 = scalar_select %p309, %s17, 1
        %s311 = smul.addr %s310, 8
        %s312 = scalar_lea.vmem %s0, %s311
      $region52: #{_lambda_.4} parent=47 // pred_fallthru
        _
    $region48: #{_lambda_.4} parent=5 // pred_fallthru
      _
    %p313 = scmp.le.s32.totalorder 1, %s17
    %p314 = scmp.lt.s32.totalorder %s17, 3
    %p315 = pnand %p313, %p314
    %p316 = pneg %p315
    // Predicated region
    $region53: #{_lambda_.4} parent=5 // pred_check
      _
    $region54: #{_lambda_.4} parent=5 // pred_check_branch
      %318 = sbr.rel (%p315) target = $region56
    $region55: #{_lambda_.4} parent=5 // pred_region
      %s319 = ssub.s32 %s17, 1
      %p320 = scmp.lt.s32.totalorder %s22, 1
      %s321 = scalar_select %p320, %s22, 1
      %s322 = smul.addr %s321, 8
      %s323 = scalar_lea.vmem %s0, %s322
      %p324 = pneg %p43
      %p325 = pneg %p40
      %p326 = pneg %p64
      %p327 = pneg %p61
      %p328 = pneg %p85
      %p329 = pneg %p82
      %p330 = pneg %p106
      %p331 = pneg %p103
      %p332 = pneg %p127
      %p333 = pneg %p124
      %p334 = pneg %p148
      %p335 = pneg %p145
      %p336 = pneg %p169
      %p337 = pneg %p166
      %p338 = pneg %p190
      %p339 = pneg %p187
      %p340 = pneg %p211
      %p341 = pneg %p208
      %p342 = pneg %p237
      %p343 = pneg %p234
      %p344 = scmp.lt.s32.totalorder %s22, 1
      %s345 = scalar_select %p344, %s22, 1
      %s346 = smul.addr %s345, 8
      %s347 = scalar_lea.vmem %s9, %s346
      %p348 = pneg %p263
      %p349 = pneg %p260
      %p350 = scmp.lt.s32.totalorder %s22, 1
      %s351 = scalar_select %p350, %s22, 1
      %s352 = smul.addr %s351, 8
      %s353 = scalar_lea.vmem %s10, %s352
      %p354 = scmp.lt.s32.totalorder %s22, 1
      %s355 = scalar_select %p354, %s22, 1
      %s356 = smul.addr %s355, 8
      %s357 = scalar_lea.vmem %s0, %s356
      %p358 = scmp.lt.s32.totalorder %s22, 1
      %s359 = scalar_select %p358, %s22, 1
      %s360 = smul.addr %s359, 8
      %s361 = scalar_lea.vmem %s9, %s360
      %p362 = scmp.lt.s32.totalorder %s22, 1
      %s363 = scalar_select %p362, %s22, 1
      %s364 = smul.addr %s363, 8
      %s365 = scalar_lea.vmem %s10, %s364
      %v366 = vld [vmem:[%s7] sm:$0xff]
      %v367 = vld [vmem:[%s7 + $0x8] sm:$0xff]
      %v368 = vld [vmem:[%s7 + $0x10] sm:$0xff]
      %v369 = vld [vmem:[%s7 + $0x18] sm:$0xff]
      %v370 = vld [vmem:[%s8] sm:$0xf]
      %v371 = vld [vmem:[%s357] sm:$0xff]
      %v372 = vld [vmem:[%s1] sm:$0xff]
      %v373 = vld [vmem:[%s1 + $0x8] sm:$0xff]
      %v374 = vld [vmem:[%s2] sm:$0x1]
      %v376 = vperm.slane %v374, 0
      %vm378 = vcmask 130048
      %v380 = vsel %vm378, %v371, 0
      %382 = vmatpush.msra.mxu0 0.0
      %383 = vmatpush.msra.mxu0 0.0
      %384 = vmatpush.msra.mxu0 0.0
      %385 = vmatpush.msra.mxu0 0.0
      %386 = vmatpush.msra.mxu0 0.0
      %387 = vmatpush.msra.mxu0 0.0
      %388 = vmatpush.msra.mxu0 0.0
      %389 = vmatpush.msra.mxu0 0.0
      %390 = vmatpush.msra.mxu0 0.0
      %391 = vmatpush.msra.mxu0 0.0
      %392 = vmatpush.msra.mxu0 0.0
      %393 = vmatpush.msra.mxu0 0.0
      %394 = vmatpush.msra.mxu0 0.0
      %395 = vmatpush.msra.mxu0 0.0
      %396 = vmatpush.msra.mxu0 %v373
      %397 = vmatpush.msra.mxu0 %v372
      %398 = vmatmul.f32.gmra.mxu0 %v380
      %v399 = vpop.f32.mrf.mxu0
      %v400 = vadd.f32 %v376, %v399
      %401 = vdwg.mxu0
      %vm402 = vcmask 261120
      %v404 = vsel %vm402, %v400, 0
      %406 = vmatpush.msra.mxu0 0.0
      %407 = vmatpush.msra.mxu0 0.0
      %408 = vmatpush.msra.mxu0 0.0
      %409 = vmatpush.msra.mxu0 0.0
      %410 = vmatpush.msra.mxu0 0.0
      %411 = vmatpush.msra.mxu0 0.0
      %412 = vmatpush.msra.mxu0 0.0
      %413 = vmatpush.msra.mxu0 0.0
      %414 = vmatpush.msra.mxu0 0.0
      %415 = vmatpush.msra.mxu0 0.0
      %416 = vmatpush.msra.mxu0 0.0
      %417 = vmatpush.msra.mxu0 0.0
      %418 = vmatpush.msra.mxu0 %v369
      %419 = vmatpush.msra.mxu0 %v368
      %420 = vmatpush.msra.mxu0 %v367
      %421 = vmatpush.msra.mxu0 %v366
      %422 = vmatmul.f32.gmra.mxu0 %v404
      %v423 = vpop.f32.mrf.mxu0
      %v424 = vadd.f32 0.0, %v423
      %425 = vdwg.mxu0
      %v426 = vmul.f32 %v424, 0.125
      %vm427 = vcmask 31744
      %v429 = vsel %vm427, %v426, 0
      %vm431 = vcmask 1043456
      %v433 = vsel %vm431, %v370, 0
      %435 = vmatpush.msra.mxu0 0.0
      %436 = vmatpush.msra.mxu0 0.0
      %437 = vmatpush.msra.mxu0 0.0
      %438 = vmatpush.msra.mxu0 0.0
      %439 = vmatpush.msra.mxu0 0.0
      %440 = vmatpush.msra.mxu0 0.0
      %441 = vmatpush.msra.mxu0 0.0
      %442 = vmatpush.msra.mxu0 0.0
      %443 = vmatpush.msra.mxu0 0.0
      %444 = vmatpush.msra.mxu0 0.0
      %445 = vmatpush.msra.mxu0 0.0
      %446 = vmatpush.msra.mxu0 0.0
      %447 = vmatpush.msra.mxu0 0.0
      %448 = vmatpush.msra.mxu0 0.0
      %449 = vmatpush.msra.mxu0 0.0
      %450 = vmatpush.msra.mxu0 %v433
      %451 = vmatmul.f32.gmra.mxu0 %v429
      %v452 = vpop.f32.mrf.mxu0
      %v453 = vadd.f32 0.0, %v452
      %454 = vdwg.mxu0
      %v455 = vsub.f32 %v400, %v453
      %v456 = vmul.f32 %v455, %v455
      %v458 = vsel %vm402, %v456, 0
      %460 = vmatpush.msra.mxu0 0.0
      %461 = vmatpush.msra.mxu0 0.0
      %462 = vmatpush.msra.mxu0 0.0
      %463 = vmatpush.msra.mxu0 0.0
      %464 = vmatpush.msra.mxu0 0.0
      %465 = vmatpush.msra.mxu0 0.0
      %466 = vmatpush.msra.mxu0 0.0
      %467 = vmatpush.msra.mxu0 0.0
      %468 = vmatpush.msra.mxu0 0.0
      %469 = vmatpush.msra.mxu0 0.0
      %470 = vmatpush.msra.mxu0 0.0
      %471 = vmatpush.msra.mxu0 0.0
      %472 = vmatpush.msra.mxu0 %v369
      %473 = vmatpush.msra.mxu0 %v368
      %474 = vmatpush.msra.mxu0 %v367
      %475 = vmatpush.msra.mxu0 %v366
      %476 = vmatmul.f32.gmra.mxu0 %v458
      %v477 = vpop.f32.mrf.mxu0
      %v478 = vadd.f32 0.0, %v477
      %479 = vdwg.mxu0
      %v480 = vmul.f32 %v478, 0.125
      %v481 = vadd.f32 %v480, 1e-06
      %v482 = vrsqrt.pop %v481
      %v483 = vmul.f32 %v482, %v481
      %v484 = vmul.f32 %v483, %v482
      %v485 = vmul.f32 0.5, %v484
      %v486 = vsub.f32 1.5, %v485
      %v487 = vmul.f32 %v482, %v486
      %vm488 = vweird.f32 %v481
      %vm489 = vweird.f32 %v482
      %vm490 = vmor %vm488, %vm489
      %v491 = vsel %vm490, %v482, %v487
      %v493 = vsel %vm427, %v491, 0
      %495 = vmatpush.msra.mxu0 0.0
      %496 = vmatpush.msra.mxu0 0.0
      %497 = vmatpush.msra.mxu0 0.0
      %498 = vmatpush.msra.mxu0 0.0
      %499 = vmatpush.msra.mxu0 0.0
      %500 = vmatpush.msra.mxu0 0.0
      %501 = vmatpush.msra.mxu0 0.0
      %502 = vmatpush.msra.mxu0 0.0
      %503 = vmatpush.msra.mxu0 0.0
      %504 = vmatpush.msra.mxu0 0.0
      %505 = vmatpush.msra.mxu0 0.0
      %506 = vmatpush.msra.mxu0 0.0
      %507 = vmatpush.msra.mxu0 0.0
      %508 = vmatpush.msra.mxu0 0.0
      %509 = vmatpush.msra.mxu0 0.0
      %510 = vmatpush.msra.mxu0 %v433
      %511 = vmatmul.f32.gmra.mxu0 %v493
      %v512 = vpop.f32.mrf.mxu0
      %v513 = vadd.f32 0.0, %v512
      %514 = vdwg.mxu0
      %v515 = vmul.f32 %v455, %v513
      %v516 = vld [vmem:[%s3] sm:$0x1]
      %v518 = vperm.slane %v516, 0
      %v520 = vmul.f32 %v515, %v518
      %v521 = vld [vmem:[%s4] sm:$0x1]
      %v523 = vperm.slane %v521, 0
      %v525 = vadd.f32 %v520, %v523
      %v526 = vld [vmem:[%s5] sm:$0xff]
      %v527 = vld [vmem:[%s5 + $0x8] sm:$0xff]
      %v528 = vld [vmem:[%s5 + $0x10] sm:$0xff]
      %v529 = vld [vmem:[%s5 + $0x18] sm:$0xff]
      %v531 = vsel %vm402, %v525, 0
      %533 = vmatpush.msra.mxu0 0.0
      %534 = vmatpush.msra.mxu0 0.0
      %535 = vmatpush.msra.mxu0 0.0
      %536 = vmatpush.msra.mxu0 0.0
      %537 = vmatpush.msra.mxu0 0.0
      %538 = vmatpush.msra.mxu0 0.0
      %539 = vmatpush.msra.mxu0 0.0
      %540 = vmatpush.msra.mxu0 0.0
      %541 = vmatpush.msra.mxu0 0.0
      %542 = vmatpush.msra.mxu0 0.0
      %543 = vmatpush.msra.mxu0 0.0
      %544 = vmatpush.msra.mxu0 0.0
      %545 = vmatpush.msra.mxu0 %v529
      %546 = vmatpush.msra.mxu0 %v528
      %547 = vmatpush.msra.mxu0 %v527
      %548 = vmatpush.msra.mxu0 %v526
      %549 = vmatmul.f32.gmra.mxu0 %v531
      %v550 = vpop.f32.mrf.mxu0
      %v551 = vadd.f32 0.0, %v550
      %552 = vdwg.mxu0
      %v553 = vld [vmem:[%s6] sm:$0xff]
      %v554 = vld [vmem:[%s6 + $0x8] sm:$0xff]
      %v555 = vld [vmem:[%s6 + $0x10] sm:$0xff]
      %v556 = vld [vmem:[%s6 + $0x18] sm:$0xff]
      %557 = vmatpush.msra.mxu0 0.0
      %558 = vmatpush.msra.mxu0 0.0
      %559 = vmatpush.msra.mxu0 0.0
      %560 = vmatpush.msra.mxu0 0.0
      %561 = vmatpush.msra.mxu0 0.0
      %562 = vmatpush.msra.mxu0 0.0
      %563 = vmatpush.msra.mxu0 0.0
      %564 = vmatpush.msra.mxu0 0.0
      %565 = vmatpush.msra.mxu0 0.0
      %566 = vmatpush.msra.mxu0 0.0
      %567 = vmatpush.msra.mxu0 0.0
      %568 = vmatpush.msra.mxu0 0.0
      %569 = vmatpush.msra.mxu0 %v556
      %570 = vmatpush.msra.mxu0 %v555
      %571 = vmatpush.msra.mxu0 %v554
      %572 = vmatpush.msra.mxu0 %v553
      %573 = vmatmul.f32.gmra.mxu0 %v404
      %v574 = vpop.f32.mrf.mxu0
      %v575 = vadd.f32 0.0, %v574
      %576 = vdwg.mxu0
      %578 = vrot.lane.b32.xlu0 %v551, 8
      %v579 = vpop.permute.xlu0 %578
      %581 = vrot.lane.b32.xlu0 %v551, 16
      %v582 = vpop.permute.xlu0 %581
      %584 = vrot.lane.b32.xlu0 %v551, 24
      %v585 = vpop.permute.xlu0 %584
      %vm587 = vcmask 64512
      %v588 = vsel %vm587, %v551, %v579
      %v589 = vsel %vm378, %v588, %v582
      %vm590 = vcmask 195584
      %v591 = vsel %vm590, %v589, %v585
      %v592 = vmul.f32 %v591, %v575
      %v594 = vsel %vm402, %v592, 0
      %596 = vmatpush.msra.mxu0 0.0
      %597 = vmatpush.msra.mxu0 0.0
      %598 = vmatpush.msra.mxu0 0.0
      %599 = vmatpush.msra.mxu0 0.0
      %600 = vmatpush.msra.mxu0 0.0
      %601 = vmatpush.msra.mxu0 0.0
      %602 = vmatpush.msra.mxu0 0.0
      %603 = vmatpush.msra.mxu0 0.0
      %604 = vmatpush.msra.mxu0 0.0
      %605 = vmatpush.msra.mxu0 0.0
      %606 = vmatpush.msra.mxu0 0.0
      %607 = vmatpush.msra.mxu0 0.0
      %608 = vmatpush.msra.mxu0 %v369
      %609 = vmatpush.msra.mxu0 %v368
      %610 = vmatpush.msra.mxu0 %v367
      %611 = vmatpush.msra.mxu0 %v366
      %612 = vmatmul.f32.gmra.mxu0 %v594
      %v613 = vpop.f32.mrf.mxu0
      %v614 = vadd.f32 0.0, %v613
      %615 = vdwg.mxu0
      %v616 = vmul.f32 %v614, 0.35355338
      %v617 = vsel %vm427, %v616, -inf
      %618 = vmax.xlane.f32.xlu0 %v617
      %v619 = vpop.xlane.xlu0 %618
      %v620 = vsub.f32 %v616, %v619
      %v621 = vmul.f32 %v620, 1.442695
      %v622 = vpow.pop %v621
      %v623 = vsel %vm427, %v622, 0.0
      %624 = vadd.xlane.f32.xlu0 %v623
      %v625 = vpop.xlane.xlu0 %624
      %v626 = vsub.f32 %v625, %v622
      %v627 = vrcp.pop %v625
      %v628 = vmul.f32 %v625, %v627
      %v629 = vsub.f32 1.0, %v628
      %v630 = vmul.f32 %v627, %v629
      %v631 = vadd.f32 %v627, %v630
      %vm632 = vweird.f32 %v625
      %vm633 = vweird.f32 %v627
      %vm634 = vmor %vm632, %vm633
      %v635 = vsel %vm634, %v627, %v631
      %v636 = vand.u32 2147483647, %v625
      %vm637 = vcmp.eq.f32.partialorder %v636, 8.507059e+37
      %v638 = vand.u32 %v625, 2147483648
      %v639 = vor.u32 1.1754944e-38, %v638
      %v640 = vsel %vm637, %v639, %v635
      %v641 = vmul.f32 %v626, %v640
      %v642 = vadd.f32 %v641, 0.0
      %643 = vrot.lane.b32.xlu0 %v551, 120
      %v644 = vpop.permute.xlu0 %643
      %v646 = vsel %vm587, %v644, %v551
      %v647 = vsel %vm378, %v646, %v579
      %v648 = vsel %vm590, %v647, %v582
      %v649 = vmul.f32 %v648, %v575
      %v651 = vsel %vm402, %v649, 0
      %653 = vmatpush.msra.mxu0 0.0
      %654 = vmatpush.msra.mxu0 0.0
      %655 = vmatpush.msra.mxu0 0.0
      %656 = vmatpush.msra.mxu0 0.0
      %657 = vmatpush.msra.mxu0 0.0
      %658 = vmatpush.msra.mxu0 0.0
      %659 = vmatpush.msra.mxu0 0.0
      %660 = vmatpush.msra.mxu0 0.0
      %661 = vmatpush.msra.mxu0 0.0
      %662 = vmatpush.msra.mxu0 0.0
      %663 = vmatpush.msra.mxu0 0.0
      %664 = vmatpush.msra.mxu0 0.0
      %665 = vmatpush.msra.mxu0 %v369
      %666 = vmatpush.msra.mxu0 %v368
      %667 = vmatpush.msra.mxu0 %v367
      %668 = vmatpush.msra.mxu0 %v366
      %669 = vmatmul.f32.gmra.mxu0 %v651
      %v670 = vpop.f32.mrf.mxu0
      %v671 = vadd.f32 0.0, %v670
      %672 = vdwg.mxu0
      %v673 = vmul.f32 %v671, 0.35355338
      %v674 = vsel %vm427, %v673, -inf
      %675 = vmax.xlane.f32.xlu0 %v674
      %v676 = vpop.xlane.xlu0 %675
      %v677 = vsub.f32 %v673, %v676
      %v678 = vmul.f32 %v677, 1.442695
      %v679 = vpow.pop %v678
      %v680 = vsel %vm427, %v679, 0.0
      %681 = vadd.xlane.f32.xlu0 %v680
      %v682 = vpop.xlane.xlu0 %681
      %v683 = vsub.f32 %v682, %v679
      %v684 = vrcp.pop %v682
      %v685 = vmul.f32 %v682, %v684
      %v686 = vsub.f32 1.0, %v685
      %v687 = vmul.f32 %v684, %v686
      %v688 = vadd.f32 %v684, %v687
      %vm689 = vweird.f32 %v682
      %vm690 = vweird.f32 %v684
      %vm691 = vmor %vm689, %vm690
      %v692 = vsel %vm691, %v684, %v688
      %v693 = vand.u32 2147483647, %v682
      %vm694 = vcmp.eq.f32.partialorder %v693, 8.507059e+37
      %v695 = vand.u32 %v682, 2147483648
      %v696 = vor.u32 1.1754944e-38, %v695
      %v697 = vsel %vm694, %v696, %v692
      %v698 = vmul.f32 %v683, %v697
      %700 = vrot.lane.b32.xlu0 %v698, 127
      %v701 = vpop.permute.xlu0 %700
      %v703 = vadd.f32 %v642, %v701
      %704 = vrot.lane.b32.xlu0 %v551, 112
      %v705 = vpop.permute.xlu0 %704
      %v707 = vsel %vm587, %v705, %v644
      %v708 = vsel %vm378, %v707, %v551
      %v709 = vsel %vm590, %v708, %v579
      %v710 = vmul.f32 %v709, %v575
      %v712 = vsel %vm402, %v710, 0
      %714 = vmatpush.msra.mxu0 0.0
      %715 = vmatpush.msra.mxu0 0.0
      %716 = vmatpush.msra.mxu0 0.0
      %717 = vmatpush.msra.mxu0 0.0
      %718 = vmatpush.msra.mxu0 0.0
      %719 = vmatpush.msra.mxu0 0.0
      %720 = vmatpush.msra.mxu0 0.0
      %721 = vmatpush.msra.mxu0 0.0
      %722 = vmatpush.msra.mxu0 0.0
      %723 = vmatpush.msra.mxu0 0.0
      %724 = vmatpush.msra.mxu0 0.0
      %725 = vmatpush.msra.mxu0 0.0
      %726 = vmatpush.msra.mxu0 %v369
      %727 = vmatpush.msra.mxu0 %v368
      %728 = vmatpush.msra.mxu0 %v367
      %729 = vmatpush.msra.mxu0 %v366
      %730 = vmatmul.f32.gmra.mxu0 %v712
      %v731 = vpop.f32.mrf.mxu0
      %v732 = vadd.f32 0.0, %v731
      %733 = vdwg.mxu0
      %v734 = vmul.f32 %v732, 0.35355338
      %v735 = vsel %vm427, %v734, -inf
      %736 = vmax.xlane.f32.xlu0 %v735
      %v737 = vpop.xlane.xlu0 %736
      %v738 = vsub.f32 %v734, %v737
      %v739 = vmul.f32 %v738, 1.442695
      %v740 = vpow.pop %v739
      %v741 = vsel %vm427, %v740, 0.0
      %742 = vadd.xlane.f32.xlu0 %v741
      %v743 = vpop.xlane.xlu0 %742
      %v744 = vsub.f32 %v743, %v740
      %v745 = vrcp.pop %v743
      %v746 = vmul.f32 %v743, %v745
      %v747 = vsub.f32 1.0, %v746
      %v748 = vmul.f32 %v745, %v747
      %v749 = vadd.f32 %v745, %v748
      %vm750 = vweird.f32 %v743
      %vm751 = vweird.f32 %v745
      %vm752 = vmor %vm750, %vm751
      %v753 = vsel %vm752, %v745, %v749
      %v754 = vand.u32 2147483647, %v743
      %vm755 = vcmp.eq.f32.partialorder %v754, 8.507059e+37
      %v756 = vand.u32 %v743, 2147483648
      %v757 = vor.u32 1.1754944e-38, %v756
      %v758 = vsel %vm755, %v757, %v753
      %v759 = vmul.f32 %v744, %v758
      %761 = vrot.lane.b32.xlu0 %v759, 126
      %v762 = vpop.permute.xlu0 %761
      %v764 = vadd.f32 %v703, %v762
      %765 = vrot.lane.b32.xlu0 %v551, 104
      %v766 = vpop.permute.xlu0 %765
      %v768 = vsel %vm587, %v766, %v705
      %v769 = vsel %vm378, %v768, %v644
      %v770 = vsel %vm590, %v769, %v551
      %v771 = vmul.f32 %v770, %v575
      %v773 = vsel %vm402, %v771, 0
      %775 = vmatpush.msra.mxu0 0.0
      %776 = vmatpush.msra.mxu0 0.0
      %777 = vmatpush.msra.mxu0 0.0
      %778 = vmatpush.msra.mxu0 0.0
      %779 = vmatpush.msra.mxu0 0.0
      %780 = vmatpush.msra.mxu0 0.0
      %781 = vmatpush.msra.mxu0 0.0
      %782 = vmatpush.msra.mxu0 0.0
      %783 = vmatpush.msra.mxu0 0.0
      %784 = vmatpush.msra.mxu0 0.0
      %785 = vmatpush.msra.mxu0 0.0
      %786 = vmatpush.msra.mxu0 0.0
      %787 = vmatpush.msra.mxu0 %v369
      %788 = vmatpush.msra.mxu0 %v368
      %789 = vmatpush.msra.mxu0 %v367
      %790 = vmatpush.msra.mxu0 %v366
      %791 = vmatmul.f32.gmra.mxu0 %v773
      %v792 = vpop.f32.mrf.mxu0
      %v793 = vadd.f32 0.0, %v792
      %794 = vdwg.mxu0
      %v795 = vmul.f32 %v793, 0.35355338
      %v796 = vsel %vm427, %v795, -inf
      %797 = vmax.xlane.f32.xlu0 %v796
      %v798 = vpop.xlane.xlu0 %797
      %v799 = vsub.f32 %v795, %v798
      %v800 = vmul.f32 %v799, 1.442695
      %v801 = vpow.pop %v800
      %v802 = vsel %vm427, %v801, 0.0
      %803 = vadd.xlane.f32.xlu0 %v802
      %v804 = vpop.xlane.xlu0 %803
      %v805 = vsub.f32 %v804, %v801
      %v806 = vrcp.pop %v804
      %v807 = vmul.f32 %v804, %v806
      %v808 = vsub.f32 1.0, %v807
      %v809 = vmul.f32 %v806, %v808
      %v810 = vadd.f32 %v806, %v809
      %vm811 = vweird.f32 %v804
      %vm812 = vweird.f32 %v806
      %vm813 = vmor %vm811, %vm812
      %v814 = vsel %vm813, %v806, %v810
      %v815 = vand.u32 2147483647, %v804
      %vm816 = vcmp.eq.f32.partialorder %v815, 8.507059e+37
      %v817 = vand.u32 %v804, 2147483648
      %v818 = vor.u32 1.1754944e-38, %v817
      %v819 = vsel %vm816, %v818, %v814
      %v820 = vmul.f32 %v805, %v819
      %822 = vrot.lane.b32.xlu0 %v820, 125
      %v823 = vpop.permute.xlu0 %822
      %v825 = vadd.f32 %v764, %v823
      %v826 = vmax.f32 %v400, 0.0
      %827 = vst.msk [vmem:[%s361] sm:$0xff] %vm402, %v826
      %vm828 = vcmask 7168
      %829 = vst.msk [vmem:[%s365] sm:$0xff] %vm828, %v825
      %p830 = scmp.lt.s32.totalorder %s22, 1
      %s831 = scalar_select %p830, %s22, 1
      %s832 = smul.addr %s831, 8
      %s833 = scalar_lea.vmem %s9, %s832
      %p834 = scmp.lt.s32.totalorder %s22, 1
      %s835 = scalar_select %p834, %s22, 1
      %s836 = smul.addr %s835, 8
      %s837 = scalar_lea.vmem %s10, %s836
      // Predicated region
      $region57: #{_lambda_.4} parent=55 // pred_check
        %p838 = pneg %p234
      $region58: #{_lambda_.4} parent=55 // pred_check_branch
        %840 = sbr.rel (%p838) target = $region60
      $region59: #{_lambda_.4} parent=55 // pred_region
        _
      $region60: #{_lambda_.4} parent=55 // pred_fallthru
        _
      // Predicated region
      $region61: #{_lambda_.4} parent=55 // pred_check
        %p841 = pneg %p260
      $region62: #{_lambda_.4} parent=55 // pred_check_branch
        %843 = sbr.rel (%p841) target = $region64
      $region63: #{_lambda_.4} parent=55 // pred_region
        _
      $region64: #{_lambda_.4} parent=55 // pred_fallthru
        _
    $region56: #{_lambda_.4} parent=5 // pred_fallthru
      _
    %p844 = scmp.le.s32.totalorder 2, %s17
    // Predicated region
    $region65: #{_lambda_.4} parent=5 // pred_check
      %p845 = pneg %p844
    $region66: #{_lambda_.4} parent=5 // pred_check_branch
      %847 = sbr.rel (%p845) target = $region68
    $region67: #{_lambda_.4} parent=5 // pred_region
      %s848 = ssub.s32 %s17, 2
      // Predicated region
      $region69: #{_lambda_.4} parent=67 // pred_check
        %p849 = pneg %p240
      $region70: #{_lambda_.4} parent=67 // pred_check_branch
        %851 = sbr.rel (%p849) target = $region72
      $region71: #{_lambda_.4} parent=67 // pred_region
        %p852 = scmp.lt.s32.totalorder %s23, 1
        %s853 = scalar_select %p852, %s23, 1
        %s854 = smul.addr %s853, 8
        %s855 = scalar_lea.vmem %s9, %s854
      $region72: #{_lambda_.4} parent=67 // pred_fallthru
        _
      // Predicated region
      $region73: #{_lambda_.4} parent=67 // pred_check
        %p856 = pneg %p266
      $region74: #{_lambda_.4} parent=67 // pred_check_branch
        %858 = sbr.rel (%p856) target = $region76
      $region75: #{_lambda_.4} parent=67 // pred_region
        %p859 = scmp.lt.s32.totalorder %s23, 1
        %s860 = scalar_select %p859, %s23, 1
        %s861 = smul.addr %s860, 8
        %s862 = scalar_lea.vmem %s10, %s861
      $region76: #{_lambda_.4} parent=67 // pred_fallthru
        _
    $region68: #{_lambda_.4} parent=5 // pred_fallthru
      _
  $region6: #{_lambda_.4} parent=0 // loop_footer
    %s21 = sadd.s32 1, %s17
  $region7: #{_lambda_.4} parent=0 // loop_footer_branch
    %16 = sbr.rel target = $region3
  $region8: #{_lambda_.4} parent=0 // loop_exit
    _

// kernel: _lambda_.6
$region0: #{_lambda_.6}
  #allocation0 [shape = 'u32[]', space=smem, size = 0x4, offset = 0x4, fixed_abs, tag = 'smem constant byte address 0x4 - core index']
  #allocation1 [shape = 'u32[72,128]{1,0:T(1,128)}', space=vmem, size = 0x9000, scoped, tag = 'internal scratch']
  #allocation2 [shape = 'f32[6,8,32]{2,1,0:T(8,128)}', space=vmem, size = 0x6000, scoped, tag = 'scratch operand']
  #allocation3 [shape = 's32[1]{0}', space=sflag, size = 0x4, scoped, tag = 'scoped memory for _lambda_.6']
  #allocation4 [shape = 'u8[512]{0}', space=smem, size = 0x200, scoped, tag = 'prefetched SMEM operand 0']
  %s0 = inlined_call_operand.vmem [shape: s32[96], index: 0, kind: input, shape index: {}]
  %s1 = inlined_call_operand.vmem [shape: f32[16,32], index: 1, kind: input, shape index: {}]
  %s2 = inlined_call_operand.vmem [shape: f32[16,6], index: 2, kind: input, shape index: {}]
  %s3 = inlined_call_operand.vmem [shape: f32[32,4], index: 3, kind: input, shape index: {}]
  %s4 = inlined_call_operand.vmem [shape: f32[4,32], index: 4, kind: input, shape index: {}]
  %s5 = inlined_call_operand.vmem [shape: f32[16,32], index: 5, kind: output, shape index: {0}]
  %s6 = inlined_call_operand.vmem [shape: f32[16,32], index: 6, kind: output, shape index: {1}]
  %s7 = inlined_call_operand.vmem [shape: f32[16,24], index: 7, kind: output, shape index: {2}]
  %8 = xla_tuple %s5, %s6, %s7
  %s9 = sld [smem:[#allocation0]]
  $region107: #{_lambda_.6} parent=0
    _
  %s11 = ssub.s32 1, %s9
  %s12 = scalar_select 0, %s11, %s9
  %s14 = sshll.u32 %s0, 4
  %s15 = int_to_ptr.vmem [resolvable:$true] %s14
  %17 = dma.vmem_to_smem %s15, 16, [#allocation4], [#allocation3]
  %19 = dma.done [#allocation3], 16
  %20 = sfence
  loop: start=0, step=1, limit=4
  $region2: #{_lambda_.6} parent=0 // loop_pre_header
    _
  $region3: #{_lambda_.6} parent=0 // loop_header
    %s22 = sphi 0, %s26
    %p23 = scmp.ge.s32.totalorder %s22, 4
    %s30 = sphi 0, %s30
    %s32 = sphi 0, %s30
    %s33 = sphi 0, %s32
    %s47 = sphi 0, %s33
    %s53 = sphi 0, %s55
    %s56 = sphi 0, %s53
    %s57 = sphi 0, %s56
    %s73 = sphi 0, %s57
    %s77 = sphi 0, %s77
    %s79 = sphi 0, %s77
    %s80 = sphi 0, %s79
    %s94 = sphi 0, %s80
    %s98 = sphi 0, %s98
    %s100 = sphi 0, %s98
    %s101 = sphi 0, %s100
    %s115 = sphi 0, %s101
    %s121 = sphi 0, %s123
    %s124 = sphi 0, %s121
    %s125 = sphi 0, %s124
    %s141 = sphi 0, %s125
    %s147 = sphi 0, %s149
    %s150 = sphi 0, %s147
    %s151 = sphi 0, %s150
    %s167 = sphi 0, %s151
    %s173 = sphi 0, %s175
    %s176 = sphi 0, %s173
    %s177 = sphi 0, %s176
    %s193 = sphi 0, %s177
  $region4: #{_lambda_.6} parent=0 // loop_header_branch
    %25 = sbr.rel (%p23) target = $region8
  $region5: #{_lambda_.6} parent=0 // loop_body
    %s27 = ssub.s32 %s22, 1
    %s28 = ssub.s32 %s22, 2
    %s29 = sadd.s32 %s22, 1
    %s31 = sadd.s32 %s30, 1
    %p34 = scmp.eq.s32.totalorder %s22, 1
    %p35 = scmp.ne.s32.totalorder %s30, %s32
    %p36 = scmp.eq.s32.totalorder %s22, 0
    %p37 = por %p35, %p36
    %p38 = scmp.ne.s32.totalorder %s30, %s32
    %p39 = scmp.eq.s32.totalorder %s27, 1
    %p40 = por %p38, %p39
    %p41 = scmp.ne.s32.totalorder %s32, %s33
    %p42 = scmp.eq.s32.totalorder %s27, 0
    %p43 = por %p41, %p42
    %p44 = scmp.ne.s32.totalorder %s32, %s33
    %p45 = scmp.eq.s32.totalorder %s28, 1
    %p46 = por %p44, %p45
    %p48 = scmp.ne.s32.totalorder %s33, %s47
    %p49 = scmp.eq.s32.totalorder %s28, 0
    %p50 = por %p48, %p49
    %s51 = ssub.s32 %s22, %s29
    %p52 = scmp.eq.s32.totalorder %s51, 0
    %s54 = sadd.s32 %s53, 1
    %s55 = scalar_select %p52, %s53, %s54
    %p58 = pneg %p52
    %p59 = scmp.eq.s32.totalorder %s22, 1
    %p60 = por %p58, %p59
    %p61 = scmp.ne.s32.totalorder %s53, %s56
    %p62 = scmp.eq.s32.totalorder %s22, 0
    %p63 = por %p61, %p62
    %p64 = scmp.ne.s32.totalorder %s53, %s56
    %p65 = scmp.eq.s32.totalorder %s27, 1
    %p66 = por %p64, %p65
    %p67 = scmp.ne.s32.totalorder %s56, %s57
    %p68 = scmp.eq.s32.totalorder %s27, 0
    %p69 = por %p67, %p68
    %p70 = scmp.ne.s32.totalorder %s56, %s57
    %p71 = scmp.eq.s32.totalorder %s28, 1
    %p72 = por %p70, %p71
    %p74 = scmp.ne.s32.totalorder %s57, %s73
    %p75 = scmp.eq.s32.totalorder %s28, 0
    %p76 = por %p74, %p75
    %s78 = sadd.s32 %s77, 1
    %p81 = scmp.eq.s32.totalorder %s22, 1
    %p82 = scmp.ne.s32.totalorder %s77, %s79
    %p83 = scmp.eq.s32.totalorder %s22, 0
    %p84 = por %p82, %p83
    %p85 = scmp.ne.s32.totalorder %s77, %s79
    %p86 = scmp.eq.s32.totalorder %s27, 1
    %p87 = por %p85, %p86
    %p88 = scmp.ne.s32.totalorder %s79, %s80
    %p89 = scmp.eq.s32.totalorder %s27, 0
    %p90 = por %p88, %p89
    %p91 = scmp.ne.s32.totalorder %s79, %s80
    %p92 = scmp.eq.s32.totalorder %s28, 1
    %p93 = por %p91, %p92
    %p95 = scmp.ne.s32.totalorder %s80, %s94
    %p96 = scmp.eq.s32.totalorder %s28, 0
    %p97 = por %p95, %p96
    %s99 = sadd.s32 %s98, 1
    %p102 = scmp.eq.s32.totalorder %s22, 1
    %p103 = scmp.ne.s32.totalorder %s98, %s100
    %p104 = scmp.eq.s32.totalorder %s22, 0
    %p105 = por %p103, %p104
    %p106 = scmp.ne.s32.totalorder %s98, %s100
    %p107 = scmp.eq.s32.totalorder %s27, 1
    %p108 = por %p106, %p107
    %p109 = scmp.ne.s32.totalorder %s100, %s101
    %p110 = scmp.eq.s32.totalorder %s27, 0
    %p111 = por %p109, %p110
    %p112 = scmp.ne.s32.totalorder %s100, %s101
    %p113 = scmp.eq.s32.totalorder %s28, 1
    %p114 = por %p112, %p113
    %p116 = scmp.ne.s32.totalorder %s101, %s115
    %p117 = scmp.eq.s32.totalorder %s28, 0
    %p118 = por %p116, %p117
    %s119 = ssub.s32 %s22, %s29
    %p120 = scmp.eq.s32.totalorder %s119, 0
    %s122 = sadd.s32 %s121, 1
    %s123 = scalar_select %p120, %s121, %s122
    %p126 = pneg %p120
    %p127 = scmp.eq.s32.totalorder %s22, 1
    %p128 = por %p126, %p127
    %p129 = scmp.ne.s32.totalorder %s121, %s124
    %p130 = scmp.eq.s32.totalorder %s22, 0
    %p131 = por %p129, %p130
    %p132 = scmp.ne.s32.totalorder %s121, %s124
    %p133 = scmp.eq.s32.totalorder %s27, 1
    %p134 = por %p132, %p133
    %p135 = scmp.ne.s32.totalorder %s124, %s125
    %p136 = scmp.eq.s32.totalorder %s27, 0
    %p137 = por %p135, %p136
    %p138 = scmp.ne.s32.totalorder %s124, %s125
    %p139 = scmp.eq.s32.totalorder %s28, 1
    %p140 = por %p138, %p139
    %p142 = scmp.ne.s32.totalorder %s125, %s141
    %p143 = scmp.eq.s32.totalorder %s28, 0
    %p144 = por %p142, %p143
    %s145 = ssub.s32 %s22, %s29
    %p146 = scmp.eq.s32.totalorder %s145, 0
    %s148 = sadd.s32 %s147, 1
    %s149 = scalar_select %p146, %s147, %s148
    %p152 = pneg %p146
    %p153 = scmp.eq.s32.totalorder %s22, 1
    %p154 = por %p152, %p153
    %p155 = scmp.ne.s32.totalorder %s147, %s150
    %p156 = scmp.eq.s32.totalorder %s22, 0
    %p157 = por %p155, %p156
    %p158 = scmp.ne.s32.totalorder %s147, %s150
    %p159 = scmp.eq.s32.totalorder %s27, 1
    %p160 = por %p158, %p159
    %p161 = scmp.ne.s32.totalorder %s150, %s151
    %p162 = scmp.eq.s32.totalorder %s27, 0
    %p163 = por %p161, %p162
    %p164 = scmp.ne.s32.totalorder %s150, %s151
    %p165 = scmp.eq.s32.totalorder %s28, 1
    %p166 = por %p164, %p165
    %p168 = scmp.ne.s32.totalorder %s151, %s167
    %p169 = scmp.eq.s32.totalorder %s28, 0
    %p170 = por %p168, %p169
    %s171 = ssub.s32 %s22, %s29
    %p172 = scmp.eq.s32.totalorder %s171, 0
    %s174 = sadd.s32 %s173, 1
    %s175 = scalar_select %p172, %s173, %s174
    %p178 = pneg %p172
    %p179 = scmp.eq.s32.totalorder %s22, 1
    %p180 = por %p178, %p179
    %p181 = scmp.ne.s32.totalorder %s173, %s176
    %p182 = scmp.eq.s32.totalorder %s22, 0
    %p183 = por %p181, %p182
    %p184 = scmp.ne.s32.totalorder %s173, %s176
    %p185 = scmp.eq.s32.totalorder %s27, 1
    %p186 = por %p184, %p185
    %p187 = scmp.ne.s32.totalorder %s176, %s177
    %p188 = scmp.eq.s32.totalorder %s27, 0
    %p189 = por %p187, %p188
    %p190 = scmp.ne.s32.totalorder %s176, %s177
    %p191 = scmp.eq.s32.totalorder %s28, 1
    %p192 = por %p190, %p191
    %p194 = scmp.ne.s32.totalorder %s177, %s193
    %p195 = scmp.eq.s32.totalorder %s28, 0
    %p196 = por %p194, %p195
    %p197 = scmp.le.s32.totalorder 1, %s22
    %p198 = scmp.lt.s32.totalorder %s22, 3
    %p199 = pnand %p197, %p198
    %p200 = pneg %p199
    // Predicated region
    $region9: #{_lambda_.6} parent=5 // pred_check
      _
    $region10: #{_lambda_.6} parent=5 // pred_check_branch
      %202 = sbr.rel (%p199) target = $region12
    $region11: #{_lambda_.6} parent=5 // pred_region
      %s203 = ssub.s32 %s22, 1
      // Predicated region
      $region13: #{_lambda_.6} parent=11 // pred_check
        %p204 = pneg %p43
      $region14: #{_lambda_.6} parent=11 // pred_check_branch
        %206 = sbr.rel (%p204) target = $region16
      $region15: #{_lambda_.6} parent=11 // pred_region
        _
      $region16: #{_lambda_.6} parent=11 // pred_fallthru
        _
      // Predicated region
      $region17: #{_lambda_.6} parent=11 // pred_check
        %p207 = pneg %p90
      $region18: #{_lambda_.6} parent=11 // pred_check_branch
        %209 = sbr.rel (%p207) target = $region20
      $region19: #{_lambda_.6} parent=11 // pred_region
        _
      $region20: #{_lambda_.6} parent=11 // pred_fallthru
        _
      // Predicated region
      $region21: #{_lambda_.6} parent=11 // pred_check
        %p210 = pneg %p111
      $region22: #{_lambda_.6} parent=11 // pred_check_branch
        %212 = sbr.rel (%p210) target = $region24
      $region23: #{_lambda_.6} parent=11 // pred_region
        _
      $region24: #{_lambda_.6} parent=11 // pred_fallthru
        _
    $region12: #{_lambda_.6} parent=5 // pred_fallthru
      _
    %p213 = scmp.lt.s32.totalorder %s22, 2
    // Predicated region
    $region25: #{_lambda_.6} parent=5 // pred_check
      %p214 = pneg %p213
    $region26: #{_lambda_.6} parent=5 // pred_check_branch
      %216 = sbr.rel (%p214) target = $region28
    $region27: #{_lambda_.6} parent=5 // pred_region
      // Predicated region
      $region29: #{_lambda_.6} parent=27 // pred_check
        %p217 = pneg %p63
      $region30: #{_lambda_.6} parent=27 // pred_check_branch
        %219 = sbr.rel (%p217) target = $region32
      $region31: #{_lambda_.6} parent=27 // pred_region
        %p220 = scmp.lt.s32.totalorder %s22, 1
        %s221 = scalar_select %p220, %s22, 1
        %s222 = smul.addr %s221, 8
        %s223 = scalar_lea.vmem %s2, %s222
      $region32: #{_lambda_.6} parent=27 // pred_fallthru
        _
    $region28: #{_lambda_.6} parent=5 // pred_fallthru
      _
    %p224 = scmp.le.s32.totalorder 1, %s22
    %p225 = scmp.lt.s32.totalorder %s22, 3
    %p226 = pnand %p224, %p225
    %p227 = pneg %p226
    // Predicated region
    $region33: #{_lambda_.6} parent=5 // pred_check
      _
    $region34: #{_lambda_.6} parent=5 // pred_check_branch
      %229 = sbr.rel (%p226) target = $region36
    $region35: #{_lambda_.6} parent=5 // pred_region
      %s230 = ssub.s32 %s22, 1
      %p231 = pneg %p43
      %p232 = pneg %p40
      %p233 = scmp.lt.s32.totalorder %s27, 1
      %s234 = scalar_select %p233, %s27, 1
      %s235 = smul.addr %s234, 8
      %s236 = scalar_lea.vmem %s2, %s235
      %p237 = pneg %p69
      %p238 = pneg %p66
      %p239 = pneg %p90
      %p240 = pneg %p87
      %p241 = pneg %p111
      %p242 = pneg %p108
      %p243 = pneg %p137
      %p244 = pneg %p134
      %p245 = scmp.lt.s32.totalorder %s27, 1
      %s246 = scalar_select %p245, %s27, 1
      %s247 = smul.addr %s246, 8
      %s248 = scalar_lea.vmem %s5, %s247
      %p249 = pneg %p163
      %p250 = pneg %p160
      %p251 = scmp.lt.s32.totalorder %s27, 1
      %s252 = scalar_select %p251, %s27, 1
      %s253 = smul.addr %s252, 8
      %s254 = scalar_lea.vmem %s6, %s253
      %p255 = pneg %p189
      %p256 = pneg %p186
      %p257 = scmp.lt.s32.totalorder %s27, 1
      %s258 = scalar_select %p257, %s27, 1
      %s259 = smul.addr %s258, 8
      %s260 = scalar_lea.vmem %s7, %s259
      %p261 = scmp.lt.s32.totalorder %s27, 1
      %s262 = scalar_select %p261, %s27, 1
      %s263 = smul.addr %s262, 8
      %s264 = scalar_lea.vmem %s2, %s263
      %p265 = scmp.lt.s32.totalorder %s27, 1
      %s266 = scalar_select %p265, %s27, 1
      %s267 = smul.addr %s266, 8
      %s268 = scalar_lea.vmem %s5, %s267
      %p269 = scmp.lt.s32.totalorder %s27, 1
      %s270 = scalar_select %p269, %s27, 1
      %s271 = smul.addr %s270, 8
      %s272 = scalar_lea.vmem %s6, %s271
      %p273 = scmp.lt.s32.totalorder %s27, 1
      %s274 = scalar_select %p273, %s27, 1
      %s275 = smul.addr %s274, 8
      %s276 = scalar_lea.vmem %s7, %s275
      %v277 = vld [vmem:[%s3] sm:$0xff]
      %v278 = vld [vmem:[%s3 + $0x8] sm:$0xff]
      %v279 = vld [vmem:[%s3 + $0x10] sm:$0xff]
      %v280 = vld [vmem:[%s3 + $0x18] sm:$0xff]
      %v281 = vld [vmem:[%s4] sm:$0xf]
      %s282 = smul.u32 %s27, 8
      loop: start=0, step=1, limit=8
      $region37: #{_lambda_.6} parent=35 // loop_pre_header
        _
      $region38: #{_lambda_.6} parent=35 // loop_header
        %s284 = sphi 0, %s288
        %p285 = scmp.ge.s32.totalorder %s284, 8
      $region39: #{_lambda_.6} parent=35 // loop_header_branch
        %287 = sbr.rel (%p285) target = $region43
      $region40: #{_lambda_.6} parent=35 // loop_body
        %s289 = sadd.s32 %s282, %s284
        %s290 = sld [smem:[#allocation4 + %s289]]
        %s291 = scalar_lea.vmem %s1, %s290
        %v292 = vld [vmem:[%s291] sm:$0x1]
        %s293 = scalar_lea.vmem [#allocation2], %s284
        %vm294 = vcmask 253952
        %295 = vst.msk [vmem:[%s293] sm:$0x1] %vm294, %v292
      $region41: #{_lambda_.6} parent=35 // loop_footer
        %s288 = sadd.s32 1, %s284
      $region42: #{_lambda_.6} parent=35 // loop_footer_branch
        %283 = sbr.rel target = $region38
      $region43: #{_lambda_.6} parent=35 // loop_exit
        _
      loop: start=0, step=1, limit=8
      $region44: #{_lambda_.6} parent=35 // loop_pre_header
        _
      $region45: #{_lambda_.6} parent=35 // loop_header
        %s297 = sphi 0, %s301
        %p298 = scmp.ge.s32.totalorder %s297, 8
      $region46: #{_lambda_.6} parent=35 // loop_header_branch
        %300 = sbr.rel (%p298) target = $region50
      $region47: #{_lambda_.6} parent=35 // loop_body
        %s302 = sadd.s32 %s282, 16
        %s303 = sadd.s32 %s302, %s297
        %s304 = sld [smem:[#allocation4 + %s303]]
        %s305 = scalar_lea.vmem %s1, %s304
        %v306 = vld [vmem:[%s305] sm:$0x1]
        %s307 = sadd.s32 %s297, 8
        %s308 = scalar_lea.vmem [#allocation2], %s307
        %vm309 = vcmask 253952
        %310 = vst.msk [vmem:[%s308] sm:$0x1] %vm309, %v306
      $region48: #{_lambda_.6} parent=35 // loop_footer
        %s301 = sadd.s32 1, %s297
      $region49: #{_lambda_.6} parent=35 // loop_footer_branch
        %296 = sbr.rel target = $region45
      $region50: #{_lambda_.6} parent=35 // loop_exit
        _
      loop: start=0, step=1, limit=8
      $region51: #{_lambda_.6} parent=35 // loop_pre_header
        _
      $region52: #{_lambda_.6} parent=35 // loop_header
        %s312 = sphi 0, %s316
        %p313 = scmp.ge.s32.totalorder %s312, 8
      $region53: #{_lambda_.6} parent=35 // loop_header_branch
        %315 = sbr.rel (%p313) target = $region57
      $region54: #{_lambda_.6} parent=35 // loop_body
        %s317 = sadd.s32 %s282, 32
        %s318 = sadd.s32 %s317, %s312
        %s319 = sld [smem:[#allocation4 + %s318]]
        %s320 = scalar_lea.vmem %s1, %s319
        %v321 = vld [vmem:[%s320] sm:$0x1]
        %s322 = sadd.s32 %s312, 16
        %s323 = scalar_lea.vmem [#allocation2], %s322
        %vm324 = vcmask 253952
        %325 = vst.msk [vmem:[%s323] sm:$0x1] %vm324, %v321
      $region55: #{_lambda_.6} parent=35 // loop_footer
        %s316 = sadd.s32 1, %s312
      $region56: #{_lambda_.6} parent=35 // loop_footer_branch
        %311 = sbr.rel target = $region52
      $region57: #{_lambda_.6} parent=35 // loop_exit
        _
      loop: start=0, step=1, limit=8
      $region58: #{_lambda_.6} parent=35 // loop_pre_header
        _
      $region59: #{_lambda_.6} parent=35 // loop_header
        %s327 = sphi 0, %s331
        %p328 = scmp.ge.s32.totalorder %s327, 8
      $region60: #{_lambda_.6} parent=35 // loop_header_branch
        %330 = sbr.rel (%p328) target = $region64
      $region61: #{_lambda_.6} parent=35 // loop_body
        %s332 = sadd.s32 %s282, 48
        %s333 = sadd.s32 %s332, %s327
        %s334 = sld [smem:[#allocation4 + %s333]]
        %s335 = scalar_lea.vmem %s1, %s334
        %v336 = vld [vmem:[%s335] sm:$0x1]
        %s337 = sadd.s32 %s327, 24
        %s338 = scalar_lea.vmem [#allocation2], %s337
        %vm339 = vcmask 253952
        %340 = vst.msk [vmem:[%s338] sm:$0x1] %vm339, %v336
      $region62: #{_lambda_.6} parent=35 // loop_footer
        %s331 = sadd.s32 1, %s327
      $region63: #{_lambda_.6} parent=35 // loop_footer_branch
        %326 = sbr.rel target = $region59
      $region64: #{_lambda_.6} parent=35 // loop_exit
        _
      loop: start=0, step=1, limit=8
      $region65: #{_lambda_.6} parent=35 // loop_pre_header
        _
      $region66: #{_lambda_.6} parent=35 // loop_header
        %s342 = sphi 0, %s346
        %p343 = scmp.ge.s32.totalorder %s342, 8
      $region67: #{_lambda_.6} parent=35 // loop_header_branch
        %345 = sbr.rel (%p343) target = $region71
      $region68: #{_lambda_.6} parent=35 // loop_body
        %s347 = sadd.s32 %s282, 64
        %s348 = sadd.s32 %s347, %s342
        %s349 = sld [smem:[#allocation4 + %s348]]
        %s350 = scalar_lea.vmem %s1, %s349
        %v351 = vld [vmem:[%s350] sm:$0x1]
        %s352 = sadd.s32 %s342, 32
        %s353 = scalar_lea.vmem [#allocation2], %s352
        %vm354 = vcmask 253952
        %355 = vst.msk [vmem:[%s353] sm:$0x1] %vm354, %v351
      $region69: #{_lambda_.6} parent=35 // loop_footer
        %s346 = sadd.s32 1, %s342
      $region70: #{_lambda_.6} parent=35 // loop_footer_branch
        %341 = sbr.rel target = $region66
      $region71: #{_lambda_.6} parent=35 // loop_exit
        _
      loop: start=0, step=1, limit=8
      $region72: #{_lambda_.6} parent=35 // loop_pre_header
        _
      $region73: #{_lambda_.6} parent=35 // loop_header
        %s357 = sphi 0, %s361
        %p358 = scmp.ge.s32.totalorder %s357, 8
      $region74: #{_lambda_.6} parent=35 // loop_header_branch
        %360 = sbr.rel (%p358) target = $region78
      $region75: #{_lambda_.6} parent=35 // loop_body
        %s362 = sadd.s32 %s282, 80
        %s363 = sadd.s32 %s362, %s357
        %s364 = sld [smem:[#allocation4 + %s363]]
        %s365 = scalar_lea.vmem %s1, %s364
        %v366 = vld [vmem:[%s365] sm:$0x1]
        %s367 = sadd.s32 %s357, 40
        %s368 = scalar_lea.vmem [#allocation2], %s367
        %vm369 = vcmask 253952
        %370 = vst.msk [vmem:[%s368] sm:$0x1] %vm369, %v366
      $region76: #{_lambda_.6} parent=35 // loop_footer
        %s361 = sadd.s32 1, %s357
      $region77: #{_lambda_.6} parent=35 // loop_footer_branch
        %356 = sbr.rel target = $region73
      $region78: #{_lambda_.6} parent=35 // loop_exit
        _
      %s371 = scalar_lea.vmem %s1, %s282
      %v372 = vld [vmem:[%s371] sm:$0xff]
      %v373 = vmul.f32 %v372, %v372
      %vm374 = vcmask 261120
      %v376 = vsel %vm374, %v373, 0
      %378 = vmatpush.msra.mxu0 0.0
      %379 = vmatpush.msra.mxu0 0.0
      %380 = vmatpush.msra.mxu0 0.0
      %381 = vmatpush.msra.mxu0 0.0
      %382 = vmatpush.msra.mxu0 0.0
      %383 = vmatpush.msra.mxu0 0.0
      %384 = vmatpush.msra.mxu0 0.0
      %385 = vmatpush.msra.mxu0 0.0
      %386 = vmatpush.msra.mxu0 0.0
      %387 = vmatpush.msra.mxu0 0.0
      %388 = vmatpush.msra.mxu0 0.0
      %389 = vmatpush.msra.mxu0 0.0
      %390 = vmatpush.msra.mxu0 %v280
      %391 = vmatpush.msra.mxu0 %v279
      %392 = vmatpush.msra.mxu0 %v278
      %393 = vmatpush.msra.mxu0 %v277
      %394 = vmatmul.f32.gmra.mxu0 %v376
      %v395 = vpop.f32.mrf.mxu0
      %v396 = vadd.f32 0.0, %v395
      %397 = vdwg.mxu0
      %v398 = vrsqrt.pop %v396
      %v399 = vmul.f32 %v398, %v396
      %v400 = vmul.f32 %v399, %v398
      %v401 = vmul.f32 0.5, %v400
      %v402 = vsub.f32 1.5, %v401
      %v403 = vmul.f32 %v398, %v402
      %v404 = vmul.f32 %v396, %v403
      %vm405 = vcmp.eq.f32.partialorder %v396, inf
      %v406 = vsel %vm405, %v396, %v404
      %vm407 = vcmp.eq.f32.partialorder %v396, 0.0
      %v408 = vand.u32 %v396, 2147483648
      %v409 = vsel %vm407, %v408, %v406
      %v410 = vmax.f32 %v409, 1e-12
      %v411 = vrcp.pop %v410
      %v412 = vmul.f32 %v410, %v411
      %v413 = vsub.f32 1.0, %v412
      %v414 = vmul.f32 %v411, %v413
      %v415 = vadd.f32 %v411, %v414
      %vm416 = vweird.f32 %v410
      %vm417 = vweird.f32 %v411
      %vm418 = vmor %vm416, %vm417
      %v419 = vsel %vm418, %v411, %v415
      %v420 = vand.u32 2147483647, %v410
      %vm421 = vcmp.eq.f32.partialorder %v420, 8.507059e+37
      %v422 = vand.u32 %v410, 2147483648
      %v423 = vor.u32 1.1754944e-38, %v422
      %v424 = vsel %vm421, %v423, %v419
      %v425 = vmul.f32 1.0, %v424
      %vm426 = vcmask 31744
      %v428 = vsel %vm426, %v425, 0
      %vm430 = vcmask 1043456
      %v432 = vsel %vm430, %v281, 0
      %434 = vmatpush.msra.mxu0 0.0
      %435 = vmatpush.msra.mxu0 0.0
      %436 = vmatpush.msra.mxu0 0.0
      %437 = vmatpush.msra.mxu0 0.0
      %438 = vmatpush.msra.mxu0 0.0
      %439 = vmatpush.msra.mxu0 0.0
      %440 = vmatpush.msra.mxu0 0.0
      %441 = vmatpush.msra.mxu0 0.0
      %442 = vmatpush.msra.mxu0 0.0
      %443 = vmatpush.msra.mxu0 0.0
      %444 = vmatpush.msra.mxu0 0.0
      %445 = vmatpush.msra.mxu0 0.0
      %446 = vmatpush.msra.mxu0 0.0
      %447 = vmatpush.msra.mxu0 0.0
      %448 = vmatpush.msra.mxu0 0.0
      %449 = vmatpush.msra.mxu0 %v432
      %450 = vmatmul.f32.gmra.mxu0 %v428
      %v451 = vpop.f32.mrf.mxu0
      %v452 = vadd.f32 0.0, %v451
      %453 = vdwg.mxu0
      %v454 = vmul.f32 %v372, %v452
      %v455 = vld [vmem:[%s264] sm:$0xff]
      %v456 = vld [vmem:[#allocation2] sm:$0xff]
      %458 = vset.pattern.permute.xlu0 0
      %459 = vperm.xlu0 %458, %v455
      %v460 = vpop.permute.xlu0 %459
      %v462 = vmul.f32 %v456, %v460
      %v463 = vmul.f32 %v462, %v462
      %v465 = vsel %vm374, %v463, 0
      %467 = vmatpush.msra.mxu0 0.0
      %468 = vmatpush.msra.mxu0 0.0
      %469 = vmatpush.msra.mxu0 0.0
      %470 = vmatpush.msra.mxu0 0.0
      %471 = vmatpush.msra.mxu0 0.0
      %472 = vmatpush.msra.mxu0 0.0
      %473 = vmatpush.msra.mxu0 0.0
      %474 = vmatpush.msra.mxu0 0.0
      %475 = vmatpush.msra.mxu0 0.0
      %476 = vmatpush.msra.mxu0 0.0
      %477 = vmatpush.msra.mxu0 0.0
      %478 = vmatpush.msra.mxu0 0.0
      %479 = vmatpush.msra.mxu0 %v280
      %480 = vmatpush.msra.mxu0 %v279
      %481 = vmatpush.msra.mxu0 %v278
      %482 = vmatpush.msra.mxu0 %v277
      %483 = vmatmul.f32.gmra.mxu0 %v465
      %v484 = vpop.f32.mrf.mxu0
      %v485 = vadd.f32 0.0, %v484
      %486 = vdwg.mxu0
      %v487 = vrsqrt.pop %v485
      %v488 = vmul.f32 %v487, %v485
      %v489 = vmul.f32 %v488, %v487
      %v490 = vmul.f32 0.5, %v489
      %v491 = vsub.f32 1.5, %v490
      %v492 = vmul.f32 %v487, %v491
      %v493 = vmul.f32 %v485, %v492
      %vm494 = vcmp.eq.f32.partialorder %v485, inf
      %v495 = vsel %vm494, %v485, %v493
      %vm496 = vcmp.eq.f32.partialorder %v485, 0.0
      %v497 = vand.u32 %v485, 2147483648
      %v498 = vsel %vm496, %v497, %v495
      %v499 = vmax.f32 %v498, 1e-12
      %v500 = vrcp.pop %v499
      %v501 = vmul.f32 %v499, %v500
      %v502 = vsub.f32 1.0, %v501
      %v503 = vmul.f32 %v500, %v502
      %v504 = vadd.f32 %v500, %v503
      %vm505 = vweird.f32 %v499
      %vm506 = vweird.f32 %v500
      %vm507 = vmor %vm505, %vm506
      %v508 = vsel %vm507, %v500, %v504
      %v509 = vand.u32 2147483647, %v499
      %vm510 = vcmp.eq.f32.partialorder %v509, 8.507059e+37
      %v511 = vand.u32 %v499, 2147483648
      %v512 = vor.u32 1.1754944e-38, %v511
      %v513 = vsel %vm510, %v512, %v508
      %v514 = vmul.f32 1.0, %v513
      %v516 = vsel %vm426, %v514, 0
      %518 = vmatpush.msra.mxu0 0.0
      %519 = vmatpush.msra.mxu0 0.0
      %520 = vmatpush.msra.mxu0 0.0
      %521 = vmatpush.msra.mxu0 0.0
      %522 = vmatpush.msra.mxu0 0.0
      %523 = vmatpush.msra.mxu0 0.0
      %524 = vmatpush.msra.mxu0 0.0
      %525 = vmatpush.msra.mxu0 0.0
      %526 = vmatpush.msra.mxu0 0.0
      %527 = vmatpush.msra.mxu0 0.0
      %528 = vmatpush.msra.mxu0 0.0
      %529 = vmatpush.msra.mxu0 0.0
      %530 = vmatpush.msra.mxu0 0.0
      %531 = vmatpush.msra.mxu0 0.0
      %532 = vmatpush.msra.mxu0 0.0
      %533 = vmatpush.msra.mxu0 %v432
      %534 = vmatmul.f32.gmra.mxu0 %v516
      %v535 = vpop.f32.mrf.mxu0
      %v536 = vadd.f32 0.0, %v535
      %537 = vdwg.mxu0
      %v538 = vmul.f32 %v462, %v536
      %539 = vst.msk [vmem:[#allocation2] sm:$0xff] %vm374, %v538
      %s540 = scalar_lea.vmem [#allocation2], 8
      %v541 = vld [vmem:[%s540] sm:$0xff]
      %542 = vset.pattern.permute.xlu0 1
      %543 = vperm.xlu0 %542, %v455
      %v544 = vpop.permute.xlu0 %543
      %v546 = vmul.f32 %v541, %v544
      %v547 = vmul.f32 %v546, %v546
      %v549 = vsel %vm374, %v547, 0
      %551 = vmatpush.msra.mxu0 0.0
      %552 = vmatpush.msra.mxu0 0.0
      %553 = vmatpush.msra.mxu0 0.0
      %554 = vmatpush.msra.mxu0 0.0
      %555 = vmatpush.msra.mxu0 0.0
      %556 = vmatpush.msra.mxu0 0.0
      %557 = vmatpush.msra.mxu0 0.0
      %558 = vmatpush.msra.mxu0 0.0
      %559 = vmatpush.msra.mxu0 0.0
      %560 = vmatpush.msra.mxu0 0.0
      %561 = vmatpush.msra.mxu0 0.0
      %562 = vmatpush.msra.mxu0 0.0
      %563 = vmatpush.msra.mxu0 %v280
      %564 = vmatpush.msra.mxu0 %v279
      %565 = vmatpush.msra.mxu0 %v278
      %566 = vmatpush.msra.mxu0 %v277
      %567 = vmatmul.f32.gmra.mxu0 %v549
      %v568 = vpop.f32.mrf.mxu0
      %v569 = vadd.f32 0.0, %v568
      %570 = vdwg.mxu0
      %v571 = vrsqrt.pop %v569
      %v572 = vmul.f32 %v571, %v569
      %v573 = vmul.f32 %v572, %v571
      %v574 = vmul.f32 0.5, %v573
      %v575 = vsub.f32 1.5, %v574
      %v576 = vmul.f32 %v571, %v575
      %v577 = vmul.f32 %v569, %v576
      %vm578 = vcmp.eq.f32.partialorder %v569, inf
      %v579 = vsel %vm578, %v569, %v577
      %vm580 = vcmp.eq.f32.partialorder %v569, 0.0
      %v581 = vand.u32 %v569, 2147483648
      %v582 = vsel %vm580, %v581, %v579
      %v583 = vmax.f32 %v582, 1e-12
      %v584 = vrcp.pop %v583
      %v585 = vmul.f32 %v583, %v584
      %v586 = vsub.f32 1.0, %v585
      %v587 = vmul.f32 %v584, %v586
      %v588 = vadd.f32 %v584, %v587
      %vm589 = vweird.f32 %v583
      %vm590 = vweird.f32 %v584
      %vm591 = vmor %vm589, %vm590
      %v592 = vsel %vm591, %v584, %v588
      %v593 = vand.u32 2147483647, %v583
      %vm594 = vcmp.eq.f32.partialorder %v593, 8.507059e+37
      %v595 = vand.u32 %v583, 2147483648
      %v596 = vor.u32 1.1754944e-38, %v595
      %v597 = vsel %vm594, %v596, %v592
      %v598 = vmul.f32 1.0, %v597
      %v600 = vsel %vm426, %v598, 0
      %602 = vmatpush.msra.mxu0 0.0
      %603 = vmatpush.msra.mxu0 0.0
      %604 = vmatpush.msra.mxu0 0.0
      %605 = vmatpush.msra.mxu0 0.0
      %606 = vmatpush.msra.mxu0 0.0
      %607 = vmatpush.msra.mxu0 0.0
      %608 = vmatpush.msra.mxu0 0.0
      %609 = vmatpush.msra.mxu0 0.0
      %610 = vmatpush.msra.mxu0 0.0
      %611 = vmatpush.msra.mxu0 0.0
      %612 = vmatpush.msra.mxu0 0.0
      %613 = vmatpush.msra.mxu0 0.0
      %614 = vmatpush.msra.mxu0 0.0
      %615 = vmatpush.msra.mxu0 0.0
      %616 = vmatpush.msra.mxu0 0.0
      %617 = vmatpush.msra.mxu0 %v432
      %618 = vmatmul.f32.gmra.mxu0 %v600
      %v619 = vpop.f32.mrf.mxu0
      %v620 = vadd.f32 0.0, %v619
      %621 = vdwg.mxu0
      %v622 = vmul.f32 %v546, %v620
      %623 = vst.msk [vmem:[%s540] sm:$0xff] %vm374, %v622
      %s624 = scalar_lea.vmem [#allocation2], 16
      %v625 = vld [vmem:[%s624] sm:$0xff]
      %626 = vset.pattern.permute.xlu0 2
      %627 = vperm.xlu0 %626, %v455
      %v628 = vpop.permute.xlu0 %627
      %v630 = vmul.f32 %v625, %v628
      %v631 = vmul.f32 %v630, %v630
      %v633 = vsel %vm374, %v631, 0
      %635 = vmatpush.msra.mxu0 0.0
      %636 = vmatpush.msra.mxu0 0.0
      %637 = vmatpush.msra.mxu0 0.0
      %638 = vmatpush.msra.mxu0 0.0
      %639 = vmatpush.msra.mxu0 0.0
      %640 = vmatpush.msra.mxu0 0.0
      %641 = vmatpush.msra.mxu0 0.0
      %642 = vmatpush.msra.mxu0 0.0
      %643 = vmatpush.msra.mxu0 0.0
      %644 = vmatpush.msra.mxu0 0.0
      %645 = vmatpush.msra.mxu0 0.0
      %646 = vmatpush.msra.mxu0 0.0
      %647 = vmatpush.msra.mxu0 %v280
      %648 = vmatpush.msra.mxu0 %v279
      %649 = vmatpush.msra.mxu0 %v278
      %650 = vmatpush.msra.mxu0 %v277
      %651 = vmatmul.f32.gmra.mxu0 %v633
      %v652 = vpop.f32.mrf.mxu0
      %v653 = vadd.f32 0.0, %v652
      %654 = vdwg.mxu0
      %v655 = vrsqrt.pop %v653
      %v656 = vmul.f32 %v655, %v653
      %v657 = vmul.f32 %v656, %v655
      %v658 = vmul.f32 0.5, %v657
      %v659 = vsub.f32 1.5, %v658
      %v660 = vmul.f32 %v655, %v659
      %v661 = vmul.f32 %v653, %v660
      %vm662 = vcmp.eq.f32.partialorder %v653, inf
      %v663 = vsel %vm662, %v653, %v661
      %vm664 = vcmp.eq.f32.partialorder %v653, 0.0
      %v665 = vand.u32 %v653, 2147483648
      %v666 = vsel %vm664, %v665, %v663
      %v667 = vmax.f32 %v666, 1e-12
      %v668 = vrcp.pop %v667
      %v669 = vmul.f32 %v667, %v668
      %v670 = vsub.f32 1.0, %v669
      %v671 = vmul.f32 %v668, %v670
      %v672 = vadd.f32 %v668, %v671
      %vm673 = vweird.f32 %v667
      %vm674 = vweird.f32 %v668
      %vm675 = vmor %vm673, %vm674
      %v676 = vsel %vm675, %v668, %v672
      %v677 = vand.u32 2147483647, %v667
      %vm678 = vcmp.eq.f32.partialorder %v677, 8.507059e+37
      %v679 = vand.u32 %v667, 2147483648
      %v680 = vor.u32 1.1754944e-38, %v679
      %v681 = vsel %vm678, %v680, %v676
      %v682 = vmul.f32 1.0, %v681
      %v684 = vsel %vm426, %v682, 0
      %686 = vmatpush.msra.mxu0 0.0
      %687 = vmatpush.msra.mxu0 0.0
      %688 = vmatpush.msra.mxu0 0.0
      %689 = vmatpush.msra.mxu0 0.0
      %690 = vmatpush.msra.mxu0 0.0
      %691 = vmatpush.msra.mxu0 0.0
      %692 = vmatpush.msra.mxu0 0.0
      %693 = vmatpush.msra.mxu0 0.0
      %694 = vmatpush.msra.mxu0 0.0
      %695 = vmatpush.msra.mxu0 0.0
      %696 = vmatpush.msra.mxu0 0.0
      %697 = vmatpush.msra.mxu0 0.0
      %698 = vmatpush.msra.mxu0 0.0
      %699 = vmatpush.msra.mxu0 0.0
      %700 = vmatpush.msra.mxu0 0.0
      %701 = vmatpush.msra.mxu0 %v432
      %702 = vmatmul.f32.gmra.mxu0 %v684
      %v703 = vpop.f32.mrf.mxu0
      %v704 = vadd.f32 0.0, %v703
      %705 = vdwg.mxu0
      %v706 = vmul.f32 %v630, %v704
      %707 = vst.msk [vmem:[%s624] sm:$0xff] %vm374, %v706
      %s708 = scalar_lea.vmem [#allocation2], 24
      %v709 = vld [vmem:[%s708] sm:$0xff]
      %710 = vset.pattern.permute.xlu0 3
      %711 = vperm.xlu0 %710, %v455
      %v712 = vpop.permute.xlu0 %711
      %v714 = vmul.f32 %v709, %v712
      %v715 = vmul.f32 %v714, %v714
      %v717 = vsel %vm374, %v715, 0
      %719 = vmatpush.msra.mxu0 0.0
      %720 = vmatpush.msra.mxu0 0.0
      %721 = vmatpush.msra.mxu0 0.0
      %722 = vmatpush.msra.mxu0 0.0
      %723 = vmatpush.msra.mxu0 0.0
      %724 = vmatpush.msra.mxu0 0.0
      %725 = vmatpush.msra.mxu0 0.0
      %726 = vmatpush.msra.mxu0 0.0
      %727 = vmatpush.msra.mxu0 0.0
      %728 = vmatpush.msra.mxu0 0.0
      %729 = vmatpush.msra.mxu0 0.0
      %730 = vmatpush.msra.mxu0 0.0
      %731 = vmatpush.msra.mxu0 %v280
      %732 = vmatpush.msra.mxu0 %v279
      %733 = vmatpush.msra.mxu0 %v278
      %734 = vmatpush.msra.mxu0 %v277
      %735 = vmatmul.f32.gmra.mxu0 %v717
      %v736 = vpop.f32.mrf.mxu0
      %v737 = vadd.f32 0.0, %v736
      %738 = vdwg.mxu0
      %v739 = vrsqrt.pop %v737
      %v740 = vmul.f32 %v739, %v737
      %v741 = vmul.f32 %v740, %v739
      %v742 = vmul.f32 0.5, %v741
      %v743 = vsub.f32 1.5, %v742
      %v744 = vmul.f32 %v739, %v743
      %v745 = vmul.f32 %v737, %v744
      %vm746 = vcmp.eq.f32.partialorder %v737, inf
      %v747 = vsel %vm746, %v737, %v745
      %vm748 = vcmp.eq.f32.partialorder %v737, 0.0
      %v749 = vand.u32 %v737, 2147483648
      %v750 = vsel %vm748, %v749, %v747
      %v751 = vmax.f32 %v750, 1e-12
      %v752 = vrcp.pop %v751
      %v753 = vmul.f32 %v751, %v752
      %v754 = vsub.f32 1.0, %v753
      %v755 = vmul.f32 %v752, %v754
      %v756 = vadd.f32 %v752, %v755
      %vm757 = vweird.f32 %v751
      %vm758 = vweird.f32 %v752
      %vm759 = vmor %vm757, %vm758
      %v760 = vsel %vm759, %v752, %v756
      %v761 = vand.u32 2147483647, %v751
      %vm762 = vcmp.eq.f32.partialorder %v761, 8.507059e+37
      %v763 = vand.u32 %v751, 2147483648
      %v764 = vor.u32 1.1754944e-38, %v763
      %v765 = vsel %vm762, %v764, %v760
      %v766 = vmul.f32 1.0, %v765
      %v768 = vsel %vm426, %v766, 0
      %770 = vmatpush.msra.mxu0 0.0
      %771 = vmatpush.msra.mxu0 0.0
      %772 = vmatpush.msra.mxu0 0.0
      %773 = vmatpush.msra.mxu0 0.0
      %774 = vmatpush.msra.mxu0 0.0
      %775 = vmatpush.msra.mxu0 0.0
      %776 = vmatpush.msra.mxu0 0.0
      %777 = vmatpush.msra.mxu0 0.0
      %778 = vmatpush.msra.mxu0 0.0
      %779 = vmatpush.msra.mxu0 0.0
      %780 = vmatpush.msra.mxu0 0.0
      %781 = vmatpush.msra.mxu0 0.0
      %782 = vmatpush.msra.mxu0 0.0
      %783 = vmatpush.msra.mxu0 0.0
      %784 = vmatpush.msra.mxu0 0.0
      %785 = vmatpush.msra.mxu0 %v432
      %786 = vmatmul.f32.gmra.mxu0 %v768
      %v787 = vpop.f32.mrf.mxu0
      %v788 = vadd.f32 0.0, %v787
      %789 = vdwg.mxu0
      %v790 = vmul.f32 %v714, %v788
      %791 = vst.msk [vmem:[%s708] sm:$0xff] %vm374, %v790
      %s792 = scalar_lea.vmem [#allocation2], 32
      %v793 = vld [vmem:[%s792] sm:$0xff]
      %794 = vset.pattern.permute.xlu0 4
      %795 = vperm.xlu0 %794, %v455
      %v796 = vpop.permute.xlu0 %795
      %v798 = vmul.f32 %v793, %v796
      %v799 = vmul.f32 %v798, %v798
      %v801 = vsel %vm374, %v799, 0
      %803 = vmatpush.msra.mxu0 0.0
      %804 = vmatpush.msra.mxu0 0.0
      %805 = vmatpush.msra.mxu0 0.0
      %806 = vmatpush.msra.mxu0 0.0
      %807 = vmatpush.msra.mxu0 0.0
      %808 = vmatpush.msra.mxu0 0.0
      %809 = vmatpush.msra.mxu0 0.0
      %810 = vmatpush.msra.mxu0 0.0
      %811 = vmatpush.msra.mxu0 0.0
      %812 = vmatpush.msra.mxu0 0.0
      %813 = vmatpush.msra.mxu0 0.0
      %814 = vmatpush.msra.mxu0 0.0
      %815 = vmatpush.msra.mxu0 %v280
      %816 = vmatpush.msra.mxu0 %v279
      %817 = vmatpush.msra.mxu0 %v278
      %818 = vmatpush.msra.mxu0 %v277
      %819 = vmatmul.f32.gmra.mxu0 %v801
      %v820 = vpop.f32.mrf.mxu0
      %v821 = vadd.f32 0.0, %v820
      %822 = vdwg.mxu0
      %v823 = vrsqrt.pop %v821
      %v824 = vmul.f32 %v823, %v821
      %v825 = vmul.f32 %v824, %v823
      %v826 = vmul.f32 0.5, %v825
      %v827 = vsub.f32 1.5, %v826
      %v828 = vmul.f32 %v823, %v827
      %v829 = vmul.f32 %v821, %v828
      %vm830 = vcmp.eq.f32.partialorder %v821, inf
      %v831 = vsel %vm830, %v821, %v829
      %vm832 = vcmp.eq.f32.partialorder %v821, 0.0
      %v833 = vand.u32 %v821, 2147483648
      %v834 = vsel %vm832, %v833, %v831
      %v835 = vmax.f32 %v834, 1e-12
      %v836 = vrcp.pop %v835
      %v837 = vmul.f32 %v835, %v836
      %v838 = vsub.f32 1.0, %v837
      %v839 = vmul.f32 %v836, %v838
      %v840 = vadd.f32 %v836, %v839
      %vm841 = vweird.f32 %v835
      %vm842 = vweird.f32 %v836
      %vm843 = vmor %vm841, %vm842
      %v844 = vsel %vm843, %v836, %v840
      %v845 = vand.u32 2147483647, %v835
      %vm846 = vcmp.eq.f32.partialorder %v845, 8.507059e+37
      %v847 = vand.u32 %v835, 2147483648
      %v848 = vor.u32 1.1754944e-38, %v847
      %v849 = vsel %vm846, %v848, %v844
      %v850 = vmul.f32 1.0, %v849
      %v852 = vsel %vm426, %v850, 0
      %854 = vmatpush.msra.mxu0 0.0
      %855 = vmatpush.msra.mxu0 0.0
      %856 = vmatpush.msra.mxu0 0.0
      %857 = vmatpush.msra.mxu0 0.0
      %858 = vmatpush.msra.mxu0 0.0
      %859 = vmatpush.msra.mxu0 0.0
      %860 = vmatpush.msra.mxu0 0.0
      %861 = vmatpush.msra.mxu0 0.0
      %862 = vmatpush.msra.mxu0 0.0
      %863 = vmatpush.msra.mxu0 0.0
      %864 = vmatpush.msra.mxu0 0.0
      %865 = vmatpush.msra.mxu0 0.0
      %866 = vmatpush.msra.mxu0 0.0
      %867 = vmatpush.msra.mxu0 0.0
      %868 = vmatpush.msra.mxu0 0.0
      %869 = vmatpush.msra.mxu0 %v432
      %870 = vmatmul.f32.gmra.mxu0 %v852
      %v871 = vpop.f32.mrf.mxu0
      %v872 = vadd.f32 0.0, %v871
      %873 = vdwg.mxu0
      %v874 = vmul.f32 %v798, %v872
      %875 = vst.msk [vmem:[%s792] sm:$0xff] %vm374, %v874
      %s876 = scalar_lea.vmem [#allocation2], 40
      %v877 = vld [vmem:[%s876] sm:$0xff]
      %878 = vset.pattern.permute.xlu0 5
      %879 = vperm.xlu0 %878, %v455
      %v880 = vpop.permute.xlu0 %879
      %v882 = vmul.f32 %v877, %v880
      %v883 = vmul.f32 %v882, %v882
      %v885 = vsel %vm374, %v883, 0
      %887 = vmatpush.msra.mxu0 0.0
      %888 = vmatpush.msra.mxu0 0.0
      %889 = vmatpush.msra.mxu0 0.0
      %890 = vmatpush.msra.mxu0 0.0
      %891 = vmatpush.msra.mxu0 0.0
      %892 = vmatpush.msra.mxu0 0.0
      %893 = vmatpush.msra.mxu0 0.0
      %894 = vmatpush.msra.mxu0 0.0
      %895 = vmatpush.msra.mxu0 0.0
      %896 = vmatpush.msra.mxu0 0.0
      %897 = vmatpush.msra.mxu0 0.0
      %898 = vmatpush.msra.mxu0 0.0
      %899 = vmatpush.msra.mxu0 %v280
      %900 = vmatpush.msra.mxu0 %v279
      %901 = vmatpush.msra.mxu0 %v278
      %902 = vmatpush.msra.mxu0 %v277
      %903 = vmatmul.f32.gmra.mxu0 %v885
      %v904 = vpop.f32.mrf.mxu0
      %v905 = vadd.f32 0.0, %v904
      %906 = vdwg.mxu0
      %v907 = vrsqrt.pop %v905
      %v908 = vmul.f32 %v907, %v905
      %v909 = vmul.f32 %v908, %v907
      %v910 = vmul.f32 0.5, %v909
      %v911 = vsub.f32 1.5, %v910
      %v912 = vmul.f32 %v907, %v911
      %v913 = vmul.f32 %v905, %v912
      %vm914 = vcmp.eq.f32.partialorder %v905, inf
      %v915 = vsel %vm914, %v905, %v913
      %vm916 = vcmp.eq.f32.partialorder %v905, 0.0
      %v917 = vand.u32 %v905, 2147483648
      %v918 = vsel %vm916, %v917, %v915
      %v919 = vmax.f32 %v918, 1e-12
      %v920 = vrcp.pop %v919
      %v921 = vmul.f32 %v919, %v920
      %v922 = vsub.f32 1.0, %v921
      %v923 = vmul.f32 %v920, %v922
      %v924 = vadd.f32 %v920, %v923
      %vm925 = vweird.f32 %v919
      %vm926 = vweird.f32 %v920
      %vm927 = vmor %vm925, %vm926
      %v928 = vsel %vm927, %v920, %v924
      %v929 = vand.u32 2147483647, %v919
      %vm930 = vcmp.eq.f32.partialorder %v929, 8.507059e+37
      %v931 = vand.u32 %v919, 2147483648
      %v932 = vor.u32 1.1754944e-38, %v931
      %v933 = vsel %vm930, %v932, %v928
      %v934 = vmul.f32 1.0, %v933
      %v936 = vsel %vm426, %v934, 0
      %938 = vmatpush.msra.mxu0 0.0
      %939 = vmatpush.msra.mxu0 0.0
      %940 = vmatpush.msra.mxu0 0.0
      %941 = vmatpush.msra.mxu0 0.0
      %942 = vmatpush.msra.mxu0 0.0
      %943 = vmatpush.msra.mxu0 0.0
      %944 = vmatpush.msra.mxu0 0.0
      %945 = vmatpush.msra.mxu0 0.0
      %946 = vmatpush.msra.mxu0 0.0
      %947 = vmatpush.msra.mxu0 0.0
      %948 = vmatpush.msra.mxu0 0.0
      %949 = vmatpush.msra.mxu0 0.0
      %950 = vmatpush.msra.mxu0 0.0
      %951 = vmatpush.msra.mxu0 0.0
      %952 = vmatpush.msra.mxu0 0.0
      %953 = vmatpush.msra.mxu0 %v432
      %954 = vmatmul.f32.gmra.mxu0 %v936
      %v955 = vpop.f32.mrf.mxu0
      %v956 = vadd.f32 0.0, %v955
      %957 = vdwg.mxu0
      %v958 = vmul.f32 %v882, %v956
      %959 = vst.msk [vmem:[%s876] sm:$0xff] %vm374, %v958
      %v960 = vld [vmem:[#allocation2] sm:$0xff]
      %v961 = vld [vmem:[%s540] sm:$0xff]
      %v962 = vadd.f32 %v960, %v961
      %v963 = vld [vmem:[%s624] sm:$0xff]
      %v964 = vadd.f32 %v962, %v963
      %v965 = vld [vmem:[%s708] sm:$0xff]
      %v966 = vadd.f32 %v964, %v965
      %v967 = vld [vmem:[%s792] sm:$0xff]
      %v968 = vadd.f32 %v966, %v967
      %v969 = vld [vmem:[%s876] sm:$0xff]
      %v970 = vadd.f32 %v968, %v969
      %v971 = vmul.f32 %v970, 0.25
      %v972 = vadd.f32 %v454, %v971
      %v973 = vmul.f32 %v972, %v972
      %v975 = vsel %vm374, %v973, 0
      %977 = vmatpush.msra.mxu0 0.0
      %978 = vmatpush.msra.mxu0 0.0
      %979 = vmatpush.msra.mxu0 0.0
      %980 = vmatpush.msra.mxu0 0.0
      %981 = vmatpush.msra.mxu0 0.0
      %982 = vmatpush.msra.mxu0 0.0
      %983 = vmatpush.msra.mxu0 0.0
      %984 = vmatpush.msra.mxu0 0.0
      %985 = vmatpush.msra.mxu0 0.0
      %986 = vmatpush.msra.mxu0 0.0
      %987 = vmatpush.msra.mxu0 0.0
      %988 = vmatpush.msra.mxu0 0.0
      %989 = vmatpush.msra.mxu0 %v280
      %990 = vmatpush.msra.mxu0 %v279
      %991 = vmatpush.msra.mxu0 %v278
      %992 = vmatpush.msra.mxu0 %v277
      %993 = vmatmul.f32.gmra.mxu0 %v975
      %v994 = vpop.f32.mrf.mxu0
      %v995 = vadd.f32 0.0, %v994
      %996 = vdwg.mxu0
      %v997 = vrsqrt.pop %v995
      %v998 = vmul.f32 %v997, %v995
      %v999 = vmul.f32 %v998, %v997
      %v1000 = vmul.f32 0.5, %v999
      %v1001 = vsub.f32 1.5, %v1000
      %v1002 = vmul.f32 %v997, %v1001
      %v1003 = vmul.f32 %v995, %v1002
      %vm1004 = vcmp.eq.f32.partialorder %v995, inf
      %v1005 = vsel %vm1004, %v995, %v1003
      %vm1006 = vcmp.eq.f32.partialorder %v995, 0.0
      %v1007 = vand.u32 %v995, 2147483648
      %v1008 = vsel %vm1006, %v1007, %v1005
      %v1009 = vmax.f32 %v1008, 1e-12
      %v1010 = vrcp.pop %v1009
      %v1011 = vmul.f32 %v1009, %v1010
      %v1012 = vsub.f32 1.0, %v1011
      %v1013 = vmul.f32 %v1010, %v1012
      %v1014 = vadd.f32 %v1010, %v1013
      %vm1015 = vweird.f32 %v1009
      %vm1016 = vweird.f32 %v1010
      %vm1017 = vmor %vm1015, %vm1016
      %v1018 = vsel %vm1017, %v1010, %v1014
      %v1019 = vand.u32 2147483647, %v1009
      %vm1020 = vcmp.eq.f32.partialorder %v1019, 8.507059e+37
      %v1021 = vand.u32 %v1009, 2147483648
      %v1022 = vor.u32 1.1754944e-38, %v1021
      %v1023 = vsel %vm1020, %v1022, %v1018
      %v1024 = vmul.f32 1.0, %v1023
      %v1026 = vsel %vm426, %v1024, 0
      %1028 = vmatpush.msra.mxu0 0.0
      %1029 = vmatpush.msra.mxu0 0.0
      %1030 = vmatpush.msra.mxu0 0.0
      %1031 = vmatpush.msra.mxu0 0.0
      %1032 = vmatpush.msra.mxu0 0.0
      %1033 = vmatpush.msra.mxu0 0.0
      %1034 = vmatpush.msra.mxu0 0.0
      %1035 = vmatpush.msra.mxu0 0.0
      %1036 = vmatpush.msra.mxu0 0.0
      %1037 = vmatpush.msra.mxu0 0.0
      %1038 = vmatpush.msra.mxu0 0.0
      %1039 = vmatpush.msra.mxu0 0.0
      %1040 = vmatpush.msra.mxu0 0.0
      %1041 = vmatpush.msra.mxu0 0.0
      %1042 = vmatpush.msra.mxu0 0.0
      %1043 = vmatpush.msra.mxu0 %v432
      %1044 = vmatmul.f32.gmra.mxu0 %v1026
      %v1045 = vpop.f32.mrf.mxu0
      %v1046 = vadd.f32 0.0, %v1045
      %1047 = vdwg.mxu0
      %v1048 = vmul.f32 %v972, %v1046
      %v1049 = vmul.f32 %v960, %v1048
      %v1051 = vsel %vm374, %v1049, 0
      %1053 = vmatpush.msra.mxu0 0.0
      %1054 = vmatpush.msra.mxu0 0.0
      %1055 = vmatpush.msra.mxu0 0.0
      %1056 = vmatpush.msra.mxu0 0.0
      %1057 = vmatpush.msra.mxu0 0.0
      %1058 = vmatpush.msra.mxu0 0.0
      %1059 = vmatpush.msra.mxu0 0.0
      %1060 = vmatpush.msra.mxu0 0.0
      %1061 = vmatpush.msra.mxu0 0.0
      %1062 = vmatpush.msra.mxu0 0.0
      %1063 = vmatpush.msra.mxu0 0.0
      %1064 = vmatpush.msra.mxu0 0.0
      %1065 = vmatpush.msra.mxu0 %v280
      %1066 = vmatpush.msra.mxu0 %v279
      %1067 = vmatpush.msra.mxu0 %v278
      %1068 = vmatpush.msra.mxu0 %v277
      %1069 = vmatmul.f32.gmra.mxu0 %v1051
      %v1070 = vpop.f32.mrf.mxu0
      %v1071 = vadd.f32 0.0, %v1070
      %1072 = vdwg.mxu0
      %v1073 = vmul.f32 %v1071, 1.442695
      %v1074 = vpow.pop %v1073
      %v1075 = vsel %vm426, %v1074, 0.0
      %1076 = vadd.xlane.f32.xlu0 %v1075
      %v1077 = vpop.xlane.xlu0 %1076
      %v1078 = vrcp.pop %v1077
      %v1079 = vmul.f32 %v1077, %v1078
      %v1080 = vsub.f32 1.0, %v1079
      %v1081 = vmul.f32 %v1078, %v1080
      %v1082 = vadd.f32 %v1078, %v1081
      %vm1083 = vweird.f32 %v1077
      %vm1084 = vweird.f32 %v1078
      %vm1085 = vmor %vm1083, %vm1084
      %v1086 = vsel %vm1085, %v1078, %v1082
      %v1087 = vand.u32 2147483647, %v1077
      %vm1088 = vcmp.eq.f32.partialorder %v1087, 8.507059e+37
      %v1089 = vand.u32 %v1077, 2147483648
      %v1090 = vor.u32 1.1754944e-38, %v1089
      %v1091 = vsel %vm1088, %v1090, %v1086
      %v1092 = vmul.f32 %v1074, %v1091
      %v1094 = vsel %vm426, %v1092, 0
      %1096 = vmatpush.msra.mxu0 0.0
      %1097 = vmatpush.msra.mxu0 0.0
      %1098 = vmatpush.msra.mxu0 0.0
      %1099 = vmatpush.msra.mxu0 0.0
      %1100 = vmatpush.msra.mxu0 0.0
      %1101 = vmatpush.msra.mxu0 0.0
      %1102 = vmatpush.msra.mxu0 0.0
      %1103 = vmatpush.msra.mxu0 0.0
      %1104 = vmatpush.msra.mxu0 0.0
      %1105 = vmatpush.msra.mxu0 0.0
      %1106 = vmatpush.msra.mxu0 0.0
      %1107 = vmatpush.msra.mxu0 0.0
      %1108 = vmatpush.msra.mxu0 0.0
      %1109 = vmatpush.msra.mxu0 0.0
      %1110 = vmatpush.msra.mxu0 0.0
      %1111 = vmatpush.msra.mxu0 %v432
      %1112 = vmatmul.f32.gmra.mxu0 %v1094
      %v1113 = vpop.f32.mrf.mxu0
      %v1114 = vadd.f32 0.0, %v1113
      %1115 = vdwg.mxu0
      %v1116 = vmul.f32 %v960, %v1114
      %v1117 = vadd.f32 %v454, %v1116
      %v1118 = vmul.f32 %v961, %v1048
      %v1120 = vsel %vm374, %v1118, 0
      %1122 = vmatpush.msra.mxu0 0.0
      %1123 = vmatpush.msra.mxu0 0.0
      %1124 = vmatpush.msra.mxu0 0.0
      %1125 = vmatpush.msra.mxu0 0.0
      %1126 = vmatpush.msra.mxu0 0.0
      %1127 = vmatpush.msra.mxu0 0.0
      %1128 = vmatpush.msra.mxu0 0.0
      %1129 = vmatpush.msra.mxu0 0.0
      %1130 = vmatpush.msra.mxu0 0.0
      %1131 = vmatpush.msra.mxu0 0.0
      %1132 = vmatpush.msra.mxu0 0.0
      %1133 = vmatpush.msra.mxu0 0.0
      %1134 = vmatpush.msra.mxu0 %v280
      %1135 = vmatpush.msra.mxu0 %v279
      %1136 = vmatpush.msra.mxu0 %v278
      %1137 = vmatpush.msra.mxu0 %v277
      %1138 = vmatmul.f32.gmra.mxu0 %v1120
      %v1139 = vpop.f32.mrf.mxu0
      %v1140 = vadd.f32 0.0, %v1139
      %1141 = vdwg.mxu0
      %v1142 = vmul.f32 %v1140, 1.442695
      %v1143 = vpow.pop %v1142
      %v1144 = vsel %vm426, %v1143, 0.0
      %1145 = vadd.xlane.f32.xlu0 %v1144
      %v1146 = vpop.xlane.xlu0 %1145
      %v1147 = vrcp.pop %v1146
      %v1148 = vmul.f32 %v1146, %v1147
      %v1149 = vsub.f32 1.0, %v1148
      %v1150 = vmul.f32 %v1147, %v1149
      %v1151 = vadd.f32 %v1147, %v1150
      %vm1152 = vweird.f32 %v1146
      %vm1153 = vweird.f32 %v1147
      %vm1154 = vmor %vm1152, %vm1153
      %v1155 = vsel %vm1154, %v1147, %v1151
      %v1156 = vand.u32 2147483647, %v1146
      %vm1157 = vcmp.eq.f32.partialorder %v1156, 8.507059e+37
      %v1158 = vand.u32 %v1146, 2147483648
      %v1159 = vor.u32 1.1754944e-38, %v1158
      %v1160 = vsel %vm1157, %v1159, %v1155
      %v1161 = vmul.f32 %v1143, %v1160
      %v1163 = vsel %vm426, %v1161, 0
      %1165 = vmatpush.msra.mxu0 0.0
      %1166 = vmatpush.msra.mxu0 0.0
      %1167 = vmatpush.msra.mxu0 0.0
      %1168 = vmatpush.msra.mxu0 0.0
      %1169 = vmatpush.msra.mxu0 0.0
      %1170 = vmatpush.msra.mxu0 0.0
      %1171 = vmatpush.msra.mxu0 0.0
      %1172 = vmatpush.msra.mxu0 0.0
      %1173 = vmatpush.msra.mxu0 0.0
      %1174 = vmatpush.msra.mxu0 0.0
      %1175 = vmatpush.msra.mxu0 0.0
      %1176 = vmatpush.msra.mxu0 0.0
      %1177 = vmatpush.msra.mxu0 0.0
      %1178 = vmatpush.msra.mxu0 0.0
      %1179 = vmatpush.msra.mxu0 0.0
      %1180 = vmatpush.msra.mxu0 %v432
      %1181 = vmatmul.f32.gmra.mxu0 %v1163
      %v1182 = vpop.f32.mrf.mxu0
      %v1183 = vadd.f32 0.0, %v1182
      %1184 = vdwg.mxu0
      %v1185 = vmul.f32 %v961, %v1183
      %v1186 = vadd.f32 %v1117, %v1185
      %v1187 = vmul.f32 %v963, %v1048
      %v1189 = vsel %vm374, %v1187, 0
      %1191 = vmatpush.msra.mxu0 0.0
      %1192 = vmatpush.msra.mxu0 0.0
      %1193 = vmatpush.msra.mxu0 0.0
      %1194 = vmatpush.msra.mxu0 0.0
      %1195 = vmatpush.msra.mxu0 0.0
      %1196 = vmatpush.msra.mxu0 0.0
      %1197 = vmatpush.msra.mxu0 0.0
      %1198 = vmatpush.msra.mxu0 0.0
      %1199 = vmatpush.msra.mxu0 0.0
      %1200 = vmatpush.msra.mxu0 0.0
      %1201 = vmatpush.msra.mxu0 0.0
      %1202 = vmatpush.msra.mxu0 0.0
      %1203 = vmatpush.msra.mxu0 %v280
      %1204 = vmatpush.msra.mxu0 %v279
      %1205 = vmatpush.msra.mxu0 %v278
      %1206 = vmatpush.msra.mxu0 %v277
      %1207 = vmatmul.f32.gmra.mxu0 %v1189
      %v1208 = vpop.f32.mrf.mxu0
      %v1209 = vadd.f32 0.0, %v1208
      %1210 = vdwg.mxu0
      %v1211 = vmul.f32 %v1209, 1.442695
      %v1212 = vpow.pop %v1211
      %v1213 = vsel %vm426, %v1212, 0.0
      %1214 = vadd.xlane.f32.xlu0 %v1213
      %v1215 = vpop.xlane.xlu0 %1214
      %v1216 = vrcp.pop %v1215
      %v1217 = vmul.f32 %v1215, %v1216
      %v1218 = vsub.f32 1.0, %v1217
      %v1219 = vmul.f32 %v1216, %v1218
      %v1220 = vadd.f32 %v1216, %v1219
      %vm1221 = vweird.f32 %v1215
      %vm1222 = vweird.f32 %v1216
      %vm1223 = vmor %vm1221, %vm1222
      %v1224 = vsel %vm1223, %v1216, %v1220
      %v1225 = vand.u32 2147483647, %v1215
      %vm1226 = vcmp.eq.f32.partialorder %v1225, 8.507059e+37
      %v1227 = vand.u32 %v1215, 2147483648
      %v1228 = vor.u32 1.1754944e-38, %v1227
      %v1229 = vsel %vm1226, %v1228, %v1224
      %v1230 = vmul.f32 %v1212, %v1229
      %v1232 = vsel %vm426, %v1230, 0
      %1234 = vmatpush.msra.mxu0 0.0
      %1235 = vmatpush.msra.mxu0 0.0
      %1236 = vmatpush.msra.mxu0 0.0
      %1237 = vmatpush.msra.mxu0 0.0
      %1238 = vmatpush.msra.mxu0 0.0
      %1239 = vmatpush.msra.mxu0 0.0
      %1240 = vmatpush.msra.mxu0 0.0
      %1241 = vmatpush.msra.mxu0 0.0
      %1242 = vmatpush.msra.mxu0 0.0
      %1243 = vmatpush.msra.mxu0 0.0
      %1244 = vmatpush.msra.mxu0 0.0
      %1245 = vmatpush.msra.mxu0 0.0
      %1246 = vmatpush.msra.mxu0 0.0
      %1247 = vmatpush.msra.mxu0 0.0
      %1248 = vmatpush.msra.mxu0 0.0
      %1249 = vmatpush.msra.mxu0 %v432
      %1250 = vmatmul.f32.gmra.mxu0 %v1232
      %v1251 = vpop.f32.mrf.mxu0
      %v1252 = vadd.f32 0.0, %v1251
      %1253 = vdwg.mxu0
      %v1254 = vmul.f32 %v963, %v1252
      %v1255 = vadd.f32 %v1186, %v1254
      %v1256 = vmul.f32 %v965, %v1048
      %v1258 = vsel %vm374, %v1256, 0
      %1260 = vmatpush.msra.mxu0 0.0
      %1261 = vmatpush.msra.mxu0 0.0
      %1262 = vmatpush.msra.mxu0 0.0
      %1263 = vmatpush.msra.mxu0 0.0
      %1264 = vmatpush.msra.mxu0 0.0
      %1265 = vmatpush.msra.mxu0 0.0
      %1266 = vmatpush.msra.mxu0 0.0
      %1267 = vmatpush.msra.mxu0 0.0
      %1268 = vmatpush.msra.mxu0 0.0
      %1269 = vmatpush.msra.mxu0 0.0
      %1270 = vmatpush.msra.mxu0 0.0
      %1271 = vmatpush.msra.mxu0 0.0
      %1272 = vmatpush.msra.mxu0 %v280
      %1273 = vmatpush.msra.mxu0 %v279
      %1274 = vmatpush.msra.mxu0 %v278
      %1275 = vmatpush.msra.mxu0 %v277
      %1276 = vmatmul.f32.gmra.mxu0 %v1258
      %v1277 = vpop.f32.mrf.mxu0
      %v1278 = vadd.f32 0.0, %v1277
      %1279 = vdwg.mxu0
      %v1280 = vmul.f32 %v1278, 1.442695
      %v1281 = vpow.pop %v1280
      %v1282 = vsel %vm426, %v1281, 0.0
      %1283 = vadd.xlane.f32.xlu0 %v1282
      %v1284 = vpop.xlane.xlu0 %1283
      %v1285 = vrcp.pop %v1284
      %v1286 = vmul.f32 %v1284, %v1285
      %v1287 = vsub.f32 1.0, %v1286
      %v1288 = vmul.f32 %v1285, %v1287
      %v1289 = vadd.f32 %v1285, %v1288
      %vm1290 = vweird.f32 %v1284
      %vm1291 = vweird.f32 %v1285
      %vm1292 = vmor %vm1290, %vm1291
      %v1293 = vsel %vm1292, %v1285, %v1289
      %v1294 = vand.u32 2147483647, %v1284
      %vm1295 = vcmp.eq.f32.partialorder %v1294, 8.507059e+37
      %v1296 = vand.u32 %v1284, 2147483648
      %v1297 = vor.u32 1.1754944e-38, %v1296
      %v1298 = vsel %vm1295, %v1297, %v1293
      %v1299 = vmul.f32 %v1281, %v1298
      %v1301 = vsel %vm426, %v1299, 0
      %1303 = vmatpush.msra.mxu0 0.0
      %1304 = vmatpush.msra.mxu0 0.0
      %1305 = vmatpush.msra.mxu0 0.0
      %1306 = vmatpush.msra.mxu0 0.0
      %1307 = vmatpush.msra.mxu0 0.0
      %1308 = vmatpush.msra.mxu0 0.0
      %1309 = vmatpush.msra.mxu0 0.0
      %1310 = vmatpush.msra.mxu0 0.0
      %1311 = vmatpush.msra.mxu0 0.0
      %1312 = vmatpush.msra.mxu0 0.0
      %1313 = vmatpush.msra.mxu0 0.0
      %1314 = vmatpush.msra.mxu0 0.0
      %1315 = vmatpush.msra.mxu0 0.0
      %1316 = vmatpush.msra.mxu0 0.0
      %1317 = vmatpush.msra.mxu0 0.0
      %1318 = vmatpush.msra.mxu0 %v432
      %1319 = vmatmul.f32.gmra.mxu0 %v1301
      %v1320 = vpop.f32.mrf.mxu0
      %v1321 = vadd.f32 0.0, %v1320
      %1322 = vdwg.mxu0
      %v1323 = vmul.f32 %v965, %v1321
      %v1324 = vadd.f32 %v1255, %v1323
      %v1325 = vmul.f32 %v967, %v1048
      %v1327 = vsel %vm374, %v1325, 0
      %1329 = vmatpush.msra.mxu0 0.0
      %1330 = vmatpush.msra.mxu0 0.0
      %1331 = vmatpush.msra.mxu0 0.0
      %1332 = vmatpush.msra.mxu0 0.0
      %1333 = vmatpush.msra.mxu0 0.0
      %1334 = vmatpush.msra.mxu0 0.0
      %1335 = vmatpush.msra.mxu0 0.0
      %1336 = vmatpush.msra.mxu0 0.0
      %1337 = vmatpush.msra.mxu0 0.0
      %1338 = vmatpush.msra.mxu0 0.0
      %1339 = vmatpush.msra.mxu0 0.0
      %1340 = vmatpush.msra.mxu0 0.0
      %1341 = vmatpush.msra.mxu0 %v280
      %1342 = vmatpush.msra.mxu0 %v279
      %1343 = vmatpush.msra.mxu0 %v278
      %1344 = vmatpush.msra.mxu0 %v277
      %1345 = vmatmul.f32.gmra.mxu0 %v1327
      %v1346 = vpop.f32.mrf.mxu0
      %v1347 = vadd.f32 0.0, %v1346
      %1348 = vdwg.mxu0
      %v1349 = vmul.f32 %v1347, 1.442695
      %v1350 = vpow.pop %v1349
      %v1351 = vsel %vm426, %v1350, 0.0
      %1352 = vadd.xlane.f32.xlu0 %v1351
      %v1353 = vpop.xlane.xlu0 %1352
      %v1354 = vrcp.pop %v1353
      %v1355 = vmul.f32 %v1353, %v1354
      %v1356 = vsub.f32 1.0, %v1355
      %v1357 = vmul.f32 %v1354, %v1356
      %v1358 = vadd.f32 %v1354, %v1357
      %vm1359 = vweird.f32 %v1353
      %vm1360 = vweird.f32 %v1354
      %vm1361 = vmor %vm1359, %vm1360
      %v1362 = vsel %vm1361, %v1354, %v1358
      %v1363 = vand.u32 2147483647, %v1353
      %vm1364 = vcmp.eq.f32.partialorder %v1363, 8.507059e+37
      %v1365 = vand.u32 %v1353, 2147483648
      %v1366 = vor.u32 1.1754944e-38, %v1365
      %v1367 = vsel %vm1364, %v1366, %v1362
      %v1368 = vmul.f32 %v1350, %v1367
      %v1370 = vsel %vm426, %v1368, 0
      %1372 = vmatpush.msra.mxu0 0.0
      %1373 = vmatpush.msra.mxu0 0.0
      %1374 = vmatpush.msra.mxu0 0.0
      %1375 = vmatpush.msra.mxu0 0.0
      %1376 = vmatpush.msra.mxu0 0.0
      %1377 = vmatpush.msra.mxu0 0.0
      %1378 = vmatpush.msra.mxu0 0.0
      %1379 = vmatpush.msra.mxu0 0.0
      %1380 = vmatpush.msra.mxu0 0.0
      %1381 = vmatpush.msra.mxu0 0.0
      %1382 = vmatpush.msra.mxu0 0.0
      %1383 = vmatpush.msra.mxu0 0.0
      %1384 = vmatpush.msra.mxu0 0.0
      %1385 = vmatpush.msra.mxu0 0.0
      %1386 = vmatpush.msra.mxu0 0.0
      %1387 = vmatpush.msra.mxu0 %v432
      %1388 = vmatmul.f32.gmra.mxu0 %v1370
      %v1389 = vpop.f32.mrf.mxu0
      %v1390 = vadd.f32 0.0, %v1389
      %1391 = vdwg.mxu0
      %v1392 = vmul.f32 %v967, %v1390
      %v1393 = vadd.f32 %v1324, %v1392
      %v1394 = vmul.f32 %v969, %v1048
      %v1396 = vsel %vm374, %v1394, 0
      %1398 = vmatpush.msra.mxu0 0.0
      %1399 = vmatpush.msra.mxu0 0.0
      %1400 = vmatpush.msra.mxu0 0.0
      %1401 = vmatpush.msra.mxu0 0.0
      %1402 = vmatpush.msra.mxu0 0.0
      %1403 = vmatpush.msra.mxu0 0.0
      %1404 = vmatpush.msra.mxu0 0.0
      %1405 = vmatpush.msra.mxu0 0.0
      %1406 = vmatpush.msra.mxu0 0.0
      %1407 = vmatpush.msra.mxu0 0.0
      %1408 = vmatpush.msra.mxu0 0.0
      %1409 = vmatpush.msra.mxu0 0.0
      %1410 = vmatpush.msra.mxu0 %v280
      %1411 = vmatpush.msra.mxu0 %v279
      %1412 = vmatpush.msra.mxu0 %v278
      %1413 = vmatpush.msra.mxu0 %v277
      %1414 = vmatmul.f32.gmra.mxu0 %v1396
      %v1415 = vpop.f32.mrf.mxu0
      %v1416 = vadd.f32 0.0, %v1415
      %1417 = vdwg.mxu0
      %v1418 = vmul.f32 %v1416, 1.442695
      %v1419 = vpow.pop %v1418
      %v1420 = vsel %vm426, %v1419, 0.0
      %1421 = vadd.xlane.f32.xlu0 %v1420
      %v1422 = vpop.xlane.xlu0 %1421
      %v1423 = vrcp.pop %v1422
      %v1424 = vmul.f32 %v1422, %v1423
      %v1425 = vsub.f32 1.0, %v1424
      %v1426 = vmul.f32 %v1423, %v1425
      %v1427 = vadd.f32 %v1423, %v1426
      %vm1428 = vweird.f32 %v1422
      %vm1429 = vweird.f32 %v1423
      %vm1430 = vmor %vm1428, %vm1429
      %v1431 = vsel %vm1430, %v1423, %v1427
      %v1432 = vand.u32 2147483647, %v1422
      %vm1433 = vcmp.eq.f32.partialorder %v1432, 8.507059e+37
      %v1434 = vand.u32 %v1422, 2147483648
      %v1435 = vor.u32 1.1754944e-38, %v1434
      %v1436 = vsel %vm1433, %v1435, %v1431
      %v1437 = vmul.f32 %v1419, %v1436
      %v1439 = vsel %vm426, %v1437, 0
      %1441 = vmatpush.msra.mxu0 0.0
      %1442 = vmatpush.msra.mxu0 0.0
      %1443 = vmatpush.msra.mxu0 0.0
      %1444 = vmatpush.msra.mxu0 0.0
      %1445 = vmatpush.msra.mxu0 0.0
      %1446 = vmatpush.msra.mxu0 0.0
      %1447 = vmatpush.msra.mxu0 0.0
      %1448 = vmatpush.msra.mxu0 0.0
      %1449 = vmatpush.msra.mxu0 0.0
      %1450 = vmatpush.msra.mxu0 0.0
      %1451 = vmatpush.msra.mxu0 0.0
      %1452 = vmatpush.msra.mxu0 0.0
      %1453 = vmatpush.msra.mxu0 0.0
      %1454 = vmatpush.msra.mxu0 0.0
      %1455 = vmatpush.msra.mxu0 0.0
      %1456 = vmatpush.msra.mxu0 %v432
      %1457 = vmatmul.f32.gmra.mxu0 %v1439
      %v1458 = vpop.f32.mrf.mxu0
      %v1459 = vadd.f32 0.0, %v1458
      %1460 = vdwg.mxu0
      %v1461 = vmul.f32 %v969, %v1459
      %v1462 = vadd.f32 %v1393, %v1461
      %v1463 = vmul.f32 %v1462, %v1462
      %v1465 = vsel %vm374, %v1463, 0
      %1467 = vmatpush.msra.mxu0 0.0
      %1468 = vmatpush.msra.mxu0 0.0
      %1469 = vmatpush.msra.mxu0 0.0
      %1470 = vmatpush.msra.mxu0 0.0
      %1471 = vmatpush.msra.mxu0 0.0
      %1472 = vmatpush.msra.mxu0 0.0
      %1473 = vmatpush.msra.mxu0 0.0
      %1474 = vmatpush.msra.mxu0 0.0
      %1475 = vmatpush.msra.mxu0 0.0
      %1476 = vmatpush.msra.mxu0 0.0
      %1477 = vmatpush.msra.mxu0 0.0
      %1478 = vmatpush.msra.mxu0 0.0
      %1479 = vmatpush.msra.mxu0 %v280
      %1480 = vmatpush.msra.mxu0 %v279
      %1481 = vmatpush.msra.mxu0 %v278
      %1482 = vmatpush.msra.mxu0 %v277
      %1483 = vmatmul.f32.gmra.mxu0 %v1465
      %v1484 = vpop.f32.mrf.mxu0
      %v1485 = vadd.f32 0.0, %v1484
      %1486 = vdwg.mxu0
      %v1487 = vrsqrt.pop %v1485
      %v1488 = vmul.f32 %v1487, %v1485
      %v1489 = vmul.f32 %v1488, %v1487
      %v1490 = vmul.f32 0.5, %v1489
      %v1491 = vsub.f32 1.5, %v1490
      %v1492 = vmul.f32 %v1487, %v1491
      %v1493 = vmul.f32 %v1485, %v1492
      %vm1494 = vcmp.eq.f32.partialorder %v1485, inf
      %v1495 = vsel %vm1494, %v1485, %v1493
      %vm1496 = vcmp.eq.f32.partialorder %v1485, 0.0
      %v1497 = vand.u32 %v1485, 2147483648
      %v1498 = vsel %vm1496, %v1497, %v1495
      %v1499 = vmax.f32 %v1498, 1e-12
      %v1500 = vrcp.pop %v1499
      %v1501 = vmul.f32 %v1499, %v1500
      %v1502 = vsub.f32 1.0, %v1501
      %v1503 = vmul.f32 %v1500, %v1502
      %v1504 = vadd.f32 %v1500, %v1503
      %vm1505 = vweird.f32 %v1499
      %vm1506 = vweird.f32 %v1500
      %vm1507 = vmor %vm1505, %vm1506
      %v1508 = vsel %vm1507, %v1500, %v1504
      %v1509 = vand.u32 2147483647, %v1499
      %vm1510 = vcmp.eq.f32.partialorder %v1509, 8.507059e+37
      %v1511 = vand.u32 %v1499, 2147483648
      %v1512 = vor.u32 1.1754944e-38, %v1511
      %v1513 = vsel %vm1510, %v1512, %v1508
      %v1514 = vmul.f32 1.0, %v1513
      %v1516 = vsel %vm426, %v1514, 0
      %1518 = vmatpush.msra.mxu0 0.0
      %1519 = vmatpush.msra.mxu0 0.0
      %1520 = vmatpush.msra.mxu0 0.0
      %1521 = vmatpush.msra.mxu0 0.0
      %1522 = vmatpush.msra.mxu0 0.0
      %1523 = vmatpush.msra.mxu0 0.0
      %1524 = vmatpush.msra.mxu0 0.0
      %1525 = vmatpush.msra.mxu0 0.0
      %1526 = vmatpush.msra.mxu0 0.0
      %1527 = vmatpush.msra.mxu0 0.0
      %1528 = vmatpush.msra.mxu0 0.0
      %1529 = vmatpush.msra.mxu0 0.0
      %1530 = vmatpush.msra.mxu0 0.0
      %1531 = vmatpush.msra.mxu0 0.0
      %1532 = vmatpush.msra.mxu0 0.0
      %1533 = vmatpush.msra.mxu0 %v432
      %1534 = vmatmul.f32.gmra.mxu0 %v1516
      %v1535 = vpop.f32.mrf.mxu0
      %v1536 = vadd.f32 0.0, %v1535
      %1537 = vdwg.mxu0
      %v1538 = vmul.f32 %v1462, %v1536
      %v1539 = vmul.f32 %v960, %v1538
      %v1541 = vsel %vm374, %v1539, 0
      %1543 = vmatpush.msra.mxu0 0.0
      %1544 = vmatpush.msra.mxu0 0.0
      %1545 = vmatpush.msra.mxu0 0.0
      %1546 = vmatpush.msra.mxu0 0.0
      %1547 = vmatpush.msra.mxu0 0.0
      %1548 = vmatpush.msra.mxu0 0.0
      %1549 = vmatpush.msra.mxu0 0.0
      %1550 = vmatpush.msra.mxu0 0.0
      %1551 = vmatpush.msra.mxu0 0.0
      %1552 = vmatpush.msra.mxu0 0.0
      %1553 = vmatpush.msra.mxu0 0.0
      %1554 = vmatpush.msra.mxu0 0.0
      %1555 = vmatpush.msra.mxu0 %v280
      %1556 = vmatpush.msra.mxu0 %v279
      %1557 = vmatpush.msra.mxu0 %v278
      %1558 = vmatpush.msra.mxu0 %v277
      %1559 = vmatmul.f32.gmra.mxu0 %v1541
      %v1560 = vpop.f32.mrf.mxu0
      %v1561 = vadd.f32 0.0, %v1560
      %1562 = vdwg.mxu0
      %v1563 = vmul.f32 %v1561, 1.442695
      %v1564 = vpow.pop %v1563
      %v1565 = vsel %vm426, %v1564, 0.0
      %1566 = vadd.xlane.f32.xlu0 %v1565
      %v1567 = vpop.xlane.xlu0 %1566
      %v1568 = vrcp.pop %v1567
      %v1569 = vmul.f32 %v1567, %v1568
      %v1570 = vsub.f32 1.0, %v1569
      %v1571 = vmul.f32 %v1568, %v1570
      %v1572 = vadd.f32 %v1568, %v1571
      %vm1573 = vweird.f32 %v1567
      %vm1574 = vweird.f32 %v1568
      %vm1575 = vmor %vm1573, %vm1574
      %v1576 = vsel %vm1575, %v1568, %v1572
      %v1577 = vand.u32 2147483647, %v1567
      %vm1578 = vcmp.eq.f32.partialorder %v1577, 8.507059e+37
      %v1579 = vand.u32 %v1567, 2147483648
      %v1580 = vor.u32 1.1754944e-38, %v1579
      %v1581 = vsel %vm1578, %v1580, %v1576
      %v1582 = vmul.f32 %v1564, %v1581
      %v1584 = vsel %vm426, %v1582, 0
      %1586 = vmatpush.msra.mxu0 0.0
      %1587 = vmatpush.msra.mxu0 0.0
      %1588 = vmatpush.msra.mxu0 0.0
      %1589 = vmatpush.msra.mxu0 0.0
      %1590 = vmatpush.msra.mxu0 0.0
      %1591 = vmatpush.msra.mxu0 0.0
      %1592 = vmatpush.msra.mxu0 0.0
      %1593 = vmatpush.msra.mxu0 0.0
      %1594 = vmatpush.msra.mxu0 0.0
      %1595 = vmatpush.msra.mxu0 0.0
      %1596 = vmatpush.msra.mxu0 0.0
      %1597 = vmatpush.msra.mxu0 0.0
      %1598 = vmatpush.msra.mxu0 0.0
      %1599 = vmatpush.msra.mxu0 0.0
      %1600 = vmatpush.msra.mxu0 0.0
      %1601 = vmatpush.msra.mxu0 %v432
      %1602 = vmatmul.f32.gmra.mxu0 %v1584
      %v1603 = vpop.f32.mrf.mxu0
      %v1604 = vadd.f32 0.0, %v1603
      %1605 = vdwg.mxu0
      %v1606 = vmul.f32 %v960, %v1604
      %v1607 = vadd.f32 %v454, %v1606
      %v1608 = vmul.f32 %v961, %v1538
      %v1610 = vsel %vm374, %v1608, 0
      %1612 = vmatpush.msra.mxu0 0.0
      %1613 = vmatpush.msra.mxu0 0.0
      %1614 = vmatpush.msra.mxu0 0.0
      %1615 = vmatpush.msra.mxu0 0.0
      %1616 = vmatpush.msra.mxu0 0.0
      %1617 = vmatpush.msra.mxu0 0.0
      %1618 = vmatpush.msra.mxu0 0.0
      %1619 = vmatpush.msra.mxu0 0.0
      %1620 = vmatpush.msra.mxu0 0.0
      %1621 = vmatpush.msra.mxu0 0.0
      %1622 = vmatpush.msra.mxu0 0.0
      %1623 = vmatpush.msra.mxu0 0.0
      %1624 = vmatpush.msra.mxu0 %v280
      %1625 = vmatpush.msra.mxu0 %v279
      %1626 = vmatpush.msra.mxu0 %v278
      %1627 = vmatpush.msra.mxu0 %v277
      %1628 = vmatmul.f32.gmra.mxu0 %v1610
      %v1629 = vpop.f32.mrf.mxu0
      %v1630 = vadd.f32 0.0, %v1629
      %1631 = vdwg.mxu0
      %v1632 = vmul.f32 %v1630, 1.442695
      %v1633 = vpow.pop %v1632
      %v1634 = vsel %vm426, %v1633, 0.0
      %1635 = vadd.xlane.f32.xlu0 %v1634
      %v1636 = vpop.xlane.xlu0 %1635
      %v1637 = vrcp.pop %v1636
      %v1638 = vmul.f32 %v1636, %v1637
      %v1639 = vsub.f32 1.0, %v1638
      %v1640 = vmul.f32 %v1637, %v1639
      %v1641 = vadd.f32 %v1637, %v1640
      %vm1642 = vweird.f32 %v1636
      %vm1643 = vweird.f32 %v1637
      %vm1644 = vmor %vm1642, %vm1643
      %v1645 = vsel %vm1644, %v1637, %v1641
      %v1646 = vand.u32 2147483647, %v1636
      %vm1647 = vcmp.eq.f32.partialorder %v1646, 8.507059e+37
      %v1648 = vand.u32 %v1636, 2147483648
      %v1649 = vor.u32 1.1754944e-38, %v1648
      %v1650 = vsel %vm1647, %v1649, %v1645
      %v1651 = vmul.f32 %v1633, %v1650
      %v1653 = vsel %vm426, %v1651, 0
      %1655 = vmatpush.msra.mxu0 0.0
      %1656 = vmatpush.msra.mxu0 0.0
      %1657 = vmatpush.msra.mxu0 0.0
      %1658 = vmatpush.msra.mxu0 0.0
      %1659 = vmatpush.msra.mxu0 0.0
      %1660 = vmatpush.msra.mxu0 0.0
      %1661 = vmatpush.msra.mxu0 0.0
      %1662 = vmatpush.msra.mxu0 0.0
      %1663 = vmatpush.msra.mxu0 0.0
      %1664 = vmatpush.msra.mxu0 0.0
      %1665 = vmatpush.msra.mxu0 0.0
      %1666 = vmatpush.msra.mxu0 0.0
      %1667 = vmatpush.msra.mxu0 0.0
      %1668 = vmatpush.msra.mxu0 0.0
      %1669 = vmatpush.msra.mxu0 0.0
      %1670 = vmatpush.msra.mxu0 %v432
      %1671 = vmatmul.f32.gmra.mxu0 %v1653
      %v1672 = vpop.f32.mrf.mxu0
      %v1673 = vadd.f32 0.0, %v1672
      %1674 = vdwg.mxu0
      %v1675 = vmul.f32 %v961, %v1673
      %v1676 = vadd.f32 %v1607, %v1675
      %v1677 = vmul.f32 %v963, %v1538
      %v1679 = vsel %vm374, %v1677, 0
      %1681 = vmatpush.msra.mxu0 0.0
      %1682 = vmatpush.msra.mxu0 0.0
      %1683 = vmatpush.msra.mxu0 0.0
      %1684 = vmatpush.msra.mxu0 0.0
      %1685 = vmatpush.msra.mxu0 0.0
      %1686 = vmatpush.msra.mxu0 0.0
      %1687 = vmatpush.msra.mxu0 0.0
      %1688 = vmatpush.msra.mxu0 0.0
      %1689 = vmatpush.msra.mxu0 0.0
      %1690 = vmatpush.msra.mxu0 0.0
      %1691 = vmatpush.msra.mxu0 0.0
      %1692 = vmatpush.msra.mxu0 0.0
      %1693 = vmatpush.msra.mxu0 %v280
      %1694 = vmatpush.msra.mxu0 %v279
      %1695 = vmatpush.msra.mxu0 %v278
      %1696 = vmatpush.msra.mxu0 %v277
      %1697 = vmatmul.f32.gmra.mxu0 %v1679
      %v1698 = vpop.f32.mrf.mxu0
      %v1699 = vadd.f32 0.0, %v1698
      %1700 = vdwg.mxu0
      %v1701 = vmul.f32 %v1699, 1.442695
      %v1702 = vpow.pop %v1701
      %v1703 = vsel %vm426, %v1702, 0.0
      %1704 = vadd.xlane.f32.xlu0 %v1703
      %v1705 = vpop.xlane.xlu0 %1704
      %v1706 = vrcp.pop %v1705
      %v1707 = vmul.f32 %v1705, %v1706
      %v1708 = vsub.f32 1.0, %v1707
      %v1709 = vmul.f32 %v1706, %v1708
      %v1710 = vadd.f32 %v1706, %v1709
      %vm1711 = vweird.f32 %v1705
      %vm1712 = vweird.f32 %v1706
      %vm1713 = vmor %vm1711, %vm1712
      %v1714 = vsel %vm1713, %v1706, %v1710
      %v1715 = vand.u32 2147483647, %v1705
      %vm1716 = vcmp.eq.f32.partialorder %v1715, 8.507059e+37
      %v1717 = vand.u32 %v1705, 2147483648
      %v1718 = vor.u32 1.1754944e-38, %v1717
      %v1719 = vsel %vm1716, %v1718, %v1714
      %v1720 = vmul.f32 %v1702, %v1719
      %v1722 = vsel %vm426, %v1720, 0
      %1724 = vmatpush.msra.mxu0 0.0
      %1725 = vmatpush.msra.mxu0 0.0
      %1726 = vmatpush.msra.mxu0 0.0
      %1727 = vmatpush.msra.mxu0 0.0
      %1728 = vmatpush.msra.mxu0 0.0
      %1729 = vmatpush.msra.mxu0 0.0
      %1730 = vmatpush.msra.mxu0 0.0
      %1731 = vmatpush.msra.mxu0 0.0
      %1732 = vmatpush.msra.mxu0 0.0
      %1733 = vmatpush.msra.mxu0 0.0
      %1734 = vmatpush.msra.mxu0 0.0
      %1735 = vmatpush.msra.mxu0 0.0
      %1736 = vmatpush.msra.mxu0 0.0
      %1737 = vmatpush.msra.mxu0 0.0
      %1738 = vmatpush.msra.mxu0 0.0
      %1739 = vmatpush.msra.mxu0 %v432
      %1740 = vmatmul.f32.gmra.mxu0 %v1722
      %v1741 = vpop.f32.mrf.mxu0
      %v1742 = vadd.f32 0.0, %v1741
      %1743 = vdwg.mxu0
      %v1744 = vmul.f32 %v963, %v1742
      %v1745 = vadd.f32 %v1676, %v1744
      %v1746 = vmul.f32 %v965, %v1538
      %v1748 = vsel %vm374, %v1746, 0
      %1750 = vmatpush.msra.mxu0 0.0
      %1751 = vmatpush.msra.mxu0 0.0
      %1752 = vmatpush.msra.mxu0 0.0
      %1753 = vmatpush.msra.mxu0 0.0
      %1754 = vmatpush.msra.mxu0 0.0
      %1755 = vmatpush.msra.mxu0 0.0
      %1756 = vmatpush.msra.mxu0 0.0
      %1757 = vmatpush.msra.mxu0 0.0
      %1758 = vmatpush.msra.mxu0 0.0
      %1759 = vmatpush.msra.mxu0 0.0
      %1760 = vmatpush.msra.mxu0 0.0
      %1761 = vmatpush.msra.mxu0 0.0
      %1762 = vmatpush.msra.mxu0 %v280
      %1763 = vmatpush.msra.mxu0 %v279
      %1764 = vmatpush.msra.mxu0 %v278
      %1765 = vmatpush.msra.mxu0 %v277
      %1766 = vmatmul.f32.gmra.mxu0 %v1748
      %v1767 = vpop.f32.mrf.mxu0
      %v1768 = vadd.f32 0.0, %v1767
      %1769 = vdwg.mxu0
      %v1770 = vmul.f32 %v1768, 1.442695
      %v1771 = vpow.pop %v1770
      %v1772 = vsel %vm426, %v1771, 0.0
      %1773 = vadd.xlane.f32.xlu0 %v1772
      %v1774 = vpop.xlane.xlu0 %1773
      %v1775 = vrcp.pop %v1774
      %v1776 = vmul.f32 %v1774, %v1775
      %v1777 = vsub.f32 1.0, %v1776
      %v1778 = vmul.f32 %v1775, %v1777
      %v1779 = vadd.f32 %v1775, %v1778
      %vm1780 = vweird.f32 %v1774
      %vm1781 = vweird.f32 %v1775
      %vm1782 = vmor %vm1780, %vm1781
      %v1783 = vsel %vm1782, %v1775, %v1779
      %v1784 = vand.u32 2147483647, %v1774
      %vm1785 = vcmp.eq.f32.partialorder %v1784, 8.507059e+37
      %v1786 = vand.u32 %v1774, 2147483648
      %v1787 = vor.u32 1.1754944e-38, %v1786
      %v1788 = vsel %vm1785, %v1787, %v1783
      %v1789 = vmul.f32 %v1771, %v1788
      %v1791 = vsel %vm426, %v1789, 0
      %1793 = vmatpush.msra.mxu0 0.0
      %1794 = vmatpush.msra.mxu0 0.0
      %1795 = vmatpush.msra.mxu0 0.0
      %1796 = vmatpush.msra.mxu0 0.0
      %1797 = vmatpush.msra.mxu0 0.0
      %1798 = vmatpush.msra.mxu0 0.0
      %1799 = vmatpush.msra.mxu0 0.0
      %1800 = vmatpush.msra.mxu0 0.0
      %1801 = vmatpush.msra.mxu0 0.0
      %1802 = vmatpush.msra.mxu0 0.0
      %1803 = vmatpush.msra.mxu0 0.0
      %1804 = vmatpush.msra.mxu0 0.0
      %1805 = vmatpush.msra.mxu0 0.0
      %1806 = vmatpush.msra.mxu0 0.0
      %1807 = vmatpush.msra.mxu0 0.0
      %1808 = vmatpush.msra.mxu0 %v432
      %1809 = vmatmul.f32.gmra.mxu0 %v1791
      %v1810 = vpop.f32.mrf.mxu0
      %v1811 = vadd.f32 0.0, %v1810
      %1812 = vdwg.mxu0
      %v1813 = vmul.f32 %v965, %v1811
      %v1814 = vadd.f32 %v1745, %v1813
      %v1815 = vmul.f32 %v967, %v1538
      %v1817 = vsel %vm374, %v1815, 0
      %1819 = vmatpush.msra.mxu0 0.0
      %1820 = vmatpush.msra.mxu0 0.0
      %1821 = vmatpush.msra.mxu0 0.0
      %1822 = vmatpush.msra.mxu0 0.0
      %1823 = vmatpush.msra.mxu0 0.0
      %1824 = vmatpush.msra.mxu0 0.0
      %1825 = vmatpush.msra.mxu0 0.0
      %1826 = vmatpush.msra.mxu0 0.0
      %1827 = vmatpush.msra.mxu0 0.0
      %1828 = vmatpush.msra.mxu0 0.0
      %1829 = vmatpush.msra.mxu0 0.0
      %1830 = vmatpush.msra.mxu0 0.0
      %1831 = vmatpush.msra.mxu0 %v280
      %1832 = vmatpush.msra.mxu0 %v279
      %1833 = vmatpush.msra.mxu0 %v278
      %1834 = vmatpush.msra.mxu0 %v277
      %1835 = vmatmul.f32.gmra.mxu0 %v1817
      %v1836 = vpop.f32.mrf.mxu0
      %v1837 = vadd.f32 0.0, %v1836
      %1838 = vdwg.mxu0
      %v1839 = vmul.f32 %v1837, 1.442695
      %v1840 = vpow.pop %v1839
      %v1841 = vsel %vm426, %v1840, 0.0
      %1842 = vadd.xlane.f32.xlu0 %v1841
      %v1843 = vpop.xlane.xlu0 %1842
      %v1844 = vrcp.pop %v1843
      %v1845 = vmul.f32 %v1843, %v1844
      %v1846 = vsub.f32 1.0, %v1845
      %v1847 = vmul.f32 %v1844, %v1846
      %v1848 = vadd.f32 %v1844, %v1847
      %vm1849 = vweird.f32 %v1843
      %vm1850 = vweird.f32 %v1844
      %vm1851 = vmor %vm1849, %vm1850
      %v1852 = vsel %vm1851, %v1844, %v1848
      %v1853 = vand.u32 2147483647, %v1843
      %vm1854 = vcmp.eq.f32.partialorder %v1853, 8.507059e+37
      %v1855 = vand.u32 %v1843, 2147483648
      %v1856 = vor.u32 1.1754944e-38, %v1855
      %v1857 = vsel %vm1854, %v1856, %v1852
      %v1858 = vmul.f32 %v1840, %v1857
      %v1860 = vsel %vm426, %v1858, 0
      %1862 = vmatpush.msra.mxu0 0.0
      %1863 = vmatpush.msra.mxu0 0.0
      %1864 = vmatpush.msra.mxu0 0.0
      %1865 = vmatpush.msra.mxu0 0.0
      %1866 = vmatpush.msra.mxu0 0.0
      %1867 = vmatpush.msra.mxu0 0.0
      %1868 = vmatpush.msra.mxu0 0.0
      %1869 = vmatpush.msra.mxu0 0.0
      %1870 = vmatpush.msra.mxu0 0.0
      %1871 = vmatpush.msra.mxu0 0.0
      %1872 = vmatpush.msra.mxu0 0.0
      %1873 = vmatpush.msra.mxu0 0.0
      %1874 = vmatpush.msra.mxu0 0.0
      %1875 = vmatpush.msra.mxu0 0.0
      %1876 = vmatpush.msra.mxu0 0.0
      %1877 = vmatpush.msra.mxu0 %v432
      %1878 = vmatmul.f32.gmra.mxu0 %v1860
      %v1879 = vpop.f32.mrf.mxu0
      %v1880 = vadd.f32 0.0, %v1879
      %1881 = vdwg.mxu0
      %v1882 = vmul.f32 %v967, %v1880
      %v1883 = vadd.f32 %v1814, %v1882
      %v1884 = vmul.f32 %v969, %v1538
      %v1886 = vsel %vm374, %v1884, 0
      %1888 = vmatpush.msra.mxu0 0.0
      %1889 = vmatpush.msra.mxu0 0.0
      %1890 = vmatpush.msra.mxu0 0.0
      %1891 = vmatpush.msra.mxu0 0.0
      %1892 = vmatpush.msra.mxu0 0.0
      %1893 = vmatpush.msra.mxu0 0.0
      %1894 = vmatpush.msra.mxu0 0.0
      %1895 = vmatpush.msra.mxu0 0.0
      %1896 = vmatpush.msra.mxu0 0.0
      %1897 = vmatpush.msra.mxu0 0.0
      %1898 = vmatpush.msra.mxu0 0.0
      %1899 = vmatpush.msra.mxu0 0.0
      %1900 = vmatpush.msra.mxu0 %v280
      %1901 = vmatpush.msra.mxu0 %v279
      %1902 = vmatpush.msra.mxu0 %v278
      %1903 = vmatpush.msra.mxu0 %v277
      %1904 = vmatmul.f32.gmra.mxu0 %v1886
      %v1905 = vpop.f32.mrf.mxu0
      %v1906 = vadd.f32 0.0, %v1905
      %1907 = vdwg.mxu0
      %v1908 = vmul.f32 %v1906, 1.442695
      %v1909 = vpow.pop %v1908
      %v1910 = vsel %vm426, %v1909, 0.0
      %1911 = vadd.xlane.f32.xlu0 %v1910
      %v1912 = vpop.xlane.xlu0 %1911
      %v1913 = vrcp.pop %v1912
      %v1914 = vmul.f32 %v1912, %v1913
      %v1915 = vsub.f32 1.0, %v1914
      %v1916 = vmul.f32 %v1913, %v1915
      %v1917 = vadd.f32 %v1913, %v1916
      %vm1918 = vweird.f32 %v1912
      %vm1919 = vweird.f32 %v1913
      %vm1920 = vmor %vm1918, %vm1919
      %v1921 = vsel %vm1920, %v1913, %v1917
      %v1922 = vand.u32 2147483647, %v1912
      %vm1923 = vcmp.eq.f32.partialorder %v1922, 8.507059e+37
      %v1924 = vand.u32 %v1912, 2147483648
      %v1925 = vor.u32 1.1754944e-38, %v1924
      %v1926 = vsel %vm1923, %v1925, %v1921
      %v1927 = vmul.f32 %v1909, %v1926
      %v1929 = vsel %vm426, %v1927, 0
      %1931 = vmatpush.msra.mxu0 0.0
      %1932 = vmatpush.msra.mxu0 0.0
      %1933 = vmatpush.msra.mxu0 0.0
      %1934 = vmatpush.msra.mxu0 0.0
      %1935 = vmatpush.msra.mxu0 0.0
      %1936 = vmatpush.msra.mxu0 0.0
      %1937 = vmatpush.msra.mxu0 0.0
      %1938 = vmatpush.msra.mxu0 0.0
      %1939 = vmatpush.msra.mxu0 0.0
      %1940 = vmatpush.msra.mxu0 0.0
      %1941 = vmatpush.msra.mxu0 0.0
      %1942 = vmatpush.msra.mxu0 0.0
      %1943 = vmatpush.msra.mxu0 0.0
      %1944 = vmatpush.msra.mxu0 0.0
      %1945 = vmatpush.msra.mxu0 0.0
      %1946 = vmatpush.msra.mxu0 %v432
      %1947 = vmatmul.f32.gmra.mxu0 %v1929
      %v1948 = vpop.f32.mrf.mxu0
      %v1949 = vadd.f32 0.0, %v1948
      %1950 = vdwg.mxu0
      %v1951 = vmul.f32 %v969, %v1949
      %v1952 = vadd.f32 %v1883, %v1951
      %1953 = vst.msk [vmem:[%s268] sm:$0xff] %vm374, %v1952
      %1954 = vst.msk [vmem:[%s272] sm:$0xff] %vm374, %v454
      %1955 = vrot.lane.b32.xlu0 %v1651, 4
      %v1956 = vpop.permute.xlu0 %1955
      %1958 = vrot.lane.b32.xlu0 %v1720, 8
      %v1959 = vpop.permute.xlu0 %1958
      %1961 = vrot.lane.b32.xlu0 %v1789, 12
      %v1962 = vpop.permute.xlu0 %1961
      %1964 = vrot.lane.b32.xlu0 %v1858, 16
      %v1965 = vpop.permute.xlu0 %1964
      %1967 = vrot.lane.b32.xlu0 %v1927, 20
      %v1968 = vpop.permute.xlu0 %1967
      %v1970 = vsel %vm426, %v1582, %v1956
      %vm1971 = vcmask 64512
      %v1972 = vsel %vm1971, %v1970, %v1959
      %vm1973 = vcmask 97280
      %v1974 = vsel %vm1973, %v1972, %v1962
      %vm1975 = vcmask 130048
      %v1976 = vsel %vm1975, %v1974, %v1965
      %vm1977 = vcmask 162816
      %v1978 = vsel %vm1977, %v1976, %v1968
      %vm1979 = vcmask 195584
      %1980 = vst.msk [vmem:[%s276] sm:$0xff] %vm1979, %v1978
      %p1981 = scmp.lt.s32.totalorder %s27, 1
      %s1982 = scalar_select %p1981, %s27, 1
      %s1983 = smul.addr %s1982, 8
      %s1984 = scalar_lea.vmem %s5, %s1983
      %p1985 = scmp.lt.s32.totalorder %s27, 1
      %s1986 = scalar_select %p1985, %s27, 1
      %s1987 = smul.addr %s1986, 8
      %s1988 = scalar_lea.vmem %s6, %s1987
      %p1989 = scmp.lt.s32.totalorder %s27, 1
      %s1990 = scalar_select %p1989, %s27, 1
      %s1991 = smul.addr %s1990, 8
      %s1992 = scalar_lea.vmem %s7, %s1991
      // Predicated region
      $region79: #{_lambda_.6} parent=35 // pred_check
        %p1993 = pneg %p134
      $region80: #{_lambda_.6} parent=35 // pred_check_branch
        %1995 = sbr.rel (%p1993) target = $region82
      $region81: #{_lambda_.6} parent=35 // pred_region
        _
      $region82: #{_lambda_.6} parent=35 // pred_fallthru
        _
      // Predicated region
      $region83: #{_lambda_.6} parent=35 // pred_check
        %p1996 = pneg %p160
      $region84: #{_lambda_.6} parent=35 // pred_check_branch
        %1998 = sbr.rel (%p1996) target = $region86
      $region85: #{_lambda_.6} parent=35 // pred_region
        _
      $region86: #{_lambda_.6} parent=35 // pred_fallthru
        _
      // Predicated region
      $region87: #{_lambda_.6} parent=35 // pred_check
        %p1999 = pneg %p186
      $region88: #{_lambda_.6} parent=35 // pred_check_branch
        %2001 = sbr.rel (%p1999) target = $region90
      $region89: #{_lambda_.6} parent=35 // pred_region
        _
      $region90: #{_lambda_.6} parent=35 // pred_fallthru
        _
    $region36: #{_lambda_.6} parent=5 // pred_fallthru
      _
    %p2002 = scmp.le.s32.totalorder 2, %s22
    // Predicated region
    $region91: #{_lambda_.6} parent=5 // pred_check
      %p2003 = pneg %p2002
    $region92: #{_lambda_.6} parent=5 // pred_check_branch
      %2005 = sbr.rel (%p2003) target = $region94
    $region93: #{_lambda_.6} parent=5 // pred_region
      %s2006 = ssub.s32 %s22, 2
      // Predicated region
      $region95: #{_lambda_.6} parent=93 // pred_check
        %p2007 = pneg %p140
      $region96: #{_lambda_.6} parent=93 // pred_check_branch
        %2009 = sbr.rel (%p2007) target = $region98
      $region97: #{_lambda_.6} parent=93 // pred_region
        %p2010 = scmp.lt.s32.totalorder %s28, 1
        %s2011 = scalar_select %p2010, %s28, 1
        %s2012 = smul.addr %s2011, 8
        %s2013 = scalar_lea.vmem %s5, %s2012
      $region98: #{_lambda_.6} parent=93 // pred_fallthru
        _
      // Predicated region
      $region99: #{_lambda_.6} parent=93 // pred_check
        %p2014 = pneg %p166
      $region100: #{_lambda_.6} parent=93 // pred_check_branch
        %2016 = sbr.rel (%p2014) target = $region102
      $region101: #{_lambda_.6} parent=93 // pred_region
        %p2017 = scmp.lt.s32.totalorder %s28, 1
        %s2018 = scalar_select %p2017, %s28, 1
        %s2019 = smul.addr %s2018, 8
        %s2020 = scalar_lea.vmem %s6, %s2019
      $region102: #{_lambda_.6} parent=93 // pred_fallthru
        _
      // Predicated region
      $region103: #{_lambda_.6} parent=93 // pred_check
        %p2021 = pneg %p192
      $region104: #{_lambda_.6} parent=93 // pred_check_branch
        %2023 = sbr.rel (%p2021) target = $region106
      $region105: #{_lambda_.6} parent=93 // pred_region
        %p2024 = scmp.lt.s32.totalorder %s28, 1
        %s2025 = scalar_select %p2024, %s28, 1
        %s2026 = smul.addr %s2025, 8
        %s2027 = scalar_lea.vmem %s7, %s2026
      $region106: #{_lambda_.6} parent=93 // pred_fallthru
        _
    $region94: #{_lambda_.6} parent=5 // pred_fallthru
      _
  $region6: #{_lambda_.6} parent=0 // loop_footer
    %s26 = sadd.s32 1, %s22
  $region7: #{_lambda_.6} parent=0 // loop_footer_branch
    %21 = sbr.rel target = $region3
  $region8: #{_lambda_.6} parent=0 // loop_exit
    _

// kernel: _lambda_.5
$region0: #{_lambda_.5}
  #allocation0 [shape = 'u32[]', space=smem, size = 0x4, offset = 0x4, fixed_abs, tag = 'smem constant byte address 0x4 - core index']
  #allocation1 [shape = 'u32[72,128]{1,0:T(1,128)}', space=vmem, size = 0x9000, scoped, tag = 'internal scratch']
  #allocation2 [shape = 'f32[6,8,32]{2,1,0:T(8,128)}', space=vmem, size = 0x6000, scoped, tag = 'scratch operand']
  #allocation3 [shape = 's32[1]{0}', space=sflag, size = 0x4, scoped, tag = 'scoped memory for _lambda_.5']
  #allocation4 [shape = 'u8[512]{0}', space=smem, size = 0x200, scoped, tag = 'prefetched SMEM operand 0']
  %s0 = inlined_call_operand.vmem [shape: s32[96], index: 0, kind: input, shape index: {}]
  %s1 = inlined_call_operand.vmem [shape: f32[16,32], index: 1, kind: input, shape index: {}]
  %s2 = inlined_call_operand.vmem [shape: f32[16,6], index: 2, kind: input, shape index: {}]
  %s3 = inlined_call_operand.vmem [shape: f32[32,4], index: 3, kind: input, shape index: {}]
  %s4 = inlined_call_operand.vmem [shape: f32[4,32], index: 4, kind: input, shape index: {}]
  %s5 = inlined_call_operand.vmem [shape: f32[16,32], index: 5, kind: output, shape index: {}]
  %s6 = sld [smem:[#allocation0]]
  $region91: #{_lambda_.5} parent=0
    _
  %s8 = ssub.s32 1, %s6
  %s9 = scalar_select 0, %s8, %s6
  %s11 = sshll.u32 %s0, 4
  %s12 = int_to_ptr.vmem [resolvable:$true] %s11
  %14 = dma.vmem_to_smem %s12, 16, [#allocation4], [#allocation3]
  %16 = dma.done [#allocation3], 16
  %17 = sfence
  loop: start=0, step=1, limit=4
  $region2: #{_lambda_.5} parent=0 // loop_pre_header
    _
  $region3: #{_lambda_.5} parent=0 // loop_header
    %s19 = sphi 0, %s23
    %p20 = scmp.ge.s32.totalorder %s19, 4
    %s27 = sphi 0, %s27
    %s29 = sphi 0, %s27
    %s30 = sphi 0, %s29
    %s44 = sphi 0, %s30
    %s50 = sphi 0, %s52
    %s53 = sphi 0, %s50
    %s54 = sphi 0, %s53
    %s70 = sphi 0, %s54
    %s74 = sphi 0, %s74
    %s76 = sphi 0, %s74
    %s77 = sphi 0, %s76
    %s91 = sphi 0, %s77
    %s95 = sphi 0, %s95
    %s97 = sphi 0, %s95
    %s98 = sphi 0, %s97
    %s112 = sphi 0, %s98
    %s118 = sphi 0, %s120
    %s121 = sphi 0, %s118
    %s122 = sphi 0, %s121
    %s138 = sphi 0, %s122
  $region4: #{_lambda_.5} parent=0 // loop_header_branch
    %22 = sbr.rel (%p20) target = $region8
  $region5: #{_lambda_.5} parent=0 // loop_body
    %s24 = ssub.s32 %s19, 1
    %s25 = ssub.s32 %s19, 2
    %s26 = sadd.s32 %s19, 1
    %s28 = sadd.s32 %s27, 1
    %p31 = scmp.eq.s32.totalorder %s19, 1
    %p32 = scmp.ne.s32.totalorder %s27, %s29
    %p33 = scmp.eq.s32.totalorder %s19, 0
    %p34 = por %p32, %p33
    %p35 = scmp.ne.s32.totalorder %s27, %s29
    %p36 = scmp.eq.s32.totalorder %s24, 1
    %p37 = por %p35, %p36
    %p38 = scmp.ne.s32.totalorder %s29, %s30
    %p39 = scmp.eq.s32.totalorder %s24, 0
    %p40 = por %p38, %p39
    %p41 = scmp.ne.s32.totalorder %s29, %s30
    %p42 = scmp.eq.s32.totalorder %s25, 1
    %p43 = por %p41, %p42
    %p45 = scmp.ne.s32.totalorder %s30, %s44
    %p46 = scmp.eq.s32.totalorder %s25, 0
    %p47 = por %p45, %p46
    %s48 = ssub.s32 %s19, %s26
    %p49 = scmp.eq.s32.totalorder %s48, 0
    %s51 = sadd.s32 %s50, 1
    %s52 = scalar_select %p49, %s50, %s51
    %p55 = pneg %p49
    %p56 = scmp.eq.s32.totalorder %s19, 1
    %p57 = por %p55, %p56
    %p58 = scmp.ne.s32.totalorder %s50, %s53
    %p59 = scmp.eq.s32.totalorder %s19, 0
    %p60 = por %p58, %p59
    %p61 = scmp.ne.s32.totalorder %s50, %s53
    %p62 = scmp.eq.s32.totalorder %s24, 1
    %p63 = por %p61, %p62
    %p64 = scmp.ne.s32.totalorder %s53, %s54
    %p65 = scmp.eq.s32.totalorder %s24, 0
    %p66 = por %p64, %p65
    %p67 = scmp.ne.s32.totalorder %s53, %s54
    %p68 = scmp.eq.s32.totalorder %s25, 1
    %p69 = por %p67, %p68
    %p71 = scmp.ne.s32.totalorder %s54, %s70
    %p72 = scmp.eq.s32.totalorder %s25, 0
    %p73 = por %p71, %p72
    %s75 = sadd.s32 %s74, 1
    %p78 = scmp.eq.s32.totalorder %s19, 1
    %p79 = scmp.ne.s32.totalorder %s74, %s76
    %p80 = scmp.eq.s32.totalorder %s19, 0
    %p81 = por %p79, %p80
    %p82 = scmp.ne.s32.totalorder %s74, %s76
    %p83 = scmp.eq.s32.totalorder %s24, 1
    %p84 = por %p82, %p83
    %p85 = scmp.ne.s32.totalorder %s76, %s77
    %p86 = scmp.eq.s32.totalorder %s24, 0
    %p87 = por %p85, %p86
    %p88 = scmp.ne.s32.totalorder %s76, %s77
    %p89 = scmp.eq.s32.totalorder %s25, 1
    %p90 = por %p88, %p89
    %p92 = scmp.ne.s32.totalorder %s77, %s91
    %p93 = scmp.eq.s32.totalorder %s25, 0
    %p94 = por %p92, %p93
    %s96 = sadd.s32 %s95, 1
    %p99 = scmp.eq.s32.totalorder %s19, 1
    %p100 = scmp.ne.s32.totalorder %s95, %s97
    %p101 = scmp.eq.s32.totalorder %s19, 0
    %p102 = por %p100, %p101
    %p103 = scmp.ne.s32.totalorder %s95, %s97
    %p104 = scmp.eq.s32.totalorder %s24, 1
    %p105 = por %p103, %p104
    %p106 = scmp.ne.s32.totalorder %s97, %s98
    %p107 = scmp.eq.s32.totalorder %s24, 0
    %p108 = por %p106, %p107
    %p109 = scmp.ne.s32.totalorder %s97, %s98
    %p110 = scmp.eq.s32.totalorder %s25, 1
    %p111 = por %p109, %p110
    %p113 = scmp.ne.s32.totalorder %s98, %s112
    %p114 = scmp.eq.s32.totalorder %s25, 0
    %p115 = por %p113, %p114
    %s116 = ssub.s32 %s19, %s26
    %p117 = scmp.eq.s32.totalorder %s116, 0
    %s119 = sadd.s32 %s118, 1
    %s120 = scalar_select %p117, %s118, %s119
    %p123 = pneg %p117
    %p124 = scmp.eq.s32.totalorder %s19, 1
    %p125 = por %p123, %p124
    %p126 = scmp.ne.s32.totalorder %s118, %s121
    %p127 = scmp.eq.s32.totalorder %s19, 0
    %p128 = por %p126, %p127
    %p129 = scmp.ne.s32.totalorder %s118, %s121
    %p130 = scmp.eq.s32.totalorder %s24, 1
    %p131 = por %p129, %p130
    %p132 = scmp.ne.s32.totalorder %s121, %s122
    %p133 = scmp.eq.s32.totalorder %s24, 0
    %p134 = por %p132, %p133
    %p135 = scmp.ne.s32.totalorder %s121, %s122
    %p136 = scmp.eq.s32.totalorder %s25, 1
    %p137 = por %p135, %p136
    %p139 = scmp.ne.s32.totalorder %s122, %s138
    %p140 = scmp.eq.s32.totalorder %s25, 0
    %p141 = por %p139, %p140
    %p142 = scmp.le.s32.totalorder 1, %s19
    %p143 = scmp.lt.s32.totalorder %s19, 3
    %p144 = pnand %p142, %p143
    %p145 = pneg %p144
    // Predicated region
    $region9: #{_lambda_.5} parent=5 // pred_check
      _
    $region10: #{_lambda_.5} parent=5 // pred_check_branch
      %147 = sbr.rel (%p144) target = $region12
    $region11: #{_lambda_.5} parent=5 // pred_region
      %s148 = ssub.s32 %s19, 1
      // Predicated region
      $region13: #{_lambda_.5} parent=11 // pred_check
        %p149 = pneg %p40
      $region14: #{_lambda_.5} parent=11 // pred_check_branch
        %151 = sbr.rel (%p149) target = $region16
      $region15: #{_lambda_.5} parent=11 // pred_region
        _
      $region16: #{_lambda_.5} parent=11 // pred_fallthru
        _
      // Predicated region
      $region17: #{_lambda_.5} parent=11 // pred_check
        %p152 = pneg %p87
      $region18: #{_lambda_.5} parent=11 // pred_check_branch
        %154 = sbr.rel (%p152) target = $region20
      $region19: #{_lambda_.5} parent=11 // pred_region
        _
      $region20: #{_lambda_.5} parent=11 // pred_fallthru
        _
      // Predicated region
      $region21: #{_lambda_.5} parent=11 // pred_check
        %p155 = pneg %p108
      $region22: #{_lambda_.5} parent=11 // pred_check_branch
        %157 = sbr.rel (%p155) target = $region24
      $region23: #{_lambda_.5} parent=11 // pred_region
        _
      $region24: #{_lambda_.5} parent=11 // pred_fallthru
        _
    $region12: #{_lambda_.5} parent=5 // pred_fallthru
      _
    %p158 = scmp.lt.s32.totalorder %s19, 2
    // Predicated region
    $region25: #{_lambda_.5} parent=5 // pred_check
      %p159 = pneg %p158
    $region26: #{_lambda_.5} parent=5 // pred_check_branch
      %161 = sbr.rel (%p159) target = $region28
    $region27: #{_lambda_.5} parent=5 // pred_region
      // Predicated region
      $region29: #{_lambda_.5} parent=27 // pred_check
        %p162 = pneg %p60
      $region30: #{_lambda_.5} parent=27 // pred_check_branch
        %164 = sbr.rel (%p162) target = $region32
      $region31: #{_lambda_.5} parent=27 // pred_region
        %p165 = scmp.lt.s32.totalorder %s19, 1
        %s166 = scalar_select %p165, %s19, 1
        %s167 = smul.addr %s166, 8
        %s168 = scalar_lea.vmem %s2, %s167
      $region32: #{_lambda_.5} parent=27 // pred_fallthru
        _
    $region28: #{_lambda_.5} parent=5 // pred_fallthru
      _
    %p169 = scmp.le.s32.totalorder 1, %s19
    %p170 = scmp.lt.s32.totalorder %s19, 3
    %p171 = pnand %p169, %p170
    %p172 = pneg %p171
    // Predicated region
    $region33: #{_lambda_.5} parent=5 // pred_check
      _
    $region34: #{_lambda_.5} parent=5 // pred_check_branch
      %174 = sbr.rel (%p171) target = $region36
    $region35: #{_lambda_.5} parent=5 // pred_region
      %s175 = ssub.s32 %s19, 1
      %p176 = pneg %p40
      %p177 = pneg %p37
      %p178 = scmp.lt.s32.totalorder %s24, 1
      %s179 = scalar_select %p178, %s24, 1
      %s180 = smul.addr %s179, 8
      %s181 = scalar_lea.vmem %s2, %s180
      %p182 = pneg %p66
      %p183 = pneg %p63
      %p184 = pneg %p87
      %p185 = pneg %p84
      %p186 = pneg %p108
      %p187 = pneg %p105
      %p188 = pneg %p134
      %p189 = pneg %p131
      %p190 = scmp.lt.s32.totalorder %s24, 1
      %s191 = scalar_select %p190, %s24, 1
      %s192 = smul.addr %s191, 8
      %s193 = scalar_lea.vmem %s5, %s192
      %p194 = scmp.lt.s32.totalorder %s24, 1
      %s195 = scalar_select %p194, %s24, 1
      %s196 = smul.addr %s195, 8
      %s197 = scalar_lea.vmem %s2, %s196
      %p198 = scmp.lt.s32.totalorder %s24, 1
      %s199 = scalar_select %p198, %s24, 1
      %s200 = smul.addr %s199, 8
      %s201 = scalar_lea.vmem %s5, %s200
      %v202 = vld [vmem:[%s3] sm:$0xff]
      %v203 = vld [vmem:[%s3 + $0x8] sm:$0xff]
      %v204 = vld [vmem:[%s3 + $0x10] sm:$0xff]
      %v205 = vld [vmem:[%s3 + $0x18] sm:$0xff]
      %v206 = vld [vmem:[%s4] sm:$0xf]
      %s207 = smul.u32 %s24, 8
      loop: start=0, step=1, limit=8
      $region37: #{_lambda_.5} parent=35 // loop_pre_header
        _
      $region38: #{_lambda_.5} parent=35 // loop_header
        %s209 = sphi 0, %s213
        %p210 = scmp.ge.s32.totalorder %s209, 8
      $region39: #{_lambda_.5} parent=35 // loop_header_branch
        %212 = sbr.rel (%p210) target = $region43
      $region40: #{_lambda_.5} parent=35 // loop_body
        %s214 = sadd.s32 %s207, %s209
        %s215 = sld [smem:[#allocation4 + %s214]]
        %s216 = scalar_lea.vmem %s1, %s215
        %v217 = vld [vmem:[%s216] sm:$0x1]
        %s218 = scalar_lea.vmem [#allocation2], %s209
        %vm219 = vcmask 253952
        %220 = vst.msk [vmem:[%s218] sm:$0x1] %vm219, %v217
      $region41: #{_lambda_.5} parent=35 // loop_footer
        %s213 = sadd.s32 1, %s209
      $region42: #{_lambda_.5} parent=35 // loop_footer_branch
        %208 = sbr.rel target = $region38
      $region43: #{_lambda_.5} parent=35 // loop_exit
        _
      loop: start=0, step=1, limit=8
      $region44: #{_lambda_.5} parent=35 // loop_pre_header
        _
      $region45: #{_lambda_.5} parent=35 // loop_header
        %s222 = sphi 0, %s226
        %p223 = scmp.ge.s32.totalorder %s222, 8
      $region46: #{_lambda_.5} parent=35 // loop_header_branch
        %225 = sbr.rel (%p223) target = $region50
      $region47: #{_lambda_.5} parent=35 // loop_body
        %s227 = sadd.s32 %s207, 16
        %s228 = sadd.s32 %s227, %s222
        %s229 = sld [smem:[#allocation4 + %s228]]
        %s230 = scalar_lea.vmem %s1, %s229
        %v231 = vld [vmem:[%s230] sm:$0x1]
        %s232 = sadd.s32 %s222, 8
        %s233 = scalar_lea.vmem [#allocation2], %s232
        %vm234 = vcmask 253952
        %235 = vst.msk [vmem:[%s233] sm:$0x1] %vm234, %v231
      $region48: #{_lambda_.5} parent=35 // loop_footer
        %s226 = sadd.s32 1, %s222
      $region49: #{_lambda_.5} parent=35 // loop_footer_branch
        %221 = sbr.rel target = $region45
      $region50: #{_lambda_.5} parent=35 // loop_exit
        _
      loop: start=0, step=1, limit=8
      $region51: #{_lambda_.5} parent=35 // loop_pre_header
        _
      $region52: #{_lambda_.5} parent=35 // loop_header
        %s237 = sphi 0, %s241
        %p238 = scmp.ge.s32.totalorder %s237, 8
      $region53: #{_lambda_.5} parent=35 // loop_header_branch
        %240 = sbr.rel (%p238) target = $region57
      $region54: #{_lambda_.5} parent=35 // loop_body
        %s242 = sadd.s32 %s207, 32
        %s243 = sadd.s32 %s242, %s237
        %s244 = sld [smem:[#allocation4 + %s243]]
        %s245 = scalar_lea.vmem %s1, %s244
        %v246 = vld [vmem:[%s245] sm:$0x1]
        %s247 = sadd.s32 %s237, 16
        %s248 = scalar_lea.vmem [#allocation2], %s247
        %vm249 = vcmask 253952
        %250 = vst.msk [vmem:[%s248] sm:$0x1] %vm249, %v246
      $region55: #{_lambda_.5} parent=35 // loop_footer
        %s241 = sadd.s32 1, %s237
      $region56: #{_lambda_.5} parent=35 // loop_footer_branch
        %236 = sbr.rel target = $region52
      $region57: #{_lambda_.5} parent=35 // loop_exit
        _
      loop: start=0, step=1, limit=8
      $region58: #{_lambda_.5} parent=35 // loop_pre_header
        _
      $region59: #{_lambda_.5} parent=35 // loop_header
        %s252 = sphi 0, %s256
        %p253 = scmp.ge.s32.totalorder %s252, 8
      $region60: #{_lambda_.5} parent=35 // loop_header_branch
        %255 = sbr.rel (%p253) target = $region64
      $region61: #{_lambda_.5} parent=35 // loop_body
        %s257 = sadd.s32 %s207, 48
        %s258 = sadd.s32 %s257, %s252
        %s259 = sld [smem:[#allocation4 + %s258]]
        %s260 = scalar_lea.vmem %s1, %s259
        %v261 = vld [vmem:[%s260] sm:$0x1]
        %s262 = sadd.s32 %s252, 24
        %s263 = scalar_lea.vmem [#allocation2], %s262
        %vm264 = vcmask 253952
        %265 = vst.msk [vmem:[%s263] sm:$0x1] %vm264, %v261
      $region62: #{_lambda_.5} parent=35 // loop_footer
        %s256 = sadd.s32 1, %s252
      $region63: #{_lambda_.5} parent=35 // loop_footer_branch
        %251 = sbr.rel target = $region59
      $region64: #{_lambda_.5} parent=35 // loop_exit
        _
      loop: start=0, step=1, limit=8
      $region65: #{_lambda_.5} parent=35 // loop_pre_header
        _
      $region66: #{_lambda_.5} parent=35 // loop_header
        %s267 = sphi 0, %s271
        %p268 = scmp.ge.s32.totalorder %s267, 8
      $region67: #{_lambda_.5} parent=35 // loop_header_branch
        %270 = sbr.rel (%p268) target = $region71
      $region68: #{_lambda_.5} parent=35 // loop_body
        %s272 = sadd.s32 %s207, 64
        %s273 = sadd.s32 %s272, %s267
        %s274 = sld [smem:[#allocation4 + %s273]]
        %s275 = scalar_lea.vmem %s1, %s274
        %v276 = vld [vmem:[%s275] sm:$0x1]
        %s277 = sadd.s32 %s267, 32
        %s278 = scalar_lea.vmem [#allocation2], %s277
        %vm279 = vcmask 253952
        %280 = vst.msk [vmem:[%s278] sm:$0x1] %vm279, %v276
      $region69: #{_lambda_.5} parent=35 // loop_footer
        %s271 = sadd.s32 1, %s267
      $region70: #{_lambda_.5} parent=35 // loop_footer_branch
        %266 = sbr.rel target = $region66
      $region71: #{_lambda_.5} parent=35 // loop_exit
        _
      loop: start=0, step=1, limit=8
      $region72: #{_lambda_.5} parent=35 // loop_pre_header
        _
      $region73: #{_lambda_.5} parent=35 // loop_header
        %s282 = sphi 0, %s286
        %p283 = scmp.ge.s32.totalorder %s282, 8
      $region74: #{_lambda_.5} parent=35 // loop_header_branch
        %285 = sbr.rel (%p283) target = $region78
      $region75: #{_lambda_.5} parent=35 // loop_body
        %s287 = sadd.s32 %s207, 80
        %s288 = sadd.s32 %s287, %s282
        %s289 = sld [smem:[#allocation4 + %s288]]
        %s290 = scalar_lea.vmem %s1, %s289
        %v291 = vld [vmem:[%s290] sm:$0x1]
        %s292 = sadd.s32 %s282, 40
        %s293 = scalar_lea.vmem [#allocation2], %s292
        %vm294 = vcmask 253952
        %295 = vst.msk [vmem:[%s293] sm:$0x1] %vm294, %v291
      $region76: #{_lambda_.5} parent=35 // loop_footer
        %s286 = sadd.s32 1, %s282
      $region77: #{_lambda_.5} parent=35 // loop_footer_branch
        %281 = sbr.rel target = $region73
      $region78: #{_lambda_.5} parent=35 // loop_exit
        _
      %s296 = scalar_lea.vmem %s1, %s207
      %v297 = vld [vmem:[%s296] sm:$0xff]
      %v298 = vmul.f32 %v297, %v297
      %vm299 = vcmask 261120
      %v301 = vsel %vm299, %v298, 0
      %303 = vmatpush.msra.mxu0 0.0
      %304 = vmatpush.msra.mxu0 0.0
      %305 = vmatpush.msra.mxu0 0.0
      %306 = vmatpush.msra.mxu0 0.0
      %307 = vmatpush.msra.mxu0 0.0
      %308 = vmatpush.msra.mxu0 0.0
      %309 = vmatpush.msra.mxu0 0.0
      %310 = vmatpush.msra.mxu0 0.0
      %311 = vmatpush.msra.mxu0 0.0
      %312 = vmatpush.msra.mxu0 0.0
      %313 = vmatpush.msra.mxu0 0.0
      %314 = vmatpush.msra.mxu0 0.0
      %315 = vmatpush.msra.mxu0 %v205
      %316 = vmatpush.msra.mxu0 %v204
      %317 = vmatpush.msra.mxu0 %v203
      %318 = vmatpush.msra.mxu0 %v202
      %319 = vmatmul.f32.gmra.mxu0 %v301
      %v320 = vpop.f32.mrf.mxu0
      %v321 = vadd.f32 0.0, %v320
      %322 = vdwg.mxu0
      %v323 = vrsqrt.pop %v321
      %v324 = vmul.f32 %v323, %v321
      %v325 = vmul.f32 %v324, %v323
      %v326 = vmul.f32 0.5, %v325
      %v327 = vsub.f32 1.5, %v326
      %v328 = vmul.f32 %v323, %v327
      %v329 = vmul.f32 %v321, %v328
      %vm330 = vcmp.eq.f32.partialorder %v321, inf
      %v331 = vsel %vm330, %v321, %v329
      %vm332 = vcmp.eq.f32.partialorder %v321, 0.0
      %v333 = vand.u32 %v321, 2147483648
      %v334 = vsel %vm332, %v333, %v331
      %v335 = vmax.f32 %v334, 1e-12
      %v336 = vrcp.pop %v335
      %v337 = vmul.f32 %v335, %v336
      %v338 = vsub.f32 1.0, %v337
      %v339 = vmul.f32 %v336, %v338
      %v340 = vadd.f32 %v336, %v339
      %vm341 = vweird.f32 %v335
      %vm342 = vweird.f32 %v336
      %vm343 = vmor %vm341, %vm342
      %v344 = vsel %vm343, %v336, %v340
      %v345 = vand.u32 2147483647, %v335
      %vm346 = vcmp.eq.f32.partialorder %v345, 8.507059e+37
      %v347 = vand.u32 %v335, 2147483648
      %v348 = vor.u32 1.1754944e-38, %v347
      %v349 = vsel %vm346, %v348, %v344
      %v350 = vmul.f32 1.0, %v349
      %vm351 = vcmask 31744
      %v353 = vsel %vm351, %v350, 0
      %vm355 = vcmask 1043456
      %v357 = vsel %vm355, %v206, 0
      %359 = vmatpush.msra.mxu0 0.0
      %360 = vmatpush.msra.mxu0 0.0
      %361 = vmatpush.msra.mxu0 0.0
      %362 = vmatpush.msra.mxu0 0.0
      %363 = vmatpush.msra.mxu0 0.0
      %364 = vmatpush.msra.mxu0 0.0
      %365 = vmatpush.msra.mxu0 0.0
      %366 = vmatpush.msra.mxu0 0.0
      %367 = vmatpush.msra.mxu0 0.0
      %368 = vmatpush.msra.mxu0 0.0
      %369 = vmatpush.msra.mxu0 0.0
      %370 = vmatpush.msra.mxu0 0.0
      %371 = vmatpush.msra.mxu0 0.0
      %372 = vmatpush.msra.mxu0 0.0
      %373 = vmatpush.msra.mxu0 0.0
      %374 = vmatpush.msra.mxu0 %v357
      %375 = vmatmul.f32.gmra.mxu0 %v353
      %v376 = vpop.f32.mrf.mxu0
      %v377 = vadd.f32 0.0, %v376
      %378 = vdwg.mxu0
      %v379 = vmul.f32 %v297, %v377
      %v380 = vld [vmem:[%s197] sm:$0xff]
      %v381 = vld [vmem:[#allocation2] sm:$0xff]
      %383 = vset.pattern.permute.xlu0 0
      %384 = vperm.xlu0 %383, %v380
      %v385 = vpop.permute.xlu0 %384
      %v387 = vmul.f32 %v381, %v385
      %v388 = vmul.f32 %v387, %v387
      %v390 = vsel %vm299, %v388, 0
      %392 = vmatpush.msra.mxu0 0.0
      %393 = vmatpush.msra.mxu0 0.0
      %394 = vmatpush.msra.mxu0 0.0
      %395 = vmatpush.msra.mxu0 0.0
      %396 = vmatpush.msra.mxu0 0.0
      %397 = vmatpush.msra.mxu0 0.0
      %398 = vmatpush.msra.mxu0 0.0
      %399 = vmatpush.msra.mxu0 0.0
      %400 = vmatpush.msra.mxu0 0.0
      %401 = vmatpush.msra.mxu0 0.0
      %402 = vmatpush.msra.mxu0 0.0
      %403 = vmatpush.msra.mxu0 0.0
      %404 = vmatpush.msra.mxu0 %v205
      %405 = vmatpush.msra.mxu0 %v204
      %406 = vmatpush.msra.mxu0 %v203
      %407 = vmatpush.msra.mxu0 %v202
      %408 = vmatmul.f32.gmra.mxu0 %v390
      %v409 = vpop.f32.mrf.mxu0
      %v410 = vadd.f32 0.0, %v409
      %411 = vdwg.mxu0
      %v412 = vrsqrt.pop %v410
      %v413 = vmul.f32 %v412, %v410
      %v414 = vmul.f32 %v413, %v412
      %v415 = vmul.f32 0.5, %v414
      %v416 = vsub.f32 1.5, %v415
      %v417 = vmul.f32 %v412, %v416
      %v418 = vmul.f32 %v410, %v417
      %vm419 = vcmp.eq.f32.partialorder %v410, inf
      %v420 = vsel %vm419, %v410, %v418
      %vm421 = vcmp.eq.f32.partialorder %v410, 0.0
      %v422 = vand.u32 %v410, 2147483648
      %v423 = vsel %vm421, %v422, %v420
      %v424 = vmax.f32 %v423, 1e-12
      %v425 = vrcp.pop %v424
      %v426 = vmul.f32 %v424, %v425
      %v427 = vsub.f32 1.0, %v426
      %v428 = vmul.f32 %v425, %v427
      %v429 = vadd.f32 %v425, %v428
      %vm430 = vweird.f32 %v424
      %vm431 = vweird.f32 %v425
      %vm432 = vmor %vm430, %vm431
      %v433 = vsel %vm432, %v425, %v429
      %v434 = vand.u32 2147483647, %v424
      %vm435 = vcmp.eq.f32.partialorder %v434, 8.507059e+37
      %v436 = vand.u32 %v424, 2147483648
      %v437 = vor.u32 1.1754944e-38, %v436
      %v438 = vsel %vm435, %v437, %v433
      %v439 = vmul.f32 1.0, %v438
      %v441 = vsel %vm351, %v439, 0
      %443 = vmatpush.msra.mxu0 0.0
      %444 = vmatpush.msra.mxu0 0.0
      %445 = vmatpush.msra.mxu0 0.0
      %446 = vmatpush.msra.mxu0 0.0
      %447 = vmatpush.msra.mxu0 0.0
      %448 = vmatpush.msra.mxu0 0.0
      %449 = vmatpush.msra.mxu0 0.0
      %450 = vmatpush.msra.mxu0 0.0
      %451 = vmatpush.msra.mxu0 0.0
      %452 = vmatpush.msra.mxu0 0.0
      %453 = vmatpush.msra.mxu0 0.0
      %454 = vmatpush.msra.mxu0 0.0
      %455 = vmatpush.msra.mxu0 0.0
      %456 = vmatpush.msra.mxu0 0.0
      %457 = vmatpush.msra.mxu0 0.0
      %458 = vmatpush.msra.mxu0 %v357
      %459 = vmatmul.f32.gmra.mxu0 %v441
      %v460 = vpop.f32.mrf.mxu0
      %v461 = vadd.f32 0.0, %v460
      %462 = vdwg.mxu0
      %v463 = vmul.f32 %v387, %v461
      %464 = vst.msk [vmem:[#allocation2] sm:$0xff] %vm299, %v463
      %s465 = scalar_lea.vmem [#allocation2], 8
      %v466 = vld [vmem:[%s465] sm:$0xff]
      %467 = vset.pattern.permute.xlu0 1
      %468 = vperm.xlu0 %467, %v380
      %v469 = vpop.permute.xlu0 %468
      %v471 = vmul.f32 %v466, %v469
      %v472 = vmul.f32 %v471, %v471
      %v474 = vsel %vm299, %v472, 0
      %476 = vmatpush.msra.mxu0 0.0
      %477 = vmatpush.msra.mxu0 0.0
      %478 = vmatpush.msra.mxu0 0.0
      %479 = vmatpush.msra.mxu0 0.0
      %480 = vmatpush.msra.mxu0 0.0
      %481 = vmatpush.msra.mxu0 0.0
      %482 = vmatpush.msra.mxu0 0.0
      %483 = vmatpush.msra.mxu0 0.0
      %484 = vmatpush.msra.mxu0 0.0
      %485 = vmatpush.msra.mxu0 0.0
      %486 = vmatpush.msra.mxu0 0.0
      %487 = vmatpush.msra.mxu0 0.0
      %488 = vmatpush.msra.mxu0 %v205
      %489 = vmatpush.msra.mxu0 %v204
      %490 = vmatpush.msra.mxu0 %v203
      %491 = vmatpush.msra.mxu0 %v202
      %492 = vmatmul.f32.gmra.mxu0 %v474
      %v493 = vpop.f32.mrf.mxu0
      %v494 = vadd.f32 0.0, %v493
      %495 = vdwg.mxu0
      %v496 = vrsqrt.pop %v494
      %v497 = vmul.f32 %v496, %v494
      %v498 = vmul.f32 %v497, %v496
      %v499 = vmul.f32 0.5, %v498
      %v500 = vsub.f32 1.5, %v499
      %v501 = vmul.f32 %v496, %v500
      %v502 = vmul.f32 %v494, %v501
      %vm503 = vcmp.eq.f32.partialorder %v494, inf
      %v504 = vsel %vm503, %v494, %v502
      %vm505 = vcmp.eq.f32.partialorder %v494, 0.0
      %v506 = vand.u32 %v494, 2147483648
      %v507 = vsel %vm505, %v506, %v504
      %v508 = vmax.f32 %v507, 1e-12
      %v509 = vrcp.pop %v508
      %v510 = vmul.f32 %v508, %v509
      %v511 = vsub.f32 1.0, %v510
      %v512 = vmul.f32 %v509, %v511
      %v513 = vadd.f32 %v509, %v512
      %vm514 = vweird.f32 %v508
      %vm515 = vweird.f32 %v509
      %vm516 = vmor %vm514, %vm515
      %v517 = vsel %vm516, %v509, %v513
      %v518 = vand.u32 2147483647, %v508
      %vm519 = vcmp.eq.f32.partialorder %v518, 8.507059e+37
      %v520 = vand.u32 %v508, 2147483648
      %v521 = vor.u32 1.1754944e-38, %v520
      %v522 = vsel %vm519, %v521, %v517
      %v523 = vmul.f32 1.0, %v522
      %v525 = vsel %vm351, %v523, 0
      %527 = vmatpush.msra.mxu0 0.0
      %528 = vmatpush.msra.mxu0 0.0
      %529 = vmatpush.msra.mxu0 0.0
      %530 = vmatpush.msra.mxu0 0.0
      %531 = vmatpush.msra.mxu0 0.0
      %532 = vmatpush.msra.mxu0 0.0
      %533 = vmatpush.msra.mxu0 0.0
      %534 = vmatpush.msra.mxu0 0.0
      %535 = vmatpush.msra.mxu0 0.0
      %536 = vmatpush.msra.mxu0 0.0
      %537 = vmatpush.msra.mxu0 0.0
      %538 = vmatpush.msra.mxu0 0.0
      %539 = vmatpush.msra.mxu0 0.0
      %540 = vmatpush.msra.mxu0 0.0
      %541 = vmatpush.msra.mxu0 0.0
      %542 = vmatpush.msra.mxu0 %v357
      %543 = vmatmul.f32.gmra.mxu0 %v525
      %v544 = vpop.f32.mrf.mxu0
      %v545 = vadd.f32 0.0, %v544
      %546 = vdwg.mxu0
      %v547 = vmul.f32 %v471, %v545
      %548 = vst.msk [vmem:[%s465] sm:$0xff] %vm299, %v547
      %s549 = scalar_lea.vmem [#allocation2], 16
      %v550 = vld [vmem:[%s549] sm:$0xff]
      %551 = vset.pattern.permute.xlu0 2
      %552 = vperm.xlu0 %551, %v380
      %v553 = vpop.permute.xlu0 %552
      %v555 = vmul.f32 %v550, %v553
      %v556 = vmul.f32 %v555, %v555
      %v558 = vsel %vm299, %v556, 0
      %560 = vmatpush.msra.mxu0 0.0
      %561 = vmatpush.msra.mxu0 0.0
      %562 = vmatpush.msra.mxu0 0.0
      %563 = vmatpush.msra.mxu0 0.0
      %564 = vmatpush.msra.mxu0 0.0
      %565 = vmatpush.msra.mxu0 0.0
      %566 = vmatpush.msra.mxu0 0.0
      %567 = vmatpush.msra.mxu0 0.0
      %568 = vmatpush.msra.mxu0 0.0
      %569 = vmatpush.msra.mxu0 0.0
      %570 = vmatpush.msra.mxu0 0.0
      %571 = vmatpush.msra.mxu0 0.0
      %572 = vmatpush.msra.mxu0 %v205
      %573 = vmatpush.msra.mxu0 %v204
      %574 = vmatpush.msra.mxu0 %v203
      %575 = vmatpush.msra.mxu0 %v202
      %576 = vmatmul.f32.gmra.mxu0 %v558
      %v577 = vpop.f32.mrf.mxu0
      %v578 = vadd.f32 0.0, %v577
      %579 = vdwg.mxu0
      %v580 = vrsqrt.pop %v578
      %v581 = vmul.f32 %v580, %v578
      %v582 = vmul.f32 %v581, %v580
      %v583 = vmul.f32 0.5, %v582
      %v584 = vsub.f32 1.5, %v583
      %v585 = vmul.f32 %v580, %v584
      %v586 = vmul.f32 %v578, %v585
      %vm587 = vcmp.eq.f32.partialorder %v578, inf
      %v588 = vsel %vm587, %v578, %v586
      %vm589 = vcmp.eq.f32.partialorder %v578, 0.0
      %v590 = vand.u32 %v578, 2147483648
      %v591 = vsel %vm589, %v590, %v588
      %v592 = vmax.f32 %v591, 1e-12
      %v593 = vrcp.pop %v592
      %v594 = vmul.f32 %v592, %v593
      %v595 = vsub.f32 1.0, %v594
      %v596 = vmul.f32 %v593, %v595
      %v597 = vadd.f32 %v593, %v596
      %vm598 = vweird.f32 %v592
      %vm599 = vweird.f32 %v593
      %vm600 = vmor %vm598, %vm599
      %v601 = vsel %vm600, %v593, %v597
      %v602 = vand.u32 2147483647, %v592
      %vm603 = vcmp.eq.f32.partialorder %v602, 8.507059e+37
      %v604 = vand.u32 %v592, 2147483648
      %v605 = vor.u32 1.1754944e-38, %v604
      %v606 = vsel %vm603, %v605, %v601
      %v607 = vmul.f32 1.0, %v606
      %v609 = vsel %vm351, %v607, 0
      %611 = vmatpush.msra.mxu0 0.0
      %612 = vmatpush.msra.mxu0 0.0
      %613 = vmatpush.msra.mxu0 0.0
      %614 = vmatpush.msra.mxu0 0.0
      %615 = vmatpush.msra.mxu0 0.0
      %616 = vmatpush.msra.mxu0 0.0
      %617 = vmatpush.msra.mxu0 0.0
      %618 = vmatpush.msra.mxu0 0.0
      %619 = vmatpush.msra.mxu0 0.0
      %620 = vmatpush.msra.mxu0 0.0
      %621 = vmatpush.msra.mxu0 0.0
      %622 = vmatpush.msra.mxu0 0.0
      %623 = vmatpush.msra.mxu0 0.0
      %624 = vmatpush.msra.mxu0 0.0
      %625 = vmatpush.msra.mxu0 0.0
      %626 = vmatpush.msra.mxu0 %v357
      %627 = vmatmul.f32.gmra.mxu0 %v609
      %v628 = vpop.f32.mrf.mxu0
      %v629 = vadd.f32 0.0, %v628
      %630 = vdwg.mxu0
      %v631 = vmul.f32 %v555, %v629
      %632 = vst.msk [vmem:[%s549] sm:$0xff] %vm299, %v631
      %s633 = scalar_lea.vmem [#allocation2], 24
      %v634 = vld [vmem:[%s633] sm:$0xff]
      %635 = vset.pattern.permute.xlu0 3
      %636 = vperm.xlu0 %635, %v380
      %v637 = vpop.permute.xlu0 %636
      %v639 = vmul.f32 %v634, %v637
      %v640 = vmul.f32 %v639, %v639
      %v642 = vsel %vm299, %v640, 0
      %644 = vmatpush.msra.mxu0 0.0
      %645 = vmatpush.msra.mxu0 0.0
      %646 = vmatpush.msra.mxu0 0.0
      %647 = vmatpush.msra.mxu0 0.0
      %648 = vmatpush.msra.mxu0 0.0
      %649 = vmatpush.msra.mxu0 0.0
      %650 = vmatpush.msra.mxu0 0.0
      %651 = vmatpush.msra.mxu0 0.0
      %652 = vmatpush.msra.mxu0 0.0
      %653 = vmatpush.msra.mxu0 0.0
      %654 = vmatpush.msra.mxu0 0.0
      %655 = vmatpush.msra.mxu0 0.0
      %656 = vmatpush.msra.mxu0 %v205
      %657 = vmatpush.msra.mxu0 %v204
      %658 = vmatpush.msra.mxu0 %v203
      %659 = vmatpush.msra.mxu0 %v202
      %660 = vmatmul.f32.gmra.mxu0 %v642
      %v661 = vpop.f32.mrf.mxu0
      %v662 = vadd.f32 0.0, %v661
      %663 = vdwg.mxu0
      %v664 = vrsqrt.pop %v662
      %v665 = vmul.f32 %v664, %v662
      %v666 = vmul.f32 %v665, %v664
      %v667 = vmul.f32 0.5, %v666
      %v668 = vsub.f32 1.5, %v667
      %v669 = vmul.f32 %v664, %v668
      %v670 = vmul.f32 %v662, %v669
      %vm671 = vcmp.eq.f32.partialorder %v662, inf
      %v672 = vsel %vm671, %v662, %v670
      %vm673 = vcmp.eq.f32.partialorder %v662, 0.0
      %v674 = vand.u32 %v662, 2147483648
      %v675 = vsel %vm673, %v674, %v672
      %v676 = vmax.f32 %v675, 1e-12
      %v677 = vrcp.pop %v676
      %v678 = vmul.f32 %v676, %v677
      %v679 = vsub.f32 1.0, %v678
      %v680 = vmul.f32 %v677, %v679
      %v681 = vadd.f32 %v677, %v680
      %vm682 = vweird.f32 %v676
      %vm683 = vweird.f32 %v677
      %vm684 = vmor %vm682, %vm683
      %v685 = vsel %vm684, %v677, %v681
      %v686 = vand.u32 2147483647, %v676
      %vm687 = vcmp.eq.f32.partialorder %v686, 8.507059e+37
      %v688 = vand.u32 %v676, 2147483648
      %v689 = vor.u32 1.1754944e-38, %v688
      %v690 = vsel %vm687, %v689, %v685
      %v691 = vmul.f32 1.0, %v690
      %v693 = vsel %vm351, %v691, 0
      %695 = vmatpush.msra.mxu0 0.0
      %696 = vmatpush.msra.mxu0 0.0
      %697 = vmatpush.msra.mxu0 0.0
      %698 = vmatpush.msra.mxu0 0.0
      %699 = vmatpush.msra.mxu0 0.0
      %700 = vmatpush.msra.mxu0 0.0
      %701 = vmatpush.msra.mxu0 0.0
      %702 = vmatpush.msra.mxu0 0.0
      %703 = vmatpush.msra.mxu0 0.0
      %704 = vmatpush.msra.mxu0 0.0
      %705 = vmatpush.msra.mxu0 0.0
      %706 = vmatpush.msra.mxu0 0.0
      %707 = vmatpush.msra.mxu0 0.0
      %708 = vmatpush.msra.mxu0 0.0
      %709 = vmatpush.msra.mxu0 0.0
      %710 = vmatpush.msra.mxu0 %v357
      %711 = vmatmul.f32.gmra.mxu0 %v693
      %v712 = vpop.f32.mrf.mxu0
      %v713 = vadd.f32 0.0, %v712
      %714 = vdwg.mxu0
      %v715 = vmul.f32 %v639, %v713
      %716 = vst.msk [vmem:[%s633] sm:$0xff] %vm299, %v715
      %s717 = scalar_lea.vmem [#allocation2], 32
      %v718 = vld [vmem:[%s717] sm:$0xff]
      %719 = vset.pattern.permute.xlu0 4
      %720 = vperm.xlu0 %719, %v380
      %v721 = vpop.permute.xlu0 %720
      %v723 = vmul.f32 %v718, %v721
      %v724 = vmul.f32 %v723, %v723
      %v726 = vsel %vm299, %v724, 0
      %728 = vmatpush.msra.mxu0 0.0
      %729 = vmatpush.msra.mxu0 0.0
      %730 = vmatpush.msra.mxu0 0.0
      %731 = vmatpush.msra.mxu0 0.0
      %732 = vmatpush.msra.mxu0 0.0
      %733 = vmatpush.msra.mxu0 0.0
      %734 = vmatpush.msra.mxu0 0.0
      %735 = vmatpush.msra.mxu0 0.0
      %736 = vmatpush.msra.mxu0 0.0
      %737 = vmatpush.msra.mxu0 0.0
      %738 = vmatpush.msra.mxu0 0.0
      %739 = vmatpush.msra.mxu0 0.0
      %740 = vmatpush.msra.mxu0 %v205
      %741 = vmatpush.msra.mxu0 %v204
      %742 = vmatpush.msra.mxu0 %v203
      %743 = vmatpush.msra.mxu0 %v202
      %744 = vmatmul.f32.gmra.mxu0 %v726
      %v745 = vpop.f32.mrf.mxu0
      %v746 = vadd.f32 0.0, %v745
      %747 = vdwg.mxu0
      %v748 = vrsqrt.pop %v746
      %v749 = vmul.f32 %v748, %v746
      %v750 = vmul.f32 %v749, %v748
      %v751 = vmul.f32 0.5, %v750
      %v752 = vsub.f32 1.5, %v751
      %v753 = vmul.f32 %v748, %v752
      %v754 = vmul.f32 %v746, %v753
      %vm755 = vcmp.eq.f32.partialorder %v746, inf
      %v756 = vsel %vm755, %v746, %v754
      %vm757 = vcmp.eq.f32.partialorder %v746, 0.0
      %v758 = vand.u32 %v746, 2147483648
      %v759 = vsel %vm757, %v758, %v756
      %v760 = vmax.f32 %v759, 1e-12
      %v761 = vrcp.pop %v760
      %v762 = vmul.f32 %v760, %v761
      %v763 = vsub.f32 1.0, %v762
      %v764 = vmul.f32 %v761, %v763
      %v765 = vadd.f32 %v761, %v764
      %vm766 = vweird.f32 %v760
      %vm767 = vweird.f32 %v761
      %vm768 = vmor %vm766, %vm767
      %v769 = vsel %vm768, %v761, %v765
      %v770 = vand.u32 2147483647, %v760
      %vm771 = vcmp.eq.f32.partialorder %v770, 8.507059e+37
      %v772 = vand.u32 %v760, 2147483648
      %v773 = vor.u32 1.1754944e-38, %v772
      %v774 = vsel %vm771, %v773, %v769
      %v775 = vmul.f32 1.0, %v774
      %v777 = vsel %vm351, %v775, 0
      %779 = vmatpush.msra.mxu0 0.0
      %780 = vmatpush.msra.mxu0 0.0
      %781 = vmatpush.msra.mxu0 0.0
      %782 = vmatpush.msra.mxu0 0.0
      %783 = vmatpush.msra.mxu0 0.0
      %784 = vmatpush.msra.mxu0 0.0
      %785 = vmatpush.msra.mxu0 0.0
      %786 = vmatpush.msra.mxu0 0.0
      %787 = vmatpush.msra.mxu0 0.0
      %788 = vmatpush.msra.mxu0 0.0
      %789 = vmatpush.msra.mxu0 0.0
      %790 = vmatpush.msra.mxu0 0.0
      %791 = vmatpush.msra.mxu0 0.0
      %792 = vmatpush.msra.mxu0 0.0
      %793 = vmatpush.msra.mxu0 0.0
      %794 = vmatpush.msra.mxu0 %v357
      %795 = vmatmul.f32.gmra.mxu0 %v777
      %v796 = vpop.f32.mrf.mxu0
      %v797 = vadd.f32 0.0, %v796
      %798 = vdwg.mxu0
      %v799 = vmul.f32 %v723, %v797
      %800 = vst.msk [vmem:[%s717] sm:$0xff] %vm299, %v799
      %s801 = scalar_lea.vmem [#allocation2], 40
      %v802 = vld [vmem:[%s801] sm:$0xff]
      %803 = vset.pattern.permute.xlu0 5
      %804 = vperm.xlu0 %803, %v380
      %v805 = vpop.permute.xlu0 %804
      %v807 = vmul.f32 %v802, %v805
      %v808 = vmul.f32 %v807, %v807
      %v810 = vsel %vm299, %v808, 0
      %812 = vmatpush.msra.mxu0 0.0
      %813 = vmatpush.msra.mxu0 0.0
      %814 = vmatpush.msra.mxu0 0.0
      %815 = vmatpush.msra.mxu0 0.0
      %816 = vmatpush.msra.mxu0 0.0
      %817 = vmatpush.msra.mxu0 0.0
      %818 = vmatpush.msra.mxu0 0.0
      %819 = vmatpush.msra.mxu0 0.0
      %820 = vmatpush.msra.mxu0 0.0
      %821 = vmatpush.msra.mxu0 0.0
      %822 = vmatpush.msra.mxu0 0.0
      %823 = vmatpush.msra.mxu0 0.0
      %824 = vmatpush.msra.mxu0 %v205
      %825 = vmatpush.msra.mxu0 %v204
      %826 = vmatpush.msra.mxu0 %v203
      %827 = vmatpush.msra.mxu0 %v202
      %828 = vmatmul.f32.gmra.mxu0 %v810
      %v829 = vpop.f32.mrf.mxu0
      %v830 = vadd.f32 0.0, %v829
      %831 = vdwg.mxu0
      %v832 = vrsqrt.pop %v830
      %v833 = vmul.f32 %v832, %v830
      %v834 = vmul.f32 %v833, %v832
      %v835 = vmul.f32 0.5, %v834
      %v836 = vsub.f32 1.5, %v835
      %v837 = vmul.f32 %v832, %v836
      %v838 = vmul.f32 %v830, %v837
      %vm839 = vcmp.eq.f32.partialorder %v830, inf
      %v840 = vsel %vm839, %v830, %v838
      %vm841 = vcmp.eq.f32.partialorder %v830, 0.0
      %v842 = vand.u32 %v830, 2147483648
      %v843 = vsel %vm841, %v842, %v840
      %v844 = vmax.f32 %v843, 1e-12
      %v845 = vrcp.pop %v844
      %v846 = vmul.f32 %v844, %v845
      %v847 = vsub.f32 1.0, %v846
      %v848 = vmul.f32 %v845, %v847
      %v849 = vadd.f32 %v845, %v848
      %vm850 = vweird.f32 %v844
      %vm851 = vweird.f32 %v845
      %vm852 = vmor %vm850, %vm851
      %v853 = vsel %vm852, %v845, %v849
      %v854 = vand.u32 2147483647, %v844
      %vm855 = vcmp.eq.f32.partialorder %v854, 8.507059e+37
      %v856 = vand.u32 %v844, 2147483648
      %v857 = vor.u32 1.1754944e-38, %v856
      %v858 = vsel %vm855, %v857, %v853
      %v859 = vmul.f32 1.0, %v858
      %v861 = vsel %vm351, %v859, 0
      %863 = vmatpush.msra.mxu0 0.0
      %864 = vmatpush.msra.mxu0 0.0
      %865 = vmatpush.msra.mxu0 0.0
      %866 = vmatpush.msra.mxu0 0.0
      %867 = vmatpush.msra.mxu0 0.0
      %868 = vmatpush.msra.mxu0 0.0
      %869 = vmatpush.msra.mxu0 0.0
      %870 = vmatpush.msra.mxu0 0.0
      %871 = vmatpush.msra.mxu0 0.0
      %872 = vmatpush.msra.mxu0 0.0
      %873 = vmatpush.msra.mxu0 0.0
      %874 = vmatpush.msra.mxu0 0.0
      %875 = vmatpush.msra.mxu0 0.0
      %876 = vmatpush.msra.mxu0 0.0
      %877 = vmatpush.msra.mxu0 0.0
      %878 = vmatpush.msra.mxu0 %v357
      %879 = vmatmul.f32.gmra.mxu0 %v861
      %v880 = vpop.f32.mrf.mxu0
      %v881 = vadd.f32 0.0, %v880
      %882 = vdwg.mxu0
      %v883 = vmul.f32 %v807, %v881
      %884 = vst.msk [vmem:[%s801] sm:$0xff] %vm299, %v883
      %v885 = vld [vmem:[#allocation2] sm:$0xff]
      %v886 = vld [vmem:[%s465] sm:$0xff]
      %v887 = vadd.f32 %v885, %v886
      %v888 = vld [vmem:[%s549] sm:$0xff]
      %v889 = vadd.f32 %v887, %v888
      %v890 = vld [vmem:[%s633] sm:$0xff]
      %v891 = vadd.f32 %v889, %v890
      %v892 = vld [vmem:[%s717] sm:$0xff]
      %v893 = vadd.f32 %v891, %v892
      %v894 = vld [vmem:[%s801] sm:$0xff]
      %v895 = vadd.f32 %v893, %v894
      %v896 = vmul.f32 %v895, 0.25
      %v897 = vadd.f32 %v379, %v896
      %v898 = vmul.f32 %v897, %v897
      %v900 = vsel %vm299, %v898, 0
      %902 = vmatpush.msra.mxu0 0.0
      %903 = vmatpush.msra.mxu0 0.0
      %904 = vmatpush.msra.mxu0 0.0
      %905 = vmatpush.msra.mxu0 0.0
      %906 = vmatpush.msra.mxu0 0.0
      %907 = vmatpush.msra.mxu0 0.0
      %908 = vmatpush.msra.mxu0 0.0
      %909 = vmatpush.msra.mxu0 0.0
      %910 = vmatpush.msra.mxu0 0.0
      %911 = vmatpush.msra.mxu0 0.0
      %912 = vmatpush.msra.mxu0 0.0
      %913 = vmatpush.msra.mxu0 0.0
      %914 = vmatpush.msra.mxu0 %v205
      %915 = vmatpush.msra.mxu0 %v204
      %916 = vmatpush.msra.mxu0 %v203
      %917 = vmatpush.msra.mxu0 %v202
      %918 = vmatmul.f32.gmra.mxu0 %v900
      %v919 = vpop.f32.mrf.mxu0
      %v920 = vadd.f32 0.0, %v919
      %921 = vdwg.mxu0
      %v922 = vrsqrt.pop %v920
      %v923 = vmul.f32 %v922, %v920
      %v924 = vmul.f32 %v923, %v922
      %v925 = vmul.f32 0.5, %v924
      %v926 = vsub.f32 1.5, %v925
      %v927 = vmul.f32 %v922, %v926
      %v928 = vmul.f32 %v920, %v927
      %vm929 = vcmp.eq.f32.partialorder %v920, inf
      %v930 = vsel %vm929, %v920, %v928
      %vm931 = vcmp.eq.f32.partialorder %v920, 0.0
      %v932 = vand.u32 %v920, 2147483648
      %v933 = vsel %vm931, %v932, %v930
      %v934 = vmax.f32 %v933, 1e-12
      %v935 = vrcp.pop %v934
      %v936 = vmul.f32 %v934, %v935
      %v937 = vsub.f32 1.0, %v936
      %v938 = vmul.f32 %v935, %v937
      %v939 = vadd.f32 %v935, %v938
      %vm940 = vweird.f32 %v934
      %vm941 = vweird.f32 %v935
      %vm942 = vmor %vm940, %vm941
      %v943 = vsel %vm942, %v935, %v939
      %v944 = vand.u32 2147483647, %v934
      %vm945 = vcmp.eq.f32.partialorder %v944, 8.507059e+37
      %v946 = vand.u32 %v934, 2147483648
      %v947 = vor.u32 1.1754944e-38, %v946
      %v948 = vsel %vm945, %v947, %v943
      %v949 = vmul.f32 1.0, %v948
      %v951 = vsel %vm351, %v949, 0
      %953 = vmatpush.msra.mxu0 0.0
      %954 = vmatpush.msra.mxu0 0.0
      %955 = vmatpush.msra.mxu0 0.0
      %956 = vmatpush.msra.mxu0 0.0
      %957 = vmatpush.msra.mxu0 0.0
      %958 = vmatpush.msra.mxu0 0.0
      %959 = vmatpush.msra.mxu0 0.0
      %960 = vmatpush.msra.mxu0 0.0
      %961 = vmatpush.msra.mxu0 0.0
      %962 = vmatpush.msra.mxu0 0.0
      %963 = vmatpush.msra.mxu0 0.0
      %964 = vmatpush.msra.mxu0 0.0
      %965 = vmatpush.msra.mxu0 0.0
      %966 = vmatpush.msra.mxu0 0.0
      %967 = vmatpush.msra.mxu0 0.0
      %968 = vmatpush.msra.mxu0 %v357
      %969 = vmatmul.f32.gmra.mxu0 %v951
      %v970 = vpop.f32.mrf.mxu0
      %v971 = vadd.f32 0.0, %v970
      %972 = vdwg.mxu0
      %v973 = vmul.f32 %v897, %v971
      %v974 = vmul.f32 %v885, %v973
      %v976 = vsel %vm299, %v974, 0
      %978 = vmatpush.msra.mxu0 0.0
      %979 = vmatpush.msra.mxu0 0.0
      %980 = vmatpush.msra.mxu0 0.0
      %981 = vmatpush.msra.mxu0 0.0
      %982 = vmatpush.msra.mxu0 0.0
      %983 = vmatpush.msra.mxu0 0.0
      %984 = vmatpush.msra.mxu0 0.0
      %985 = vmatpush.msra.mxu0 0.0
      %986 = vmatpush.msra.mxu0 0.0
      %987 = vmatpush.msra.mxu0 0.0
      %988 = vmatpush.msra.mxu0 0.0
      %989 = vmatpush.msra.mxu0 0.0
      %990 = vmatpush.msra.mxu0 %v205
      %991 = vmatpush.msra.mxu0 %v204
      %992 = vmatpush.msra.mxu0 %v203
      %993 = vmatpush.msra.mxu0 %v202
      %994 = vmatmul.f32.gmra.mxu0 %v976
      %v995 = vpop.f32.mrf.mxu0
      %v996 = vadd.f32 0.0, %v995
      %997 = vdwg.mxu0
      %v998 = vmul.f32 %v996, 1.442695
      %v999 = vpow.pop %v998
      %v1000 = vsel %vm351, %v999, 0.0
      %1001 = vadd.xlane.f32.xlu0 %v1000
      %v1002 = vpop.xlane.xlu0 %1001
      %v1003 = vrcp.pop %v1002
      %v1004 = vmul.f32 %v1002, %v1003
      %v1005 = vsub.f32 1.0, %v1004
      %v1006 = vmul.f32 %v1003, %v1005
      %v1007 = vadd.f32 %v1003, %v1006
      %vm1008 = vweird.f32 %v1002
      %vm1009 = vweird.f32 %v1003
      %vm1010 = vmor %vm1008, %vm1009
      %v1011 = vsel %vm1010, %v1003, %v1007
      %v1012 = vand.u32 2147483647, %v1002
      %vm1013 = vcmp.eq.f32.partialorder %v1012, 8.507059e+37
      %v1014 = vand.u32 %v1002, 2147483648
      %v1015 = vor.u32 1.1754944e-38, %v1014
      %v1016 = vsel %vm1013, %v1015, %v1011
      %v1017 = vmul.f32 %v999, %v1016
      %v1019 = vsel %vm351, %v1017, 0
      %1021 = vmatpush.msra.mxu0 0.0
      %1022 = vmatpush.msra.mxu0 0.0
      %1023 = vmatpush.msra.mxu0 0.0
      %1024 = vmatpush.msra.mxu0 0.0
      %1025 = vmatpush.msra.mxu0 0.0
      %1026 = vmatpush.msra.mxu0 0.0
      %1027 = vmatpush.msra.mxu0 0.0
      %1028 = vmatpush.msra.mxu0 0.0
      %1029 = vmatpush.msra.mxu0 0.0
      %1030 = vmatpush.msra.mxu0 0.0
      %1031 = vmatpush.msra.mxu0 0.0
      %1032 = vmatpush.msra.mxu0 0.0
      %1033 = vmatpush.msra.mxu0 0.0
      %1034 = vmatpush.msra.mxu0 0.0
      %1035 = vmatpush.msra.mxu0 0.0
      %1036 = vmatpush.msra.mxu0 %v357
      %1037 = vmatmul.f32.gmra.mxu0 %v1019
      %v1038 = vpop.f32.mrf.mxu0
      %v1039 = vadd.f32 0.0, %v1038
      %1040 = vdwg.mxu0
      %v1041 = vmul.f32 %v885, %v1039
      %v1042 = vadd.f32 %v379, %v1041
      %v1043 = vmul.f32 %v886, %v973
      %v1045 = vsel %vm299, %v1043, 0
      %1047 = vmatpush.msra.mxu0 0.0
      %1048 = vmatpush.msra.mxu0 0.0
      %1049 = vmatpush.msra.mxu0 0.0
      %1050 = vmatpush.msra.mxu0 0.0
      %1051 = vmatpush.msra.mxu0 0.0
      %1052 = vmatpush.msra.mxu0 0.0
      %1053 = vmatpush.msra.mxu0 0.0
      %1054 = vmatpush.msra.mxu0 0.0
      %1055 = vmatpush.msra.mxu0 0.0
      %1056 = vmatpush.msra.mxu0 0.0
      %1057 = vmatpush.msra.mxu0 0.0
      %1058 = vmatpush.msra.mxu0 0.0
      %1059 = vmatpush.msra.mxu0 %v205
      %1060 = vmatpush.msra.mxu0 %v204
      %1061 = vmatpush.msra.mxu0 %v203
      %1062 = vmatpush.msra.mxu0 %v202
      %1063 = vmatmul.f32.gmra.mxu0 %v1045
      %v1064 = vpop.f32.mrf.mxu0
      %v1065 = vadd.f32 0.0, %v1064
      %1066 = vdwg.mxu0
      %v1067 = vmul.f32 %v1065, 1.442695
      %v1068 = vpow.pop %v1067
      %v1069 = vsel %vm351, %v1068, 0.0
      %1070 = vadd.xlane.f32.xlu0 %v1069
      %v1071 = vpop.xlane.xlu0 %1070
      %v1072 = vrcp.pop %v1071
      %v1073 = vmul.f32 %v1071, %v1072
      %v1074 = vsub.f32 1.0, %v1073
      %v1075 = vmul.f32 %v1072, %v1074
      %v1076 = vadd.f32 %v1072, %v1075
      %vm1077 = vweird.f32 %v1071
      %vm1078 = vweird.f32 %v1072
      %vm1079 = vmor %vm1077, %vm1078
      %v1080 = vsel %vm1079, %v1072, %v1076
      %v1081 = vand.u32 2147483647, %v1071
      %vm1082 = vcmp.eq.f32.partialorder %v1081, 8.507059e+37
      %v1083 = vand.u32 %v1071, 2147483648
      %v1084 = vor.u32 1.1754944e-38, %v1083
      %v1085 = vsel %vm1082, %v1084, %v1080
      %v1086 = vmul.f32 %v1068, %v1085
      %v1088 = vsel %vm351, %v1086, 0
      %1090 = vmatpush.msra.mxu0 0.0
      %1091 = vmatpush.msra.mxu0 0.0
      %1092 = vmatpush.msra.mxu0 0.0
      %1093 = vmatpush.msra.mxu0 0.0
      %1094 = vmatpush.msra.mxu0 0.0
      %1095 = vmatpush.msra.mxu0 0.0
      %1096 = vmatpush.msra.mxu0 0.0
      %1097 = vmatpush.msra.mxu0 0.0
      %1098 = vmatpush.msra.mxu0 0.0
      %1099 = vmatpush.msra.mxu0 0.0
      %1100 = vmatpush.msra.mxu0 0.0
      %1101 = vmatpush.msra.mxu0 0.0
      %1102 = vmatpush.msra.mxu0 0.0
      %1103 = vmatpush.msra.mxu0 0.0
      %1104 = vmatpush.msra.mxu0 0.0
      %1105 = vmatpush.msra.mxu0 %v357
      %1106 = vmatmul.f32.gmra.mxu0 %v1088
      %v1107 = vpop.f32.mrf.mxu0
      %v1108 = vadd.f32 0.0, %v1107
      %1109 = vdwg.mxu0
      %v1110 = vmul.f32 %v886, %v1108
      %v1111 = vadd.f32 %v1042, %v1110
      %v1112 = vmul.f32 %v888, %v973
      %v1114 = vsel %vm299, %v1112, 0
      %1116 = vmatpush.msra.mxu0 0.0
      %1117 = vmatpush.msra.mxu0 0.0
      %1118 = vmatpush.msra.mxu0 0.0
      %1119 = vmatpush.msra.mxu0 0.0
      %1120 = vmatpush.msra.mxu0 0.0
      %1121 = vmatpush.msra.mxu0 0.0
      %1122 = vmatpush.msra.mxu0 0.0
      %1123 = vmatpush.msra.mxu0 0.0
      %1124 = vmatpush.msra.mxu0 0.0
      %1125 = vmatpush.msra.mxu0 0.0
      %1126 = vmatpush.msra.mxu0 0.0
      %1127 = vmatpush.msra.mxu0 0.0
      %1128 = vmatpush.msra.mxu0 %v205
      %1129 = vmatpush.msra.mxu0 %v204
      %1130 = vmatpush.msra.mxu0 %v203
      %1131 = vmatpush.msra.mxu0 %v202
      %1132 = vmatmul.f32.gmra.mxu0 %v1114
      %v1133 = vpop.f32.mrf.mxu0
      %v1134 = vadd.f32 0.0, %v1133
      %1135 = vdwg.mxu0
      %v1136 = vmul.f32 %v1134, 1.442695
      %v1137 = vpow.pop %v1136
      %v1138 = vsel %vm351, %v1137, 0.0
      %1139 = vadd.xlane.f32.xlu0 %v1138
      %v1140 = vpop.xlane.xlu0 %1139
      %v1141 = vrcp.pop %v1140
      %v1142 = vmul.f32 %v1140, %v1141
      %v1143 = vsub.f32 1.0, %v1142
      %v1144 = vmul.f32 %v1141, %v1143
      %v1145 = vadd.f32 %v1141, %v1144
      %vm1146 = vweird.f32 %v1140
      %vm1147 = vweird.f32 %v1141
      %vm1148 = vmor %vm1146, %vm1147
      %v1149 = vsel %vm1148, %v1141, %v1145
      %v1150 = vand.u32 2147483647, %v1140
      %vm1151 = vcmp.eq.f32.partialorder %v1150, 8.507059e+37
      %v1152 = vand.u32 %v1140, 2147483648
      %v1153 = vor.u32 1.1754944e-38, %v1152
      %v1154 = vsel %vm1151, %v1153, %v1149
      %v1155 = vmul.f32 %v1137, %v1154
      %v1157 = vsel %vm351, %v1155, 0
      %1159 = vmatpush.msra.mxu0 0.0
      %1160 = vmatpush.msra.mxu0 0.0
      %1161 = vmatpush.msra.mxu0 0.0
      %1162 = vmatpush.msra.mxu0 0.0
      %1163 = vmatpush.msra.mxu0 0.0
      %1164 = vmatpush.msra.mxu0 0.0
      %1165 = vmatpush.msra.mxu0 0.0
      %1166 = vmatpush.msra.mxu0 0.0
      %1167 = vmatpush.msra.mxu0 0.0
      %1168 = vmatpush.msra.mxu0 0.0
      %1169 = vmatpush.msra.mxu0 0.0
      %1170 = vmatpush.msra.mxu0 0.0
      %1171 = vmatpush.msra.mxu0 0.0
      %1172 = vmatpush.msra.mxu0 0.0
      %1173 = vmatpush.msra.mxu0 0.0
      %1174 = vmatpush.msra.mxu0 %v357
      %1175 = vmatmul.f32.gmra.mxu0 %v1157
      %v1176 = vpop.f32.mrf.mxu0
      %v1177 = vadd.f32 0.0, %v1176
      %1178 = vdwg.mxu0
      %v1179 = vmul.f32 %v888, %v1177
      %v1180 = vadd.f32 %v1111, %v1179
      %v1181 = vmul.f32 %v890, %v973
      %v1183 = vsel %vm299, %v1181, 0
      %1185 = vmatpush.msra.mxu0 0.0
      %1186 = vmatpush.msra.mxu0 0.0
      %1187 = vmatpush.msra.mxu0 0.0
      %1188 = vmatpush.msra.mxu0 0.0
      %1189 = vmatpush.msra.mxu0 0.0
      %1190 = vmatpush.msra.mxu0 0.0
      %1191 = vmatpush.msra.mxu0 0.0
      %1192 = vmatpush.msra.mxu0 0.0
      %1193 = vmatpush.msra.mxu0 0.0
      %1194 = vmatpush.msra.mxu0 0.0
      %1195 = vmatpush.msra.mxu0 0.0
      %1196 = vmatpush.msra.mxu0 0.0
      %1197 = vmatpush.msra.mxu0 %v205
      %1198 = vmatpush.msra.mxu0 %v204
      %1199 = vmatpush.msra.mxu0 %v203
      %1200 = vmatpush.msra.mxu0 %v202
      %1201 = vmatmul.f32.gmra.mxu0 %v1183
      %v1202 = vpop.f32.mrf.mxu0
      %v1203 = vadd.f32 0.0, %v1202
      %1204 = vdwg.mxu0
      %v1205 = vmul.f32 %v1203, 1.442695
      %v1206 = vpow.pop %v1205
      %v1207 = vsel %vm351, %v1206, 0.0
      %1208 = vadd.xlane.f32.xlu0 %v1207
      %v1209 = vpop.xlane.xlu0 %1208
      %v1210 = vrcp.pop %v1209
      %v1211 = vmul.f32 %v1209, %v1210
      %v1212 = vsub.f32 1.0, %v1211
      %v1213 = vmul.f32 %v1210, %v1212
      %v1214 = vadd.f32 %v1210, %v1213
      %vm1215 = vweird.f32 %v1209
      %vm1216 = vweird.f32 %v1210
      %vm1217 = vmor %vm1215, %vm1216
      %v1218 = vsel %vm1217, %v1210, %v1214
      %v1219 = vand.u32 2147483647, %v1209
      %vm1220 = vcmp.eq.f32.partialorder %v1219, 8.507059e+37
      %v1221 = vand.u32 %v1209, 2147483648
      %v1222 = vor.u32 1.1754944e-38, %v1221
      %v1223 = vsel %vm1220, %v1222, %v1218
      %v1224 = vmul.f32 %v1206, %v1223
      %v1226 = vsel %vm351, %v1224, 0
      %1228 = vmatpush.msra.mxu0 0.0
      %1229 = vmatpush.msra.mxu0 0.0
      %1230 = vmatpush.msra.mxu0 0.0
      %1231 = vmatpush.msra.mxu0 0.0
      %1232 = vmatpush.msra.mxu0 0.0
      %1233 = vmatpush.msra.mxu0 0.0
      %1234 = vmatpush.msra.mxu0 0.0
      %1235 = vmatpush.msra.mxu0 0.0
      %1236 = vmatpush.msra.mxu0 0.0
      %1237 = vmatpush.msra.mxu0 0.0
      %1238 = vmatpush.msra.mxu0 0.0
      %1239 = vmatpush.msra.mxu0 0.0
      %1240 = vmatpush.msra.mxu0 0.0
      %1241 = vmatpush.msra.mxu0 0.0
      %1242 = vmatpush.msra.mxu0 0.0
      %1243 = vmatpush.msra.mxu0 %v357
      %1244 = vmatmul.f32.gmra.mxu0 %v1226
      %v1245 = vpop.f32.mrf.mxu0
      %v1246 = vadd.f32 0.0, %v1245
      %1247 = vdwg.mxu0
      %v1248 = vmul.f32 %v890, %v1246
      %v1249 = vadd.f32 %v1180, %v1248
      %v1250 = vmul.f32 %v892, %v973
      %v1252 = vsel %vm299, %v1250, 0
      %1254 = vmatpush.msra.mxu0 0.0
      %1255 = vmatpush.msra.mxu0 0.0
      %1256 = vmatpush.msra.mxu0 0.0
      %1257 = vmatpush.msra.mxu0 0.0
      %1258 = vmatpush.msra.mxu0 0.0
      %1259 = vmatpush.msra.mxu0 0.0
      %1260 = vmatpush.msra.mxu0 0.0
      %1261 = vmatpush.msra.mxu0 0.0
      %1262 = vmatpush.msra.mxu0 0.0
      %1263 = vmatpush.msra.mxu0 0.0
      %1264 = vmatpush.msra.mxu0 0.0
      %1265 = vmatpush.msra.mxu0 0.0
      %1266 = vmatpush.msra.mxu0 %v205
      %1267 = vmatpush.msra.mxu0 %v204
      %1268 = vmatpush.msra.mxu0 %v203
      %1269 = vmatpush.msra.mxu0 %v202
      %1270 = vmatmul.f32.gmra.mxu0 %v1252
      %v1271 = vpop.f32.mrf.mxu0
      %v1272 = vadd.f32 0.0, %v1271
      %1273 = vdwg.mxu0
      %v1274 = vmul.f32 %v1272, 1.442695
      %v1275 = vpow.pop %v1274
      %v1276 = vsel %vm351, %v1275, 0.0
      %1277 = vadd.xlane.f32.xlu0 %v1276
      %v1278 = vpop.xlane.xlu0 %1277
      %v1279 = vrcp.pop %v1278
      %v1280 = vmul.f32 %v1278, %v1279
      %v1281 = vsub.f32 1.0, %v1280
      %v1282 = vmul.f32 %v1279, %v1281
      %v1283 = vadd.f32 %v1279, %v1282
      %vm1284 = vweird.f32 %v1278
      %vm1285 = vweird.f32 %v1279
      %vm1286 = vmor %vm1284, %vm1285
      %v1287 = vsel %vm1286, %v1279, %v1283
      %v1288 = vand.u32 2147483647, %v1278
      %vm1289 = vcmp.eq.f32.partialorder %v1288, 8.507059e+37
      %v1290 = vand.u32 %v1278, 2147483648
      %v1291 = vor.u32 1.1754944e-38, %v1290
      %v1292 = vsel %vm1289, %v1291, %v1287
      %v1293 = vmul.f32 %v1275, %v1292
      %v1295 = vsel %vm351, %v1293, 0
      %1297 = vmatpush.msra.mxu0 0.0
      %1298 = vmatpush.msra.mxu0 0.0
      %1299 = vmatpush.msra.mxu0 0.0
      %1300 = vmatpush.msra.mxu0 0.0
      %1301 = vmatpush.msra.mxu0 0.0
      %1302 = vmatpush.msra.mxu0 0.0
      %1303 = vmatpush.msra.mxu0 0.0
      %1304 = vmatpush.msra.mxu0 0.0
      %1305 = vmatpush.msra.mxu0 0.0
      %1306 = vmatpush.msra.mxu0 0.0
      %1307 = vmatpush.msra.mxu0 0.0
      %1308 = vmatpush.msra.mxu0 0.0
      %1309 = vmatpush.msra.mxu0 0.0
      %1310 = vmatpush.msra.mxu0 0.0
      %1311 = vmatpush.msra.mxu0 0.0
      %1312 = vmatpush.msra.mxu0 %v357
      %1313 = vmatmul.f32.gmra.mxu0 %v1295
      %v1314 = vpop.f32.mrf.mxu0
      %v1315 = vadd.f32 0.0, %v1314
      %1316 = vdwg.mxu0
      %v1317 = vmul.f32 %v892, %v1315
      %v1318 = vadd.f32 %v1249, %v1317
      %v1319 = vmul.f32 %v894, %v973
      %v1321 = vsel %vm299, %v1319, 0
      %1323 = vmatpush.msra.mxu0 0.0
      %1324 = vmatpush.msra.mxu0 0.0
      %1325 = vmatpush.msra.mxu0 0.0
      %1326 = vmatpush.msra.mxu0 0.0
      %1327 = vmatpush.msra.mxu0 0.0
      %1328 = vmatpush.msra.mxu0 0.0
      %1329 = vmatpush.msra.mxu0 0.0
      %1330 = vmatpush.msra.mxu0 0.0
      %1331 = vmatpush.msra.mxu0 0.0
      %1332 = vmatpush.msra.mxu0 0.0
      %1333 = vmatpush.msra.mxu0 0.0
      %1334 = vmatpush.msra.mxu0 0.0
      %1335 = vmatpush.msra.mxu0 %v205
      %1336 = vmatpush.msra.mxu0 %v204
      %1337 = vmatpush.msra.mxu0 %v203
      %1338 = vmatpush.msra.mxu0 %v202
      %1339 = vmatmul.f32.gmra.mxu0 %v1321
      %v1340 = vpop.f32.mrf.mxu0
      %v1341 = vadd.f32 0.0, %v1340
      %1342 = vdwg.mxu0
      %v1343 = vmul.f32 %v1341, 1.442695
      %v1344 = vpow.pop %v1343
      %v1345 = vsel %vm351, %v1344, 0.0
      %1346 = vadd.xlane.f32.xlu0 %v1345
      %v1347 = vpop.xlane.xlu0 %1346
      %v1348 = vrcp.pop %v1347
      %v1349 = vmul.f32 %v1347, %v1348
      %v1350 = vsub.f32 1.0, %v1349
      %v1351 = vmul.f32 %v1348, %v1350
      %v1352 = vadd.f32 %v1348, %v1351
      %vm1353 = vweird.f32 %v1347
      %vm1354 = vweird.f32 %v1348
      %vm1355 = vmor %vm1353, %vm1354
      %v1356 = vsel %vm1355, %v1348, %v1352
      %v1357 = vand.u32 2147483647, %v1347
      %vm1358 = vcmp.eq.f32.partialorder %v1357, 8.507059e+37
      %v1359 = vand.u32 %v1347, 2147483648
      %v1360 = vor.u32 1.1754944e-38, %v1359
      %v1361 = vsel %vm1358, %v1360, %v1356
      %v1362 = vmul.f32 %v1344, %v1361
      %v1364 = vsel %vm351, %v1362, 0
      %1366 = vmatpush.msra.mxu0 0.0
      %1367 = vmatpush.msra.mxu0 0.0
      %1368 = vmatpush.msra.mxu0 0.0
      %1369 = vmatpush.msra.mxu0 0.0
      %1370 = vmatpush.msra.mxu0 0.0
      %1371 = vmatpush.msra.mxu0 0.0
      %1372 = vmatpush.msra.mxu0 0.0
      %1373 = vmatpush.msra.mxu0 0.0
      %1374 = vmatpush.msra.mxu0 0.0
      %1375 = vmatpush.msra.mxu0 0.0
      %1376 = vmatpush.msra.mxu0 0.0
      %1377 = vmatpush.msra.mxu0 0.0
      %1378 = vmatpush.msra.mxu0 0.0
      %1379 = vmatpush.msra.mxu0 0.0
      %1380 = vmatpush.msra.mxu0 0.0
      %1381 = vmatpush.msra.mxu0 %v357
      %1382 = vmatmul.f32.gmra.mxu0 %v1364
      %v1383 = vpop.f32.mrf.mxu0
      %v1384 = vadd.f32 0.0, %v1383
      %1385 = vdwg.mxu0
      %v1386 = vmul.f32 %v894, %v1384
      %v1387 = vadd.f32 %v1318, %v1386
      %v1388 = vmul.f32 %v1387, %v1387
      %v1390 = vsel %vm299, %v1388, 0
      %1392 = vmatpush.msra.mxu0 0.0
      %1393 = vmatpush.msra.mxu0 0.0
      %1394 = vmatpush.msra.mxu0 0.0
      %1395 = vmatpush.msra.mxu0 0.0
      %1396 = vmatpush.msra.mxu0 0.0
      %1397 = vmatpush.msra.mxu0 0.0
      %1398 = vmatpush.msra.mxu0 0.0
      %1399 = vmatpush.msra.mxu0 0.0
      %1400 = vmatpush.msra.mxu0 0.0
      %1401 = vmatpush.msra.mxu0 0.0
      %1402 = vmatpush.msra.mxu0 0.0
      %1403 = vmatpush.msra.mxu0 0.0
      %1404 = vmatpush.msra.mxu0 %v205
      %1405 = vmatpush.msra.mxu0 %v204
      %1406 = vmatpush.msra.mxu0 %v203
      %1407 = vmatpush.msra.mxu0 %v202
      %1408 = vmatmul.f32.gmra.mxu0 %v1390
      %v1409 = vpop.f32.mrf.mxu0
      %v1410 = vadd.f32 0.0, %v1409
      %1411 = vdwg.mxu0
      %v1412 = vrsqrt.pop %v1410
      %v1413 = vmul.f32 %v1412, %v1410
      %v1414 = vmul.f32 %v1413, %v1412
      %v1415 = vmul.f32 0.5, %v1414
      %v1416 = vsub.f32 1.5, %v1415
      %v1417 = vmul.f32 %v1412, %v1416
      %v1418 = vmul.f32 %v1410, %v1417
      %vm1419 = vcmp.eq.f32.partialorder %v1410, inf
      %v1420 = vsel %vm1419, %v1410, %v1418
      %vm1421 = vcmp.eq.f32.partialorder %v1410, 0.0
      %v1422 = vand.u32 %v1410, 2147483648
      %v1423 = vsel %vm1421, %v1422, %v1420
      %v1424 = vmax.f32 %v1423, 1e-12
      %v1425 = vrcp.pop %v1424
      %v1426 = vmul.f32 %v1424, %v1425
      %v1427 = vsub.f32 1.0, %v1426
      %v1428 = vmul.f32 %v1425, %v1427
      %v1429 = vadd.f32 %v1425, %v1428
      %vm1430 = vweird.f32 %v1424
      %vm1431 = vweird.f32 %v1425
      %vm1432 = vmor %vm1430, %vm1431
      %v1433 = vsel %vm1432, %v1425, %v1429
      %v1434 = vand.u32 2147483647, %v1424
      %vm1435 = vcmp.eq.f32.partialorder %v1434, 8.507059e+37
      %v1436 = vand.u32 %v1424, 2147483648
      %v1437 = vor.u32 1.1754944e-38, %v1436
      %v1438 = vsel %vm1435, %v1437, %v1433
      %v1439 = vmul.f32 1.0, %v1438
      %v1441 = vsel %vm351, %v1439, 0
      %1443 = vmatpush.msra.mxu0 0.0
      %1444 = vmatpush.msra.mxu0 0.0
      %1445 = vmatpush.msra.mxu0 0.0
      %1446 = vmatpush.msra.mxu0 0.0
      %1447 = vmatpush.msra.mxu0 0.0
      %1448 = vmatpush.msra.mxu0 0.0
      %1449 = vmatpush.msra.mxu0 0.0
      %1450 = vmatpush.msra.mxu0 0.0
      %1451 = vmatpush.msra.mxu0 0.0
      %1452 = vmatpush.msra.mxu0 0.0
      %1453 = vmatpush.msra.mxu0 0.0
      %1454 = vmatpush.msra.mxu0 0.0
      %1455 = vmatpush.msra.mxu0 0.0
      %1456 = vmatpush.msra.mxu0 0.0
      %1457 = vmatpush.msra.mxu0 0.0
      %1458 = vmatpush.msra.mxu0 %v357
      %1459 = vmatmul.f32.gmra.mxu0 %v1441
      %v1460 = vpop.f32.mrf.mxu0
      %v1461 = vadd.f32 0.0, %v1460
      %1462 = vdwg.mxu0
      %v1463 = vmul.f32 %v1387, %v1461
      %v1464 = vmul.f32 %v885, %v1463
      %v1466 = vsel %vm299, %v1464, 0
      %1468 = vmatpush.msra.mxu0 0.0
      %1469 = vmatpush.msra.mxu0 0.0
      %1470 = vmatpush.msra.mxu0 0.0
      %1471 = vmatpush.msra.mxu0 0.0
      %1472 = vmatpush.msra.mxu0 0.0
      %1473 = vmatpush.msra.mxu0 0.0
      %1474 = vmatpush.msra.mxu0 0.0
      %1475 = vmatpush.msra.mxu0 0.0
      %1476 = vmatpush.msra.mxu0 0.0
      %1477 = vmatpush.msra.mxu0 0.0
      %1478 = vmatpush.msra.mxu0 0.0
      %1479 = vmatpush.msra.mxu0 0.0
      %1480 = vmatpush.msra.mxu0 %v205
      %1481 = vmatpush.msra.mxu0 %v204
      %1482 = vmatpush.msra.mxu0 %v203
      %1483 = vmatpush.msra.mxu0 %v202
      %1484 = vmatmul.f32.gmra.mxu0 %v1466
      %v1485 = vpop.f32.mrf.mxu0
      %v1486 = vadd.f32 0.0, %v1485
      %1487 = vdwg.mxu0
      %v1488 = vmul.f32 %v1486, 1.442695
      %v1489 = vpow.pop %v1488
      %v1490 = vsel %vm351, %v1489, 0.0
      %1491 = vadd.xlane.f32.xlu0 %v1490
      %v1492 = vpop.xlane.xlu0 %1491
      %v1493 = vrcp.pop %v1492
      %v1494 = vmul.f32 %v1492, %v1493
      %v1495 = vsub.f32 1.0, %v1494
      %v1496 = vmul.f32 %v1493, %v1495
      %v1497 = vadd.f32 %v1493, %v1496
      %vm1498 = vweird.f32 %v1492
      %vm1499 = vweird.f32 %v1493
      %vm1500 = vmor %vm1498, %vm1499
      %v1501 = vsel %vm1500, %v1493, %v1497
      %v1502 = vand.u32 2147483647, %v1492
      %vm1503 = vcmp.eq.f32.partialorder %v1502, 8.507059e+37
      %v1504 = vand.u32 %v1492, 2147483648
      %v1505 = vor.u32 1.1754944e-38, %v1504
      %v1506 = vsel %vm1503, %v1505, %v1501
      %v1507 = vmul.f32 %v1489, %v1506
      %v1509 = vsel %vm351, %v1507, 0
      %1511 = vmatpush.msra.mxu0 0.0
      %1512 = vmatpush.msra.mxu0 0.0
      %1513 = vmatpush.msra.mxu0 0.0
      %1514 = vmatpush.msra.mxu0 0.0
      %1515 = vmatpush.msra.mxu0 0.0
      %1516 = vmatpush.msra.mxu0 0.0
      %1517 = vmatpush.msra.mxu0 0.0
      %1518 = vmatpush.msra.mxu0 0.0
      %1519 = vmatpush.msra.mxu0 0.0
      %1520 = vmatpush.msra.mxu0 0.0
      %1521 = vmatpush.msra.mxu0 0.0
      %1522 = vmatpush.msra.mxu0 0.0
      %1523 = vmatpush.msra.mxu0 0.0
      %1524 = vmatpush.msra.mxu0 0.0
      %1525 = vmatpush.msra.mxu0 0.0
      %1526 = vmatpush.msra.mxu0 %v357
      %1527 = vmatmul.f32.gmra.mxu0 %v1509
      %v1528 = vpop.f32.mrf.mxu0
      %v1529 = vadd.f32 0.0, %v1528
      %1530 = vdwg.mxu0
      %v1531 = vmul.f32 %v885, %v1529
      %v1532 = vadd.f32 %v379, %v1531
      %v1533 = vmul.f32 %v886, %v1463
      %v1535 = vsel %vm299, %v1533, 0
      %1537 = vmatpush.msra.mxu0 0.0
      %1538 = vmatpush.msra.mxu0 0.0
      %1539 = vmatpush.msra.mxu0 0.0
      %1540 = vmatpush.msra.mxu0 0.0
      %1541 = vmatpush.msra.mxu0 0.0
      %1542 = vmatpush.msra.mxu0 0.0
      %1543 = vmatpush.msra.mxu0 0.0
      %1544 = vmatpush.msra.mxu0 0.0
      %1545 = vmatpush.msra.mxu0 0.0
      %1546 = vmatpush.msra.mxu0 0.0
      %1547 = vmatpush.msra.mxu0 0.0
      %1548 = vmatpush.msra.mxu0 0.0
      %1549 = vmatpush.msra.mxu0 %v205
      %1550 = vmatpush.msra.mxu0 %v204
      %1551 = vmatpush.msra.mxu0 %v203
      %1552 = vmatpush.msra.mxu0 %v202
      %1553 = vmatmul.f32.gmra.mxu0 %v1535
      %v1554 = vpop.f32.mrf.mxu0
      %v1555 = vadd.f32 0.0, %v1554
      %1556 = vdwg.mxu0
      %v1557 = vmul.f32 %v1555, 1.442695
      %v1558 = vpow.pop %v1557
      %v1559 = vsel %vm351, %v1558, 0.0
      %1560 = vadd.xlane.f32.xlu0 %v1559
      %v1561 = vpop.xlane.xlu0 %1560
      %v1562 = vrcp.pop %v1561
      %v1563 = vmul.f32 %v1561, %v1562
      %v1564 = vsub.f32 1.0, %v1563
      %v1565 = vmul.f32 %v1562, %v1564
      %v1566 = vadd.f32 %v1562, %v1565
      %vm1567 = vweird.f32 %v1561
      %vm1568 = vweird.f32 %v1562
      %vm1569 = vmor %vm1567, %vm1568
      %v1570 = vsel %vm1569, %v1562, %v1566
      %v1571 = vand.u32 2147483647, %v1561
      %vm1572 = vcmp.eq.f32.partialorder %v1571, 8.507059e+37
      %v1573 = vand.u32 %v1561, 2147483648
      %v1574 = vor.u32 1.1754944e-38, %v1573
      %v1575 = vsel %vm1572, %v1574, %v1570
      %v1576 = vmul.f32 %v1558, %v1575
      %v1578 = vsel %vm351, %v1576, 0
      %1580 = vmatpush.msra.mxu0 0.0
      %1581 = vmatpush.msra.mxu0 0.0
      %1582 = vmatpush.msra.mxu0 0.0
      %1583 = vmatpush.msra.mxu0 0.0
      %1584 = vmatpush.msra.mxu0 0.0
      %1585 = vmatpush.msra.mxu0 0.0
      %1586 = vmatpush.msra.mxu0 0.0
      %1587 = vmatpush.msra.mxu0 0.0
      %1588 = vmatpush.msra.mxu0 0.0
      %1589 = vmatpush.msra.mxu0 0.0
      %1590 = vmatpush.msra.mxu0 0.0
      %1591 = vmatpush.msra.mxu0 0.0
      %1592 = vmatpush.msra.mxu0 0.0
      %1593 = vmatpush.msra.mxu0 0.0
      %1594 = vmatpush.msra.mxu0 0.0
      %1595 = vmatpush.msra.mxu0 %v357
      %1596 = vmatmul.f32.gmra.mxu0 %v1578
      %v1597 = vpop.f32.mrf.mxu0
      %v1598 = vadd.f32 0.0, %v1597
      %1599 = vdwg.mxu0
      %v1600 = vmul.f32 %v886, %v1598
      %v1601 = vadd.f32 %v1532, %v1600
      %v1602 = vmul.f32 %v888, %v1463
      %v1604 = vsel %vm299, %v1602, 0
      %1606 = vmatpush.msra.mxu0 0.0
      %1607 = vmatpush.msra.mxu0 0.0
      %1608 = vmatpush.msra.mxu0 0.0
      %1609 = vmatpush.msra.mxu0 0.0
      %1610 = vmatpush.msra.mxu0 0.0
      %1611 = vmatpush.msra.mxu0 0.0
      %1612 = vmatpush.msra.mxu0 0.0
      %1613 = vmatpush.msra.mxu0 0.0
      %1614 = vmatpush.msra.mxu0 0.0
      %1615 = vmatpush.msra.mxu0 0.0
      %1616 = vmatpush.msra.mxu0 0.0
      %1617 = vmatpush.msra.mxu0 0.0
      %1618 = vmatpush.msra.mxu0 %v205
      %1619 = vmatpush.msra.mxu0 %v204
      %1620 = vmatpush.msra.mxu0 %v203
      %1621 = vmatpush.msra.mxu0 %v202
      %1622 = vmatmul.f32.gmra.mxu0 %v1604
      %v1623 = vpop.f32.mrf.mxu0
      %v1624 = vadd.f32 0.0, %v1623
      %1625 = vdwg.mxu0
      %v1626 = vmul.f32 %v1624, 1.442695
      %v1627 = vpow.pop %v1626
      %v1628 = vsel %vm351, %v1627, 0.0
      %1629 = vadd.xlane.f32.xlu0 %v1628
      %v1630 = vpop.xlane.xlu0 %1629
      %v1631 = vrcp.pop %v1630
      %v1632 = vmul.f32 %v1630, %v1631
      %v1633 = vsub.f32 1.0, %v1632
      %v1634 = vmul.f32 %v1631, %v1633
      %v1635 = vadd.f32 %v1631, %v1634
      %vm1636 = vweird.f32 %v1630
      %vm1637 = vweird.f32 %v1631
      %vm1638 = vmor %vm1636, %vm1637
      %v1639 = vsel %vm1638, %v1631, %v1635
      %v1640 = vand.u32 2147483647, %v1630
      %vm1641 = vcmp.eq.f32.partialorder %v1640, 8.507059e+37
      %v1642 = vand.u32 %v1630, 2147483648
      %v1643 = vor.u32 1.1754944e-38, %v1642
      %v1644 = vsel %vm1641, %v1643, %v1639
      %v1645 = vmul.f32 %v1627, %v1644
      %v1647 = vsel %vm351, %v1645, 0
      %1649 = vmatpush.msra.mxu0 0.0
      %1650 = vmatpush.msra.mxu0 0.0
      %1651 = vmatpush.msra.mxu0 0.0
      %1652 = vmatpush.msra.mxu0 0.0
      %1653 = vmatpush.msra.mxu0 0.0
      %1654 = vmatpush.msra.mxu0 0.0
      %1655 = vmatpush.msra.mxu0 0.0
      %1656 = vmatpush.msra.mxu0 0.0
      %1657 = vmatpush.msra.mxu0 0.0
      %1658 = vmatpush.msra.mxu0 0.0
      %1659 = vmatpush.msra.mxu0 0.0
      %1660 = vmatpush.msra.mxu0 0.0
      %1661 = vmatpush.msra.mxu0 0.0
      %1662 = vmatpush.msra.mxu0 0.0
      %1663 = vmatpush.msra.mxu0 0.0
      %1664 = vmatpush.msra.mxu0 %v357
      %1665 = vmatmul.f32.gmra.mxu0 %v1647
      %v1666 = vpop.f32.mrf.mxu0
      %v1667 = vadd.f32 0.0, %v1666
      %1668 = vdwg.mxu0
      %v1669 = vmul.f32 %v888, %v1667
      %v1670 = vadd.f32 %v1601, %v1669
      %v1671 = vmul.f32 %v890, %v1463
      %v1673 = vsel %vm299, %v1671, 0
      %1675 = vmatpush.msra.mxu0 0.0
      %1676 = vmatpush.msra.mxu0 0.0
      %1677 = vmatpush.msra.mxu0 0.0
      %1678 = vmatpush.msra.mxu0 0.0
      %1679 = vmatpush.msra.mxu0 0.0
      %1680 = vmatpush.msra.mxu0 0.0
      %1681 = vmatpush.msra.mxu0 0.0
      %1682 = vmatpush.msra.mxu0 0.0
      %1683 = vmatpush.msra.mxu0 0.0
      %1684 = vmatpush.msra.mxu0 0.0
      %1685 = vmatpush.msra.mxu0 0.0
      %1686 = vmatpush.msra.mxu0 0.0
      %1687 = vmatpush.msra.mxu0 %v205
      %1688 = vmatpush.msra.mxu0 %v204
      %1689 = vmatpush.msra.mxu0 %v203
      %1690 = vmatpush.msra.mxu0 %v202
      %1691 = vmatmul.f32.gmra.mxu0 %v1673
      %v1692 = vpop.f32.mrf.mxu0
      %v1693 = vadd.f32 0.0, %v1692
      %1694 = vdwg.mxu0
      %v1695 = vmul.f32 %v1693, 1.442695
      %v1696 = vpow.pop %v1695
      %v1697 = vsel %vm351, %v1696, 0.0
      %1698 = vadd.xlane.f32.xlu0 %v1697
      %v1699 = vpop.xlane.xlu0 %1698
      %v1700 = vrcp.pop %v1699
      %v1701 = vmul.f32 %v1699, %v1700
      %v1702 = vsub.f32 1.0, %v1701
      %v1703 = vmul.f32 %v1700, %v1702
      %v1704 = vadd.f32 %v1700, %v1703
      %vm1705 = vweird.f32 %v1699
      %vm1706 = vweird.f32 %v1700
      %vm1707 = vmor %vm1705, %vm1706
      %v1708 = vsel %vm1707, %v1700, %v1704
      %v1709 = vand.u32 2147483647, %v1699
      %vm1710 = vcmp.eq.f32.partialorder %v1709, 8.507059e+37
      %v1711 = vand.u32 %v1699, 2147483648
      %v1712 = vor.u32 1.1754944e-38, %v1711
      %v1713 = vsel %vm1710, %v1712, %v1708
      %v1714 = vmul.f32 %v1696, %v1713
      %v1716 = vsel %vm351, %v1714, 0
      %1718 = vmatpush.msra.mxu0 0.0
      %1719 = vmatpush.msra.mxu0 0.0
      %1720 = vmatpush.msra.mxu0 0.0
      %1721 = vmatpush.msra.mxu0 0.0
      %1722 = vmatpush.msra.mxu0 0.0
      %1723 = vmatpush.msra.mxu0 0.0
      %1724 = vmatpush.msra.mxu0 0.0
      %1725 = vmatpush.msra.mxu0 0.0
      %1726 = vmatpush.msra.mxu0 0.0
      %1727 = vmatpush.msra.mxu0 0.0
      %1728 = vmatpush.msra.mxu0 0.0
      %1729 = vmatpush.msra.mxu0 0.0
      %1730 = vmatpush.msra.mxu0 0.0
      %1731 = vmatpush.msra.mxu0 0.0
      %1732 = vmatpush.msra.mxu0 0.0
      %1733 = vmatpush.msra.mxu0 %v357
      %1734 = vmatmul.f32.gmra.mxu0 %v1716
      %v1735 = vpop.f32.mrf.mxu0
      %v1736 = vadd.f32 0.0, %v1735
      %1737 = vdwg.mxu0
      %v1738 = vmul.f32 %v890, %v1736
      %v1739 = vadd.f32 %v1670, %v1738
      %v1740 = vmul.f32 %v892, %v1463
      %v1742 = vsel %vm299, %v1740, 0
      %1744 = vmatpush.msra.mxu0 0.0
      %1745 = vmatpush.msra.mxu0 0.0
      %1746 = vmatpush.msra.mxu0 0.0
      %1747 = vmatpush.msra.mxu0 0.0
      %1748 = vmatpush.msra.mxu0 0.0
      %1749 = vmatpush.msra.mxu0 0.0
      %1750 = vmatpush.msra.mxu0 0.0
      %1751 = vmatpush.msra.mxu0 0.0
      %1752 = vmatpush.msra.mxu0 0.0
      %1753 = vmatpush.msra.mxu0 0.0
      %1754 = vmatpush.msra.mxu0 0.0
      %1755 = vmatpush.msra.mxu0 0.0
      %1756 = vmatpush.msra.mxu0 %v205
      %1757 = vmatpush.msra.mxu0 %v204
      %1758 = vmatpush.msra.mxu0 %v203
      %1759 = vmatpush.msra.mxu0 %v202
      %1760 = vmatmul.f32.gmra.mxu0 %v1742
      %v1761 = vpop.f32.mrf.mxu0
      %v1762 = vadd.f32 0.0, %v1761
      %1763 = vdwg.mxu0
      %v1764 = vmul.f32 %v1762, 1.442695
      %v1765 = vpow.pop %v1764
      %v1766 = vsel %vm351, %v1765, 0.0
      %1767 = vadd.xlane.f32.xlu0 %v1766
      %v1768 = vpop.xlane.xlu0 %1767
      %v1769 = vrcp.pop %v1768
      %v1770 = vmul.f32 %v1768, %v1769
      %v1771 = vsub.f32 1.0, %v1770
      %v1772 = vmul.f32 %v1769, %v1771
      %v1773 = vadd.f32 %v1769, %v1772
      %vm1774 = vweird.f32 %v1768
      %vm1775 = vweird.f32 %v1769
      %vm1776 = vmor %vm1774, %vm1775
      %v1777 = vsel %vm1776, %v1769, %v1773
      %v1778 = vand.u32 2147483647, %v1768
      %vm1779 = vcmp.eq.f32.partialorder %v1778, 8.507059e+37
      %v1780 = vand.u32 %v1768, 2147483648
      %v1781 = vor.u32 1.1754944e-38, %v1780
      %v1782 = vsel %vm1779, %v1781, %v1777
      %v1783 = vmul.f32 %v1765, %v1782
      %v1785 = vsel %vm351, %v1783, 0
      %1787 = vmatpush.msra.mxu0 0.0
      %1788 = vmatpush.msra.mxu0 0.0
      %1789 = vmatpush.msra.mxu0 0.0
      %1790 = vmatpush.msra.mxu0 0.0
      %1791 = vmatpush.msra.mxu0 0.0
      %1792 = vmatpush.msra.mxu0 0.0
      %1793 = vmatpush.msra.mxu0 0.0
      %1794 = vmatpush.msra.mxu0 0.0
      %1795 = vmatpush.msra.mxu0 0.0
      %1796 = vmatpush.msra.mxu0 0.0
      %1797 = vmatpush.msra.mxu0 0.0
      %1798 = vmatpush.msra.mxu0 0.0
      %1799 = vmatpush.msra.mxu0 0.0
      %1800 = vmatpush.msra.mxu0 0.0
      %1801 = vmatpush.msra.mxu0 0.0
      %1802 = vmatpush.msra.mxu0 %v357
      %1803 = vmatmul.f32.gmra.mxu0 %v1785
      %v1804 = vpop.f32.mrf.mxu0
      %v1805 = vadd.f32 0.0, %v1804
      %1806 = vdwg.mxu0
      %v1807 = vmul.f32 %v892, %v1805
      %v1808 = vadd.f32 %v1739, %v1807
      %v1809 = vmul.f32 %v894, %v1463
      %v1811 = vsel %vm299, %v1809, 0
      %1813 = vmatpush.msra.mxu0 0.0
      %1814 = vmatpush.msra.mxu0 0.0
      %1815 = vmatpush.msra.mxu0 0.0
      %1816 = vmatpush.msra.mxu0 0.0
      %1817 = vmatpush.msra.mxu0 0.0
      %1818 = vmatpush.msra.mxu0 0.0
      %1819 = vmatpush.msra.mxu0 0.0
      %1820 = vmatpush.msra.mxu0 0.0
      %1821 = vmatpush.msra.mxu0 0.0
      %1822 = vmatpush.msra.mxu0 0.0
      %1823 = vmatpush.msra.mxu0 0.0
      %1824 = vmatpush.msra.mxu0 0.0
      %1825 = vmatpush.msra.mxu0 %v205
      %1826 = vmatpush.msra.mxu0 %v204
      %1827 = vmatpush.msra.mxu0 %v203
      %1828 = vmatpush.msra.mxu0 %v202
      %1829 = vmatmul.f32.gmra.mxu0 %v1811
      %v1830 = vpop.f32.mrf.mxu0
      %v1831 = vadd.f32 0.0, %v1830
      %1832 = vdwg.mxu0
      %v1833 = vmul.f32 %v1831, 1.442695
      %v1834 = vpow.pop %v1833
      %v1835 = vsel %vm351, %v1834, 0.0
      %1836 = vadd.xlane.f32.xlu0 %v1835
      %v1837 = vpop.xlane.xlu0 %1836
      %v1838 = vrcp.pop %v1837
      %v1839 = vmul.f32 %v1837, %v1838
      %v1840 = vsub.f32 1.0, %v1839
      %v1841 = vmul.f32 %v1838, %v1840
      %v1842 = vadd.f32 %v1838, %v1841
      %vm1843 = vweird.f32 %v1837
      %vm1844 = vweird.f32 %v1838
      %vm1845 = vmor %vm1843, %vm1844
      %v1846 = vsel %vm1845, %v1838, %v1842
      %v1847 = vand.u32 2147483647, %v1837
      %vm1848 = vcmp.eq.f32.partialorder %v1847, 8.507059e+37
      %v1849 = vand.u32 %v1837, 2147483648
      %v1850 = vor.u32 1.1754944e-38, %v1849
      %v1851 = vsel %vm1848, %v1850, %v1846
      %v1852 = vmul.f32 %v1834, %v1851
      %v1854 = vsel %vm351, %v1852, 0
      %1856 = vmatpush.msra.mxu0 0.0
      %1857 = vmatpush.msra.mxu0 0.0
      %1858 = vmatpush.msra.mxu0 0.0
      %1859 = vmatpush.msra.mxu0 0.0
      %1860 = vmatpush.msra.mxu0 0.0
      %1861 = vmatpush.msra.mxu0 0.0
      %1862 = vmatpush.msra.mxu0 0.0
      %1863 = vmatpush.msra.mxu0 0.0
      %1864 = vmatpush.msra.mxu0 0.0
      %1865 = vmatpush.msra.mxu0 0.0
      %1866 = vmatpush.msra.mxu0 0.0
      %1867 = vmatpush.msra.mxu0 0.0
      %1868 = vmatpush.msra.mxu0 0.0
      %1869 = vmatpush.msra.mxu0 0.0
      %1870 = vmatpush.msra.mxu0 0.0
      %1871 = vmatpush.msra.mxu0 %v357
      %1872 = vmatmul.f32.gmra.mxu0 %v1854
      %v1873 = vpop.f32.mrf.mxu0
      %v1874 = vadd.f32 0.0, %v1873
      %1875 = vdwg.mxu0
      %v1876 = vmul.f32 %v894, %v1874
      %v1877 = vadd.f32 %v1808, %v1876
      %v1878 = vmax.f32 %v1877, 0.0
      %1879 = vst.msk [vmem:[%s201] sm:$0xff] %vm299, %v1878
      %p1880 = scmp.lt.s32.totalorder %s24, 1
      %s1881 = scalar_select %p1880, %s24, 1
      %s1882 = smul.addr %s1881, 8
      %s1883 = scalar_lea.vmem %s5, %s1882
      // Predicated region
      $region79: #{_lambda_.5} parent=35 // pred_check
        %p1884 = pneg %p131
      $region80: #{_lambda_.5} parent=35 // pred_check_branch
        %1886 = sbr.rel (%p1884) target = $region82
      $region81: #{_lambda_.5} parent=35 // pred_region
        _
      $region82: #{_lambda_.5} parent=35 // pred_fallthru
        _
    $region36: #{_lambda_.5} parent=5 // pred_fallthru
      _
    %p1887 = scmp.le.s32.totalorder 2, %s19
    // Predicated region
    $region83: #{_lambda_.5} parent=5 // pred_check
      %p1888 = pneg %p1887
    $region84: #{_lambda_.5} parent=5 // pred_check_branch
      %1890 = sbr.rel (%p1888) target = $region86
    $region85: #{_lambda_.5} parent=5 // pred_region
      %s1891 = ssub.s32 %s19, 2
      // Predicated region
      $region87: #{_lambda_.5} parent=85 // pred_check
        %p1892 = pneg %p137
      $region88: #{_lambda_.5} parent=85 // pred_check_branch
        %1894 = sbr.rel (%p1892) target = $region90
      $region89: #{_lambda_.5} parent=85 // pred_region
        %p1895 = scmp.lt.s32.totalorder %s25, 1
        %s1896 = scalar_select %p1895, %s25, 1
        %s1897 = smul.addr %s1896, 8
        %s1898 = scalar_lea.vmem %s5, %s1897
      $region90: #{_lambda_.5} parent=85 // pred_fallthru
        _
    $region86: #{_lambda_.5} parent=5 // pred_fallthru
      _
  $region6: #{_lambda_.5} parent=0 // loop_footer
    %s23 = sadd.s32 1, %s19
  $region7: #{_lambda_.5} parent=0 // loop_footer_branch
    %18 = sbr.rel target = $region3
  $region8: #{_lambda_.5} parent=0 // loop_exit
    _

// kernel: _lambda_.7
$region0: #{_lambda_.7}
  #allocation0 [shape = 'u32[]', space=smem, size = 0x4, offset = 0x4, fixed_abs, tag = 'smem constant byte address 0x4 - core index']
  #allocation1 [shape = 'u32[72,128]{1,0:T(1,128)}', space=vmem, size = 0x9000, scoped, tag = 'internal scratch']
  %s0 = inlined_call_operand.vmem [shape: f32[16,32], index: 0, kind: input, shape index: {}]
  %s1 = inlined_call_operand.vmem [shape: f32[16,32], index: 1, kind: input, shape index: {}]
  %s2 = inlined_call_operand.vmem [shape: f32[32,3], index: 2, kind: input, shape index: {}]
  %s3 = inlined_call_operand.vmem [shape: f32[1,3], index: 3, kind: input, shape index: {}]
  %s4 = inlined_call_operand.vmem [shape: f32[16,3], index: 4, kind: output, shape index: {0}]
  %s5 = inlined_call_operand.vmem [shape: f32[16,3], index: 5, kind: output, shape index: {1}]
  %6 = xla_tuple %s4, %s5
  %s7 = sld [smem:[#allocation0]]
  $region57: #{_lambda_.7} parent=0
    _
  %s9 = ssub.s32 1, %s7
  %s10 = scalar_select 0, %s9, %s7
  loop: start=0, step=1, limit=4
  $region2: #{_lambda_.7} parent=0 // loop_pre_header
    _
  $region3: #{_lambda_.7} parent=0 // loop_header
    %s12 = sphi 0, %s16
    %p13 = scmp.ge.s32.totalorder %s12, 4
    %s22 = sphi 0, %s24
    %s25 = sphi 0, %s22
    %s26 = sphi 0, %s25
    %s42 = sphi 0, %s26
    %s48 = sphi 0, %s50
    %s51 = sphi 0, %s48
    %s52 = sphi 0, %s51
    %s68 = sphi 0, %s52
    %s72 = sphi 0, %s72
    %s74 = sphi 0, %s72
    %s75 = sphi 0, %s74
    %s89 = sphi 0, %s75
    %s93 = sphi 0, %s93
    %s95 = sphi 0, %s93
    %s96 = sphi 0, %s95
    %s110 = sphi 0, %s96
    %s116 = sphi 0, %s118
    %s119 = sphi 0, %s116
    %s120 = sphi 0, %s119
    %s136 = sphi 0, %s120
    %s142 = sphi 0, %s144
    %s145 = sphi 0, %s142
    %s146 = sphi 0, %s145
    %s162 = sphi 0, %s146
  $region4: #{_lambda_.7} parent=0 // loop_header_branch
    %15 = sbr.rel (%p13) target = $region8
  $region5: #{_lambda_.7} parent=0 // loop_body
    %s17 = ssub.s32 %s12, 1
    %s18 = ssub.s32 %s12, 2
    %s19 = sadd.s32 %s12, 1
    %s20 = ssub.s32 %s12, %s19
    %p21 = scmp.eq.s32.totalorder %s20, 0
    %s23 = sadd.s32 %s22, 1
    %s24 = scalar_select %p21, %s22, %s23
    %p27 = pneg %p21
    %p28 = scmp.eq.s32.totalorder %s12, 1
    %p29 = por %p27, %p28
    %p30 = scmp.ne.s32.totalorder %s22, %s25
    %p31 = scmp.eq.s32.totalorder %s12, 0
    %p32 = por %p30, %p31
    %p33 = scmp.ne.s32.totalorder %s22, %s25
    %p34 = scmp.eq.s32.totalorder %s17, 1
    %p35 = por %p33, %p34
    %p36 = scmp.ne.s32.totalorder %s25, %s26
    %p37 = scmp.eq.s32.totalorder %s17, 0
    %p38 = por %p36, %p37
    %p39 = scmp.ne.s32.totalorder %s25, %s26
    %p40 = scmp.eq.s32.totalorder %s18, 1
    %p41 = por %p39, %p40
    %p43 = scmp.ne.s32.totalorder %s26, %s42
    %p44 = scmp.eq.s32.totalorder %s18, 0
    %p45 = por %p43, %p44
    %s46 = ssub.s32 %s12, %s19
    %p47 = scmp.eq.s32.totalorder %s46, 0
    %s49 = sadd.s32 %s48, 1
    %s50 = scalar_select %p47, %s48, %s49
    %p53 = pneg %p47
    %p54 = scmp.eq.s32.totalorder %s12, 1
    %p55 = por %p53, %p54
    %p56 = scmp.ne.s32.totalorder %s48, %s51
    %p57 = scmp.eq.s32.totalorder %s12, 0
    %p58 = por %p56, %p57
    %p59 = scmp.ne.s32.totalorder %s48, %s51
    %p60 = scmp.eq.s32.totalorder %s17, 1
    %p61 = por %p59, %p60
    %p62 = scmp.ne.s32.totalorder %s51, %s52
    %p63 = scmp.eq.s32.totalorder %s17, 0
    %p64 = por %p62, %p63
    %p65 = scmp.ne.s32.totalorder %s51, %s52
    %p66 = scmp.eq.s32.totalorder %s18, 1
    %p67 = por %p65, %p66
    %p69 = scmp.ne.s32.totalorder %s52, %s68
    %p70 = scmp.eq.s32.totalorder %s18, 0
    %p71 = por %p69, %p70
    %s73 = sadd.s32 %s72, 1
    %p76 = scmp.eq.s32.totalorder %s12, 1
    %p77 = scmp.ne.s32.totalorder %s72, %s74
    %p78 = scmp.eq.s32.totalorder %s12, 0
    %p79 = por %p77, %p78
    %p80 = scmp.ne.s32.totalorder %s72, %s74
    %p81 = scmp.eq.s32.totalorder %s17, 1
    %p82 = por %p80, %p81
    %p83 = scmp.ne.s32.totalorder %s74, %s75
    %p84 = scmp.eq.s32.totalorder %s17, 0
    %p85 = por %p83, %p84
    %p86 = scmp.ne.s32.totalorder %s74, %s75
    %p87 = scmp.eq.s32.totalorder %s18, 1
    %p88 = por %p86, %p87
    %p90 = scmp.ne.s32.totalorder %s75, %s89
    %p91 = scmp.eq.s32.totalorder %s18, 0
    %p92 = por %p90, %p91
    %s94 = sadd.s32 %s93, 1
    %p97 = scmp.eq.s32.totalorder %s12, 1
    %p98 = scmp.ne.s32.totalorder %s93, %s95
    %p99 = scmp.eq.s32.totalorder %s12, 0
    %p100 = por %p98, %p99
    %p101 = scmp.ne.s32.totalorder %s93, %s95
    %p102 = scmp.eq.s32.totalorder %s17, 1
    %p103 = por %p101, %p102
    %p104 = scmp.ne.s32.totalorder %s95, %s96
    %p105 = scmp.eq.s32.totalorder %s17, 0
    %p106 = por %p104, %p105
    %p107 = scmp.ne.s32.totalorder %s95, %s96
    %p108 = scmp.eq.s32.totalorder %s18, 1
    %p109 = por %p107, %p108
    %p111 = scmp.ne.s32.totalorder %s96, %s110
    %p112 = scmp.eq.s32.totalorder %s18, 0
    %p113 = por %p111, %p112
    %s114 = ssub.s32 %s12, %s19
    %p115 = scmp.eq.s32.totalorder %s114, 0
    %s117 = sadd.s32 %s116, 1
    %s118 = scalar_select %p115, %s116, %s117
    %p121 = pneg %p115
    %p122 = scmp.eq.s32.totalorder %s12, 1
    %p123 = por %p121, %p122
    %p124 = scmp.ne.s32.totalorder %s116, %s119
    %p125 = scmp.eq.s32.totalorder %s12, 0
    %p126 = por %p124, %p125
    %p127 = scmp.ne.s32.totalorder %s116, %s119
    %p128 = scmp.eq.s32.totalorder %s17, 1
    %p129 = por %p127, %p128
    %p130 = scmp.ne.s32.totalorder %s119, %s120
    %p131 = scmp.eq.s32.totalorder %s17, 0
    %p132 = por %p130, %p131
    %p133 = scmp.ne.s32.totalorder %s119, %s120
    %p134 = scmp.eq.s32.totalorder %s18, 1
    %p135 = por %p133, %p134
    %p137 = scmp.ne.s32.totalorder %s120, %s136
    %p138 = scmp.eq.s32.totalorder %s18, 0
    %p139 = por %p137, %p138
    %s140 = ssub.s32 %s12, %s19
    %p141 = scmp.eq.s32.totalorder %s140, 0
    %s143 = sadd.s32 %s142, 1
    %s144 = scalar_select %p141, %s142, %s143
    %p147 = pneg %p141
    %p148 = scmp.eq.s32.totalorder %s12, 1
    %p149 = por %p147, %p148
    %p150 = scmp.ne.s32.totalorder %s142, %s145
    %p151 = scmp.eq.s32.totalorder %s12, 0
    %p152 = por %p150, %p151
    %p153 = scmp.ne.s32.totalorder %s142, %s145
    %p154 = scmp.eq.s32.totalorder %s17, 1
    %p155 = por %p153, %p154
    %p156 = scmp.ne.s32.totalorder %s145, %s146
    %p157 = scmp.eq.s32.totalorder %s17, 0
    %p158 = por %p156, %p157
    %p159 = scmp.ne.s32.totalorder %s145, %s146
    %p160 = scmp.eq.s32.totalorder %s18, 1
    %p161 = por %p159, %p160
    %p163 = scmp.ne.s32.totalorder %s146, %s162
    %p164 = scmp.eq.s32.totalorder %s18, 0
    %p165 = por %p163, %p164
    %p166 = scmp.le.s32.totalorder 1, %s12
    %p167 = scmp.lt.s32.totalorder %s12, 3
    %p168 = pnand %p166, %p167
    %p169 = pneg %p168
    // Predicated region
    $region9: #{_lambda_.7} parent=5 // pred_check
      _
    $region10: #{_lambda_.7} parent=5 // pred_check_branch
      %171 = sbr.rel (%p168) target = $region12
    $region11: #{_lambda_.7} parent=5 // pred_region
      %s172 = ssub.s32 %s12, 1
      // Predicated region
      $region13: #{_lambda_.7} parent=11 // pred_check
        %p173 = pneg %p85
      $region14: #{_lambda_.7} parent=11 // pred_check_branch
        %175 = sbr.rel (%p173) target = $region16
      $region15: #{_lambda_.7} parent=11 // pred_region
        _
      $region16: #{_lambda_.7} parent=11 // pred_fallthru
        _
      // Predicated region
      $region17: #{_lambda_.7} parent=11 // pred_check
        %p176 = pneg %p106
      $region18: #{_lambda_.7} parent=11 // pred_check_branch
        %178 = sbr.rel (%p176) target = $region20
      $region19: #{_lambda_.7} parent=11 // pred_region
        _
      $region20: #{_lambda_.7} parent=11 // pred_fallthru
        _
    $region12: #{_lambda_.7} parent=5 // pred_fallthru
      _
    %p179 = scmp.lt.s32.totalorder %s12, 2
    // Predicated region
    $region21: #{_lambda_.7} parent=5 // pred_check
      %p180 = pneg %p179
    $region22: #{_lambda_.7} parent=5 // pred_check_branch
      %182 = sbr.rel (%p180) target = $region24
    $region23: #{_lambda_.7} parent=5 // pred_region
      // Predicated region
      $region25: #{_lambda_.7} parent=23 // pred_check
        %p183 = pneg %p32
      $region26: #{_lambda_.7} parent=23 // pred_check_branch
        %185 = sbr.rel (%p183) target = $region28
      $region27: #{_lambda_.7} parent=23 // pred_region
        %p186 = scmp.lt.s32.totalorder %s12, 1
        %s187 = scalar_select %p186, %s12, 1
        %s188 = smul.addr %s187, 8
        %s189 = scalar_lea.vmem %s0, %s188
      $region28: #{_lambda_.7} parent=23 // pred_fallthru
        _
      // Predicated region
      $region29: #{_lambda_.7} parent=23 // pred_check
        %p190 = pneg %p58
      $region30: #{_lambda_.7} parent=23 // pred_check_branch
        %192 = sbr.rel (%p190) target = $region32
      $region31: #{_lambda_.7} parent=23 // pred_region
        %p193 = scmp.lt.s32.totalorder %s12, 1
        %s194 = scalar_select %p193, %s12, 1
        %s195 = smul.addr %s194, 8
        %s196 = scalar_lea.vmem %s1, %s195
      $region32: #{_lambda_.7} parent=23 // pred_fallthru
        _
    $region24: #{_lambda_.7} parent=5 // pred_fallthru
      _
    %p197 = scmp.le.s32.totalorder 1, %s12
    %p198 = scmp.lt.s32.totalorder %s12, 3
    %p199 = pnand %p197, %p198
    %p200 = pneg %p199
    // Predicated region
    $region33: #{_lambda_.7} parent=5 // pred_check
      _
    $region34: #{_lambda_.7} parent=5 // pred_check_branch
      %202 = sbr.rel (%p199) target = $region36
    $region35: #{_lambda_.7} parent=5 // pred_region
      %s203 = ssub.s32 %s12, 1
      %p204 = scmp.lt.s32.totalorder %s17, 1
      %s205 = scalar_select %p204, %s17, 1
      %s206 = smul.addr %s205, 8
      %s207 = scalar_lea.vmem %s0, %s206
      %p208 = pneg %p38
      %p209 = pneg %p35
      %p210 = scmp.lt.s32.totalorder %s17, 1
      %s211 = scalar_select %p210, %s17, 1
      %s212 = smul.addr %s211, 8
      %s213 = scalar_lea.vmem %s1, %s212
      %p214 = pneg %p64
      %p215 = pneg %p61
      %p216 = pneg %p85
      %p217 = pneg %p82
      %p218 = pneg %p106
      %p219 = pneg %p103
      %p220 = pneg %p132
      %p221 = pneg %p129
      %p222 = scmp.lt.s32.totalorder %s17, 1
      %s223 = scalar_select %p222, %s17, 1
      %s224 = smul.addr %s223, 8
      %s225 = scalar_lea.vmem %s4, %s224
      %p226 = pneg %p158
      %p227 = pneg %p155
      %p228 = scmp.lt.s32.totalorder %s17, 1
      %s229 = scalar_select %p228, %s17, 1
      %s230 = smul.addr %s229, 8
      %s231 = scalar_lea.vmem %s5, %s230
      %p232 = scmp.lt.s32.totalorder %s17, 1
      %s233 = scalar_select %p232, %s17, 1
      %s234 = smul.addr %s233, 8
      %s235 = scalar_lea.vmem %s0, %s234
      %p236 = scmp.lt.s32.totalorder %s17, 1
      %s237 = scalar_select %p236, %s17, 1
      %s238 = smul.addr %s237, 8
      %s239 = scalar_lea.vmem %s1, %s238
      %p240 = scmp.lt.s32.totalorder %s17, 1
      %s241 = scalar_select %p240, %s17, 1
      %s242 = smul.addr %s241, 8
      %s243 = scalar_lea.vmem %s4, %s242
      %p244 = scmp.lt.s32.totalorder %s17, 1
      %s245 = scalar_select %p244, %s17, 1
      %s246 = smul.addr %s245, 8
      %s247 = scalar_lea.vmem %s5, %s246
      %v248 = vld [vmem:[%s235] sm:$0xff]
      %v249 = vld [vmem:[%s239] sm:$0xff]
      %v250 = vadd.f32 %v248, %v249
      %v251 = vmax.f32 %v250, 0.0
      %v252 = vld [vmem:[%s2] sm:$0xff]
      %v253 = vld [vmem:[%s2 + $0x8] sm:$0xff]
      %v254 = vld [vmem:[%s2 + $0x10] sm:$0xff]
      %v255 = vld [vmem:[%s2 + $0x18] sm:$0xff]
      %v256 = vld [vmem:[%s3] sm:$0x1]
      %v258 = vperm.slane %v256, 0
      %vm260 = vcmask 261120
      %v262 = vsel %vm260, %v251, 0
      %264 = vmatpush.msra.mxu0 0.0
      %265 = vmatpush.msra.mxu0 0.0
      %266 = vmatpush.msra.mxu0 0.0
      %267 = vmatpush.msra.mxu0 0.0
      %268 = vmatpush.msra.mxu0 0.0
      %269 = vmatpush.msra.mxu0 0.0
      %270 = vmatpush.msra.mxu0 0.0
      %271 = vmatpush.msra.mxu0 0.0
      %272 = vmatpush.msra.mxu0 0.0
      %273 = vmatpush.msra.mxu0 0.0
      %274 = vmatpush.msra.mxu0 0.0
      %275 = vmatpush.msra.mxu0 0.0
      %276 = vmatpush.msra.mxu0 %v255
      %277 = vmatpush.msra.mxu0 %v254
      %278 = vmatpush.msra.mxu0 %v253
      %279 = vmatpush.msra.mxu0 %v252
      %280 = vmatmul.f32.gmra.mxu0 %v262
      %v281 = vpop.f32.mrf.mxu0
      %v282 = vadd.f32 %v258, %v281
      %283 = vdwg.mxu0
      %vm284 = vcmask 23552
      %v285 = vsel %vm284, %v282, -inf
      %286 = vmax.xlane.f32.xlu0 %v285
      %v287 = vpop.xlane.xlu0 %286
      %v288 = vsub.f32 %v282, %v287
      %v289 = vmul.f32 %v288, 1.442695
      %v290 = vpow.pop %v289
      %v291 = vsel %vm284, %v290, 0.0
      %292 = vadd.xlane.f32.xlu0 %v291
      %v293 = vpop.xlane.xlu0 %292
      %v294 = vlog2.pop %v293
      %v295 = vmul.f32 %v294, 0.6931472
      %v296 = vadd.f32 %v295, %v287
      %v297 = vsub.f32 %v282, %v296
      %298 = vst.msk [vmem:[%s243] sm:$0xff] %vm284, %v297
      %299 = vst.msk [vmem:[%s247] sm:$0xff] %vm284, %v282
      %p300 = scmp.lt.s32.totalorder %s17, 1
      %s301 = scalar_select %p300, %s17, 1
      %s302 = smul.addr %s301, 8
      %s303 = scalar_lea.vmem %s4, %s302
      %p304 = scmp.lt.s32.totalorder %s17, 1
      %s305 = scalar_select %p304, %s17, 1
      %s306 = smul.addr %s305, 8
      %s307 = scalar_lea.vmem %s5, %s306
      // Predicated region
      $region37: #{_lambda_.7} parent=35 // pred_check
        %p308 = pneg %p129
      $region38: #{_lambda_.7} parent=35 // pred_check_branch
        %310 = sbr.rel (%p308) target = $region40
      $region39: #{_lambda_.7} parent=35 // pred_region
        _
      $region40: #{_lambda_.7} parent=35 // pred_fallthru
        _
      // Predicated region
      $region41: #{_lambda_.7} parent=35 // pred_check
        %p311 = pneg %p155
      $region42: #{_lambda_.7} parent=35 // pred_check_branch
        %313 = sbr.rel (%p311) target = $region44
      $region43: #{_lambda_.7} parent=35 // pred_region
        _
      $region44: #{_lambda_.7} parent=35 // pred_fallthru
        _
    $region36: #{_lambda_.7} parent=5 // pred_fallthru
      _
    %p314 = scmp.le.s32.totalorder 2, %s12
    // Predicated region
    $region45: #{_lambda_.7} parent=5 // pred_check
      %p315 = pneg %p314
    $region46: #{_lambda_.7} parent=5 // pred_check_branch
      %317 = sbr.rel (%p315) target = $region48
    $region47: #{_lambda_.7} parent=5 // pred_region
      %s318 = ssub.s32 %s12, 2
      // Predicated region
      $region49: #{_lambda_.7} parent=47 // pred_check
        %p319 = pneg %p135
      $region50: #{_lambda_.7} parent=47 // pred_check_branch
        %321 = sbr.rel (%p319) target = $region52
      $region51: #{_lambda_.7} parent=47 // pred_region
        %p322 = scmp.lt.s32.totalorder %s18, 1
        %s323 = scalar_select %p322, %s18, 1
        %s324 = smul.addr %s323, 8
        %s325 = scalar_lea.vmem %s4, %s324
      $region52: #{_lambda_.7} parent=47 // pred_fallthru
        _
      // Predicated region
      $region53: #{_lambda_.7} parent=47 // pred_check
        %p326 = pneg %p161
      $region54: #{_lambda_.7} parent=47 // pred_check_branch
        %328 = sbr.rel (%p326) target = $region56
      $region55: #{_lambda_.7} parent=47 // pred_region
        %p329 = scmp.lt.s32.totalorder %s18, 1
        %s330 = scalar_select %p329, %s18, 1
        %s331 = smul.addr %s330, 8
        %s332 = scalar_lea.vmem %s5, %s331
      $region56: #{_lambda_.7} parent=47 // pred_fallthru
        _
    $region48: #{_lambda_.7} parent=5 // pred_fallthru
      _
  $region6: #{_lambda_.7} parent=0 // loop_footer
    %s16 = sadd.s32 1, %s12
  $region7: #{_lambda_.7} parent=0 // loop_footer_branch
    %11 = sbr.rel target = $region3
  $region8: #{_lambda_.7} parent=0 // loop_exit
    _

</llo_original>
